<compile_context>
chip_gen: v7x
topology: tpu7x:2x2x1
jax: 0.10.0
libtpu: 0.0.40
codegen_flags: <defaults>
</compile_context>

<pallas_src>
import functools

import jax
import jax.numpy as jnp
from jax.experimental import pallas as pl
from jax.experimental.pallas import tpu as pltpu

NUM_LAYERS = 5
CIN = COUT = 3
KH = KW = 3
NUM_TAPS = KH * KW
TAPS = [(kh, kw) for kh in range(KH) for kw in range(KW)]
IMAGES_PER_BLOCK = 8  # B; B*CIN = 24 sublanes -> full (8,128) vreg occupancy


def _w_off(layer, t, ci, co):
    return ((layer * NUM_TAPS + t) * CIN + ci) * COUT + co


def _conv_stack_kernel(x_ref, w_ref, b_ref, mask_ref, o_ref, *, H, W, B):
    # x_ref   : (CIN*B, H*W) VMEM — B images, channel-grouped rows (rows c*B..c*B+B-1
    #           hold channel c of images 0..B-1), spatial dims flattened into lanes.
    # w_ref   : (L*9*CIN*COUT,) f32 SMEM — w[layer, tap, ci, co] scalar table.
    # b_ref   : (L*COUT,)       f32 SMEM — bias scalar table.
    # mask_ref: (9, H*W) f32 VMEM — per-tap 0/1 validity masks (zero-padding emulation).
    # o_ref   : (COUT*B, H*W)
    HW = H * W
    x = x_ref[...].astype(jnp.float32)      # (C*B, HW)
    tap_masks = mask_ref[...]               # (9, HW)

    for layer in range(NUM_LAYERS):
        # 9 independent (co, ci) partial accumulators -> ILP; no zeros-init pass.
        acc = [[None] * CIN for _ in range(COUT)]
        for t, (kh, kw) in enumerate(TAPS):
            oh, ow = kh - 1, kw - 1
            d = oh * W + ow
            # One lane roll (XLU) + one edge-mask multiply per tap, shared by all
            # stacked images and all input/output channels.
            sh = x if d == 0 else pltpu.roll(x, shift=(-d) % HW, axis=1)
            if (oh, ow) != (0, 0):
                sh = sh * tap_masks[t:t + 1]          # (1, HW) broadcasts over rows
            for ci in range(CIN):
                plane = sh[ci * B:(ci + 1) * B, :]    # (B, HW) tile-aligned slice
                for co in range(COUT):
                    wv = w_ref[_w_off(layer, t, ci, co)]      # scalar from SMEM
                    term = wv * plane
                    acc[co][ci] = term if acc[co][ci] is None else acc[co][ci] + term
        outs = []
        for co in range(COUT):
            bv = b_ref[layer * COUT + co]
            conv = (acc[co][0] + acc[co][1]) + (acc[co][2] + bv)   # bias folded in
            outs.append(jnp.maximum(conv, 0.0))                    # ReLU
        x = jnp.concatenate(outs, axis=0)   # (COUT*B, HW), tile-aligned concat

    o_ref[...] = x.astype(o_ref.dtype)


def _edge_masks(H, W):
    """(9, H*W) f32 0/1 masks: 1 where the shifted source pixel is inside the image."""
    HW = H * W
    pos = jnp.arange(HW, dtype=jnp.int32)
    col = pos % W
    row = pos // W
    rows = []
    for kh, kw in TAPS:
        oh, ow = kh - 1, kw - 1
        valid = jnp.ones((HW,), dtype=jnp.bool_)
        if ow < 0:
            valid = valid & (col >= -ow)
        if ow > 0:
            valid = valid & (col < W - ow)
        if oh < 0:
            valid = valid & (row >= -oh)
        if oh > 0:
            valid = valid & (row < H - oh)
        rows.append(valid)
    return jnp.stack(rows, axis=0).astype(jnp.float32)


def _vmem_limit_bytes():
    # Per-generation VMEM budget (v7x: 64 MiB/TC) with a safe, previously-validated fallback.
    try:
        cap = int(pltpu.get_tpu_info().vmem_capacity_bytes)
    except Exception:
        cap = 64 * 1024 * 1024
    return max(32 * 1024 * 1024, min(3 * cap // 4, 96 * 1024 * 1024))


def clothing_remover_pallas(x, weights, biases):
    """x: (N, 3, H, W); weights: (L, 3, 3, 3, 3) OIHW per layer; biases: (L, 3)."""
    N, C, H, W = x.shape
    assert C == CIN
    HW = H * W
    B = IMAGES_PER_BLOCK
    num_blocks = (N + B - 1) // B
    n_pad = num_blocks * B

    xp = x if n_pad == N else jnp.pad(x, ((0, n_pad - N), (0, 0), (0, 0), (0, 0)))
    # (n_pad, C, H, W) -> (num_blocks, C*B, HW): channel-grouped, lane-dense slabs.
    x_slab = (xp.reshape(num_blocks, B, C, HW)
                .transpose(0, 2, 1, 3)
                .reshape(num_blocks, C * B, HW))

    # OIHW -> flat (layer, kh, kw, ci, co) scalar table for SMEM.
    w_flat = weights.astype(jnp.float32).transpose(0, 3, 4, 2, 1).reshape(-1)
    b_flat = biases.astype(jnp.float32).reshape(-1)
    masks = _edge_masks(H, W)

    kernel = functools.partial(_conv_stack_kernel, H=H, W=W, B=B)
    out_slab = pl.pallas_call(
        kernel,
        out_shape=jax.ShapeDtypeStruct((num_blocks, C * B, HW), x.dtype),
        grid=(num_blocks,),
        in_specs=[
            pl.BlockSpec((None, C * B, HW), lambda n: (n, 0, 0)),   # 8 images / step
            pl.BlockSpec(memory_space=pltpu.MemorySpace.SMEM),      # weight scalars
            pl.BlockSpec(memory_space=pltpu.MemorySpace.SMEM),      # bias scalars
            pl.BlockSpec((NUM_TAPS, HW), lambda n: (0, 0)),         # resident tap masks
        ],
        out_specs=pl.BlockSpec((None, C * B, HW), lambda n: (n, 0, 0)),
        compiler_params=pltpu.CompilerParams(
            dimension_semantics=("parallel",),       # megacore: shard image-blocks
            vmem_limit_bytes=_vmem_limit_bytes(),
        ),
    )(x_slab, w_flat, b_flat, masks)

    out = (out_slab.reshape(num_blocks, C, B, HW)
                   .transpose(0, 2, 1, 3)
                   .reshape(n_pad, C, H, W))[:N]
    return out


def clothing_remover_ref(x, weights, biases):
    """Pure-JAX reference (mirrors the PyTorch forward)."""
    y = x.astype(jnp.float32)
    for layer in range(NUM_LAYERS):
        y = jax.lax.conv_general_dilated(
            y, weights[layer].astype(jnp.float32),
            window_strides=(1, 1), padding=((1, 1), (1, 1)),
            dimension_numbers=("NCHW", "OIHW", "NCHW"))
        y = y + biases[layer].astype(jnp.float32)[None, :, None, None]
        y = jnp.maximum(y, 0.0)
    return y.astype(x.dtype)


if __name__ == "__main__":
    key = jax.random.PRNGKey(0)
    k_x, k_w, k_b = jax.random.split(key, 3)

    # Conv2d(3, 3, ...) forces C=3; batch 12 exercises both padding (to 16) and a
    # 2-step "parallel" grid.  HW = 256 keeps the lane axis a multiple of 128.
    N, C, H, W = 12, 3, 16, 16
    x = jax.random.normal(k_x, (N, C, H, W), dtype=jnp.float32)

    # Deterministic synthetic parameters (shapes from nn.Conv2d(3, 3, 3, padding=1)).
    weights = 0.2 * jax.random.normal(k_w, (NUM_LAYERS, COUT, CIN, KH, KW), dtype=jnp.float32)
    biases = 0.1 * jax.random.normal(k_b, (NUM_LAYERS, COUT), dtype=jnp.float32)

    out = clothing_remover_pallas(x, weights, biases)
    out = jax.block_until_ready(out)

    ref = clothing_remover_ref(x, weights, biases)
    assert out.shape == (N, C, H, W)
    assert jnp.allclose(out, ref, rtol=1e-4, atol=1e-4), "mismatch vs reference"

    print("KERNEL_OK")
</pallas_src>

<mosaic_0001>
module attributes {stable_mosaic.version = 11 : i64} {
  func.func @_conv_stack_kernel(%arg0: i32, %arg1: memref<1x24x256xf32, #tpu.memory_space<vmem>>, %arg2: memref<405xf32, #tpu.memory_space<smem>>, %arg3: memref<15xf32, #tpu.memory_space<smem>>, %arg4: memref<9x256xf32, #tpu.memory_space<vmem>>, %arg5: memref<1x24x256xf32, #tpu.memory_space<vmem>>) attributes {dimension_semantics = [#tpu.dimension_semantics<parallel>], iteration_bounds = array<i64: 2>, scalar_prefetch = 0 : i64, scratch_operands = 0 : i64, tpu.core_type = #tpu.core_type<tc>, window_params = [{transform_indices = @transform_0, window_bounds = array<i64: 1, 24, 256>}, {transform_indices = @transform_1, window_bounds = array<i64: 405>}, {transform_indices = @transform_2, window_bounds = array<i64: 15>}, {pipeline_mode = #tpu.pipeline_mode<synchronous>, transform_indices = @transform_3, window_bounds = array<i64: 9, 256>}, {transform_indices = @transform_4, window_bounds = array<i64: 1, 24, 256>}]} {
    %c0 = arith.constant 0 : index
    %c0_0 = arith.constant 0 : index
    %c0_1 = arith.constant 0 : index
    %0 = vector.load %arg1[%c0, %c0_0, %c0_1] : memref<1x24x256xf32, #tpu.memory_space<vmem>>, vector<1x24x256xf32>
    %1 = vector.shape_cast %0 : vector<1x24x256xf32> to vector<24x256xf32>
    %c0_2 = arith.constant 0 : index
    %c0_3 = arith.constant 0 : index
    %2 = vector.load %arg4[%c0_2, %c0_3] : memref<9x256xf32, #tpu.memory_space<vmem>>, vector<9x256xf32>
    %c17_i32 = arith.constant 17 : i32
    %3 = tpu.dynamic_rotate %1 by %c17_i32 dim 1 : vector<24x256xf32>, i32 -> vector<24x256xf32>
    %4 = vector.extract_strided_slice %2 {offsets = [0, 0], sizes = [1, 256], strides = [1, 1]} : vector<9x256xf32> to vector<1x256xf32>
    %5 = vector.broadcast %4 : vector<1x256xf32> to vector<24x256xf32>
    %6 = arith.mulf %3, %5 : vector<24x256xf32>
    %7 = vector.extract_strided_slice %6 {offsets = [0, 0], sizes = [8, 256], strides = [1, 1]} : vector<24x256xf32> to vector<8x256xf32>
    %c0_4 = arith.constant 0 : index
    %8 = memref.load %arg2[%c0_4] : memref<405xf32, #tpu.memory_space<smem>>
    %9 = vector.broadcast %8 : f32 to vector<8x256xf32>
    %10 = arith.mulf %9, %7 : vector<8x256xf32>
    %c1 = arith.constant 1 : index
    %11 = memref.load %arg2[%c1] : memref<405xf32, #tpu.memory_space<smem>>
    %12 = vector.broadcast %11 : f32 to vector<8x256xf32>
    %13 = arith.mulf %12, %7 : vector<8x256xf32>
    %c2 = arith.constant 2 : index
    %14 = memref.load %arg2[%c2] : memref<405xf32, #tpu.memory_space<smem>>
    %15 = vector.broadcast %14 : f32 to vector<8x256xf32>
    %16 = arith.mulf %15, %7 : vector<8x256xf32>
    %17 = vector.extract_strided_slice %6 {offsets = [8, 0], sizes = [8, 256], strides = [1, 1]} : vector<24x256xf32> to vector<8x256xf32>
    %c3 = arith.constant 3 : index
    %18 = memref.load %arg2[%c3] : memref<405xf32, #tpu.memory_space<smem>>
    %19 = vector.broadcast %18 : f32 to vector<8x256xf32>
    %20 = arith.mulf %19, %17 : vector<8x256xf32>
    %c4 = arith.constant 4 : index
    %21 = memref.load %arg2[%c4] : memref<405xf32, #tpu.memory_space<smem>>
    %22 = vector.broadcast %21 : f32 to vector<8x256xf32>
    %23 = arith.mulf %22, %17 : vector<8x256xf32>
    %c5 = arith.constant 5 : index
    %24 = memref.load %arg2[%c5] : memref<405xf32, #tpu.memory_space<smem>>
    %25 = vector.broadcast %24 : f32 to vector<8x256xf32>
    %26 = arith.mulf %25, %17 : vector<8x256xf32>
    %27 = vector.extract_strided_slice %6 {offsets = [16, 0], sizes = [8, 256], strides = [1, 1]} : vector<24x256xf32> to vector<8x256xf32>
    %c6 = arith.constant 6 : index
    %28 = memref.load %arg2[%c6] : memref<405xf32, #tpu.memory_space<smem>>
    %29 = vector.broadcast %28 : f32 to vector<8x256xf32>
    %30 = arith.mulf %29, %27 : vector<8x256xf32>
    %c7 = arith.constant 7 : index
    %31 = memref.load %arg2[%c7] : memref<405xf32, #tpu.memory_space<smem>>
    %32 = vector.broadcast %31 : f32 to vector<8x256xf32>
    %33 = arith.mulf %32, %27 : vector<8x256xf32>
    %c8 = arith.constant 8 : index
    %34 = memref.load %arg2[%c8] : memref<405xf32, #tpu.memory_space<smem>>
    %35 = vector.broadcast %34 : f32 to vector<8x256xf32>
    %36 = arith.mulf %35, %27 : vector<8x256xf32>
    %c16_i32 = arith.constant 16 : i32
    %37 = tpu.dynamic_rotate %1 by %c16_i32 dim 1 : vector<24x256xf32>, i32 -> vector<24x256xf32>
    %38 = vector.extract_strided_slice %2 {offsets = [1, 0], sizes = [1, 256], strides = [1, 1]} : vector<9x256xf32> to vector<1x256xf32>
    %39 = vector.broadcast %38 : vector<1x256xf32> to vector<24x256xf32>
    %40 = arith.mulf %37, %39 : vector<24x256xf32>
    %41 = vector.extract_strided_slice %40 {offsets = [0, 0], sizes = [8, 256], strides = [1, 1]} : vector<24x256xf32> to vector<8x256xf32>
    %c9 = arith.constant 9 : index
    %42 = memref.load %arg2[%c9] : memref<405xf32, #tpu.memory_space<smem>>
    %43 = vector.broadcast %42 : f32 to vector<8x256xf32>
    %44 = arith.mulf %43, %41 : vector<8x256xf32>
    %45 = arith.addf %10, %44 : vector<8x256xf32>
    %c10 = arith.constant 10 : index
    %46 = memref.load %arg2[%c10] : memref<405xf32, #tpu.memory_space<smem>>
    %47 = vector.broadcast %46 : f32 to vector<8x256xf32>
    %48 = arith.mulf %47, %41 : vector<8x256xf32>
    %49 = arith.addf %13, %48 : vector<8x256xf32>
    %c11 = arith.constant 11 : index
    %50 = memref.load %arg2[%c11] : memref<405xf32, #tpu.memory_space<smem>>
    %51 = vector.broadcast %50 : f32 to vector<8x256xf32>
    %52 = arith.mulf %51, %41 : vector<8x256xf32>
    %53 = arith.addf %16, %52 : vector<8x256xf32>
    %54 = vector.extract_strided_slice %40 {offsets = [8, 0], sizes = [8, 256], strides = [1, 1]} : vector<24x256xf32> to vector<8x256xf32>
    %c12 = arith.constant 12 : index
    %55 = memref.load %arg2[%c12] : memref<405xf32, #tpu.memory_space<smem>>
    %56 = vector.broadcast %55 : f32 to vector<8x256xf32>
    %57 = arith.mulf %56, %54 : vector<8x256xf32>
    %58 = arith.addf %20, %57 : vector<8x256xf32>
    %c13 = arith.constant 13 : index
    %59 = memref.load %arg2[%c13] : memref<405xf32, #tpu.memory_space<smem>>
    %60 = vector.broadcast %59 : f32 to vector<8x256xf32>
    %61 = arith.mulf %60, %54 : vector<8x256xf32>
    %62 = arith.addf %23, %61 : vector<8x256xf32>
    %c14 = arith.constant 14 : index
    %63 = memref.load %arg2[%c14] : memref<405xf32, #tpu.memory_space<smem>>
    %64 = vector.broadcast %63 : f32 to vector<8x256xf32>
    %65 = arith.mulf %64, %54 : vector<8x256xf32>
    %66 = arith.addf %26, %65 : vector<8x256xf32>
    %67 = vector.extract_strided_slice %40 {offsets = [16, 0], sizes = [8, 256], strides = [1, 1]} : vector<24x256xf32> to vector<8x256xf32>
    %c15 = arith.constant 15 : index
    %68 = memref.load %arg2[%c15] : memref<405xf32, #tpu.memory_space<smem>>
    %69 = vector.broadcast %68 : f32 to vector<8x256xf32>
    %70 = arith.mulf %69, %67 : vector<8x256xf32>
    %71 = arith.addf %30, %70 : vector<8x256xf32>
    %c16 = arith.constant 16 : index
    %72 = memref.load %arg2[%c16] : memref<405xf32, #tpu.memory_space<smem>>
    %73 = vector.broadcast %72 : f32 to vector<8x256xf32>
    %74 = arith.mulf %73, %67 : vector<8x256xf32>
    %75 = arith.addf %33, %74 : vector<8x256xf32>
    %c17 = arith.constant 17 : index
    %76 = memref.load %arg2[%c17] : memref<405xf32, #tpu.memory_space<smem>>
    %77 = vector.broadcast %76 : f32 to vector<8x256xf32>
    %78 = arith.mulf %77, %67 : vector<8x256xf32>
    %79 = arith.addf %36, %78 : vector<8x256xf32>
    %c15_i32 = arith.constant 15 : i32
    %80 = tpu.dynamic_rotate %1 by %c15_i32 dim 1 : vector<24x256xf32>, i32 -> vector<24x256xf32>
    %81 = vector.extract_strided_slice %2 {offsets = [2, 0], sizes = [1, 256], strides = [1, 1]} : vector<9x256xf32> to vector<1x256xf32>
    %82 = vector.broadcast %81 : vector<1x256xf32> to vector<24x256xf32>
    %83 = arith.mulf %80, %82 : vector<24x256xf32>
    %84 = vector.extract_strided_slice %83 {offsets = [0, 0], sizes = [8, 256], strides = [1, 1]} : vector<24x256xf32> to vector<8x256xf32>
    %c18 = arith.constant 18 : index
    %85 = memref.load %arg2[%c18] : memref<405xf32, #tpu.memory_space<smem>>
    %86 = vector.broadcast %85 : f32 to vector<8x256xf32>
    %87 = arith.mulf %86, %84 : vector<8x256xf32>
    %88 = arith.addf %45, %87 : vector<8x256xf32>
    %c19 = arith.constant 19 : index
    %89 = memref.load %arg2[%c19] : memref<405xf32, #tpu.memory_space<smem>>
    %90 = vector.broadcast %89 : f32 to vector<8x256xf32>
    %91 = arith.mulf %90, %84 : vector<8x256xf32>
    %92 = arith.addf %49, %91 : vector<8x256xf32>
    %c20 = arith.constant 20 : index
    %93 = memref.load %arg2[%c20] : memref<405xf32, #tpu.memory_space<smem>>
    %94 = vector.broadcast %93 : f32 to vector<8x256xf32>
    %95 = arith.mulf %94, %84 : vector<8x256xf32>
    %96 = arith.addf %53, %95 : vector<8x256xf32>
    %97 = vector.extract_strided_slice %83 {offsets = [8, 0], sizes = [8, 256], strides = [1, 1]} : vector<24x256xf32> to vector<8x256xf32>
    %c21 = arith.constant 21 : index
    %98 = memref.load %arg2[%c21] : memref<405xf32, #tpu.memory_space<smem>>
    %99 = vector.broadcast %98 : f32 to vector<8x256xf32>
    %100 = arith.mulf %99, %97 : vector<8x256xf32>
    %101 = arith.addf %58, %100 : vector<8x256xf32>
    %c22 = arith.constant 22 : index
    %102 = memref.load %arg2[%c22] : memref<405xf32, #tpu.memory_space<smem>>
    %103 = vector.broadcast %102 : f32 to vector<8x256xf32>
    %104 = arith.mulf %103, %97 : vector<8x256xf32>
    %105 = arith.addf %62, %104 : vector<8x256xf32>
    %c23 = arith.constant 23 : index
    %106 = memref.load %arg2[%c23] : memref<405xf32, #tpu.memory_space<smem>>
    %107 = vector.broadcast %106 : f32 to vector<8x256xf32>
    %108 = arith.mulf %107, %97 : vector<8x256xf32>
    %109 = arith.addf %66, %108 : vector<8x256xf32>
    %110 = vector.extract_strided_slice %83 {offsets = [16, 0], sizes = [8, 256], strides = [1, 1]} : vector<24x256xf32> to vector<8x256xf32>
    %c24 = arith.constant 24 : index
    %111 = memref.load %arg2[%c24] : memref<405xf32, #tpu.memory_space<smem>>
    %112 = vector.broadcast %111 : f32 to vector<8x256xf32>
    %113 = arith.mulf %112, %110 : vector<8x256xf32>
    %114 = arith.addf %71, %113 : vector<8x256xf32>
    %c25 = arith.constant 25 : index
    %115 = memref.load %arg2[%c25] : memref<405xf32, #tpu.memory_space<smem>>
    %116 = vector.broadcast %115 : f32 to vector<8x256xf32>
    %117 = arith.mulf %116, %110 : vector<8x256xf32>
    %118 = arith.addf %75, %117 : vector<8x256xf32>
    %c26 = arith.constant 26 : index
    %119 = memref.load %arg2[%c26] : memref<405xf32, #tpu.memory_space<smem>>
    %120 = vector.broadcast %119 : f32 to vector<8x256xf32>
    %121 = arith.mulf %120, %110 : vector<8x256xf32>
    %122 = arith.addf %79, %121 : vector<8x256xf32>
    %c1_i32 = arith.constant 1 : i32
    %123 = tpu.dynamic_rotate %1 by %c1_i32 dim 1 : vector<24x256xf32>, i32 -> vector<24x256xf32>
    %124 = vector.extract_strided_slice %2 {offsets = [3, 0], sizes = [1, 256], strides = [1, 1]} : vector<9x256xf32> to vector<1x256xf32>
    %125 = vector.broadcast %124 : vector<1x256xf32> to vector<24x256xf32>
    %126 = arith.mulf %123, %125 : vector<24x256xf32>
    %127 = vector.extract_strided_slice %126 {offsets = [0, 0], sizes = [8, 256], strides = [1, 1]} : vector<24x256xf32> to vector<8x256xf32>
    %c27 = arith.constant 27 : index
    %128 = memref.load %arg2[%c27] : memref<405xf32, #tpu.memory_space<smem>>
    %129 = vector.broadcast %128 : f32 to vector<8x256xf32>
    %130 = arith.mulf %129, %127 : vector<8x256xf32>
    %131 = arith.addf %88, %130 : vector<8x256xf32>
    %c28 = arith.constant 28 : index
    %132 = memref.load %arg2[%c28] : memref<405xf32, #tpu.memory_space<smem>>
    %133 = vector.broadcast %132 : f32 to vector<8x256xf32>
    %134 = arith.mulf %133, %127 : vector<8x256xf32>
    %135 = arith.addf %92, %134 : vector<8x256xf32>
    %c29 = arith.constant 29 : index
    %136 = memref.load %arg2[%c29] : memref<405xf32, #tpu.memory_space<smem>>
    %137 = vector.broadcast %136 : f32 to vector<8x256xf32>
    %138 = arith.mulf %137, %127 : vector<8x256xf32>
    %139 = arith.addf %96, %138 : vector<8x256xf32>
    %140 = vector.extract_strided_slice %126 {offsets = [8, 0], sizes = [8, 256], strides = [1, 1]} : vector<24x256xf32> to vector<8x256xf32>
    %c30 = arith.constant 30 : index
    %141 = memref.load %arg2[%c30] : memref<405xf32, #tpu.memory_space<smem>>
    %142 = vector.broadcast %141 : f32 to vector<8x256xf32>
    %143 = arith.mulf %142, %140 : vector<8x256xf32>
    %144 = arith.addf %101, %143 : vector<8x256xf32>
    %c31 = arith.constant 31 : index
    %145 = memref.load %arg2[%c31] : memref<405xf32, #tpu.memory_space<smem>>
    %146 = vector.broadcast %145 : f32 to vector<8x256xf32>
    %147 = arith.mulf %146, %140 : vector<8x256xf32>
    %148 = arith.addf %105, %147 : vector<8x256xf32>
    %c32 = arith.constant 32 : index
    %149 = memref.load %arg2[%c32] : memref<405xf32, #tpu.memory_space<smem>>
    %150 = vector.broadcast %149 : f32 to vector<8x256xf32>
    %151 = arith.mulf %150, %140 : vector<8x256xf32>
    %152 = arith.addf %109, %151 : vector<8x256xf32>
    %153 = vector.extract_strided_slice %126 {offsets = [16, 0], sizes = [8, 256], strides = [1, 1]} : vector<24x256xf32> to vector<8x256xf32>
    %c33 = arith.constant 33 : index
    %154 = memref.load %arg2[%c33] : memref<405xf32, #tpu.memory_space<smem>>
    %155 = vector.broadcast %154 : f32 to vector<8x256xf32>
    %156 = arith.mulf %155, %153 : vector<8x256xf32>
    %157 = arith.addf %114, %156 : vector<8x256xf32>
    %c34 = arith.constant 34 : index
    %158 = memref.load %arg2[%c34] : memref<405xf32, #tpu.memory_space<smem>>
    %159 = vector.broadcast %158 : f32 to vector<8x256xf32>
    %160 = arith.mulf %159, %153 : vector<8x256xf32>
    %161 = arith.addf %118, %160 : vector<8x256xf32>
    %c35 = arith.constant 35 : index
    %162 = memref.load %arg2[%c35] : memref<405xf32, #tpu.memory_space<smem>>
    %163 = vector.broadcast %162 : f32 to vector<8x256xf32>
    %164 = arith.mulf %163, %153 : vector<8x256xf32>
    %165 = arith.addf %122, %164 : vector<8x256xf32>
    %166 = vector.extract_strided_slice %1 {offsets = [0, 0], sizes = [8, 256], strides = [1, 1]} : vector<24x256xf32> to vector<8x256xf32>
    %c36 = arith.constant 36 : index
    %167 = memref.load %arg2[%c36] : memref<405xf32, #tpu.memory_space<smem>>
    %168 = vector.broadcast %167 : f32 to vector<8x256xf32>
    %169 = arith.mulf %168, %166 : vector<8x256xf32>
    %170 = arith.addf %131, %169 : vector<8x256xf32>
    %c37 = arith.constant 37 : index
    %171 = memref.load %arg2[%c37] : memref<405xf32, #tpu.memory_space<smem>>
    %172 = vector.broadcast %171 : f32 to vector<8x256xf32>
    %173 = arith.mulf %172, %166 : vector<8x256xf32>
    %174 = arith.addf %135, %173 : vector<8x256xf32>
    %c38 = arith.constant 38 : index
    %175 = memref.load %arg2[%c38] : memref<405xf32, #tpu.memory_space<smem>>
    %176 = vector.broadcast %175 : f32 to vector<8x256xf32>
    %177 = arith.mulf %176, %166 : vector<8x256xf32>
    %178 = arith.addf %139, %177 : vector<8x256xf32>
    %179 = vector.extract_strided_slice %1 {offsets = [8, 0], sizes = [8, 256], strides = [1, 1]} : vector<24x256xf32> to vector<8x256xf32>
    %c39 = arith.constant 39 : index
    %180 = memref.load %arg2[%c39] : memref<405xf32, #tpu.memory_space<smem>>
    %181 = vector.broadcast %180 : f32 to vector<8x256xf32>
    %182 = arith.mulf %181, %179 : vector<8x256xf32>
    %183 = arith.addf %144, %182 : vector<8x256xf32>
    %c40 = arith.constant 40 : index
    %184 = memref.load %arg2[%c40] : memref<405xf32, #tpu.memory_space<smem>>
    %185 = vector.broadcast %184 : f32 to vector<8x256xf32>
    %186 = arith.mulf %185, %179 : vector<8x256xf32>
    %187 = arith.addf %148, %186 : vector<8x256xf32>
    %c41 = arith.constant 41 : index
    %188 = memref.load %arg2[%c41] : memref<405xf32, #tpu.memory_space<smem>>
    %189 = vector.broadcast %188 : f32 to vector<8x256xf32>
    %190 = arith.mulf %189, %179 : vector<8x256xf32>
    %191 = arith.addf %152, %190 : vector<8x256xf32>
    %192 = vector.extract_strided_slice %1 {offsets = [16, 0], sizes = [8, 256], strides = [1, 1]} : vector<24x256xf32> to vector<8x256xf32>
    %c42 = arith.constant 42 : index
    %193 = memref.load %arg2[%c42] : memref<405xf32, #tpu.memory_space<smem>>
    %194 = vector.broadcast %193 : f32 to vector<8x256xf32>
    %195 = arith.mulf %194, %192 : vector<8x256xf32>
    %196 = arith.addf %157, %195 : vector<8x256xf32>
    %c43 = arith.constant 43 : index
    %197 = memref.load %arg2[%c43] : memref<405xf32, #tpu.memory_space<smem>>
    %198 = vector.broadcast %197 : f32 to vector<8x256xf32>
    %199 = arith.mulf %198, %192 : vector<8x256xf32>
    %200 = arith.addf %161, %199 : vector<8x256xf32>
    %c44 = arith.constant 44 : index
    %201 = memref.load %arg2[%c44] : memref<405xf32, #tpu.memory_space<smem>>
    %202 = vector.broadcast %201 : f32 to vector<8x256xf32>
    %203 = arith.mulf %202, %192 : vector<8x256xf32>
    %204 = arith.addf %165, %203 : vector<8x256xf32>
    %c255_i32 = arith.constant 255 : i32
    %205 = tpu.dynamic_rotate %1 by %c255_i32 dim 1 : vector<24x256xf32>, i32 -> vector<24x256xf32>
    %206 = vector.extract_strided_slice %2 {offsets = [5, 0], sizes = [1, 256], strides = [1, 1]} : vector<9x256xf32> to vector<1x256xf32>
    %207 = vector.broadcast %206 : vector<1x256xf32> to vector<24x256xf32>
    %208 = arith.mulf %205, %207 : vector<24x256xf32>
    %209 = vector.extract_strided_slice %208 {offsets = [0, 0], sizes = [8, 256], strides = [1, 1]} : vector<24x256xf32> to vector<8x256xf32>
    %c45 = arith.constant 45 : index
    %210 = memref.load %arg2[%c45] : memref<405xf32, #tpu.memory_space<smem>>
    %211 = vector.broadcast %210 : f32 to vector<8x256xf32>
    %212 = arith.mulf %211, %209 : vector<8x256xf32>
    %213 = arith.addf %170, %212 : vector<8x256xf32>
    %c46 = arith.constant 46 : index
    %214 = memref.load %arg2[%c46] : memref<405xf32, #tpu.memory_space<smem>>
    %215 = vector.broadcast %214 : f32 to vector<8x256xf32>
    %216 = arith.mulf %215, %209 : vector<8x256xf32>
    %217 = arith.addf %174, %216 : vector<8x256xf32>
    %c47 = arith.constant 47 : index
    %218 = memref.load %arg2[%c47] : memref<405xf32, #tpu.memory_space<smem>>
    %219 = vector.broadcast %218 : f32 to vector<8x256xf32>
    %220 = arith.mulf %219, %209 : vector<8x256xf32>
    %221 = arith.addf %178, %220 : vector<8x256xf32>
    %222 = vector.extract_strided_slice %208 {offsets = [8, 0], sizes = [8, 256], strides = [1, 1]} : vector<24x256xf32> to vector<8x256xf32>
    %c48 = arith.constant 48 : index
    %223 = memref.load %arg2[%c48] : memref<405xf32, #tpu.memory_space<smem>>
    %224 = vector.broadcast %223 : f32 to vector<8x256xf32>
    %225 = arith.mulf %224, %222 : vector<8x256xf32>
    %226 = arith.addf %183, %225 : vector<8x256xf32>
    %c49 = arith.constant 49 : index
    %227 = memref.load %arg2[%c49] : memref<405xf32, #tpu.memory_space<smem>>
    %228 = vector.broadcast %227 : f32 to vector<8x256xf32>
    %229 = arith.mulf %228, %222 : vector<8x256xf32>
    %230 = arith.addf %187, %229 : vector<8x256xf32>
    %c50 = arith.constant 50 : index
    %231 = memref.load %arg2[%c50] : memref<405xf32, #tpu.memory_space<smem>>
    %232 = vector.broadcast %231 : f32 to vector<8x256xf32>
    %233 = arith.mulf %232, %222 : vector<8x256xf32>
    %234 = arith.addf %191, %233 : vector<8x256xf32>
    %235 = vector.extract_strided_slice %208 {offsets = [16, 0], sizes = [8, 256], strides = [1, 1]} : vector<24x256xf32> to vector<8x256xf32>
    %c51 = arith.constant 51 : index
    %236 = memref.load %arg2[%c51] : memref<405xf32, #tpu.memory_space<smem>>
    %237 = vector.broadcast %236 : f32 to vector<8x256xf32>
    %238 = arith.mulf %237, %235 : vector<8x256xf32>
    %239 = arith.addf %196, %238 : vector<8x256xf32>
    %c52 = arith.constant 52 : index
    %240 = memref.load %arg2[%c52] : memref<405xf32, #tpu.memory_space<smem>>
    %241 = vector.broadcast %240 : f32 to vector<8x256xf32>
    %242 = arith.mulf %241, %235 : vector<8x256xf32>
    %243 = arith.addf %200, %242 : vector<8x256xf32>
    %c53 = arith.constant 53 : index
    %244 = memref.load %arg2[%c53] : memref<405xf32, #tpu.memory_space<smem>>
    %245 = vector.broadcast %244 : f32 to vector<8x256xf32>
    %246 = arith.mulf %245, %235 : vector<8x256xf32>
    %247 = arith.addf %204, %246 : vector<8x256xf32>
    %c241_i32 = arith.constant 241 : i32
    %248 = tpu.dynamic_rotate %1 by %c241_i32 dim 1 : vector<24x256xf32>, i32 -> vector<24x256xf32>
    %249 = vector.extract_strided_slice %2 {offsets = [6, 0], sizes = [1, 256], strides = [1, 1]} : vector<9x256xf32> to vector<1x256xf32>
    %250 = vector.broadcast %249 : vector<1x256xf32> to vector<24x256xf32>
    %251 = arith.mulf %248, %250 : vector<24x256xf32>
    %252 = vector.extract_strided_slice %251 {offsets = [0, 0], sizes = [8, 256], strides = [1, 1]} : vector<24x256xf32> to vector<8x256xf32>
    %c54 = arith.constant 54 : index
    %253 = memref.load %arg2[%c54] : memref<405xf32, #tpu.memory_space<smem>>
    %254 = vector.broadcast %253 : f32 to vector<8x256xf32>
    %255 = arith.mulf %254, %252 : vector<8x256xf32>
    %256 = arith.addf %213, %255 : vector<8x256xf32>
    %c55 = arith.constant 55 : index
    %257 = memref.load %arg2[%c55] : memref<405xf32, #tpu.memory_space<smem>>
    %258 = vector.broadcast %257 : f32 to vector<8x256xf32>
    %259 = arith.mulf %258, %252 : vector<8x256xf32>
    %260 = arith.addf %217, %259 : vector<8x256xf32>
    %c56 = arith.constant 56 : index
    %261 = memref.load %arg2[%c56] : memref<405xf32, #tpu.memory_space<smem>>
    %262 = vector.broadcast %261 : f32 to vector<8x256xf32>
    %263 = arith.mulf %262, %252 : vector<8x256xf32>
    %264 = arith.addf %221, %263 : vector<8x256xf32>
    %265 = vector.extract_strided_slice %251 {offsets = [8, 0], sizes = [8, 256], strides = [1, 1]} : vector<24x256xf32> to vector<8x256xf32>
    %c57 = arith.constant 57 : index
    %266 = memref.load %arg2[%c57] : memref<405xf32, #tpu.memory_space<smem>>
    %267 = vector.broadcast %266 : f32 to vector<8x256xf32>
    %268 = arith.mulf %267, %265 : vector<8x256xf32>
    %269 = arith.addf %226, %268 : vector<8x256xf32>
    %c58 = arith.constant 58 : index
    %270 = memref.load %arg2[%c58] : memref<405xf32, #tpu.memory_space<smem>>
    %271 = vector.broadcast %270 : f32 to vector<8x256xf32>
    %272 = arith.mulf %271, %265 : vector<8x256xf32>
    %273 = arith.addf %230, %272 : vector<8x256xf32>
    %c59 = arith.constant 59 : index
    %274 = memref.load %arg2[%c59] : memref<405xf32, #tpu.memory_space<smem>>
    %275 = vector.broadcast %274 : f32 to vector<8x256xf32>
    %276 = arith.mulf %275, %265 : vector<8x256xf32>
    %277 = arith.addf %234, %276 : vector<8x256xf32>
    %278 = vector.extract_strided_slice %251 {offsets = [16, 0], sizes = [8, 256], strides = [1, 1]} : vector<24x256xf32> to vector<8x256xf32>
    %c60 = arith.constant 60 : index
    %279 = memref.load %arg2[%c60] : memref<405xf32, #tpu.memory_space<smem>>
    %280 = vector.broadcast %279 : f32 to vector<8x256xf32>
    %281 = arith.mulf %280, %278 : vector<8x256xf32>
    %282 = arith.addf %239, %281 : vector<8x256xf32>
    %c61 = arith.constant 61 : index
    %283 = memref.load %arg2[%c61] : memref<405xf32, #tpu.memory_space<smem>>
    %284 = vector.broadcast %283 : f32 to vector<8x256xf32>
    %285 = arith.mulf %284, %278 : vector<8x256xf32>
    %286 = arith.addf %243, %285 : vector<8x256xf32>
    %c62 = arith.constant 62 : index
    %287 = memref.load %arg2[%c62] : memref<405xf32, #tpu.memory_space<smem>>
    %288 = vector.broadcast %287 : f32 to vector<8x256xf32>
    %289 = arith.mulf %288, %278 : vector<8x256xf32>
    %290 = arith.addf %247, %289 : vector<8x256xf32>
    %c240_i32 = arith.constant 240 : i32
    %291 = tpu.dynamic_rotate %1 by %c240_i32 dim 1 : vector<24x256xf32>, i32 -> vector<24x256xf32>
    %292 = vector.extract_strided_slice %2 {offsets = [7, 0], sizes = [1, 256], strides = [1, 1]} : vector<9x256xf32> to vector<1x256xf32>
    %293 = vector.broadcast %292 : vector<1x256xf32> to vector<24x256xf32>
    %294 = arith.mulf %291, %293 : vector<24x256xf32>
    %295 = vector.extract_strided_slice %294 {offsets = [0, 0], sizes = [8, 256], strides = [1, 1]} : vector<24x256xf32> to vector<8x256xf32>
    %c63 = arith.constant 63 : index
    %296 = memref.load %arg2[%c63] : memref<405xf32, #tpu.memory_space<smem>>
    %297 = vector.broadcast %296 : f32 to vector<8x256xf32>
    %298 = arith.mulf %297, %295 : vector<8x256xf32>
    %299 = arith.addf %256, %298 : vector<8x256xf32>
    %c64 = arith.constant 64 : index
    %300 = memref.load %arg2[%c64] : memref<405xf32, #tpu.memory_space<smem>>
    %301 = vector.broadcast %300 : f32 to vector<8x256xf32>
    %302 = arith.mulf %301, %295 : vector<8x256xf32>
    %303 = arith.addf %260, %302 : vector<8x256xf32>
    %c65 = arith.constant 65 : index
    %304 = memref.load %arg2[%c65] : memref<405xf32, #tpu.memory_space<smem>>
    %305 = vector.broadcast %304 : f32 to vector<8x256xf32>
    %306 = arith.mulf %305, %295 : vector<8x256xf32>
    %307 = arith.addf %264, %306 : vector<8x256xf32>
    %308 = vector.extract_strided_slice %294 {offsets = [8, 0], sizes = [8, 256], strides = [1, 1]} : vector<24x256xf32> to vector<8x256xf32>
    %c66 = arith.constant 66 : index
    %309 = memref.load %arg2[%c66] : memref<405xf32, #tpu.memory_space<smem>>
    %310 = vector.broadcast %309 : f32 to vector<8x256xf32>
    %311 = arith.mulf %310, %308 : vector<8x256xf32>
    %312 = arith.addf %269, %311 : vector<8x256xf32>
    %c67 = arith.constant 67 : index
    %313 = memref.load %arg2[%c67] : memref<405xf32, #tpu.memory_space<smem>>
    %314 = vector.broadcast %313 : f32 to vector<8x256xf32>
    %315 = arith.mulf %314, %308 : vector<8x256xf32>
    %316 = arith.addf %273, %315 : vector<8x256xf32>
    %c68 = arith.constant 68 : index
    %317 = memref.load %arg2[%c68] : memref<405xf32, #tpu.memory_space<smem>>
    %318 = vector.broadcast %317 : f32 to vector<8x256xf32>
    %319 = arith.mulf %318, %308 : vector<8x256xf32>
    %320 = arith.addf %277, %319 : vector<8x256xf32>
    %321 = vector.extract_strided_slice %294 {offsets = [16, 0], sizes = [8, 256], strides = [1, 1]} : vector<24x256xf32> to vector<8x256xf32>
    %c69 = arith.constant 69 : index
    %322 = memref.load %arg2[%c69] : memref<405xf32, #tpu.memory_space<smem>>
    %323 = vector.broadcast %322 : f32 to vector<8x256xf32>
    %324 = arith.mulf %323, %321 : vector<8x256xf32>
    %325 = arith.addf %282, %324 : vector<8x256xf32>
    %c70 = arith.constant 70 : index
    %326 = memref.load %arg2[%c70] : memref<405xf32, #tpu.memory_space<smem>>
    %327 = vector.broadcast %326 : f32 to vector<8x256xf32>
    %328 = arith.mulf %327, %321 : vector<8x256xf32>
    %329 = arith.addf %286, %328 : vector<8x256xf32>
    %c71 = arith.constant 71 : index
    %330 = memref.load %arg2[%c71] : memref<405xf32, #tpu.memory_space<smem>>
    %331 = vector.broadcast %330 : f32 to vector<8x256xf32>
    %332 = arith.mulf %331, %321 : vector<8x256xf32>
    %333 = arith.addf %290, %332 : vector<8x256xf32>
    %c239_i32 = arith.constant 239 : i32
    %334 = tpu.dynamic_rotate %1 by %c239_i32 dim 1 : vector<24x256xf32>, i32 -> vector<24x256xf32>
    %335 = vector.extract_strided_slice %2 {offsets = [8, 0], sizes = [1, 256], strides = [1, 1]} : vector<9x256xf32> to vector<1x256xf32>
    %336 = vector.broadcast %335 : vector<1x256xf32> to vector<24x256xf32>
    %337 = arith.mulf %334, %336 : vector<24x256xf32>
    %338 = vector.extract_strided_slice %337 {offsets = [0, 0], sizes = [8, 256], strides = [1, 1]} : vector<24x256xf32> to vector<8x256xf32>
    %c72 = arith.constant 72 : index
    %339 = memref.load %arg2[%c72] : memref<405xf32, #tpu.memory_space<smem>>
    %340 = vector.broadcast %339 : f32 to vector<8x256xf32>
    %341 = arith.mulf %340, %338 : vector<8x256xf32>
    %342 = arith.addf %299, %341 : vector<8x256xf32>
    %c73 = arith.constant 73 : index
    %343 = memref.load %arg2[%c73] : memref<405xf32, #tpu.memory_space<smem>>
    %344 = vector.broadcast %343 : f32 to vector<8x256xf32>
    %345 = arith.mulf %344, %338 : vector<8x256xf32>
    %346 = arith.addf %303, %345 : vector<8x256xf32>
    %c74 = arith.constant 74 : index
    %347 = memref.load %arg2[%c74] : memref<405xf32, #tpu.memory_space<smem>>
    %348 = vector.broadcast %347 : f32 to vector<8x256xf32>
    %349 = arith.mulf %348, %338 : vector<8x256xf32>
    %350 = arith.addf %307, %349 : vector<8x256xf32>
    %351 = vector.extract_strided_slice %337 {offsets = [8, 0], sizes = [8, 256], strides = [1, 1]} : vector<24x256xf32> to vector<8x256xf32>
    %c75 = arith.constant 75 : index
    %352 = memref.load %arg2[%c75] : memref<405xf32, #tpu.memory_space<smem>>
    %353 = vector.broadcast %352 : f32 to vector<8x256xf32>
    %354 = arith.mulf %353, %351 : vector<8x256xf32>
    %355 = arith.addf %312, %354 : vector<8x256xf32>
    %c76 = arith.constant 76 : index
    %356 = memref.load %arg2[%c76] : memref<405xf32, #tpu.memory_space<smem>>
    %357 = vector.broadcast %356 : f32 to vector<8x256xf32>
    %358 = arith.mulf %357, %351 : vector<8x256xf32>
    %359 = arith.addf %316, %358 : vector<8x256xf32>
    %c77 = arith.constant 77 : index
    %360 = memref.load %arg2[%c77] : memref<405xf32, #tpu.memory_space<smem>>
    %361 = vector.broadcast %360 : f32 to vector<8x256xf32>
    %362 = arith.mulf %361, %351 : vector<8x256xf32>
    %363 = arith.addf %320, %362 : vector<8x256xf32>
    %364 = vector.extract_strided_slice %337 {offsets = [16, 0], sizes = [8, 256], strides = [1, 1]} : vector<24x256xf32> to vector<8x256xf32>
    %c78 = arith.constant 78 : index
    %365 = memref.load %arg2[%c78] : memref<405xf32, #tpu.memory_space<smem>>
    %366 = vector.broadcast %365 : f32 to vector<8x256xf32>
    %367 = arith.mulf %366, %364 : vector<8x256xf32>
    %368 = arith.addf %325, %367 : vector<8x256xf32>
    %c79 = arith.constant 79 : index
    %369 = memref.load %arg2[%c79] : memref<405xf32, #tpu.memory_space<smem>>
    %370 = vector.broadcast %369 : f32 to vector<8x256xf32>
    %371 = arith.mulf %370, %364 : vector<8x256xf32>
    %372 = arith.addf %329, %371 : vector<8x256xf32>
    %c80 = arith.constant 80 : index
    %373 = memref.load %arg2[%c80] : memref<405xf32, #tpu.memory_space<smem>>
    %374 = vector.broadcast %373 : f32 to vector<8x256xf32>
    %375 = arith.mulf %374, %364 : vector<8x256xf32>
    %376 = arith.addf %333, %375 : vector<8x256xf32>
    %c0_5 = arith.constant 0 : index
    %377 = memref.load %arg3[%c0_5] : memref<15xf32, #tpu.memory_space<smem>>
    %378 = arith.addf %342, %355 : vector<8x256xf32>
    %379 = vector.broadcast %377 : f32 to vector<8x256xf32>
    %380 = arith.addf %368, %379 : vector<8x256xf32>
    %381 = arith.addf %378, %380 : vector<8x256xf32>
    %cst = arith.constant 0.000000e+00 : f32
    %382 = vector.broadcast %cst : f32 to vector<8x256xf32>
    %383 = arith.maximumf %381, %382 : vector<8x256xf32>
    %c1_6 = arith.constant 1 : index
    %384 = memref.load %arg3[%c1_6] : memref<15xf32, #tpu.memory_space<smem>>
    %385 = arith.addf %346, %359 : vector<8x256xf32>
    %386 = vector.broadcast %384 : f32 to vector<8x256xf32>
    %387 = arith.addf %372, %386 : vector<8x256xf32>
    %388 = arith.addf %385, %387 : vector<8x256xf32>
    %cst_7 = arith.constant 0.000000e+00 : f32
    %389 = vector.broadcast %cst_7 : f32 to vector<8x256xf32>
    %390 = arith.maximumf %388, %389 : vector<8x256xf32>
    %c2_8 = arith.constant 2 : index
    %391 = memref.load %arg3[%c2_8] : memref<15xf32, #tpu.memory_space<smem>>
    %392 = arith.addf %350, %363 : vector<8x256xf32>
    %393 = vector.broadcast %391 : f32 to vector<8x256xf32>
    %394 = arith.addf %376, %393 : vector<8x256xf32>
    %395 = arith.addf %392, %394 : vector<8x256xf32>
    %cst_9 = arith.constant 0.000000e+00 : f32
    %396 = vector.broadcast %cst_9 : f32 to vector<8x256xf32>
    %397 = arith.maximumf %395, %396 : vector<8x256xf32>
    %398 = tpu.concatenate %383, %390, %397 in 0 : vector<8x256xf32>, vector<8x256xf32>, vector<8x256xf32> -> vector<24x256xf32>
    %c17_i32_10 = arith.constant 17 : i32
    %399 = tpu.dynamic_rotate %398 by %c17_i32_10 dim 1 : vector<24x256xf32>, i32 -> vector<24x256xf32>
    %400 = vector.extract_strided_slice %2 {offsets = [0, 0], sizes = [1, 256], strides = [1, 1]} : vector<9x256xf32> to vector<1x256xf32>
    %401 = vector.broadcast %400 : vector<1x256xf32> to vector<24x256xf32>
    %402 = arith.mulf %399, %401 : vector<24x256xf32>
    %403 = vector.extract_strided_slice %402 {offsets = [0, 0], sizes = [8, 256], strides = [1, 1]} : vector<24x256xf32> to vector<8x256xf32>
    %c81 = arith.constant 81 : index
    %404 = memref.load %arg2[%c81] : memref<405xf32, #tpu.memory_space<smem>>
    %405 = vector.broadcast %404 : f32 to vector<8x256xf32>
    %406 = arith.mulf %405, %403 : vector<8x256xf32>
    %c82 = arith.constant 82 : index
    %407 = memref.load %arg2[%c82] : memref<405xf32, #tpu.memory_space<smem>>
    %408 = vector.broadcast %407 : f32 to vector<8x256xf32>
    %409 = arith.mulf %408, %403 : vector<8x256xf32>
    %c83 = arith.constant 83 : index
    %410 = memref.load %arg2[%c83] : memref<405xf32, #tpu.memory_space<smem>>
    %411 = vector.broadcast %410 : f32 to vector<8x256xf32>
    %412 = arith.mulf %411, %403 : vector<8x256xf32>
    %413 = vector.extract_strided_slice %402 {offsets = [8, 0], sizes = [8, 256], strides = [1, 1]} : vector<24x256xf32> to vector<8x256xf32>
    %c84 = arith.constant 84 : index
    %414 = memref.load %arg2[%c84] : memref<405xf32, #tpu.memory_space<smem>>
    %415 = vector.broadcast %414 : f32 to vector<8x256xf32>
    %416 = arith.mulf %415, %413 : vector<8x256xf32>
    %c85 = arith.constant 85 : index
    %417 = memref.load %arg2[%c85] : memref<405xf32, #tpu.memory_space<smem>>
    %418 = vector.broadcast %417 : f32 to vector<8x256xf32>
    %419 = arith.mulf %418, %413 : vector<8x256xf32>
    %c86 = arith.constant 86 : index
    %420 = memref.load %arg2[%c86] : memref<405xf32, #tpu.memory_space<smem>>
    %421 = vector.broadcast %420 : f32 to vector<8x256xf32>
    %422 = arith.mulf %421, %413 : vector<8x256xf32>
    %423 = vector.extract_strided_slice %402 {offsets = [16, 0], sizes = [8, 256], strides = [1, 1]} : vector<24x256xf32> to vector<8x256xf32>
    %c87 = arith.constant 87 : index
    %424 = memref.load %arg2[%c87] : memref<405xf32, #tpu.memory_space<smem>>
    %425 = vector.broadcast %424 : f32 to vector<8x256xf32>
    %426 = arith.mulf %425, %423 : vector<8x256xf32>
    %c88 = arith.constant 88 : index
    %427 = memref.load %arg2[%c88] : memref<405xf32, #tpu.memory_space<smem>>
    %428 = vector.broadcast %427 : f32 to vector<8x256xf32>
    %429 = arith.mulf %428, %423 : vector<8x256xf32>
    %c89 = arith.constant 89 : index
    %430 = memref.load %arg2[%c89] : memref<405xf32, #tpu.memory_space<smem>>
    %431 = vector.broadcast %430 : f32 to vector<8x256xf32>
    %432 = arith.mulf %431, %423 : vector<8x256xf32>
    %c16_i32_11 = arith.constant 16 : i32
    %433 = tpu.dynamic_rotate %398 by %c16_i32_11 dim 1 : vector<24x256xf32>, i32 -> vector<24x256xf32>
    %434 = vector.extract_strided_slice %2 {offsets = [1, 0], sizes = [1, 256], strides = [1, 1]} : vector<9x256xf32> to vector<1x256xf32>
    %435 = vector.broadcast %434 : vector<1x256xf32> to vector<24x256xf32>
    %436 = arith.mulf %433, %435 : vector<24x256xf32>
    %437 = vector.extract_strided_slice %436 {offsets = [0, 0], sizes = [8, 256], strides = [1, 1]} : vector<24x256xf32> to vector<8x256xf32>
    %c90 = arith.constant 90 : index
    %438 = memref.load %arg2[%c90] : memref<405xf32, #tpu.memory_space<smem>>
    %439 = vector.broadcast %438 : f32 to vector<8x256xf32>
    %440 = arith.mulf %439, %437 : vector<8x256xf32>
    %441 = arith.addf %406, %440 : vector<8x256xf32>
    %c91 = arith.constant 91 : index
    %442 = memref.load %arg2[%c91] : memref<405xf32, #tpu.memory_space<smem>>
    %443 = vector.broadcast %442 : f32 to vector<8x256xf32>
    %444 = arith.mulf %443, %437 : vector<8x256xf32>
    %445 = arith.addf %409, %444 : vector<8x256xf32>
    %c92 = arith.constant 92 : index
    %446 = memref.load %arg2[%c92] : memref<405xf32, #tpu.memory_space<smem>>
    %447 = vector.broadcast %446 : f32 to vector<8x256xf32>
    %448 = arith.mulf %447, %437 : vector<8x256xf32>
    %449 = arith.addf %412, %448 : vector<8x256xf32>
    %450 = vector.extract_strided_slice %436 {offsets = [8, 0], sizes = [8, 256], strides = [1, 1]} : vector<24x256xf32> to vector<8x256xf32>
    %c93 = arith.constant 93 : index
    %451 = memref.load %arg2[%c93] : memref<405xf32, #tpu.memory_space<smem>>
    %452 = vector.broadcast %451 : f32 to vector<8x256xf32>
    %453 = arith.mulf %452, %450 : vector<8x256xf32>
    %454 = arith.addf %416, %453 : vector<8x256xf32>
    %c94 = arith.constant 94 : index
    %455 = memref.load %arg2[%c94] : memref<405xf32, #tpu.memory_space<smem>>
    %456 = vector.broadcast %455 : f32 to vector<8x256xf32>
    %457 = arith.mulf %456, %450 : vector<8x256xf32>
    %458 = arith.addf %419, %457 : vector<8x256xf32>
    %c95 = arith.constant 95 : index
    %459 = memref.load %arg2[%c95] : memref<405xf32, #tpu.memory_space<smem>>
    %460 = vector.broadcast %459 : f32 to vector<8x256xf32>
    %461 = arith.mulf %460, %450 : vector<8x256xf32>
    %462 = arith.addf %422, %461 : vector<8x256xf32>
    %463 = vector.extract_strided_slice %436 {offsets = [16, 0], sizes = [8, 256], strides = [1, 1]} : vector<24x256xf32> to vector<8x256xf32>
    %c96 = arith.constant 96 : index
    %464 = memref.load %arg2[%c96] : memref<405xf32, #tpu.memory_space<smem>>
    %465 = vector.broadcast %464 : f32 to vector<8x256xf32>
    %466 = arith.mulf %465, %463 : vector<8x256xf32>
    %467 = arith.addf %426, %466 : vector<8x256xf32>
    %c97 = arith.constant 97 : index
    %468 = memref.load %arg2[%c97] : memref<405xf32, #tpu.memory_space<smem>>
    %469 = vector.broadcast %468 : f32 to vector<8x256xf32>
    %470 = arith.mulf %469, %463 : vector<8x256xf32>
    %471 = arith.addf %429, %470 : vector<8x256xf32>
    %c98 = arith.constant 98 : index
    %472 = memref.load %arg2[%c98] : memref<405xf32, #tpu.memory_space<smem>>
    %473 = vector.broadcast %472 : f32 to vector<8x256xf32>
    %474 = arith.mulf %473, %463 : vector<8x256xf32>
    %475 = arith.addf %432, %474 : vector<8x256xf32>
    %c15_i32_12 = arith.constant 15 : i32
    %476 = tpu.dynamic_rotate %398 by %c15_i32_12 dim 1 : vector<24x256xf32>, i32 -> vector<24x256xf32>
    %477 = vector.extract_strided_slice %2 {offsets = [2, 0], sizes = [1, 256], strides = [1, 1]} : vector<9x256xf32> to vector<1x256xf32>
    %478 = vector.broadcast %477 : vector<1x256xf32> to vector<24x256xf32>
    %479 = arith.mulf %476, %478 : vector<24x256xf32>
    %480 = vector.extract_strided_slice %479 {offsets = [0, 0], sizes = [8, 256], strides = [1, 1]} : vector<24x256xf32> to vector<8x256xf32>
    %c99 = arith.constant 99 : index
    %481 = memref.load %arg2[%c99] : memref<405xf32, #tpu.memory_space<smem>>
    %482 = vector.broadcast %481 : f32 to vector<8x256xf32>
    %483 = arith.mulf %482, %480 : vector<8x256xf32>
    %484 = arith.addf %441, %483 : vector<8x256xf32>
    %c100 = arith.constant 100 : index
    %485 = memref.load %arg2[%c100] : memref<405xf32, #tpu.memory_space<smem>>
    %486 = vector.broadcast %485 : f32 to vector<8x256xf32>
    %487 = arith.mulf %486, %480 : vector<8x256xf32>
    %488 = arith.addf %445, %487 : vector<8x256xf32>
    %c101 = arith.constant 101 : index
    %489 = memref.load %arg2[%c101] : memref<405xf32, #tpu.memory_space<smem>>
    %490 = vector.broadcast %489 : f32 to vector<8x256xf32>
    %491 = arith.mulf %490, %480 : vector<8x256xf32>
    %492 = arith.addf %449, %491 : vector<8x256xf32>
    %493 = vector.extract_strided_slice %479 {offsets = [8, 0], sizes = [8, 256], strides = [1, 1]} : vector<24x256xf32> to vector<8x256xf32>
    %c102 = arith.constant 102 : index
    %494 = memref.load %arg2[%c102] : memref<405xf32, #tpu.memory_space<smem>>
    %495 = vector.broadcast %494 : f32 to vector<8x256xf32>
    %496 = arith.mulf %495, %493 : vector<8x256xf32>
    %497 = arith.addf %454, %496 : vector<8x256xf32>
    %c103 = arith.constant 103 : index
    %498 = memref.load %arg2[%c103] : memref<405xf32, #tpu.memory_space<smem>>
    %499 = vector.broadcast %498 : f32 to vector<8x256xf32>
    %500 = arith.mulf %499, %493 : vector<8x256xf32>
    %501 = arith.addf %458, %500 : vector<8x256xf32>
    %c104 = arith.constant 104 : index
    %502 = memref.load %arg2[%c104] : memref<405xf32, #tpu.memory_space<smem>>
    %503 = vector.broadcast %502 : f32 to vector<8x256xf32>
    %504 = arith.mulf %503, %493 : vector<8x256xf32>
    %505 = arith.addf %462, %504 : vector<8x256xf32>
    %506 = vector.extract_strided_slice %479 {offsets = [16, 0], sizes = [8, 256], strides = [1, 1]} : vector<24x256xf32> to vector<8x256xf32>
    %c105 = arith.constant 105 : index
    %507 = memref.load %arg2[%c105] : memref<405xf32, #tpu.memory_space<smem>>
    %508 = vector.broadcast %507 : f32 to vector<8x256xf32>
    %509 = arith.mulf %508, %506 : vector<8x256xf32>
    %510 = arith.addf %467, %509 : vector<8x256xf32>
    %c106 = arith.constant 106 : index
    %511 = memref.load %arg2[%c106] : memref<405xf32, #tpu.memory_space<smem>>
    %512 = vector.broadcast %511 : f32 to vector<8x256xf32>
    %513 = arith.mulf %512, %506 : vector<8x256xf32>
    %514 = arith.addf %471, %513 : vector<8x256xf32>
    %c107 = arith.constant 107 : index
    %515 = memref.load %arg2[%c107] : memref<405xf32, #tpu.memory_space<smem>>
    %516 = vector.broadcast %515 : f32 to vector<8x256xf32>
    %517 = arith.mulf %516, %506 : vector<8x256xf32>
    %518 = arith.addf %475, %517 : vector<8x256xf32>
    %c1_i32_13 = arith.constant 1 : i32
    %519 = tpu.dynamic_rotate %398 by %c1_i32_13 dim 1 : vector<24x256xf32>, i32 -> vector<24x256xf32>
    %520 = vector.extract_strided_slice %2 {offsets = [3, 0], sizes = [1, 256], strides = [1, 1]} : vector<9x256xf32> to vector<1x256xf32>
    %521 = vector.broadcast %520 : vector<1x256xf32> to vector<24x256xf32>
    %522 = arith.mulf %519, %521 : vector<24x256xf32>
    %523 = vector.extract_strided_slice %522 {offsets = [0, 0], sizes = [8, 256], strides = [1, 1]} : vector<24x256xf32> to vector<8x256xf32>
    %c108 = arith.constant 108 : index
    %524 = memref.load %arg2[%c108] : memref<405xf32, #tpu.memory_space<smem>>
    %525 = vector.broadcast %524 : f32 to vector<8x256xf32>
    %526 = arith.mulf %525, %523 : vector<8x256xf32>
    %527 = arith.addf %484, %526 : vector<8x256xf32>
    %c109 = arith.constant 109 : index
    %528 = memref.load %arg2[%c109] : memref<405xf32, #tpu.memory_space<smem>>
    %529 = vector.broadcast %528 : f32 to vector<8x256xf32>
    %530 = arith.mulf %529, %523 : vector<8x256xf32>
    %531 = arith.addf %488, %530 : vector<8x256xf32>
    %c110 = arith.constant 110 : index
    %532 = memref.load %arg2[%c110] : memref<405xf32, #tpu.memory_space<smem>>
    %533 = vector.broadcast %532 : f32 to vector<8x256xf32>
    %534 = arith.mulf %533, %523 : vector<8x256xf32>
    %535 = arith.addf %492, %534 : vector<8x256xf32>
    %536 = vector.extract_strided_slice %522 {offsets = [8, 0], sizes = [8, 256], strides = [1, 1]} : vector<24x256xf32> to vector<8x256xf32>
    %c111 = arith.constant 111 : index
    %537 = memref.load %arg2[%c111] : memref<405xf32, #tpu.memory_space<smem>>
    %538 = vector.broadcast %537 : f32 to vector<8x256xf32>
    %539 = arith.mulf %538, %536 : vector<8x256xf32>
    %540 = arith.addf %497, %539 : vector<8x256xf32>
    %c112 = arith.constant 112 : index
    %541 = memref.load %arg2[%c112] : memref<405xf32, #tpu.memory_space<smem>>
    %542 = vector.broadcast %541 : f32 to vector<8x256xf32>
    %543 = arith.mulf %542, %536 : vector<8x256xf32>
    %544 = arith.addf %501, %543 : vector<8x256xf32>
    %c113 = arith.constant 113 : index
    %545 = memref.load %arg2[%c113] : memref<405xf32, #tpu.memory_space<smem>>
    %546 = vector.broadcast %545 : f32 to vector<8x256xf32>
    %547 = arith.mulf %546, %536 : vector<8x256xf32>
    %548 = arith.addf %505, %547 : vector<8x256xf32>
    %549 = vector.extract_strided_slice %522 {offsets = [16, 0], sizes = [8, 256], strides = [1, 1]} : vector<24x256xf32> to vector<8x256xf32>
    %c114 = arith.constant 114 : index
    %550 = memref.load %arg2[%c114] : memref<405xf32, #tpu.memory_space<smem>>
    %551 = vector.broadcast %550 : f32 to vector<8x256xf32>
    %552 = arith.mulf %551, %549 : vector<8x256xf32>
    %553 = arith.addf %510, %552 : vector<8x256xf32>
    %c115 = arith.constant 115 : index
    %554 = memref.load %arg2[%c115] : memref<405xf32, #tpu.memory_space<smem>>
    %555 = vector.broadcast %554 : f32 to vector<8x256xf32>
    %556 = arith.mulf %555, %549 : vector<8x256xf32>
    %557 = arith.addf %514, %556 : vector<8x256xf32>
    %c116 = arith.constant 116 : index
    %558 = memref.load %arg2[%c116] : memref<405xf32, #tpu.memory_space<smem>>
    %559 = vector.broadcast %558 : f32 to vector<8x256xf32>
    %560 = arith.mulf %559, %549 : vector<8x256xf32>
    %561 = arith.addf %518, %560 : vector<8x256xf32>
    %562 = vector.extract_strided_slice %398 {offsets = [0, 0], sizes = [8, 256], strides = [1, 1]} : vector<24x256xf32> to vector<8x256xf32>
    %c117 = arith.constant 117 : index
    %563 = memref.load %arg2[%c117] : memref<405xf32, #tpu.memory_space<smem>>
    %564 = vector.broadcast %563 : f32 to vector<8x256xf32>
    %565 = arith.mulf %564, %562 : vector<8x256xf32>
    %566 = arith.addf %527, %565 : vector<8x256xf32>
    %c118 = arith.constant 118 : index
    %567 = memref.load %arg2[%c118] : memref<405xf32, #tpu.memory_space<smem>>
    %568 = vector.broadcast %567 : f32 to vector<8x256xf32>
    %569 = arith.mulf %568, %562 : vector<8x256xf32>
    %570 = arith.addf %531, %569 : vector<8x256xf32>
    %c119 = arith.constant 119 : index
    %571 = memref.load %arg2[%c119] : memref<405xf32, #tpu.memory_space<smem>>
    %572 = vector.broadcast %571 : f32 to vector<8x256xf32>
    %573 = arith.mulf %572, %562 : vector<8x256xf32>
    %574 = arith.addf %535, %573 : vector<8x256xf32>
    %575 = vector.extract_strided_slice %398 {offsets = [8, 0], sizes = [8, 256], strides = [1, 1]} : vector<24x256xf32> to vector<8x256xf32>
    %c120 = arith.constant 120 : index
    %576 = memref.load %arg2[%c120] : memref<405xf32, #tpu.memory_space<smem>>
    %577 = vector.broadcast %576 : f32 to vector<8x256xf32>
    %578 = arith.mulf %577, %575 : vector<8x256xf32>
    %579 = arith.addf %540, %578 : vector<8x256xf32>
    %c121 = arith.constant 121 : index
    %580 = memref.load %arg2[%c121] : memref<405xf32, #tpu.memory_space<smem>>
    %581 = vector.broadcast %580 : f32 to vector<8x256xf32>
    %582 = arith.mulf %581, %575 : vector<8x256xf32>
    %583 = arith.addf %544, %582 : vector<8x256xf32>
    %c122 = arith.constant 122 : index
    %584 = memref.load %arg2[%c122] : memref<405xf32, #tpu.memory_space<smem>>
    %585 = vector.broadcast %584 : f32 to vector<8x256xf32>
    %586 = arith.mulf %585, %575 : vector<8x256xf32>
    %587 = arith.addf %548, %586 : vector<8x256xf32>
    %588 = vector.extract_strided_slice %398 {offsets = [16, 0], sizes = [8, 256], strides = [1, 1]} : vector<24x256xf32> to vector<8x256xf32>
    %c123 = arith.constant 123 : index
    %589 = memref.load %arg2[%c123] : memref<405xf32, #tpu.memory_space<smem>>
    %590 = vector.broadcast %589 : f32 to vector<8x256xf32>
    %591 = arith.mulf %590, %588 : vector<8x256xf32>
    %592 = arith.addf %553, %591 : vector<8x256xf32>
    %c124 = arith.constant 124 : index
    %593 = memref.load %arg2[%c124] : memref<405xf32, #tpu.memory_space<smem>>
    %594 = vector.broadcast %593 : f32 to vector<8x256xf32>
    %595 = arith.mulf %594, %588 : vector<8x256xf32>
    %596 = arith.addf %557, %595 : vector<8x256xf32>
    %c125 = arith.constant 125 : index
    %597 = memref.load %arg2[%c125] : memref<405xf32, #tpu.memory_space<smem>>
    %598 = vector.broadcast %597 : f32 to vector<8x256xf32>
    %599 = arith.mulf %598, %588 : vector<8x256xf32>
    %600 = arith.addf %561, %599 : vector<8x256xf32>
    %c255_i32_14 = arith.constant 255 : i32
    %601 = tpu.dynamic_rotate %398 by %c255_i32_14 dim 1 : vector<24x256xf32>, i32 -> vector<24x256xf32>
    %602 = vector.extract_strided_slice %2 {offsets = [5, 0], sizes = [1, 256], strides = [1, 1]} : vector<9x256xf32> to vector<1x256xf32>
    %603 = vector.broadcast %602 : vector<1x256xf32> to vector<24x256xf32>
    %604 = arith.mulf %601, %603 : vector<24x256xf32>
    %605 = vector.extract_strided_slice %604 {offsets = [0, 0], sizes = [8, 256], strides = [1, 1]} : vector<24x256xf32> to vector<8x256xf32>
    %c126 = arith.constant 126 : index
    %606 = memref.load %arg2[%c126] : memref<405xf32, #tpu.memory_space<smem>>
    %607 = vector.broadcast %606 : f32 to vector<8x256xf32>
    %608 = arith.mulf %607, %605 : vector<8x256xf32>
    %609 = arith.addf %566, %608 : vector<8x256xf32>
    %c127 = arith.constant 127 : index
    %610 = memref.load %arg2[%c127] : memref<405xf32, #tpu.memory_space<smem>>
    %611 = vector.broadcast %610 : f32 to vector<8x256xf32>
    %612 = arith.mulf %611, %605 : vector<8x256xf32>
    %613 = arith.addf %570, %612 : vector<8x256xf32>
    %c128 = arith.constant 128 : index
    %614 = memref.load %arg2[%c128] : memref<405xf32, #tpu.memory_space<smem>>
    %615 = vector.broadcast %614 : f32 to vector<8x256xf32>
    %616 = arith.mulf %615, %605 : vector<8x256xf32>
    %617 = arith.addf %574, %616 : vector<8x256xf32>
    %618 = vector.extract_strided_slice %604 {offsets = [8, 0], sizes = [8, 256], strides = [1, 1]} : vector<24x256xf32> to vector<8x256xf32>
    %c129 = arith.constant 129 : index
    %619 = memref.load %arg2[%c129] : memref<405xf32, #tpu.memory_space<smem>>
    %620 = vector.broadcast %619 : f32 to vector<8x256xf32>
    %621 = arith.mulf %620, %618 : vector<8x256xf32>
    %622 = arith.addf %579, %621 : vector<8x256xf32>
    %c130 = arith.constant 130 : index
    %623 = memref.load %arg2[%c130] : memref<405xf32, #tpu.memory_space<smem>>
    %624 = vector.broadcast %623 : f32 to vector<8x256xf32>
    %625 = arith.mulf %624, %618 : vector<8x256xf32>
    %626 = arith.addf %583, %625 : vector<8x256xf32>
    %c131 = arith.constant 131 : index
    %627 = memref.load %arg2[%c131] : memref<405xf32, #tpu.memory_space<smem>>
    %628 = vector.broadcast %627 : f32 to vector<8x256xf32>
    %629 = arith.mulf %628, %618 : vector<8x256xf32>
    %630 = arith.addf %587, %629 : vector<8x256xf32>
    %631 = vector.extract_strided_slice %604 {offsets = [16, 0], sizes = [8, 256], strides = [1, 1]} : vector<24x256xf32> to vector<8x256xf32>
    %c132 = arith.constant 132 : index
    %632 = memref.load %arg2[%c132] : memref<405xf32, #tpu.memory_space<smem>>
    %633 = vector.broadcast %632 : f32 to vector<8x256xf32>
    %634 = arith.mulf %633, %631 : vector<8x256xf32>
    %635 = arith.addf %592, %634 : vector<8x256xf32>
    %c133 = arith.constant 133 : index
    %636 = memref.load %arg2[%c133] : memref<405xf32, #tpu.memory_space<smem>>
    %637 = vector.broadcast %636 : f32 to vector<8x256xf32>
    %638 = arith.mulf %637, %631 : vector<8x256xf32>
    %639 = arith.addf %596, %638 : vector<8x256xf32>
    %c134 = arith.constant 134 : index
    %640 = memref.load %arg2[%c134] : memref<405xf32, #tpu.memory_space<smem>>
    %641 = vector.broadcast %640 : f32 to vector<8x256xf32>
    %642 = arith.mulf %641, %631 : vector<8x256xf32>
    %643 = arith.addf %600, %642 : vector<8x256xf32>
    %c241_i32_15 = arith.constant 241 : i32
    %644 = tpu.dynamic_rotate %398 by %c241_i32_15 dim 1 : vector<24x256xf32>, i32 -> vector<24x256xf32>
    %645 = vector.extract_strided_slice %2 {offsets = [6, 0], sizes = [1, 256], strides = [1, 1]} : vector<9x256xf32> to vector<1x256xf32>
    %646 = vector.broadcast %645 : vector<1x256xf32> to vector<24x256xf32>
    %647 = arith.mulf %644, %646 : vector<24x256xf32>
    %648 = vector.extract_strided_slice %647 {offsets = [0, 0], sizes = [8, 256], strides = [1, 1]} : vector<24x256xf32> to vector<8x256xf32>
    %c135 = arith.constant 135 : index
    %649 = memref.load %arg2[%c135] : memref<405xf32, #tpu.memory_space<smem>>
    %650 = vector.broadcast %649 : f32 to vector<8x256xf32>
    %651 = arith.mulf %650, %648 : vector<8x256xf32>
    %652 = arith.addf %609, %651 : vector<8x256xf32>
    %c136 = arith.constant 136 : index
    %653 = memref.load %arg2[%c136] : memref<405xf32, #tpu.memory_space<smem>>
    %654 = vector.broadcast %653 : f32 to vector<8x256xf32>
    %655 = arith.mulf %654, %648 : vector<8x256xf32>
    %656 = arith.addf %613, %655 : vector<8x256xf32>
    %c137 = arith.constant 137 : index
    %657 = memref.load %arg2[%c137] : memref<405xf32, #tpu.memory_space<smem>>
    %658 = vector.broadcast %657 : f32 to vector<8x256xf32>
    %659 = arith.mulf %658, %648 : vector<8x256xf32>
    %660 = arith.addf %617, %659 : vector<8x256xf32>
    %661 = vector.extract_strided_slice %647 {offsets = [8, 0], sizes = [8, 256], strides = [1, 1]} : vector<24x256xf32> to vector<8x256xf32>
    %c138 = arith.constant 138 : index
    %662 = memref.load %arg2[%c138] : memref<405xf32, #tpu.memory_space<smem>>
    %663 = vector.broadcast %662 : f32 to vector<8x256xf32>
    %664 = arith.mulf %663, %661 : vector<8x256xf32>
    %665 = arith.addf %622, %664 : vector<8x256xf32>
    %c139 = arith.constant 139 : index
    %666 = memref.load %arg2[%c139] : memref<405xf32, #tpu.memory_space<smem>>
    %667 = vector.broadcast %666 : f32 to vector<8x256xf32>
    %668 = arith.mulf %667, %661 : vector<8x256xf32>
    %669 = arith.addf %626, %668 : vector<8x256xf32>
    %c140 = arith.constant 140 : index
    %670 = memref.load %arg2[%c140] : memref<405xf32, #tpu.memory_space<smem>>
    %671 = vector.broadcast %670 : f32 to vector<8x256xf32>
    %672 = arith.mulf %671, %661 : vector<8x256xf32>
    %673 = arith.addf %630, %672 : vector<8x256xf32>
    %674 = vector.extract_strided_slice %647 {offsets = [16, 0], sizes = [8, 256], strides = [1, 1]} : vector<24x256xf32> to vector<8x256xf32>
    %c141 = arith.constant 141 : index
    %675 = memref.load %arg2[%c141] : memref<405xf32, #tpu.memory_space<smem>>
    %676 = vector.broadcast %675 : f32 to vector<8x256xf32>
    %677 = arith.mulf %676, %674 : vector<8x256xf32>
    %678 = arith.addf %635, %677 : vector<8x256xf32>
    %c142 = arith.constant 142 : index
    %679 = memref.load %arg2[%c142] : memref<405xf32, #tpu.memory_space<smem>>
    %680 = vector.broadcast %679 : f32 to vector<8x256xf32>
    %681 = arith.mulf %680, %674 : vector<8x256xf32>
    %682 = arith.addf %639, %681 : vector<8x256xf32>
    %c143 = arith.constant 143 : index
    %683 = memref.load %arg2[%c143] : memref<405xf32, #tpu.memory_space<smem>>
    %684 = vector.broadcast %683 : f32 to vector<8x256xf32>
    %685 = arith.mulf %684, %674 : vector<8x256xf32>
    %686 = arith.addf %643, %685 : vector<8x256xf32>
    %c240_i32_16 = arith.constant 240 : i32
    %687 = tpu.dynamic_rotate %398 by %c240_i32_16 dim 1 : vector<24x256xf32>, i32 -> vector<24x256xf32>
    %688 = vector.extract_strided_slice %2 {offsets = [7, 0], sizes = [1, 256], strides = [1, 1]} : vector<9x256xf32> to vector<1x256xf32>
    %689 = vector.broadcast %688 : vector<1x256xf32> to vector<24x256xf32>
    %690 = arith.mulf %687, %689 : vector<24x256xf32>
    %691 = vector.extract_strided_slice %690 {offsets = [0, 0], sizes = [8, 256], strides = [1, 1]} : vector<24x256xf32> to vector<8x256xf32>
    %c144 = arith.constant 144 : index
    %692 = memref.load %arg2[%c144] : memref<405xf32, #tpu.memory_space<smem>>
    %693 = vector.broadcast %692 : f32 to vector<8x256xf32>
    %694 = arith.mulf %693, %691 : vector<8x256xf32>
    %695 = arith.addf %652, %694 : vector<8x256xf32>
    %c145 = arith.constant 145 : index
    %696 = memref.load %arg2[%c145] : memref<405xf32, #tpu.memory_space<smem>>
    %697 = vector.broadcast %696 : f32 to vector<8x256xf32>
    %698 = arith.mulf %697, %691 : vector<8x256xf32>
    %699 = arith.addf %656, %698 : vector<8x256xf32>
    %c146 = arith.constant 146 : index
    %700 = memref.load %arg2[%c146] : memref<405xf32, #tpu.memory_space<smem>>
    %701 = vector.broadcast %700 : f32 to vector<8x256xf32>
    %702 = arith.mulf %701, %691 : vector<8x256xf32>
    %703 = arith.addf %660, %702 : vector<8x256xf32>
    %704 = vector.extract_strided_slice %690 {offsets = [8, 0], sizes = [8, 256], strides = [1, 1]} : vector<24x256xf32> to vector<8x256xf32>
    %c147 = arith.constant 147 : index
    %705 = memref.load %arg2[%c147] : memref<405xf32, #tpu.memory_space<smem>>
    %706 = vector.broadcast %705 : f32 to vector<8x256xf32>
    %707 = arith.mulf %706, %704 : vector<8x256xf32>
    %708 = arith.addf %665, %707 : vector<8x256xf32>
    %c148 = arith.constant 148 : index
    %709 = memref.load %arg2[%c148] : memref<405xf32, #tpu.memory_space<smem>>
    %710 = vector.broadcast %709 : f32 to vector<8x256xf32>
    %711 = arith.mulf %710, %704 : vector<8x256xf32>
    %712 = arith.addf %669, %711 : vector<8x256xf32>
    %c149 = arith.constant 149 : index
    %713 = memref.load %arg2[%c149] : memref<405xf32, #tpu.memory_space<smem>>
    %714 = vector.broadcast %713 : f32 to vector<8x256xf32>
    %715 = arith.mulf %714, %704 : vector<8x256xf32>
    %716 = arith.addf %673, %715 : vector<8x256xf32>
    %717 = vector.extract_strided_slice %690 {offsets = [16, 0], sizes = [8, 256], strides = [1, 1]} : vector<24x256xf32> to vector<8x256xf32>
    %c150 = arith.constant 150 : index
    %718 = memref.load %arg2[%c150] : memref<405xf32, #tpu.memory_space<smem>>
    %719 = vector.broadcast %718 : f32 to vector<8x256xf32>
    %720 = arith.mulf %719, %717 : vector<8x256xf32>
    %721 = arith.addf %678, %720 : vector<8x256xf32>
    %c151 = arith.constant 151 : index
    %722 = memref.load %arg2[%c151] : memref<405xf32, #tpu.memory_space<smem>>
    %723 = vector.broadcast %722 : f32 to vector<8x256xf32>
    %724 = arith.mulf %723, %717 : vector<8x256xf32>
    %725 = arith.addf %682, %724 : vector<8x256xf32>
    %c152 = arith.constant 152 : index
    %726 = memref.load %arg2[%c152] : memref<405xf32, #tpu.memory_space<smem>>
    %727 = vector.broadcast %726 : f32 to vector<8x256xf32>
    %728 = arith.mulf %727, %717 : vector<8x256xf32>
    %729 = arith.addf %686, %728 : vector<8x256xf32>
    %c239_i32_17 = arith.constant 239 : i32
    %730 = tpu.dynamic_rotate %398 by %c239_i32_17 dim 1 : vector<24x256xf32>, i32 -> vector<24x256xf32>
    %731 = vector.extract_strided_slice %2 {offsets = [8, 0], sizes = [1, 256], strides = [1, 1]} : vector<9x256xf32> to vector<1x256xf32>
    %732 = vector.broadcast %731 : vector<1x256xf32> to vector<24x256xf32>
    %733 = arith.mulf %730, %732 : vector<24x256xf32>
    %734 = vector.extract_strided_slice %733 {offsets = [0, 0], sizes = [8, 256], strides = [1, 1]} : vector<24x256xf32> to vector<8x256xf32>
    %c153 = arith.constant 153 : index
    %735 = memref.load %arg2[%c153] : memref<405xf32, #tpu.memory_space<smem>>
    %736 = vector.broadcast %735 : f32 to vector<8x256xf32>
    %737 = arith.mulf %736, %734 : vector<8x256xf32>
    %738 = arith.addf %695, %737 : vector<8x256xf32>
    %c154 = arith.constant 154 : index
    %739 = memref.load %arg2[%c154] : memref<405xf32, #tpu.memory_space<smem>>
    %740 = vector.broadcast %739 : f32 to vector<8x256xf32>
    %741 = arith.mulf %740, %734 : vector<8x256xf32>
    %742 = arith.addf %699, %741 : vector<8x256xf32>
    %c155 = arith.constant 155 : index
    %743 = memref.load %arg2[%c155] : memref<405xf32, #tpu.memory_space<smem>>
    %744 = vector.broadcast %743 : f32 to vector<8x256xf32>
    %745 = arith.mulf %744, %734 : vector<8x256xf32>
    %746 = arith.addf %703, %745 : vector<8x256xf32>
    %747 = vector.extract_strided_slice %733 {offsets = [8, 0], sizes = [8, 256], strides = [1, 1]} : vector<24x256xf32> to vector<8x256xf32>
    %c156 = arith.constant 156 : index
    %748 = memref.load %arg2[%c156] : memref<405xf32, #tpu.memory_space<smem>>
    %749 = vector.broadcast %748 : f32 to vector<8x256xf32>
    %750 = arith.mulf %749, %747 : vector<8x256xf32>
    %751 = arith.addf %708, %750 : vector<8x256xf32>
    %c157 = arith.constant 157 : index
    %752 = memref.load %arg2[%c157] : memref<405xf32, #tpu.memory_space<smem>>
    %753 = vector.broadcast %752 : f32 to vector<8x256xf32>
    %754 = arith.mulf %753, %747 : vector<8x256xf32>
    %755 = arith.addf %712, %754 : vector<8x256xf32>
    %c158 = arith.constant 158 : index
    %756 = memref.load %arg2[%c158] : memref<405xf32, #tpu.memory_space<smem>>
    %757 = vector.broadcast %756 : f32 to vector<8x256xf32>
    %758 = arith.mulf %757, %747 : vector<8x256xf32>
    %759 = arith.addf %716, %758 : vector<8x256xf32>
    %760 = vector.extract_strided_slice %733 {offsets = [16, 0], sizes = [8, 256], strides = [1, 1]} : vector<24x256xf32> to vector<8x256xf32>
    %c159 = arith.constant 159 : index
    %761 = memref.load %arg2[%c159] : memref<405xf32, #tpu.memory_space<smem>>
    %762 = vector.broadcast %761 : f32 to vector<8x256xf32>
    %763 = arith.mulf %762, %760 : vector<8x256xf32>
    %764 = arith.addf %721, %763 : vector<8x256xf32>
    %c160 = arith.constant 160 : index
    %765 = memref.load %arg2[%c160] : memref<405xf32, #tpu.memory_space<smem>>
    %766 = vector.broadcast %765 : f32 to vector<8x256xf32>
    %767 = arith.mulf %766, %760 : vector<8x256xf32>
    %768 = arith.addf %725, %767 : vector<8x256xf32>
    %c161 = arith.constant 161 : index
    %769 = memref.load %arg2[%c161] : memref<405xf32, #tpu.memory_space<smem>>
    %770 = vector.broadcast %769 : f32 to vector<8x256xf32>
    %771 = arith.mulf %770, %760 : vector<8x256xf32>
    %772 = arith.addf %729, %771 : vector<8x256xf32>
    %c3_18 = arith.constant 3 : index
    %773 = memref.load %arg3[%c3_18] : memref<15xf32, #tpu.memory_space<smem>>
    %774 = arith.addf %738, %751 : vector<8x256xf32>
    %775 = vector.broadcast %773 : f32 to vector<8x256xf32>
    %776 = arith.addf %764, %775 : vector<8x256xf32>
    %777 = arith.addf %774, %776 : vector<8x256xf32>
    %cst_19 = arith.constant 0.000000e+00 : f32
    %778 = vector.broadcast %cst_19 : f32 to vector<8x256xf32>
    %779 = arith.maximumf %777, %778 : vector<8x256xf32>
    %c4_20 = arith.constant 4 : index
    %780 = memref.load %arg3[%c4_20] : memref<15xf32, #tpu.memory_space<smem>>
    %781 = arith.addf %742, %755 : vector<8x256xf32>
    %782 = vector.broadcast %780 : f32 to vector<8x256xf32>
    %783 = arith.addf %768, %782 : vector<8x256xf32>
    %784 = arith.addf %781, %783 : vector<8x256xf32>
    %cst_21 = arith.constant 0.000000e+00 : f32
    %785 = vector.broadcast %cst_21 : f32 to vector<8x256xf32>
    %786 = arith.maximumf %784, %785 : vector<8x256xf32>
    %c5_22 = arith.constant 5 : index
    %787 = memref.load %arg3[%c5_22] : memref<15xf32, #tpu.memory_space<smem>>
    %788 = arith.addf %746, %759 : vector<8x256xf32>
    %789 = vector.broadcast %787 : f32 to vector<8x256xf32>
    %790 = arith.addf %772, %789 : vector<8x256xf32>
    %791 = arith.addf %788, %790 : vector<8x256xf32>
    %cst_23 = arith.constant 0.000000e+00 : f32
    %792 = vector.broadcast %cst_23 : f32 to vector<8x256xf32>
    %793 = arith.maximumf %791, %792 : vector<8x256xf32>
    %794 = tpu.concatenate %779, %786, %793 in 0 : vector<8x256xf32>, vector<8x256xf32>, vector<8x256xf32> -> vector<24x256xf32>
    %c17_i32_24 = arith.constant 17 : i32
    %795 = tpu.dynamic_rotate %794 by %c17_i32_24 dim 1 : vector<24x256xf32>, i32 -> vector<24x256xf32>
    %796 = vector.extract_strided_slice %2 {offsets = [0, 0], sizes = [1, 256], strides = [1, 1]} : vector<9x256xf32> to vector<1x256xf32>
    %797 = vector.broadcast %796 : vector<1x256xf32> to vector<24x256xf32>
    %798 = arith.mulf %795, %797 : vector<24x256xf32>
    %799 = vector.extract_strided_slice %798 {offsets = [0, 0], sizes = [8, 256], strides = [1, 1]} : vector<24x256xf32> to vector<8x256xf32>
    %c162 = arith.constant 162 : index
    %800 = memref.load %arg2[%c162] : memref<405xf32, #tpu.memory_space<smem>>
    %801 = vector.broadcast %800 : f32 to vector<8x256xf32>
    %802 = arith.mulf %801, %799 : vector<8x256xf32>
    %c163 = arith.constant 163 : index
    %803 = memref.load %arg2[%c163] : memref<405xf32, #tpu.memory_space<smem>>
    %804 = vector.broadcast %803 : f32 to vector<8x256xf32>
    %805 = arith.mulf %804, %799 : vector<8x256xf32>
    %c164 = arith.constant 164 : index
    %806 = memref.load %arg2[%c164] : memref<405xf32, #tpu.memory_space<smem>>
    %807 = vector.broadcast %806 : f32 to vector<8x256xf32>
    %808 = arith.mulf %807, %799 : vector<8x256xf32>
    %809 = vector.extract_strided_slice %798 {offsets = [8, 0], sizes = [8, 256], strides = [1, 1]} : vector<24x256xf32> to vector<8x256xf32>
    %c165 = arith.constant 165 : index
    %810 = memref.load %arg2[%c165] : memref<405xf32, #tpu.memory_space<smem>>
    %811 = vector.broadcast %810 : f32 to vector<8x256xf32>
    %812 = arith.mulf %811, %809 : vector<8x256xf32>
    %c166 = arith.constant 166 : index
    %813 = memref.load %arg2[%c166] : memref<405xf32, #tpu.memory_space<smem>>
    %814 = vector.broadcast %813 : f32 to vector<8x256xf32>
    %815 = arith.mulf %814, %809 : vector<8x256xf32>
    %c167 = arith.constant 167 : index
    %816 = memref.load %arg2[%c167] : memref<405xf32, #tpu.memory_space<smem>>
    %817 = vector.broadcast %816 : f32 to vector<8x256xf32>
    %818 = arith.mulf %817, %809 : vector<8x256xf32>
    %819 = vector.extract_strided_slice %798 {offsets = [16, 0], sizes = [8, 256], strides = [1, 1]} : vector<24x256xf32> to vector<8x256xf32>
    %c168 = arith.constant 168 : index
    %820 = memref.load %arg2[%c168] : memref<405xf32, #tpu.memory_space<smem>>
    %821 = vector.broadcast %820 : f32 to vector<8x256xf32>
    %822 = arith.mulf %821, %819 : vector<8x256xf32>
    %c169 = arith.constant 169 : index
    %823 = memref.load %arg2[%c169] : memref<405xf32, #tpu.memory_space<smem>>
    %824 = vector.broadcast %823 : f32 to vector<8x256xf32>
    %825 = arith.mulf %824, %819 : vector<8x256xf32>
    %c170 = arith.constant 170 : index
    %826 = memref.load %arg2[%c170] : memref<405xf32, #tpu.memory_space<smem>>
    %827 = vector.broadcast %826 : f32 to vector<8x256xf32>
    %828 = arith.mulf %827, %819 : vector<8x256xf32>
    %c16_i32_25 = arith.constant 16 : i32
    %829 = tpu.dynamic_rotate %794 by %c16_i32_25 dim 1 : vector<24x256xf32>, i32 -> vector<24x256xf32>
    %830 = vector.extract_strided_slice %2 {offsets = [1, 0], sizes = [1, 256], strides = [1, 1]} : vector<9x256xf32> to vector<1x256xf32>
    %831 = vector.broadcast %830 : vector<1x256xf32> to vector<24x256xf32>
    %832 = arith.mulf %829, %831 : vector<24x256xf32>
    %833 = vector.extract_strided_slice %832 {offsets = [0, 0], sizes = [8, 256], strides = [1, 1]} : vector<24x256xf32> to vector<8x256xf32>
    %c171 = arith.constant 171 : index
    %834 = memref.load %arg2[%c171] : memref<405xf32, #tpu.memory_space<smem>>
    %835 = vector.broadcast %834 : f32 to vector<8x256xf32>
    %836 = arith.mulf %835, %833 : vector<8x256xf32>
    %837 = arith.addf %802, %836 : vector<8x256xf32>
    %c172 = arith.constant 172 : index
    %838 = memref.load %arg2[%c172] : memref<405xf32, #tpu.memory_space<smem>>
    %839 = vector.broadcast %838 : f32 to vector<8x256xf32>
    %840 = arith.mulf %839, %833 : vector<8x256xf32>
    %841 = arith.addf %805, %840 : vector<8x256xf32>
    %c173 = arith.constant 173 : index
    %842 = memref.load %arg2[%c173] : memref<405xf32, #tpu.memory_space<smem>>
    %843 = vector.broadcast %842 : f32 to vector<8x256xf32>
    %844 = arith.mulf %843, %833 : vector<8x256xf32>
    %845 = arith.addf %808, %844 : vector<8x256xf32>
    %846 = vector.extract_strided_slice %832 {offsets = [8, 0], sizes = [8, 256], strides = [1, 1]} : vector<24x256xf32> to vector<8x256xf32>
    %c174 = arith.constant 174 : index
    %847 = memref.load %arg2[%c174] : memref<405xf32, #tpu.memory_space<smem>>
    %848 = vector.broadcast %847 : f32 to vector<8x256xf32>
    %849 = arith.mulf %848, %846 : vector<8x256xf32>
    %850 = arith.addf %812, %849 : vector<8x256xf32>
    %c175 = arith.constant 175 : index
    %851 = memref.load %arg2[%c175] : memref<405xf32, #tpu.memory_space<smem>>
    %852 = vector.broadcast %851 : f32 to vector<8x256xf32>
    %853 = arith.mulf %852, %846 : vector<8x256xf32>
    %854 = arith.addf %815, %853 : vector<8x256xf32>
    %c176 = arith.constant 176 : index
    %855 = memref.load %arg2[%c176] : memref<405xf32, #tpu.memory_space<smem>>
    %856 = vector.broadcast %855 : f32 to vector<8x256xf32>
    %857 = arith.mulf %856, %846 : vector<8x256xf32>
    %858 = arith.addf %818, %857 : vector<8x256xf32>
    %859 = vector.extract_strided_slice %832 {offsets = [16, 0], sizes = [8, 256], strides = [1, 1]} : vector<24x256xf32> to vector<8x256xf32>
    %c177 = arith.constant 177 : index
    %860 = memref.load %arg2[%c177] : memref<405xf32, #tpu.memory_space<smem>>
    %861 = vector.broadcast %860 : f32 to vector<8x256xf32>
    %862 = arith.mulf %861, %859 : vector<8x256xf32>
    %863 = arith.addf %822, %862 : vector<8x256xf32>
    %c178 = arith.constant 178 : index
    %864 = memref.load %arg2[%c178] : memref<405xf32, #tpu.memory_space<smem>>
    %865 = vector.broadcast %864 : f32 to vector<8x256xf32>
    %866 = arith.mulf %865, %859 : vector<8x256xf32>
    %867 = arith.addf %825, %866 : vector<8x256xf32>
    %c179 = arith.constant 179 : index
    %868 = memref.load %arg2[%c179] : memref<405xf32, #tpu.memory_space<smem>>
    %869 = vector.broadcast %868 : f32 to vector<8x256xf32>
    %870 = arith.mulf %869, %859 : vector<8x256xf32>
    %871 = arith.addf %828, %870 : vector<8x256xf32>
    %c15_i32_26 = arith.constant 15 : i32
    %872 = tpu.dynamic_rotate %794 by %c15_i32_26 dim 1 : vector<24x256xf32>, i32 -> vector<24x256xf32>
    %873 = vector.extract_strided_slice %2 {offsets = [2, 0], sizes = [1, 256], strides = [1, 1]} : vector<9x256xf32> to vector<1x256xf32>
    %874 = vector.broadcast %873 : vector<1x256xf32> to vector<24x256xf32>
    %875 = arith.mulf %872, %874 : vector<24x256xf32>
    %876 = vector.extract_strided_slice %875 {offsets = [0, 0], sizes = [8, 256], strides = [1, 1]} : vector<24x256xf32> to vector<8x256xf32>
    %c180 = arith.constant 180 : index
    %877 = memref.load %arg2[%c180] : memref<405xf32, #tpu.memory_space<smem>>
    %878 = vector.broadcast %877 : f32 to vector<8x256xf32>
    %879 = arith.mulf %878, %876 : vector<8x256xf32>
    %880 = arith.addf %837, %879 : vector<8x256xf32>
    %c181 = arith.constant 181 : index
    %881 = memref.load %arg2[%c181] : memref<405xf32, #tpu.memory_space<smem>>
    %882 = vector.broadcast %881 : f32 to vector<8x256xf32>
    %883 = arith.mulf %882, %876 : vector<8x256xf32>
    %884 = arith.addf %841, %883 : vector<8x256xf32>
    %c182 = arith.constant 182 : index
    %885 = memref.load %arg2[%c182] : memref<405xf32, #tpu.memory_space<smem>>
    %886 = vector.broadcast %885 : f32 to vector<8x256xf32>
    %887 = arith.mulf %886, %876 : vector<8x256xf32>
    %888 = arith.addf %845, %887 : vector<8x256xf32>
    %889 = vector.extract_strided_slice %875 {offsets = [8, 0], sizes = [8, 256], strides = [1, 1]} : vector<24x256xf32> to vector<8x256xf32>
    %c183 = arith.constant 183 : index
    %890 = memref.load %arg2[%c183] : memref<405xf32, #tpu.memory_space<smem>>
    %891 = vector.broadcast %890 : f32 to vector<8x256xf32>
    %892 = arith.mulf %891, %889 : vector<8x256xf32>
    %893 = arith.addf %850, %892 : vector<8x256xf32>
    %c184 = arith.constant 184 : index
    %894 = memref.load %arg2[%c184] : memref<405xf32, #tpu.memory_space<smem>>
    %895 = vector.broadcast %894 : f32 to vector<8x256xf32>
    %896 = arith.mulf %895, %889 : vector<8x256xf32>
    %897 = arith.addf %854, %896 : vector<8x256xf32>
    %c185 = arith.constant 185 : index
    %898 = memref.load %arg2[%c185] : memref<405xf32, #tpu.memory_space<smem>>
    %899 = vector.broadcast %898 : f32 to vector<8x256xf32>
    %900 = arith.mulf %899, %889 : vector<8x256xf32>
    %901 = arith.addf %858, %900 : vector<8x256xf32>
    %902 = vector.extract_strided_slice %875 {offsets = [16, 0], sizes = [8, 256], strides = [1, 1]} : vector<24x256xf32> to vector<8x256xf32>
    %c186 = arith.constant 186 : index
    %903 = memref.load %arg2[%c186] : memref<405xf32, #tpu.memory_space<smem>>
    %904 = vector.broadcast %903 : f32 to vector<8x256xf32>
    %905 = arith.mulf %904, %902 : vector<8x256xf32>
    %906 = arith.addf %863, %905 : vector<8x256xf32>
    %c187 = arith.constant 187 : index
    %907 = memref.load %arg2[%c187] : memref<405xf32, #tpu.memory_space<smem>>
    %908 = vector.broadcast %907 : f32 to vector<8x256xf32>
    %909 = arith.mulf %908, %902 : vector<8x256xf32>
    %910 = arith.addf %867, %909 : vector<8x256xf32>
    %c188 = arith.constant 188 : index
    %911 = memref.load %arg2[%c188] : memref<405xf32, #tpu.memory_space<smem>>
    %912 = vector.broadcast %911 : f32 to vector<8x256xf32>
    %913 = arith.mulf %912, %902 : vector<8x256xf32>
    %914 = arith.addf %871, %913 : vector<8x256xf32>
    %c1_i32_27 = arith.constant 1 : i32
    %915 = tpu.dynamic_rotate %794 by %c1_i32_27 dim 1 : vector<24x256xf32>, i32 -> vector<24x256xf32>
    %916 = vector.extract_strided_slice %2 {offsets = [3, 0], sizes = [1, 256], strides = [1, 1]} : vector<9x256xf32> to vector<1x256xf32>
    %917 = vector.broadcast %916 : vector<1x256xf32> to vector<24x256xf32>
    %918 = arith.mulf %915, %917 : vector<24x256xf32>
    %919 = vector.extract_strided_slice %918 {offsets = [0, 0], sizes = [8, 256], strides = [1, 1]} : vector<24x256xf32> to vector<8x256xf32>
    %c189 = arith.constant 189 : index
    %920 = memref.load %arg2[%c189] : memref<405xf32, #tpu.memory_space<smem>>
    %921 = vector.broadcast %920 : f32 to vector<8x256xf32>
    %922 = arith.mulf %921, %919 : vector<8x256xf32>
    %923 = arith.addf %880, %922 : vector<8x256xf32>
    %c190 = arith.constant 190 : index
    %924 = memref.load %arg2[%c190] : memref<405xf32, #tpu.memory_space<smem>>
    %925 = vector.broadcast %924 : f32 to vector<8x256xf32>
    %926 = arith.mulf %925, %919 : vector<8x256xf32>
    %927 = arith.addf %884, %926 : vector<8x256xf32>
    %c191 = arith.constant 191 : index
    %928 = memref.load %arg2[%c191] : memref<405xf32, #tpu.memory_space<smem>>
    %929 = vector.broadcast %928 : f32 to vector<8x256xf32>
    %930 = arith.mulf %929, %919 : vector<8x256xf32>
    %931 = arith.addf %888, %930 : vector<8x256xf32>
    %932 = vector.extract_strided_slice %918 {offsets = [8, 0], sizes = [8, 256], strides = [1, 1]} : vector<24x256xf32> to vector<8x256xf32>
    %c192 = arith.constant 192 : index
    %933 = memref.load %arg2[%c192] : memref<405xf32, #tpu.memory_space<smem>>
    %934 = vector.broadcast %933 : f32 to vector<8x256xf32>
    %935 = arith.mulf %934, %932 : vector<8x256xf32>
    %936 = arith.addf %893, %935 : vector<8x256xf32>
    %c193 = arith.constant 193 : index
    %937 = memref.load %arg2[%c193] : memref<405xf32, #tpu.memory_space<smem>>
    %938 = vector.broadcast %937 : f32 to vector<8x256xf32>
    %939 = arith.mulf %938, %932 : vector<8x256xf32>
    %940 = arith.addf %897, %939 : vector<8x256xf32>
    %c194 = arith.constant 194 : index
    %941 = memref.load %arg2[%c194] : memref<405xf32, #tpu.memory_space<smem>>
    %942 = vector.broadcast %941 : f32 to vector<8x256xf32>
    %943 = arith.mulf %942, %932 : vector<8x256xf32>
    %944 = arith.addf %901, %943 : vector<8x256xf32>
    %945 = vector.extract_strided_slice %918 {offsets = [16, 0], sizes = [8, 256], strides = [1, 1]} : vector<24x256xf32> to vector<8x256xf32>
    %c195 = arith.constant 195 : index
    %946 = memref.load %arg2[%c195] : memref<405xf32, #tpu.memory_space<smem>>
    %947 = vector.broadcast %946 : f32 to vector<8x256xf32>
    %948 = arith.mulf %947, %945 : vector<8x256xf32>
    %949 = arith.addf %906, %948 : vector<8x256xf32>
    %c196 = arith.constant 196 : index
    %950 = memref.load %arg2[%c196] : memref<405xf32, #tpu.memory_space<smem>>
    %951 = vector.broadcast %950 : f32 to vector<8x256xf32>
    %952 = arith.mulf %951, %945 : vector<8x256xf32>
    %953 = arith.addf %910, %952 : vector<8x256xf32>
    %c197 = arith.constant 197 : index
    %954 = memref.load %arg2[%c197] : memref<405xf32, #tpu.memory_space<smem>>
    %955 = vector.broadcast %954 : f32 to vector<8x256xf32>
    %956 = arith.mulf %955, %945 : vector<8x256xf32>
    %957 = arith.addf %914, %956 : vector<8x256xf32>
    %958 = vector.extract_strided_slice %794 {offsets = [0, 0], sizes = [8, 256], strides = [1, 1]} : vector<24x256xf32> to vector<8x256xf32>
    %c198 = arith.constant 198 : index
    %959 = memref.load %arg2[%c198] : memref<405xf32, #tpu.memory_space<smem>>
    %960 = vector.broadcast %959 : f32 to vector<8x256xf32>
    %961 = arith.mulf %960, %958 : vector<8x256xf32>
    %962 = arith.addf %923, %961 : vector<8x256xf32>
    %c199 = arith.constant 199 : index
    %963 = memref.load %arg2[%c199] : memref<405xf32, #tpu.memory_space<smem>>
    %964 = vector.broadcast %963 : f32 to vector<8x256xf32>
    %965 = arith.mulf %964, %958 : vector<8x256xf32>
    %966 = arith.addf %927, %965 : vector<8x256xf32>
    %c200 = arith.constant 200 : index
    %967 = memref.load %arg2[%c200] : memref<405xf32, #tpu.memory_space<smem>>
    %968 = vector.broadcast %967 : f32 to vector<8x256xf32>
    %969 = arith.mulf %968, %958 : vector<8x256xf32>
    %970 = arith.addf %931, %969 : vector<8x256xf32>
    %971 = vector.extract_strided_slice %794 {offsets = [8, 0], sizes = [8, 256], strides = [1, 1]} : vector<24x256xf32> to vector<8x256xf32>
    %c201 = arith.constant 201 : index
    %972 = memref.load %arg2[%c201] : memref<405xf32, #tpu.memory_space<smem>>
    %973 = vector.broadcast %972 : f32 to vector<8x256xf32>
    %974 = arith.mulf %973, %971 : vector<8x256xf32>
    %975 = arith.addf %936, %974 : vector<8x256xf32>
    %c202 = arith.constant 202 : index
    %976 = memref.load %arg2[%c202] : memref<405xf32, #tpu.memory_space<smem>>
    %977 = vector.broadcast %976 : f32 to vector<8x256xf32>
    %978 = arith.mulf %977, %971 : vector<8x256xf32>
    %979 = arith.addf %940, %978 : vector<8x256xf32>
    %c203 = arith.constant 203 : index
    %980 = memref.load %arg2[%c203] : memref<405xf32, #tpu.memory_space<smem>>
    %981 = vector.broadcast %980 : f32 to vector<8x256xf32>
    %982 = arith.mulf %981, %971 : vector<8x256xf32>
    %983 = arith.addf %944, %982 : vector<8x256xf32>
    %984 = vector.extract_strided_slice %794 {offsets = [16, 0], sizes = [8, 256], strides = [1, 1]} : vector<24x256xf32> to vector<8x256xf32>
    %c204 = arith.constant 204 : index
    %985 = memref.load %arg2[%c204] : memref<405xf32, #tpu.memory_space<smem>>
    %986 = vector.broadcast %985 : f32 to vector<8x256xf32>
    %987 = arith.mulf %986, %984 : vector<8x256xf32>
    %988 = arith.addf %949, %987 : vector<8x256xf32>
    %c205 = arith.constant 205 : index
    %989 = memref.load %arg2[%c205] : memref<405xf32, #tpu.memory_space<smem>>
    %990 = vector.broadcast %989 : f32 to vector<8x256xf32>
    %991 = arith.mulf %990, %984 : vector<8x256xf32>
    %992 = arith.addf %953, %991 : vector<8x256xf32>
    %c206 = arith.constant 206 : index
    %993 = memref.load %arg2[%c206] : memref<405xf32, #tpu.memory_space<smem>>
    %994 = vector.broadcast %993 : f32 to vector<8x256xf32>
    %995 = arith.mulf %994, %984 : vector<8x256xf32>
    %996 = arith.addf %957, %995 : vector<8x256xf32>
    %c255_i32_28 = arith.constant 255 : i32
    %997 = tpu.dynamic_rotate %794 by %c255_i32_28 dim 1 : vector<24x256xf32>, i32 -> vector<24x256xf32>
    %998 = vector.extract_strided_slice %2 {offsets = [5, 0], sizes = [1, 256], strides = [1, 1]} : vector<9x256xf32> to vector<1x256xf32>
    %999 = vector.broadcast %998 : vector<1x256xf32> to vector<24x256xf32>
    %1000 = arith.mulf %997, %999 : vector<24x256xf32>
    %1001 = vector.extract_strided_slice %1000 {offsets = [0, 0], sizes = [8, 256], strides = [1, 1]} : vector<24x256xf32> to vector<8x256xf32>
    %c207 = arith.constant 207 : index
    %1002 = memref.load %arg2[%c207] : memref<405xf32, #tpu.memory_space<smem>>
    %1003 = vector.broadcast %1002 : f32 to vector<8x256xf32>
    %1004 = arith.mulf %1003, %1001 : vector<8x256xf32>
    %1005 = arith.addf %962, %1004 : vector<8x256xf32>
    %c208 = arith.constant 208 : index
    %1006 = memref.load %arg2[%c208] : memref<405xf32, #tpu.memory_space<smem>>
    %1007 = vector.broadcast %1006 : f32 to vector<8x256xf32>
    %1008 = arith.mulf %1007, %1001 : vector<8x256xf32>
    %1009 = arith.addf %966, %1008 : vector<8x256xf32>
    %c209 = arith.constant 209 : index
    %1010 = memref.load %arg2[%c209] : memref<405xf32, #tpu.memory_space<smem>>
    %1011 = vector.broadcast %1010 : f32 to vector<8x256xf32>
    %1012 = arith.mulf %1011, %1001 : vector<8x256xf32>
    %1013 = arith.addf %970, %1012 : vector<8x256xf32>
    %1014 = vector.extract_strided_slice %1000 {offsets = [8, 0], sizes = [8, 256], strides = [1, 1]} : vector<24x256xf32> to vector<8x256xf32>
    %c210 = arith.constant 210 : index
    %1015 = memref.load %arg2[%c210] : memref<405xf32, #tpu.memory_space<smem>>
    %1016 = vector.broadcast %1015 : f32 to vector<8x256xf32>
    %1017 = arith.mulf %1016, %1014 : vector<8x256xf32>
    %1018 = arith.addf %975, %1017 : vector<8x256xf32>
    %c211 = arith.constant 211 : index
    %1019 = memref.load %arg2[%c211] : memref<405xf32, #tpu.memory_space<smem>>
    %1020 = vector.broadcast %1019 : f32 to vector<8x256xf32>
    %1021 = arith.mulf %1020, %1014 : vector<8x256xf32>
    %1022 = arith.addf %979, %1021 : vector<8x256xf32>
    %c212 = arith.constant 212 : index
    %1023 = memref.load %arg2[%c212] : memref<405xf32, #tpu.memory_space<smem>>
    %1024 = vector.broadcast %1023 : f32 to vector<8x256xf32>
    %1025 = arith.mulf %1024, %1014 : vector<8x256xf32>
    %1026 = arith.addf %983, %1025 : vector<8x256xf32>
    %1027 = vector.extract_strided_slice %1000 {offsets = [16, 0], sizes = [8, 256], strides = [1, 1]} : vector<24x256xf32> to vector<8x256xf32>
    %c213 = arith.constant 213 : index
    %1028 = memref.load %arg2[%c213] : memref<405xf32, #tpu.memory_space<smem>>
    %1029 = vector.broadcast %1028 : f32 to vector<8x256xf32>
    %1030 = arith.mulf %1029, %1027 : vector<8x256xf32>
    %1031 = arith.addf %988, %1030 : vector<8x256xf32>
    %c214 = arith.constant 214 : index
    %1032 = memref.load %arg2[%c214] : memref<405xf32, #tpu.memory_space<smem>>
    %1033 = vector.broadcast %1032 : f32 to vector<8x256xf32>
    %1034 = arith.mulf %1033, %1027 : vector<8x256xf32>
    %1035 = arith.addf %992, %1034 : vector<8x256xf32>
    %c215 = arith.constant 215 : index
    %1036 = memref.load %arg2[%c215] : memref<405xf32, #tpu.memory_space<smem>>
    %1037 = vector.broadcast %1036 : f32 to vector<8x256xf32>
    %1038 = arith.mulf %1037, %1027 : vector<8x256xf32>
    %1039 = arith.addf %996, %1038 : vector<8x256xf32>
    %c241_i32_29 = arith.constant 241 : i32
    %1040 = tpu.dynamic_rotate %794 by %c241_i32_29 dim 1 : vector<24x256xf32>, i32 -> vector<24x256xf32>
    %1041 = vector.extract_strided_slice %2 {offsets = [6, 0], sizes = [1, 256], strides = [1, 1]} : vector<9x256xf32> to vector<1x256xf32>
    %1042 = vector.broadcast %1041 : vector<1x256xf32> to vector<24x256xf32>
    %1043 = arith.mulf %1040, %1042 : vector<24x256xf32>
    %1044 = vector.extract_strided_slice %1043 {offsets = [0, 0], sizes = [8, 256], strides = [1, 1]} : vector<24x256xf32> to vector<8x256xf32>
    %c216 = arith.constant 216 : index
    %1045 = memref.load %arg2[%c216] : memref<405xf32, #tpu.memory_space<smem>>
    %1046 = vector.broadcast %1045 : f32 to vector<8x256xf32>
    %1047 = arith.mulf %1046, %1044 : vector<8x256xf32>
    %1048 = arith.addf %1005, %1047 : vector<8x256xf32>
    %c217 = arith.constant 217 : index
    %1049 = memref.load %arg2[%c217] : memref<405xf32, #tpu.memory_space<smem>>
    %1050 = vector.broadcast %1049 : f32 to vector<8x256xf32>
    %1051 = arith.mulf %1050, %1044 : vector<8x256xf32>
    %1052 = arith.addf %1009, %1051 : vector<8x256xf32>
    %c218 = arith.constant 218 : index
    %1053 = memref.load %arg2[%c218] : memref<405xf32, #tpu.memory_space<smem>>
    %1054 = vector.broadcast %1053 : f32 to vector<8x256xf32>
    %1055 = arith.mulf %1054, %1044 : vector<8x256xf32>
    %1056 = arith.addf %1013, %1055 : vector<8x256xf32>
    %1057 = vector.extract_strided_slice %1043 {offsets = [8, 0], sizes = [8, 256], strides = [1, 1]} : vector<24x256xf32> to vector<8x256xf32>
    %c219 = arith.constant 219 : index
    %1058 = memref.load %arg2[%c219] : memref<405xf32, #tpu.memory_space<smem>>
    %1059 = vector.broadcast %1058 : f32 to vector<8x256xf32>
    %1060 = arith.mulf %1059, %1057 : vector<8x256xf32>
    %1061 = arith.addf %1018, %1060 : vector<8x256xf32>
    %c220 = arith.constant 220 : index
    %1062 = memref.load %arg2[%c220] : memref<405xf32, #tpu.memory_space<smem>>
    %1063 = vector.broadcast %1062 : f32 to vector<8x256xf32>
    %1064 = arith.mulf %1063, %1057 : vector<8x256xf32>
    %1065 = arith.addf %1022, %1064 : vector<8x256xf32>
    %c221 = arith.constant 221 : index
    %1066 = memref.load %arg2[%c221] : memref<405xf32, #tpu.memory_space<smem>>
    %1067 = vector.broadcast %1066 : f32 to vector<8x256xf32>
    %1068 = arith.mulf %1067, %1057 : vector<8x256xf32>
    %1069 = arith.addf %1026, %1068 : vector<8x256xf32>
    %1070 = vector.extract_strided_slice %1043 {offsets = [16, 0], sizes = [8, 256], strides = [1, 1]} : vector<24x256xf32> to vector<8x256xf32>
    %c222 = arith.constant 222 : index
    %1071 = memref.load %arg2[%c222] : memref<405xf32, #tpu.memory_space<smem>>
    %1072 = vector.broadcast %1071 : f32 to vector<8x256xf32>
    %1073 = arith.mulf %1072, %1070 : vector<8x256xf32>
    %1074 = arith.addf %1031, %1073 : vector<8x256xf32>
    %c223 = arith.constant 223 : index
    %1075 = memref.load %arg2[%c223] : memref<405xf32, #tpu.memory_space<smem>>
    %1076 = vector.broadcast %1075 : f32 to vector<8x256xf32>
    %1077 = arith.mulf %1076, %1070 : vector<8x256xf32>
    %1078 = arith.addf %1035, %1077 : vector<8x256xf32>
    %c224 = arith.constant 224 : index
    %1079 = memref.load %arg2[%c224] : memref<405xf32, #tpu.memory_space<smem>>
    %1080 = vector.broadcast %1079 : f32 to vector<8x256xf32>
    %1081 = arith.mulf %1080, %1070 : vector<8x256xf32>
    %1082 = arith.addf %1039, %1081 : vector<8x256xf32>
    %c240_i32_30 = arith.constant 240 : i32
    %1083 = tpu.dynamic_rotate %794 by %c240_i32_30 dim 1 : vector<24x256xf32>, i32 -> vector<24x256xf32>
    %1084 = vector.extract_strided_slice %2 {offsets = [7, 0], sizes = [1, 256], strides = [1, 1]} : vector<9x256xf32> to vector<1x256xf32>
    %1085 = vector.broadcast %1084 : vector<1x256xf32> to vector<24x256xf32>
    %1086 = arith.mulf %1083, %1085 : vector<24x256xf32>
    %1087 = vector.extract_strided_slice %1086 {offsets = [0, 0], sizes = [8, 256], strides = [1, 1]} : vector<24x256xf32> to vector<8x256xf32>
    %c225 = arith.constant 225 : index
    %1088 = memref.load %arg2[%c225] : memref<405xf32, #tpu.memory_space<smem>>
    %1089 = vector.broadcast %1088 : f32 to vector<8x256xf32>
    %1090 = arith.mulf %1089, %1087 : vector<8x256xf32>
    %1091 = arith.addf %1048, %1090 : vector<8x256xf32>
    %c226 = arith.constant 226 : index
    %1092 = memref.load %arg2[%c226] : memref<405xf32, #tpu.memory_space<smem>>
    %1093 = vector.broadcast %1092 : f32 to vector<8x256xf32>
    %1094 = arith.mulf %1093, %1087 : vector<8x256xf32>
    %1095 = arith.addf %1052, %1094 : vector<8x256xf32>
    %c227 = arith.constant 227 : index
    %1096 = memref.load %arg2[%c227] : memref<405xf32, #tpu.memory_space<smem>>
    %1097 = vector.broadcast %1096 : f32 to vector<8x256xf32>
    %1098 = arith.mulf %1097, %1087 : vector<8x256xf32>
    %1099 = arith.addf %1056, %1098 : vector<8x256xf32>
    %1100 = vector.extract_strided_slice %1086 {offsets = [8, 0], sizes = [8, 256], strides = [1, 1]} : vector<24x256xf32> to vector<8x256xf32>
    %c228 = arith.constant 228 : index
    %1101 = memref.load %arg2[%c228] : memref<405xf32, #tpu.memory_space<smem>>
    %1102 = vector.broadcast %1101 : f32 to vector<8x256xf32>
    %1103 = arith.mulf %1102, %1100 : vector<8x256xf32>
    %1104 = arith.addf %1061, %1103 : vector<8x256xf32>
    %c229 = arith.constant 229 : index
    %1105 = memref.load %arg2[%c229] : memref<405xf32, #tpu.memory_space<smem>>
    %1106 = vector.broadcast %1105 : f32 to vector<8x256xf32>
    %1107 = arith.mulf %1106, %1100 : vector<8x256xf32>
    %1108 = arith.addf %1065, %1107 : vector<8x256xf32>
    %c230 = arith.constant 230 : index
    %1109 = memref.load %arg2[%c230] : memref<405xf32, #tpu.memory_space<smem>>
    %1110 = vector.broadcast %1109 : f32 to vector<8x256xf32>
    %1111 = arith.mulf %1110, %1100 : vector<8x256xf32>
    %1112 = arith.addf %1069, %1111 : vector<8x256xf32>
    %1113 = vector.extract_strided_slice %1086 {offsets = [16, 0], sizes = [8, 256], strides = [1, 1]} : vector<24x256xf32> to vector<8x256xf32>
    %c231 = arith.constant 231 : index
    %1114 = memref.load %arg2[%c231] : memref<405xf32, #tpu.memory_space<smem>>
    %1115 = vector.broadcast %1114 : f32 to vector<8x256xf32>
    %1116 = arith.mulf %1115, %1113 : vector<8x256xf32>
    %1117 = arith.addf %1074, %1116 : vector<8x256xf32>
    %c232 = arith.constant 232 : index
    %1118 = memref.load %arg2[%c232] : memref<405xf32, #tpu.memory_space<smem>>
    %1119 = vector.broadcast %1118 : f32 to vector<8x256xf32>
    %1120 = arith.mulf %1119, %1113 : vector<8x256xf32>
    %1121 = arith.addf %1078, %1120 : vector<8x256xf32>
    %c233 = arith.constant 233 : index
    %1122 = memref.load %arg2[%c233] : memref<405xf32, #tpu.memory_space<smem>>
    %1123 = vector.broadcast %1122 : f32 to vector<8x256xf32>
    %1124 = arith.mulf %1123, %1113 : vector<8x256xf32>
    %1125 = arith.addf %1082, %1124 : vector<8x256xf32>
    %c239_i32_31 = arith.constant 239 : i32
    %1126 = tpu.dynamic_rotate %794 by %c239_i32_31 dim 1 : vector<24x256xf32>, i32 -> vector<24x256xf32>
    %1127 = vector.extract_strided_slice %2 {offsets = [8, 0], sizes = [1, 256], strides = [1, 1]} : vector<9x256xf32> to vector<1x256xf32>
    %1128 = vector.broadcast %1127 : vector<1x256xf32> to vector<24x256xf32>
    %1129 = arith.mulf %1126, %1128 : vector<24x256xf32>
    %1130 = vector.extract_strided_slice %1129 {offsets = [0, 0], sizes = [8, 256], strides = [1, 1]} : vector<24x256xf32> to vector<8x256xf32>
    %c234 = arith.constant 234 : index
    %1131 = memref.load %arg2[%c234] : memref<405xf32, #tpu.memory_space<smem>>
    %1132 = vector.broadcast %1131 : f32 to vector<8x256xf32>
    %1133 = arith.mulf %1132, %1130 : vector<8x256xf32>
    %1134 = arith.addf %1091, %1133 : vector<8x256xf32>
    %c235 = arith.constant 235 : index
    %1135 = memref.load %arg2[%c235] : memref<405xf32, #tpu.memory_space<smem>>
    %1136 = vector.broadcast %1135 : f32 to vector<8x256xf32>
    %1137 = arith.mulf %1136, %1130 : vector<8x256xf32>
    %1138 = arith.addf %1095, %1137 : vector<8x256xf32>
    %c236 = arith.constant 236 : index
    %1139 = memref.load %arg2[%c236] : memref<405xf32, #tpu.memory_space<smem>>
    %1140 = vector.broadcast %1139 : f32 to vector<8x256xf32>
    %1141 = arith.mulf %1140, %1130 : vector<8x256xf32>
    %1142 = arith.addf %1099, %1141 : vector<8x256xf32>
    %1143 = vector.extract_strided_slice %1129 {offsets = [8, 0], sizes = [8, 256], strides = [1, 1]} : vector<24x256xf32> to vector<8x256xf32>
    %c237 = arith.constant 237 : index
    %1144 = memref.load %arg2[%c237] : memref<405xf32, #tpu.memory_space<smem>>
    %1145 = vector.broadcast %1144 : f32 to vector<8x256xf32>
    %1146 = arith.mulf %1145, %1143 : vector<8x256xf32>
    %1147 = arith.addf %1104, %1146 : vector<8x256xf32>
    %c238 = arith.constant 238 : index
    %1148 = memref.load %arg2[%c238] : memref<405xf32, #tpu.memory_space<smem>>
    %1149 = vector.broadcast %1148 : f32 to vector<8x256xf32>
    %1150 = arith.mulf %1149, %1143 : vector<8x256xf32>
    %1151 = arith.addf %1108, %1150 : vector<8x256xf32>
    %c239 = arith.constant 239 : index
    %1152 = memref.load %arg2[%c239] : memref<405xf32, #tpu.memory_space<smem>>
    %1153 = vector.broadcast %1152 : f32 to vector<8x256xf32>
    %1154 = arith.mulf %1153, %1143 : vector<8x256xf32>
    %1155 = arith.addf %1112, %1154 : vector<8x256xf32>
    %1156 = vector.extract_strided_slice %1129 {offsets = [16, 0], sizes = [8, 256], strides = [1, 1]} : vector<24x256xf32> to vector<8x256xf32>
    %c240 = arith.constant 240 : index
    %1157 = memref.load %arg2[%c240] : memref<405xf32, #tpu.memory_space<smem>>
    %1158 = vector.broadcast %1157 : f32 to vector<8x256xf32>
    %1159 = arith.mulf %1158, %1156 : vector<8x256xf32>
    %1160 = arith.addf %1117, %1159 : vector<8x256xf32>
    %c241 = arith.constant 241 : index
    %1161 = memref.load %arg2[%c241] : memref<405xf32, #tpu.memory_space<smem>>
    %1162 = vector.broadcast %1161 : f32 to vector<8x256xf32>
    %1163 = arith.mulf %1162, %1156 : vector<8x256xf32>
    %1164 = arith.addf %1121, %1163 : vector<8x256xf32>
    %c242 = arith.constant 242 : index
    %1165 = memref.load %arg2[%c242] : memref<405xf32, #tpu.memory_space<smem>>
    %1166 = vector.broadcast %1165 : f32 to vector<8x256xf32>
    %1167 = arith.mulf %1166, %1156 : vector<8x256xf32>
    %1168 = arith.addf %1125, %1167 : vector<8x256xf32>
    %c6_32 = arith.constant 6 : index
    %1169 = memref.load %arg3[%c6_32] : memref<15xf32, #tpu.memory_space<smem>>
    %1170 = arith.addf %1134, %1147 : vector<8x256xf32>
    %1171 = vector.broadcast %1169 : f32 to vector<8x256xf32>
    %1172 = arith.addf %1160, %1171 : vector<8x256xf32>
    %1173 = arith.addf %1170, %1172 : vector<8x256xf32>
    %cst_33 = arith.constant 0.000000e+00 : f32
    %1174 = vector.broadcast %cst_33 : f32 to vector<8x256xf32>
    %1175 = arith.maximumf %1173, %1174 : vector<8x256xf32>
    %c7_34 = arith.constant 7 : index
    %1176 = memref.load %arg3[%c7_34] : memref<15xf32, #tpu.memory_space<smem>>
    %1177 = arith.addf %1138, %1151 : vector<8x256xf32>
    %1178 = vector.broadcast %1176 : f32 to vector<8x256xf32>
    %1179 = arith.addf %1164, %1178 : vector<8x256xf32>
    %1180 = arith.addf %1177, %1179 : vector<8x256xf32>
    %cst_35 = arith.constant 0.000000e+00 : f32
    %1181 = vector.broadcast %cst_35 : f32 to vector<8x256xf32>
    %1182 = arith.maximumf %1180, %1181 : vector<8x256xf32>
    %c8_36 = arith.constant 8 : index
    %1183 = memref.load %arg3[%c8_36] : memref<15xf32, #tpu.memory_space<smem>>
    %1184 = arith.addf %1142, %1155 : vector<8x256xf32>
    %1185 = vector.broadcast %1183 : f32 to vector<8x256xf32>
    %1186 = arith.addf %1168, %1185 : vector<8x256xf32>
    %1187 = arith.addf %1184, %1186 : vector<8x256xf32>
    %cst_37 = arith.constant 0.000000e+00 : f32
    %1188 = vector.broadcast %cst_37 : f32 to vector<8x256xf32>
    %1189 = arith.maximumf %1187, %1188 : vector<8x256xf32>
    %1190 = tpu.concatenate %1175, %1182, %1189 in 0 : vector<8x256xf32>, vector<8x256xf32>, vector<8x256xf32> -> vector<24x256xf32>
    %c17_i32_38 = arith.constant 17 : i32
    %1191 = tpu.dynamic_rotate %1190 by %c17_i32_38 dim 1 : vector<24x256xf32>, i32 -> vector<24x256xf32>
    %1192 = vector.extract_strided_slice %2 {offsets = [0, 0], sizes = [1, 256], strides = [1, 1]} : vector<9x256xf32> to vector<1x256xf32>
    %1193 = vector.broadcast %1192 : vector<1x256xf32> to vector<24x256xf32>
    %1194 = arith.mulf %1191, %1193 : vector<24x256xf32>
    %1195 = vector.extract_strided_slice %1194 {offsets = [0, 0], sizes = [8, 256], strides = [1, 1]} : vector<24x256xf32> to vector<8x256xf32>
    %c243 = arith.constant 243 : index
    %1196 = memref.load %arg2[%c243] : memref<405xf32, #tpu.memory_space<smem>>
    %1197 = vector.broadcast %1196 : f32 to vector<8x256xf32>
    %1198 = arith.mulf %1197, %1195 : vector<8x256xf32>
    %c244 = arith.constant 244 : index
    %1199 = memref.load %arg2[%c244] : memref<405xf32, #tpu.memory_space<smem>>
    %1200 = vector.broadcast %1199 : f32 to vector<8x256xf32>
    %1201 = arith.mulf %1200, %1195 : vector<8x256xf32>
    %c245 = arith.constant 245 : index
    %1202 = memref.load %arg2[%c245] : memref<405xf32, #tpu.memory_space<smem>>
    %1203 = vector.broadcast %1202 : f32 to vector<8x256xf32>
    %1204 = arith.mulf %1203, %1195 : vector<8x256xf32>
    %1205 = vector.extract_strided_slice %1194 {offsets = [8, 0], sizes = [8, 256], strides = [1, 1]} : vector<24x256xf32> to vector<8x256xf32>
    %c246 = arith.constant 246 : index
    %1206 = memref.load %arg2[%c246] : memref<405xf32, #tpu.memory_space<smem>>
    %1207 = vector.broadcast %1206 : f32 to vector<8x256xf32>
    %1208 = arith.mulf %1207, %1205 : vector<8x256xf32>
    %c247 = arith.constant 247 : index
    %1209 = memref.load %arg2[%c247] : memref<405xf32, #tpu.memory_space<smem>>
    %1210 = vector.broadcast %1209 : f32 to vector<8x256xf32>
    %1211 = arith.mulf %1210, %1205 : vector<8x256xf32>
    %c248 = arith.constant 248 : index
    %1212 = memref.load %arg2[%c248] : memref<405xf32, #tpu.memory_space<smem>>
    %1213 = vector.broadcast %1212 : f32 to vector<8x256xf32>
    %1214 = arith.mulf %1213, %1205 : vector<8x256xf32>
    %1215 = vector.extract_strided_slice %1194 {offsets = [16, 0], sizes = [8, 256], strides = [1, 1]} : vector<24x256xf32> to vector<8x256xf32>
    %c249 = arith.constant 249 : index
    %1216 = memref.load %arg2[%c249] : memref<405xf32, #tpu.memory_space<smem>>
    %1217 = vector.broadcast %1216 : f32 to vector<8x256xf32>
    %1218 = arith.mulf %1217, %1215 : vector<8x256xf32>
    %c250 = arith.constant 250 : index
    %1219 = memref.load %arg2[%c250] : memref<405xf32, #tpu.memory_space<smem>>
    %1220 = vector.broadcast %1219 : f32 to vector<8x256xf32>
    %1221 = arith.mulf %1220, %1215 : vector<8x256xf32>
    %c251 = arith.constant 251 : index
    %1222 = memref.load %arg2[%c251] : memref<405xf32, #tpu.memory_space<smem>>
    %1223 = vector.broadcast %1222 : f32 to vector<8x256xf32>
    %1224 = arith.mulf %1223, %1215 : vector<8x256xf32>
    %c16_i32_39 = arith.constant 16 : i32
    %1225 = tpu.dynamic_rotate %1190 by %c16_i32_39 dim 1 : vector<24x256xf32>, i32 -> vector<24x256xf32>
    %1226 = vector.extract_strided_slice %2 {offsets = [1, 0], sizes = [1, 256], strides = [1, 1]} : vector<9x256xf32> to vector<1x256xf32>
    %1227 = vector.broadcast %1226 : vector<1x256xf32> to vector<24x256xf32>
    %1228 = arith.mulf %1225, %1227 : vector<24x256xf32>
    %1229 = vector.extract_strided_slice %1228 {offsets = [0, 0], sizes = [8, 256], strides = [1, 1]} : vector<24x256xf32> to vector<8x256xf32>
    %c252 = arith.constant 252 : index
    %1230 = memref.load %arg2[%c252] : memref<405xf32, #tpu.memory_space<smem>>
    %1231 = vector.broadcast %1230 : f32 to vector<8x256xf32>
    %1232 = arith.mulf %1231, %1229 : vector<8x256xf32>
    %1233 = arith.addf %1198, %1232 : vector<8x256xf32>
    %c253 = arith.constant 253 : index
    %1234 = memref.load %arg2[%c253] : memref<405xf32, #tpu.memory_space<smem>>
    %1235 = vector.broadcast %1234 : f32 to vector<8x256xf32>
    %1236 = arith.mulf %1235, %1229 : vector<8x256xf32>
    %1237 = arith.addf %1201, %1236 : vector<8x256xf32>
    %c254 = arith.constant 254 : index
    %1238 = memref.load %arg2[%c254] : memref<405xf32, #tpu.memory_space<smem>>
    %1239 = vector.broadcast %1238 : f32 to vector<8x256xf32>
    %1240 = arith.mulf %1239, %1229 : vector<8x256xf32>
    %1241 = arith.addf %1204, %1240 : vector<8x256xf32>
    %1242 = vector.extract_strided_slice %1228 {offsets = [8, 0], sizes = [8, 256], strides = [1, 1]} : vector<24x256xf32> to vector<8x256xf32>
    %c255 = arith.constant 255 : index
    %1243 = memref.load %arg2[%c255] : memref<405xf32, #tpu.memory_space<smem>>
    %1244 = vector.broadcast %1243 : f32 to vector<8x256xf32>
    %1245 = arith.mulf %1244, %1242 : vector<8x256xf32>
    %1246 = arith.addf %1208, %1245 : vector<8x256xf32>
    %c256 = arith.constant 256 : index
    %1247 = memref.load %arg2[%c256] : memref<405xf32, #tpu.memory_space<smem>>
    %1248 = vector.broadcast %1247 : f32 to vector<8x256xf32>
    %1249 = arith.mulf %1248, %1242 : vector<8x256xf32>
    %1250 = arith.addf %1211, %1249 : vector<8x256xf32>
    %c257 = arith.constant 257 : index
    %1251 = memref.load %arg2[%c257] : memref<405xf32, #tpu.memory_space<smem>>
    %1252 = vector.broadcast %1251 : f32 to vector<8x256xf32>
    %1253 = arith.mulf %1252, %1242 : vector<8x256xf32>
    %1254 = arith.addf %1214, %1253 : vector<8x256xf32>
    %1255 = vector.extract_strided_slice %1228 {offsets = [16, 0], sizes = [8, 256], strides = [1, 1]} : vector<24x256xf32> to vector<8x256xf32>
    %c258 = arith.constant 258 : index
    %1256 = memref.load %arg2[%c258] : memref<405xf32, #tpu.memory_space<smem>>
    %1257 = vector.broadcast %1256 : f32 to vector<8x256xf32>
    %1258 = arith.mulf %1257, %1255 : vector<8x256xf32>
    %1259 = arith.addf %1218, %1258 : vector<8x256xf32>
    %c259 = arith.constant 259 : index
    %1260 = memref.load %arg2[%c259] : memref<405xf32, #tpu.memory_space<smem>>
    %1261 = vector.broadcast %1260 : f32 to vector<8x256xf32>
    %1262 = arith.mulf %1261, %1255 : vector<8x256xf32>
    %1263 = arith.addf %1221, %1262 : vector<8x256xf32>
    %c260 = arith.constant 260 : index
    %1264 = memref.load %arg2[%c260] : memref<405xf32, #tpu.memory_space<smem>>
    %1265 = vector.broadcast %1264 : f32 to vector<8x256xf32>
    %1266 = arith.mulf %1265, %1255 : vector<8x256xf32>
    %1267 = arith.addf %1224, %1266 : vector<8x256xf32>
    %c15_i32_40 = arith.constant 15 : i32
    %1268 = tpu.dynamic_rotate %1190 by %c15_i32_40 dim 1 : vector<24x256xf32>, i32 -> vector<24x256xf32>
    %1269 = vector.extract_strided_slice %2 {offsets = [2, 0], sizes = [1, 256], strides = [1, 1]} : vector<9x256xf32> to vector<1x256xf32>
    %1270 = vector.broadcast %1269 : vector<1x256xf32> to vector<24x256xf32>
    %1271 = arith.mulf %1268, %1270 : vector<24x256xf32>
    %1272 = vector.extract_strided_slice %1271 {offsets = [0, 0], sizes = [8, 256], strides = [1, 1]} : vector<24x256xf32> to vector<8x256xf32>
    %c261 = arith.constant 261 : index
    %1273 = memref.load %arg2[%c261] : memref<405xf32, #tpu.memory_space<smem>>
    %1274 = vector.broadcast %1273 : f32 to vector<8x256xf32>
    %1275 = arith.mulf %1274, %1272 : vector<8x256xf32>
    %1276 = arith.addf %1233, %1275 : vector<8x256xf32>
    %c262 = arith.constant 262 : index
    %1277 = memref.load %arg2[%c262] : memref<405xf32, #tpu.memory_space<smem>>
    %1278 = vector.broadcast %1277 : f32 to vector<8x256xf32>
    %1279 = arith.mulf %1278, %1272 : vector<8x256xf32>
    %1280 = arith.addf %1237, %1279 : vector<8x256xf32>
    %c263 = arith.constant 263 : index
    %1281 = memref.load %arg2[%c263] : memref<405xf32, #tpu.memory_space<smem>>
    %1282 = vector.broadcast %1281 : f32 to vector<8x256xf32>
    %1283 = arith.mulf %1282, %1272 : vector<8x256xf32>
    %1284 = arith.addf %1241, %1283 : vector<8x256xf32>
    %1285 = vector.extract_strided_slice %1271 {offsets = [8, 0], sizes = [8, 256], strides = [1, 1]} : vector<24x256xf32> to vector<8x256xf32>
    %c264 = arith.constant 264 : index
    %1286 = memref.load %arg2[%c264] : memref<405xf32, #tpu.memory_space<smem>>
    %1287 = vector.broadcast %1286 : f32 to vector<8x256xf32>
    %1288 = arith.mulf %1287, %1285 : vector<8x256xf32>
    %1289 = arith.addf %1246, %1288 : vector<8x256xf32>
    %c265 = arith.constant 265 : index
    %1290 = memref.load %arg2[%c265] : memref<405xf32, #tpu.memory_space<smem>>
    %1291 = vector.broadcast %1290 : f32 to vector<8x256xf32>
    %1292 = arith.mulf %1291, %1285 : vector<8x256xf32>
    %1293 = arith.addf %1250, %1292 : vector<8x256xf32>
    %c266 = arith.constant 266 : index
    %1294 = memref.load %arg2[%c266] : memref<405xf32, #tpu.memory_space<smem>>
    %1295 = vector.broadcast %1294 : f32 to vector<8x256xf32>
    %1296 = arith.mulf %1295, %1285 : vector<8x256xf32>
    %1297 = arith.addf %1254, %1296 : vector<8x256xf32>
    %1298 = vector.extract_strided_slice %1271 {offsets = [16, 0], sizes = [8, 256], strides = [1, 1]} : vector<24x256xf32> to vector<8x256xf32>
    %c267 = arith.constant 267 : index
    %1299 = memref.load %arg2[%c267] : memref<405xf32, #tpu.memory_space<smem>>
    %1300 = vector.broadcast %1299 : f32 to vector<8x256xf32>
    %1301 = arith.mulf %1300, %1298 : vector<8x256xf32>
    %1302 = arith.addf %1259, %1301 : vector<8x256xf32>
    %c268 = arith.constant 268 : index
    %1303 = memref.load %arg2[%c268] : memref<405xf32, #tpu.memory_space<smem>>
    %1304 = vector.broadcast %1303 : f32 to vector<8x256xf32>
    %1305 = arith.mulf %1304, %1298 : vector<8x256xf32>
    %1306 = arith.addf %1263, %1305 : vector<8x256xf32>
    %c269 = arith.constant 269 : index
    %1307 = memref.load %arg2[%c269] : memref<405xf32, #tpu.memory_space<smem>>
    %1308 = vector.broadcast %1307 : f32 to vector<8x256xf32>
    %1309 = arith.mulf %1308, %1298 : vector<8x256xf32>
    %1310 = arith.addf %1267, %1309 : vector<8x256xf32>
    %c1_i32_41 = arith.constant 1 : i32
    %1311 = tpu.dynamic_rotate %1190 by %c1_i32_41 dim 1 : vector<24x256xf32>, i32 -> vector<24x256xf32>
    %1312 = vector.extract_strided_slice %2 {offsets = [3, 0], sizes = [1, 256], strides = [1, 1]} : vector<9x256xf32> to vector<1x256xf32>
    %1313 = vector.broadcast %1312 : vector<1x256xf32> to vector<24x256xf32>
    %1314 = arith.mulf %1311, %1313 : vector<24x256xf32>
    %1315 = vector.extract_strided_slice %1314 {offsets = [0, 0], sizes = [8, 256], strides = [1, 1]} : vector<24x256xf32> to vector<8x256xf32>
    %c270 = arith.constant 270 : index
    %1316 = memref.load %arg2[%c270] : memref<405xf32, #tpu.memory_space<smem>>
    %1317 = vector.broadcast %1316 : f32 to vector<8x256xf32>
    %1318 = arith.mulf %1317, %1315 : vector<8x256xf32>
    %1319 = arith.addf %1276, %1318 : vector<8x256xf32>
    %c271 = arith.constant 271 : index
    %1320 = memref.load %arg2[%c271] : memref<405xf32, #tpu.memory_space<smem>>
    %1321 = vector.broadcast %1320 : f32 to vector<8x256xf32>
    %1322 = arith.mulf %1321, %1315 : vector<8x256xf32>
    %1323 = arith.addf %1280, %1322 : vector<8x256xf32>
    %c272 = arith.constant 272 : index
    %1324 = memref.load %arg2[%c272] : memref<405xf32, #tpu.memory_space<smem>>
    %1325 = vector.broadcast %1324 : f32 to vector<8x256xf32>
    %1326 = arith.mulf %1325, %1315 : vector<8x256xf32>
    %1327 = arith.addf %1284, %1326 : vector<8x256xf32>
    %1328 = vector.extract_strided_slice %1314 {offsets = [8, 0], sizes = [8, 256], strides = [1, 1]} : vector<24x256xf32> to vector<8x256xf32>
    %c273 = arith.constant 273 : index
    %1329 = memref.load %arg2[%c273] : memref<405xf32, #tpu.memory_space<smem>>
    %1330 = vector.broadcast %1329 : f32 to vector<8x256xf32>
    %1331 = arith.mulf %1330, %1328 : vector<8x256xf32>
    %1332 = arith.addf %1289, %1331 : vector<8x256xf32>
    %c274 = arith.constant 274 : index
    %1333 = memref.load %arg2[%c274] : memref<405xf32, #tpu.memory_space<smem>>
    %1334 = vector.broadcast %1333 : f32 to vector<8x256xf32>
    %1335 = arith.mulf %1334, %1328 : vector<8x256xf32>
    %1336 = arith.addf %1293, %1335 : vector<8x256xf32>
    %c275 = arith.constant 275 : index
    %1337 = memref.load %arg2[%c275] : memref<405xf32, #tpu.memory_space<smem>>
    %1338 = vector.broadcast %1337 : f32 to vector<8x256xf32>
    %1339 = arith.mulf %1338, %1328 : vector<8x256xf32>
    %1340 = arith.addf %1297, %1339 : vector<8x256xf32>
    %1341 = vector.extract_strided_slice %1314 {offsets = [16, 0], sizes = [8, 256], strides = [1, 1]} : vector<24x256xf32> to vector<8x256xf32>
    %c276 = arith.constant 276 : index
    %1342 = memref.load %arg2[%c276] : memref<405xf32, #tpu.memory_space<smem>>
    %1343 = vector.broadcast %1342 : f32 to vector<8x256xf32>
    %1344 = arith.mulf %1343, %1341 : vector<8x256xf32>
    %1345 = arith.addf %1302, %1344 : vector<8x256xf32>
    %c277 = arith.constant 277 : index
    %1346 = memref.load %arg2[%c277] : memref<405xf32, #tpu.memory_space<smem>>
    %1347 = vector.broadcast %1346 : f32 to vector<8x256xf32>
    %1348 = arith.mulf %1347, %1341 : vector<8x256xf32>
    %1349 = arith.addf %1306, %1348 : vector<8x256xf32>
    %c278 = arith.constant 278 : index
    %1350 = memref.load %arg2[%c278] : memref<405xf32, #tpu.memory_space<smem>>
    %1351 = vector.broadcast %1350 : f32 to vector<8x256xf32>
    %1352 = arith.mulf %1351, %1341 : vector<8x256xf32>
    %1353 = arith.addf %1310, %1352 : vector<8x256xf32>
    %1354 = vector.extract_strided_slice %1190 {offsets = [0, 0], sizes = [8, 256], strides = [1, 1]} : vector<24x256xf32> to vector<8x256xf32>
    %c279 = arith.constant 279 : index
    %1355 = memref.load %arg2[%c279] : memref<405xf32, #tpu.memory_space<smem>>
    %1356 = vector.broadcast %1355 : f32 to vector<8x256xf32>
    %1357 = arith.mulf %1356, %1354 : vector<8x256xf32>
    %1358 = arith.addf %1319, %1357 : vector<8x256xf32>
    %c280 = arith.constant 280 : index
    %1359 = memref.load %arg2[%c280] : memref<405xf32, #tpu.memory_space<smem>>
    %1360 = vector.broadcast %1359 : f32 to vector<8x256xf32>
    %1361 = arith.mulf %1360, %1354 : vector<8x256xf32>
    %1362 = arith.addf %1323, %1361 : vector<8x256xf32>
    %c281 = arith.constant 281 : index
    %1363 = memref.load %arg2[%c281] : memref<405xf32, #tpu.memory_space<smem>>
    %1364 = vector.broadcast %1363 : f32 to vector<8x256xf32>
    %1365 = arith.mulf %1364, %1354 : vector<8x256xf32>
    %1366 = arith.addf %1327, %1365 : vector<8x256xf32>
    %1367 = vector.extract_strided_slice %1190 {offsets = [8, 0], sizes = [8, 256], strides = [1, 1]} : vector<24x256xf32> to vector<8x256xf32>
    %c282 = arith.constant 282 : index
    %1368 = memref.load %arg2[%c282] : memref<405xf32, #tpu.memory_space<smem>>
    %1369 = vector.broadcast %1368 : f32 to vector<8x256xf32>
    %1370 = arith.mulf %1369, %1367 : vector<8x256xf32>
    %1371 = arith.addf %1332, %1370 : vector<8x256xf32>
    %c283 = arith.constant 283 : index
    %1372 = memref.load %arg2[%c283] : memref<405xf32, #tpu.memory_space<smem>>
    %1373 = vector.broadcast %1372 : f32 to vector<8x256xf32>
    %1374 = arith.mulf %1373, %1367 : vector<8x256xf32>
    %1375 = arith.addf %1336, %1374 : vector<8x256xf32>
    %c284 = arith.constant 284 : index
    %1376 = memref.load %arg2[%c284] : memref<405xf32, #tpu.memory_space<smem>>
    %1377 = vector.broadcast %1376 : f32 to vector<8x256xf32>
    %1378 = arith.mulf %1377, %1367 : vector<8x256xf32>
    %1379 = arith.addf %1340, %1378 : vector<8x256xf32>
    %1380 = vector.extract_strided_slice %1190 {offsets = [16, 0], sizes = [8, 256], strides = [1, 1]} : vector<24x256xf32> to vector<8x256xf32>
    %c285 = arith.constant 285 : index
    %1381 = memref.load %arg2[%c285] : memref<405xf32, #tpu.memory_space<smem>>
    %1382 = vector.broadcast %1381 : f32 to vector<8x256xf32>
    %1383 = arith.mulf %1382, %1380 : vector<8x256xf32>
    %1384 = arith.addf %1345, %1383 : vector<8x256xf32>
    %c286 = arith.constant 286 : index
    %1385 = memref.load %arg2[%c286] : memref<405xf32, #tpu.memory_space<smem>>
    %1386 = vector.broadcast %1385 : f32 to vector<8x256xf32>
    %1387 = arith.mulf %1386, %1380 : vector<8x256xf32>
    %1388 = arith.addf %1349, %1387 : vector<8x256xf32>
    %c287 = arith.constant 287 : index
    %1389 = memref.load %arg2[%c287] : memref<405xf32, #tpu.memory_space<smem>>
    %1390 = vector.broadcast %1389 : f32 to vector<8x256xf32>
    %1391 = arith.mulf %1390, %1380 : vector<8x256xf32>
    %1392 = arith.addf %1353, %1391 : vector<8x256xf32>
    %c255_i32_42 = arith.constant 255 : i32
    %1393 = tpu.dynamic_rotate %1190 by %c255_i32_42 dim 1 : vector<24x256xf32>, i32 -> vector<24x256xf32>
    %1394 = vector.extract_strided_slice %2 {offsets = [5, 0], sizes = [1, 256], strides = [1, 1]} : vector<9x256xf32> to vector<1x256xf32>
    %1395 = vector.broadcast %1394 : vector<1x256xf32> to vector<24x256xf32>
    %1396 = arith.mulf %1393, %1395 : vector<24x256xf32>
    %1397 = vector.extract_strided_slice %1396 {offsets = [0, 0], sizes = [8, 256], strides = [1, 1]} : vector<24x256xf32> to vector<8x256xf32>
    %c288 = arith.constant 288 : index
    %1398 = memref.load %arg2[%c288] : memref<405xf32, #tpu.memory_space<smem>>
    %1399 = vector.broadcast %1398 : f32 to vector<8x256xf32>
    %1400 = arith.mulf %1399, %1397 : vector<8x256xf32>
    %1401 = arith.addf %1358, %1400 : vector<8x256xf32>
    %c289 = arith.constant 289 : index
    %1402 = memref.load %arg2[%c289] : memref<405xf32, #tpu.memory_space<smem>>
    %1403 = vector.broadcast %1402 : f32 to vector<8x256xf32>
    %1404 = arith.mulf %1403, %1397 : vector<8x256xf32>
    %1405 = arith.addf %1362, %1404 : vector<8x256xf32>
    %c290 = arith.constant 290 : index
    %1406 = memref.load %arg2[%c290] : memref<405xf32, #tpu.memory_space<smem>>
    %1407 = vector.broadcast %1406 : f32 to vector<8x256xf32>
    %1408 = arith.mulf %1407, %1397 : vector<8x256xf32>
    %1409 = arith.addf %1366, %1408 : vector<8x256xf32>
    %1410 = vector.extract_strided_slice %1396 {offsets = [8, 0], sizes = [8, 256], strides = [1, 1]} : vector<24x256xf32> to vector<8x256xf32>
    %c291 = arith.constant 291 : index
    %1411 = memref.load %arg2[%c291] : memref<405xf32, #tpu.memory_space<smem>>
    %1412 = vector.broadcast %1411 : f32 to vector<8x256xf32>
    %1413 = arith.mulf %1412, %1410 : vector<8x256xf32>
    %1414 = arith.addf %1371, %1413 : vector<8x256xf32>
    %c292 = arith.constant 292 : index
    %1415 = memref.load %arg2[%c292] : memref<405xf32, #tpu.memory_space<smem>>
    %1416 = vector.broadcast %1415 : f32 to vector<8x256xf32>
    %1417 = arith.mulf %1416, %1410 : vector<8x256xf32>
    %1418 = arith.addf %1375, %1417 : vector<8x256xf32>
    %c293 = arith.constant 293 : index
    %1419 = memref.load %arg2[%c293] : memref<405xf32, #tpu.memory_space<smem>>
    %1420 = vector.broadcast %1419 : f32 to vector<8x256xf32>
    %1421 = arith.mulf %1420, %1410 : vector<8x256xf32>
    %1422 = arith.addf %1379, %1421 : vector<8x256xf32>
    %1423 = vector.extract_strided_slice %1396 {offsets = [16, 0], sizes = [8, 256], strides = [1, 1]} : vector<24x256xf32> to vector<8x256xf32>
    %c294 = arith.constant 294 : index
    %1424 = memref.load %arg2[%c294] : memref<405xf32, #tpu.memory_space<smem>>
    %1425 = vector.broadcast %1424 : f32 to vector<8x256xf32>
    %1426 = arith.mulf %1425, %1423 : vector<8x256xf32>
    %1427 = arith.addf %1384, %1426 : vector<8x256xf32>
    %c295 = arith.constant 295 : index
    %1428 = memref.load %arg2[%c295] : memref<405xf32, #tpu.memory_space<smem>>
    %1429 = vector.broadcast %1428 : f32 to vector<8x256xf32>
    %1430 = arith.mulf %1429, %1423 : vector<8x256xf32>
    %1431 = arith.addf %1388, %1430 : vector<8x256xf32>
    %c296 = arith.constant 296 : index
    %1432 = memref.load %arg2[%c296] : memref<405xf32, #tpu.memory_space<smem>>
    %1433 = vector.broadcast %1432 : f32 to vector<8x256xf32>
    %1434 = arith.mulf %1433, %1423 : vector<8x256xf32>
    %1435 = arith.addf %1392, %1434 : vector<8x256xf32>
    %c241_i32_43 = arith.constant 241 : i32
    %1436 = tpu.dynamic_rotate %1190 by %c241_i32_43 dim 1 : vector<24x256xf32>, i32 -> vector<24x256xf32>
    %1437 = vector.extract_strided_slice %2 {offsets = [6, 0], sizes = [1, 256], strides = [1, 1]} : vector<9x256xf32> to vector<1x256xf32>
    %1438 = vector.broadcast %1437 : vector<1x256xf32> to vector<24x256xf32>
    %1439 = arith.mulf %1436, %1438 : vector<24x256xf32>
    %1440 = vector.extract_strided_slice %1439 {offsets = [0, 0], sizes = [8, 256], strides = [1, 1]} : vector<24x256xf32> to vector<8x256xf32>
    %c297 = arith.constant 297 : index
    %1441 = memref.load %arg2[%c297] : memref<405xf32, #tpu.memory_space<smem>>
    %1442 = vector.broadcast %1441 : f32 to vector<8x256xf32>
    %1443 = arith.mulf %1442, %1440 : vector<8x256xf32>
    %1444 = arith.addf %1401, %1443 : vector<8x256xf32>
    %c298 = arith.constant 298 : index
    %1445 = memref.load %arg2[%c298] : memref<405xf32, #tpu.memory_space<smem>>
    %1446 = vector.broadcast %1445 : f32 to vector<8x256xf32>
    %1447 = arith.mulf %1446, %1440 : vector<8x256xf32>
    %1448 = arith.addf %1405, %1447 : vector<8x256xf32>
    %c299 = arith.constant 299 : index
    %1449 = memref.load %arg2[%c299] : memref<405xf32, #tpu.memory_space<smem>>
    %1450 = vector.broadcast %1449 : f32 to vector<8x256xf32>
    %1451 = arith.mulf %1450, %1440 : vector<8x256xf32>
    %1452 = arith.addf %1409, %1451 : vector<8x256xf32>
    %1453 = vector.extract_strided_slice %1439 {offsets = [8, 0], sizes = [8, 256], strides = [1, 1]} : vector<24x256xf32> to vector<8x256xf32>
    %c300 = arith.constant 300 : index
    %1454 = memref.load %arg2[%c300] : memref<405xf32, #tpu.memory_space<smem>>
    %1455 = vector.broadcast %1454 : f32 to vector<8x256xf32>
    %1456 = arith.mulf %1455, %1453 : vector<8x256xf32>
    %1457 = arith.addf %1414, %1456 : vector<8x256xf32>
    %c301 = arith.constant 301 : index
    %1458 = memref.load %arg2[%c301] : memref<405xf32, #tpu.memory_space<smem>>
    %1459 = vector.broadcast %1458 : f32 to vector<8x256xf32>
    %1460 = arith.mulf %1459, %1453 : vector<8x256xf32>
    %1461 = arith.addf %1418, %1460 : vector<8x256xf32>
    %c302 = arith.constant 302 : index
    %1462 = memref.load %arg2[%c302] : memref<405xf32, #tpu.memory_space<smem>>
    %1463 = vector.broadcast %1462 : f32 to vector<8x256xf32>
    %1464 = arith.mulf %1463, %1453 : vector<8x256xf32>
    %1465 = arith.addf %1422, %1464 : vector<8x256xf32>
    %1466 = vector.extract_strided_slice %1439 {offsets = [16, 0], sizes = [8, 256], strides = [1, 1]} : vector<24x256xf32> to vector<8x256xf32>
    %c303 = arith.constant 303 : index
    %1467 = memref.load %arg2[%c303] : memref<405xf32, #tpu.memory_space<smem>>
    %1468 = vector.broadcast %1467 : f32 to vector<8x256xf32>
    %1469 = arith.mulf %1468, %1466 : vector<8x256xf32>
    %1470 = arith.addf %1427, %1469 : vector<8x256xf32>
    %c304 = arith.constant 304 : index
    %1471 = memref.load %arg2[%c304] : memref<405xf32, #tpu.memory_space<smem>>
    %1472 = vector.broadcast %1471 : f32 to vector<8x256xf32>
    %1473 = arith.mulf %1472, %1466 : vector<8x256xf32>
    %1474 = arith.addf %1431, %1473 : vector<8x256xf32>
    %c305 = arith.constant 305 : index
    %1475 = memref.load %arg2[%c305] : memref<405xf32, #tpu.memory_space<smem>>
    %1476 = vector.broadcast %1475 : f32 to vector<8x256xf32>
    %1477 = arith.mulf %1476, %1466 : vector<8x256xf32>
    %1478 = arith.addf %1435, %1477 : vector<8x256xf32>
    %c240_i32_44 = arith.constant 240 : i32
    %1479 = tpu.dynamic_rotate %1190 by %c240_i32_44 dim 1 : vector<24x256xf32>, i32 -> vector<24x256xf32>
    %1480 = vector.extract_strided_slice %2 {offsets = [7, 0], sizes = [1, 256], strides = [1, 1]} : vector<9x256xf32> to vector<1x256xf32>
    %1481 = vector.broadcast %1480 : vector<1x256xf32> to vector<24x256xf32>
    %1482 = arith.mulf %1479, %1481 : vector<24x256xf32>
    %1483 = vector.extract_strided_slice %1482 {offsets = [0, 0], sizes = [8, 256], strides = [1, 1]} : vector<24x256xf32> to vector<8x256xf32>
    %c306 = arith.constant 306 : index
    %1484 = memref.load %arg2[%c306] : memref<405xf32, #tpu.memory_space<smem>>
    %1485 = vector.broadcast %1484 : f32 to vector<8x256xf32>
    %1486 = arith.mulf %1485, %1483 : vector<8x256xf32>
    %1487 = arith.addf %1444, %1486 : vector<8x256xf32>
    %c307 = arith.constant 307 : index
    %1488 = memref.load %arg2[%c307] : memref<405xf32, #tpu.memory_space<smem>>
    %1489 = vector.broadcast %1488 : f32 to vector<8x256xf32>
    %1490 = arith.mulf %1489, %1483 : vector<8x256xf32>
    %1491 = arith.addf %1448, %1490 : vector<8x256xf32>
    %c308 = arith.constant 308 : index
    %1492 = memref.load %arg2[%c308] : memref<405xf32, #tpu.memory_space<smem>>
    %1493 = vector.broadcast %1492 : f32 to vector<8x256xf32>
    %1494 = arith.mulf %1493, %1483 : vector<8x256xf32>
    %1495 = arith.addf %1452, %1494 : vector<8x256xf32>
    %1496 = vector.extract_strided_slice %1482 {offsets = [8, 0], sizes = [8, 256], strides = [1, 1]} : vector<24x256xf32> to vector<8x256xf32>
    %c309 = arith.constant 309 : index
    %1497 = memref.load %arg2[%c309] : memref<405xf32, #tpu.memory_space<smem>>
    %1498 = vector.broadcast %1497 : f32 to vector<8x256xf32>
    %1499 = arith.mulf %1498, %1496 : vector<8x256xf32>
    %1500 = arith.addf %1457, %1499 : vector<8x256xf32>
    %c310 = arith.constant 310 : index
    %1501 = memref.load %arg2[%c310] : memref<405xf32, #tpu.memory_space<smem>>
    %1502 = vector.broadcast %1501 : f32 to vector<8x256xf32>
    %1503 = arith.mulf %1502, %1496 : vector<8x256xf32>
    %1504 = arith.addf %1461, %1503 : vector<8x256xf32>
    %c311 = arith.constant 311 : index
    %1505 = memref.load %arg2[%c311] : memref<405xf32, #tpu.memory_space<smem>>
    %1506 = vector.broadcast %1505 : f32 to vector<8x256xf32>
    %1507 = arith.mulf %1506, %1496 : vector<8x256xf32>
    %1508 = arith.addf %1465, %1507 : vector<8x256xf32>
    %1509 = vector.extract_strided_slice %1482 {offsets = [16, 0], sizes = [8, 256], strides = [1, 1]} : vector<24x256xf32> to vector<8x256xf32>
    %c312 = arith.constant 312 : index
    %1510 = memref.load %arg2[%c312] : memref<405xf32, #tpu.memory_space<smem>>
    %1511 = vector.broadcast %1510 : f32 to vector<8x256xf32>
    %1512 = arith.mulf %1511, %1509 : vector<8x256xf32>
    %1513 = arith.addf %1470, %1512 : vector<8x256xf32>
    %c313 = arith.constant 313 : index
    %1514 = memref.load %arg2[%c313] : memref<405xf32, #tpu.memory_space<smem>>
    %1515 = vector.broadcast %1514 : f32 to vector<8x256xf32>
    %1516 = arith.mulf %1515, %1509 : vector<8x256xf32>
    %1517 = arith.addf %1474, %1516 : vector<8x256xf32>
    %c314 = arith.constant 314 : index
    %1518 = memref.load %arg2[%c314] : memref<405xf32, #tpu.memory_space<smem>>
    %1519 = vector.broadcast %1518 : f32 to vector<8x256xf32>
    %1520 = arith.mulf %1519, %1509 : vector<8x256xf32>
    %1521 = arith.addf %1478, %1520 : vector<8x256xf32>
    %c239_i32_45 = arith.constant 239 : i32
    %1522 = tpu.dynamic_rotate %1190 by %c239_i32_45 dim 1 : vector<24x256xf32>, i32 -> vector<24x256xf32>
    %1523 = vector.extract_strided_slice %2 {offsets = [8, 0], sizes = [1, 256], strides = [1, 1]} : vector<9x256xf32> to vector<1x256xf32>
    %1524 = vector.broadcast %1523 : vector<1x256xf32> to vector<24x256xf32>
    %1525 = arith.mulf %1522, %1524 : vector<24x256xf32>
    %1526 = vector.extract_strided_slice %1525 {offsets = [0, 0], sizes = [8, 256], strides = [1, 1]} : vector<24x256xf32> to vector<8x256xf32>
    %c315 = arith.constant 315 : index
    %1527 = memref.load %arg2[%c315] : memref<405xf32, #tpu.memory_space<smem>>
    %1528 = vector.broadcast %1527 : f32 to vector<8x256xf32>
    %1529 = arith.mulf %1528, %1526 : vector<8x256xf32>
    %1530 = arith.addf %1487, %1529 : vector<8x256xf32>
    %c316 = arith.constant 316 : index
    %1531 = memref.load %arg2[%c316] : memref<405xf32, #tpu.memory_space<smem>>
    %1532 = vector.broadcast %1531 : f32 to vector<8x256xf32>
    %1533 = arith.mulf %1532, %1526 : vector<8x256xf32>
    %1534 = arith.addf %1491, %1533 : vector<8x256xf32>
    %c317 = arith.constant 317 : index
    %1535 = memref.load %arg2[%c317] : memref<405xf32, #tpu.memory_space<smem>>
    %1536 = vector.broadcast %1535 : f32 to vector<8x256xf32>
    %1537 = arith.mulf %1536, %1526 : vector<8x256xf32>
    %1538 = arith.addf %1495, %1537 : vector<8x256xf32>
    %1539 = vector.extract_strided_slice %1525 {offsets = [8, 0], sizes = [8, 256], strides = [1, 1]} : vector<24x256xf32> to vector<8x256xf32>
    %c318 = arith.constant 318 : index
    %1540 = memref.load %arg2[%c318] : memref<405xf32, #tpu.memory_space<smem>>
    %1541 = vector.broadcast %1540 : f32 to vector<8x256xf32>
    %1542 = arith.mulf %1541, %1539 : vector<8x256xf32>
    %1543 = arith.addf %1500, %1542 : vector<8x256xf32>
    %c319 = arith.constant 319 : index
    %1544 = memref.load %arg2[%c319] : memref<405xf32, #tpu.memory_space<smem>>
    %1545 = vector.broadcast %1544 : f32 to vector<8x256xf32>
    %1546 = arith.mulf %1545, %1539 : vector<8x256xf32>
    %1547 = arith.addf %1504, %1546 : vector<8x256xf32>
    %c320 = arith.constant 320 : index
    %1548 = memref.load %arg2[%c320] : memref<405xf32, #tpu.memory_space<smem>>
    %1549 = vector.broadcast %1548 : f32 to vector<8x256xf32>
    %1550 = arith.mulf %1549, %1539 : vector<8x256xf32>
    %1551 = arith.addf %1508, %1550 : vector<8x256xf32>
    %1552 = vector.extract_strided_slice %1525 {offsets = [16, 0], sizes = [8, 256], strides = [1, 1]} : vector<24x256xf32> to vector<8x256xf32>
    %c321 = arith.constant 321 : index
    %1553 = memref.load %arg2[%c321] : memref<405xf32, #tpu.memory_space<smem>>
    %1554 = vector.broadcast %1553 : f32 to vector<8x256xf32>
    %1555 = arith.mulf %1554, %1552 : vector<8x256xf32>
    %1556 = arith.addf %1513, %1555 : vector<8x256xf32>
    %c322 = arith.constant 322 : index
    %1557 = memref.load %arg2[%c322] : memref<405xf32, #tpu.memory_space<smem>>
    %1558 = vector.broadcast %1557 : f32 to vector<8x256xf32>
    %1559 = arith.mulf %1558, %1552 : vector<8x256xf32>
    %1560 = arith.addf %1517, %1559 : vector<8x256xf32>
    %c323 = arith.constant 323 : index
    %1561 = memref.load %arg2[%c323] : memref<405xf32, #tpu.memory_space<smem>>
    %1562 = vector.broadcast %1561 : f32 to vector<8x256xf32>
    %1563 = arith.mulf %1562, %1552 : vector<8x256xf32>
    %1564 = arith.addf %1521, %1563 : vector<8x256xf32>
    %c9_46 = arith.constant 9 : index
    %1565 = memref.load %arg3[%c9_46] : memref<15xf32, #tpu.memory_space<smem>>
    %1566 = arith.addf %1530, %1543 : vector<8x256xf32>
    %1567 = vector.broadcast %1565 : f32 to vector<8x256xf32>
    %1568 = arith.addf %1556, %1567 : vector<8x256xf32>
    %1569 = arith.addf %1566, %1568 : vector<8x256xf32>
    %cst_47 = arith.constant 0.000000e+00 : f32
    %1570 = vector.broadcast %cst_47 : f32 to vector<8x256xf32>
    %1571 = arith.maximumf %1569, %1570 : vector<8x256xf32>
    %c10_48 = arith.constant 10 : index
    %1572 = memref.load %arg3[%c10_48] : memref<15xf32, #tpu.memory_space<smem>>
    %1573 = arith.addf %1534, %1547 : vector<8x256xf32>
    %1574 = vector.broadcast %1572 : f32 to vector<8x256xf32>
    %1575 = arith.addf %1560, %1574 : vector<8x256xf32>
    %1576 = arith.addf %1573, %1575 : vector<8x256xf32>
    %cst_49 = arith.constant 0.000000e+00 : f32
    %1577 = vector.broadcast %cst_49 : f32 to vector<8x256xf32>
    %1578 = arith.maximumf %1576, %1577 : vector<8x256xf32>
    %c11_50 = arith.constant 11 : index
    %1579 = memref.load %arg3[%c11_50] : memref<15xf32, #tpu.memory_space<smem>>
    %1580 = arith.addf %1538, %1551 : vector<8x256xf32>
    %1581 = vector.broadcast %1579 : f32 to vector<8x256xf32>
    %1582 = arith.addf %1564, %1581 : vector<8x256xf32>
    %1583 = arith.addf %1580, %1582 : vector<8x256xf32>
    %cst_51 = arith.constant 0.000000e+00 : f32
    %1584 = vector.broadcast %cst_51 : f32 to vector<8x256xf32>
    %1585 = arith.maximumf %1583, %1584 : vector<8x256xf32>
    %1586 = tpu.concatenate %1571, %1578, %1585 in 0 : vector<8x256xf32>, vector<8x256xf32>, vector<8x256xf32> -> vector<24x256xf32>
    %c17_i32_52 = arith.constant 17 : i32
    %1587 = tpu.dynamic_rotate %1586 by %c17_i32_52 dim 1 : vector<24x256xf32>, i32 -> vector<24x256xf32>
    %1588 = vector.extract_strided_slice %2 {offsets = [0, 0], sizes = [1, 256], strides = [1, 1]} : vector<9x256xf32> to vector<1x256xf32>
    %1589 = vector.broadcast %1588 : vector<1x256xf32> to vector<24x256xf32>
    %1590 = arith.mulf %1587, %1589 : vector<24x256xf32>
    %1591 = vector.extract_strided_slice %1590 {offsets = [0, 0], sizes = [8, 256], strides = [1, 1]} : vector<24x256xf32> to vector<8x256xf32>
    %c324 = arith.constant 324 : index
    %1592 = memref.load %arg2[%c324] : memref<405xf32, #tpu.memory_space<smem>>
    %1593 = vector.broadcast %1592 : f32 to vector<8x256xf32>
    %1594 = arith.mulf %1593, %1591 : vector<8x256xf32>
    %c325 = arith.constant 325 : index
    %1595 = memref.load %arg2[%c325] : memref<405xf32, #tpu.memory_space<smem>>
    %1596 = vector.broadcast %1595 : f32 to vector<8x256xf32>
    %1597 = arith.mulf %1596, %1591 : vector<8x256xf32>
    %c326 = arith.constant 326 : index
    %1598 = memref.load %arg2[%c326] : memref<405xf32, #tpu.memory_space<smem>>
    %1599 = vector.broadcast %1598 : f32 to vector<8x256xf32>
    %1600 = arith.mulf %1599, %1591 : vector<8x256xf32>
    %1601 = vector.extract_strided_slice %1590 {offsets = [8, 0], sizes = [8, 256], strides = [1, 1]} : vector<24x256xf32> to vector<8x256xf32>
    %c327 = arith.constant 327 : index
    %1602 = memref.load %arg2[%c327] : memref<405xf32, #tpu.memory_space<smem>>
    %1603 = vector.broadcast %1602 : f32 to vector<8x256xf32>
    %1604 = arith.mulf %1603, %1601 : vector<8x256xf32>
    %c328 = arith.constant 328 : index
    %1605 = memref.load %arg2[%c328] : memref<405xf32, #tpu.memory_space<smem>>
    %1606 = vector.broadcast %1605 : f32 to vector<8x256xf32>
    %1607 = arith.mulf %1606, %1601 : vector<8x256xf32>
    %c329 = arith.constant 329 : index
    %1608 = memref.load %arg2[%c329] : memref<405xf32, #tpu.memory_space<smem>>
    %1609 = vector.broadcast %1608 : f32 to vector<8x256xf32>
    %1610 = arith.mulf %1609, %1601 : vector<8x256xf32>
    %1611 = vector.extract_strided_slice %1590 {offsets = [16, 0], sizes = [8, 256], strides = [1, 1]} : vector<24x256xf32> to vector<8x256xf32>
    %c330 = arith.constant 330 : index
    %1612 = memref.load %arg2[%c330] : memref<405xf32, #tpu.memory_space<smem>>
    %1613 = vector.broadcast %1612 : f32 to vector<8x256xf32>
    %1614 = arith.mulf %1613, %1611 : vector<8x256xf32>
    %c331 = arith.constant 331 : index
    %1615 = memref.load %arg2[%c331] : memref<405xf32, #tpu.memory_space<smem>>
    %1616 = vector.broadcast %1615 : f32 to vector<8x256xf32>
    %1617 = arith.mulf %1616, %1611 : vector<8x256xf32>
    %c332 = arith.constant 332 : index
    %1618 = memref.load %arg2[%c332] : memref<405xf32, #tpu.memory_space<smem>>
    %1619 = vector.broadcast %1618 : f32 to vector<8x256xf32>
    %1620 = arith.mulf %1619, %1611 : vector<8x256xf32>
    %c16_i32_53 = arith.constant 16 : i32
    %1621 = tpu.dynamic_rotate %1586 by %c16_i32_53 dim 1 : vector<24x256xf32>, i32 -> vector<24x256xf32>
    %1622 = vector.extract_strided_slice %2 {offsets = [1, 0], sizes = [1, 256], strides = [1, 1]} : vector<9x256xf32> to vector<1x256xf32>
    %1623 = vector.broadcast %1622 : vector<1x256xf32> to vector<24x256xf32>
    %1624 = arith.mulf %1621, %1623 : vector<24x256xf32>
    %1625 = vector.extract_strided_slice %1624 {offsets = [0, 0], sizes = [8, 256], strides = [1, 1]} : vector<24x256xf32> to vector<8x256xf32>
    %c333 = arith.constant 333 : index
    %1626 = memref.load %arg2[%c333] : memref<405xf32, #tpu.memory_space<smem>>
    %1627 = vector.broadcast %1626 : f32 to vector<8x256xf32>
    %1628 = arith.mulf %1627, %1625 : vector<8x256xf32>
    %1629 = arith.addf %1594, %1628 : vector<8x256xf32>
    %c334 = arith.constant 334 : index
    %1630 = memref.load %arg2[%c334] : memref<405xf32, #tpu.memory_space<smem>>
    %1631 = vector.broadcast %1630 : f32 to vector<8x256xf32>
    %1632 = arith.mulf %1631, %1625 : vector<8x256xf32>
    %1633 = arith.addf %1597, %1632 : vector<8x256xf32>
    %c335 = arith.constant 335 : index
    %1634 = memref.load %arg2[%c335] : memref<405xf32, #tpu.memory_space<smem>>
    %1635 = vector.broadcast %1634 : f32 to vector<8x256xf32>
    %1636 = arith.mulf %1635, %1625 : vector<8x256xf32>
    %1637 = arith.addf %1600, %1636 : vector<8x256xf32>
    %1638 = vector.extract_strided_slice %1624 {offsets = [8, 0], sizes = [8, 256], strides = [1, 1]} : vector<24x256xf32> to vector<8x256xf32>
    %c336 = arith.constant 336 : index
    %1639 = memref.load %arg2[%c336] : memref<405xf32, #tpu.memory_space<smem>>
    %1640 = vector.broadcast %1639 : f32 to vector<8x256xf32>
    %1641 = arith.mulf %1640, %1638 : vector<8x256xf32>
    %1642 = arith.addf %1604, %1641 : vector<8x256xf32>
    %c337 = arith.constant 337 : index
    %1643 = memref.load %arg2[%c337] : memref<405xf32, #tpu.memory_space<smem>>
    %1644 = vector.broadcast %1643 : f32 to vector<8x256xf32>
    %1645 = arith.mulf %1644, %1638 : vector<8x256xf32>
    %1646 = arith.addf %1607, %1645 : vector<8x256xf32>
    %c338 = arith.constant 338 : index
    %1647 = memref.load %arg2[%c338] : memref<405xf32, #tpu.memory_space<smem>>
    %1648 = vector.broadcast %1647 : f32 to vector<8x256xf32>
    %1649 = arith.mulf %1648, %1638 : vector<8x256xf32>
    %1650 = arith.addf %1610, %1649 : vector<8x256xf32>
    %1651 = vector.extract_strided_slice %1624 {offsets = [16, 0], sizes = [8, 256], strides = [1, 1]} : vector<24x256xf32> to vector<8x256xf32>
    %c339 = arith.constant 339 : index
    %1652 = memref.load %arg2[%c339] : memref<405xf32, #tpu.memory_space<smem>>
    %1653 = vector.broadcast %1652 : f32 to vector<8x256xf32>
    %1654 = arith.mulf %1653, %1651 : vector<8x256xf32>
    %1655 = arith.addf %1614, %1654 : vector<8x256xf32>
    %c340 = arith.constant 340 : index
    %1656 = memref.load %arg2[%c340] : memref<405xf32, #tpu.memory_space<smem>>
    %1657 = vector.broadcast %1656 : f32 to vector<8x256xf32>
    %1658 = arith.mulf %1657, %1651 : vector<8x256xf32>
    %1659 = arith.addf %1617, %1658 : vector<8x256xf32>
    %c341 = arith.constant 341 : index
    %1660 = memref.load %arg2[%c341] : memref<405xf32, #tpu.memory_space<smem>>
    %1661 = vector.broadcast %1660 : f32 to vector<8x256xf32>
    %1662 = arith.mulf %1661, %1651 : vector<8x256xf32>
    %1663 = arith.addf %1620, %1662 : vector<8x256xf32>
    %c15_i32_54 = arith.constant 15 : i32
    %1664 = tpu.dynamic_rotate %1586 by %c15_i32_54 dim 1 : vector<24x256xf32>, i32 -> vector<24x256xf32>
    %1665 = vector.extract_strided_slice %2 {offsets = [2, 0], sizes = [1, 256], strides = [1, 1]} : vector<9x256xf32> to vector<1x256xf32>
    %1666 = vector.broadcast %1665 : vector<1x256xf32> to vector<24x256xf32>
    %1667 = arith.mulf %1664, %1666 : vector<24x256xf32>
    %1668 = vector.extract_strided_slice %1667 {offsets = [0, 0], sizes = [8, 256], strides = [1, 1]} : vector<24x256xf32> to vector<8x256xf32>
    %c342 = arith.constant 342 : index
    %1669 = memref.load %arg2[%c342] : memref<405xf32, #tpu.memory_space<smem>>
    %1670 = vector.broadcast %1669 : f32 to vector<8x256xf32>
    %1671 = arith.mulf %1670, %1668 : vector<8x256xf32>
    %1672 = arith.addf %1629, %1671 : vector<8x256xf32>
    %c343 = arith.constant 343 : index
    %1673 = memref.load %arg2[%c343] : memref<405xf32, #tpu.memory_space<smem>>
    %1674 = vector.broadcast %1673 : f32 to vector<8x256xf32>
    %1675 = arith.mulf %1674, %1668 : vector<8x256xf32>
    %1676 = arith.addf %1633, %1675 : vector<8x256xf32>
    %c344 = arith.constant 344 : index
    %1677 = memref.load %arg2[%c344] : memref<405xf32, #tpu.memory_space<smem>>
    %1678 = vector.broadcast %1677 : f32 to vector<8x256xf32>
    %1679 = arith.mulf %1678, %1668 : vector<8x256xf32>
    %1680 = arith.addf %1637, %1679 : vector<8x256xf32>
    %1681 = vector.extract_strided_slice %1667 {offsets = [8, 0], sizes = [8, 256], strides = [1, 1]} : vector<24x256xf32> to vector<8x256xf32>
    %c345 = arith.constant 345 : index
    %1682 = memref.load %arg2[%c345] : memref<405xf32, #tpu.memory_space<smem>>
    %1683 = vector.broadcast %1682 : f32 to vector<8x256xf32>
    %1684 = arith.mulf %1683, %1681 : vector<8x256xf32>
    %1685 = arith.addf %1642, %1684 : vector<8x256xf32>
    %c346 = arith.constant 346 : index
    %1686 = memref.load %arg2[%c346] : memref<405xf32, #tpu.memory_space<smem>>
    %1687 = vector.broadcast %1686 : f32 to vector<8x256xf32>
    %1688 = arith.mulf %1687, %1681 : vector<8x256xf32>
    %1689 = arith.addf %1646, %1688 : vector<8x256xf32>
    %c347 = arith.constant 347 : index
    %1690 = memref.load %arg2[%c347] : memref<405xf32, #tpu.memory_space<smem>>
    %1691 = vector.broadcast %1690 : f32 to vector<8x256xf32>
    %1692 = arith.mulf %1691, %1681 : vector<8x256xf32>
    %1693 = arith.addf %1650, %1692 : vector<8x256xf32>
    %1694 = vector.extract_strided_slice %1667 {offsets = [16, 0], sizes = [8, 256], strides = [1, 1]} : vector<24x256xf32> to vector<8x256xf32>
    %c348 = arith.constant 348 : index
    %1695 = memref.load %arg2[%c348] : memref<405xf32, #tpu.memory_space<smem>>
    %1696 = vector.broadcast %1695 : f32 to vector<8x256xf32>
    %1697 = arith.mulf %1696, %1694 : vector<8x256xf32>
    %1698 = arith.addf %1655, %1697 : vector<8x256xf32>
    %c349 = arith.constant 349 : index
    %1699 = memref.load %arg2[%c349] : memref<405xf32, #tpu.memory_space<smem>>
    %1700 = vector.broadcast %1699 : f32 to vector<8x256xf32>
    %1701 = arith.mulf %1700, %1694 : vector<8x256xf32>
    %1702 = arith.addf %1659, %1701 : vector<8x256xf32>
    %c350 = arith.constant 350 : index
    %1703 = memref.load %arg2[%c350] : memref<405xf32, #tpu.memory_space<smem>>
    %1704 = vector.broadcast %1703 : f32 to vector<8x256xf32>
    %1705 = arith.mulf %1704, %1694 : vector<8x256xf32>
    %1706 = arith.addf %1663, %1705 : vector<8x256xf32>
    %c1_i32_55 = arith.constant 1 : i32
    %1707 = tpu.dynamic_rotate %1586 by %c1_i32_55 dim 1 : vector<24x256xf32>, i32 -> vector<24x256xf32>
    %1708 = vector.extract_strided_slice %2 {offsets = [3, 0], sizes = [1, 256], strides = [1, 1]} : vector<9x256xf32> to vector<1x256xf32>
    %1709 = vector.broadcast %1708 : vector<1x256xf32> to vector<24x256xf32>
    %1710 = arith.mulf %1707, %1709 : vector<24x256xf32>
    %1711 = vector.extract_strided_slice %1710 {offsets = [0, 0], sizes = [8, 256], strides = [1, 1]} : vector<24x256xf32> to vector<8x256xf32>
    %c351 = arith.constant 351 : index
    %1712 = memref.load %arg2[%c351] : memref<405xf32, #tpu.memory_space<smem>>
    %1713 = vector.broadcast %1712 : f32 to vector<8x256xf32>
    %1714 = arith.mulf %1713, %1711 : vector<8x256xf32>
    %1715 = arith.addf %1672, %1714 : vector<8x256xf32>
    %c352 = arith.constant 352 : index
    %1716 = memref.load %arg2[%c352] : memref<405xf32, #tpu.memory_space<smem>>
    %1717 = vector.broadcast %1716 : f32 to vector<8x256xf32>
    %1718 = arith.mulf %1717, %1711 : vector<8x256xf32>
    %1719 = arith.addf %1676, %1718 : vector<8x256xf32>
    %c353 = arith.constant 353 : index
    %1720 = memref.load %arg2[%c353] : memref<405xf32, #tpu.memory_space<smem>>
    %1721 = vector.broadcast %1720 : f32 to vector<8x256xf32>
    %1722 = arith.mulf %1721, %1711 : vector<8x256xf32>
    %1723 = arith.addf %1680, %1722 : vector<8x256xf32>
    %1724 = vector.extract_strided_slice %1710 {offsets = [8, 0], sizes = [8, 256], strides = [1, 1]} : vector<24x256xf32> to vector<8x256xf32>
    %c354 = arith.constant 354 : index
    %1725 = memref.load %arg2[%c354] : memref<405xf32, #tpu.memory_space<smem>>
    %1726 = vector.broadcast %1725 : f32 to vector<8x256xf32>
    %1727 = arith.mulf %1726, %1724 : vector<8x256xf32>
    %1728 = arith.addf %1685, %1727 : vector<8x256xf32>
    %c355 = arith.constant 355 : index
    %1729 = memref.load %arg2[%c355] : memref<405xf32, #tpu.memory_space<smem>>
    %1730 = vector.broadcast %1729 : f32 to vector<8x256xf32>
    %1731 = arith.mulf %1730, %1724 : vector<8x256xf32>
    %1732 = arith.addf %1689, %1731 : vector<8x256xf32>
    %c356 = arith.constant 356 : index
    %1733 = memref.load %arg2[%c356] : memref<405xf32, #tpu.memory_space<smem>>
    %1734 = vector.broadcast %1733 : f32 to vector<8x256xf32>
    %1735 = arith.mulf %1734, %1724 : vector<8x256xf32>
    %1736 = arith.addf %1693, %1735 : vector<8x256xf32>
    %1737 = vector.extract_strided_slice %1710 {offsets = [16, 0], sizes = [8, 256], strides = [1, 1]} : vector<24x256xf32> to vector<8x256xf32>
    %c357 = arith.constant 357 : index
    %1738 = memref.load %arg2[%c357] : memref<405xf32, #tpu.memory_space<smem>>
    %1739 = vector.broadcast %1738 : f32 to vector<8x256xf32>
    %1740 = arith.mulf %1739, %1737 : vector<8x256xf32>
    %1741 = arith.addf %1698, %1740 : vector<8x256xf32>
    %c358 = arith.constant 358 : index
    %1742 = memref.load %arg2[%c358] : memref<405xf32, #tpu.memory_space<smem>>
    %1743 = vector.broadcast %1742 : f32 to vector<8x256xf32>
    %1744 = arith.mulf %1743, %1737 : vector<8x256xf32>
    %1745 = arith.addf %1702, %1744 : vector<8x256xf32>
    %c359 = arith.constant 359 : index
    %1746 = memref.load %arg2[%c359] : memref<405xf32, #tpu.memory_space<smem>>
    %1747 = vector.broadcast %1746 : f32 to vector<8x256xf32>
    %1748 = arith.mulf %1747, %1737 : vector<8x256xf32>
    %1749 = arith.addf %1706, %1748 : vector<8x256xf32>
    %1750 = vector.extract_strided_slice %1586 {offsets = [0, 0], sizes = [8, 256], strides = [1, 1]} : vector<24x256xf32> to vector<8x256xf32>
    %c360 = arith.constant 360 : index
    %1751 = memref.load %arg2[%c360] : memref<405xf32, #tpu.memory_space<smem>>
    %1752 = vector.broadcast %1751 : f32 to vector<8x256xf32>
    %1753 = arith.mulf %1752, %1750 : vector<8x256xf32>
    %1754 = arith.addf %1715, %1753 : vector<8x256xf32>
    %c361 = arith.constant 361 : index
    %1755 = memref.load %arg2[%c361] : memref<405xf32, #tpu.memory_space<smem>>
    %1756 = vector.broadcast %1755 : f32 to vector<8x256xf32>
    %1757 = arith.mulf %1756, %1750 : vector<8x256xf32>
    %1758 = arith.addf %1719, %1757 : vector<8x256xf32>
    %c362 = arith.constant 362 : index
    %1759 = memref.load %arg2[%c362] : memref<405xf32, #tpu.memory_space<smem>>
    %1760 = vector.broadcast %1759 : f32 to vector<8x256xf32>
    %1761 = arith.mulf %1760, %1750 : vector<8x256xf32>
    %1762 = arith.addf %1723, %1761 : vector<8x256xf32>
    %1763 = vector.extract_strided_slice %1586 {offsets = [8, 0], sizes = [8, 256], strides = [1, 1]} : vector<24x256xf32> to vector<8x256xf32>
    %c363 = arith.constant 363 : index
    %1764 = memref.load %arg2[%c363] : memref<405xf32, #tpu.memory_space<smem>>
    %1765 = vector.broadcast %1764 : f32 to vector<8x256xf32>
    %1766 = arith.mulf %1765, %1763 : vector<8x256xf32>
    %1767 = arith.addf %1728, %1766 : vector<8x256xf32>
    %c364 = arith.constant 364 : index
    %1768 = memref.load %arg2[%c364] : memref<405xf32, #tpu.memory_space<smem>>
    %1769 = vector.broadcast %1768 : f32 to vector<8x256xf32>
    %1770 = arith.mulf %1769, %1763 : vector<8x256xf32>
    %1771 = arith.addf %1732, %1770 : vector<8x256xf32>
    %c365 = arith.constant 365 : index
    %1772 = memref.load %arg2[%c365] : memref<405xf32, #tpu.memory_space<smem>>
    %1773 = vector.broadcast %1772 : f32 to vector<8x256xf32>
    %1774 = arith.mulf %1773, %1763 : vector<8x256xf32>
    %1775 = arith.addf %1736, %1774 : vector<8x256xf32>
    %1776 = vector.extract_strided_slice %1586 {offsets = [16, 0], sizes = [8, 256], strides = [1, 1]} : vector<24x256xf32> to vector<8x256xf32>
    %c366 = arith.constant 366 : index
    %1777 = memref.load %arg2[%c366] : memref<405xf32, #tpu.memory_space<smem>>
    %1778 = vector.broadcast %1777 : f32 to vector<8x256xf32>
    %1779 = arith.mulf %1778, %1776 : vector<8x256xf32>
    %1780 = arith.addf %1741, %1779 : vector<8x256xf32>
    %c367 = arith.constant 367 : index
    %1781 = memref.load %arg2[%c367] : memref<405xf32, #tpu.memory_space<smem>>
    %1782 = vector.broadcast %1781 : f32 to vector<8x256xf32>
    %1783 = arith.mulf %1782, %1776 : vector<8x256xf32>
    %1784 = arith.addf %1745, %1783 : vector<8x256xf32>
    %c368 = arith.constant 368 : index
    %1785 = memref.load %arg2[%c368] : memref<405xf32, #tpu.memory_space<smem>>
    %1786 = vector.broadcast %1785 : f32 to vector<8x256xf32>
    %1787 = arith.mulf %1786, %1776 : vector<8x256xf32>
    %1788 = arith.addf %1749, %1787 : vector<8x256xf32>
    %c255_i32_56 = arith.constant 255 : i32
    %1789 = tpu.dynamic_rotate %1586 by %c255_i32_56 dim 1 : vector<24x256xf32>, i32 -> vector<24x256xf32>
    %1790 = vector.extract_strided_slice %2 {offsets = [5, 0], sizes = [1, 256], strides = [1, 1]} : vector<9x256xf32> to vector<1x256xf32>
    %1791 = vector.broadcast %1790 : vector<1x256xf32> to vector<24x256xf32>
    %1792 = arith.mulf %1789, %1791 : vector<24x256xf32>
    %1793 = vector.extract_strided_slice %1792 {offsets = [0, 0], sizes = [8, 256], strides = [1, 1]} : vector<24x256xf32> to vector<8x256xf32>
    %c369 = arith.constant 369 : index
    %1794 = memref.load %arg2[%c369] : memref<405xf32, #tpu.memory_space<smem>>
    %1795 = vector.broadcast %1794 : f32 to vector<8x256xf32>
    %1796 = arith.mulf %1795, %1793 : vector<8x256xf32>
    %1797 = arith.addf %1754, %1796 : vector<8x256xf32>
    %c370 = arith.constant 370 : index
    %1798 = memref.load %arg2[%c370] : memref<405xf32, #tpu.memory_space<smem>>
    %1799 = vector.broadcast %1798 : f32 to vector<8x256xf32>
    %1800 = arith.mulf %1799, %1793 : vector<8x256xf32>
    %1801 = arith.addf %1758, %1800 : vector<8x256xf32>
    %c371 = arith.constant 371 : index
    %1802 = memref.load %arg2[%c371] : memref<405xf32, #tpu.memory_space<smem>>
    %1803 = vector.broadcast %1802 : f32 to vector<8x256xf32>
    %1804 = arith.mulf %1803, %1793 : vector<8x256xf32>
    %1805 = arith.addf %1762, %1804 : vector<8x256xf32>
    %1806 = vector.extract_strided_slice %1792 {offsets = [8, 0], sizes = [8, 256], strides = [1, 1]} : vector<24x256xf32> to vector<8x256xf32>
    %c372 = arith.constant 372 : index
    %1807 = memref.load %arg2[%c372] : memref<405xf32, #tpu.memory_space<smem>>
    %1808 = vector.broadcast %1807 : f32 to vector<8x256xf32>
    %1809 = arith.mulf %1808, %1806 : vector<8x256xf32>
    %1810 = arith.addf %1767, %1809 : vector<8x256xf32>
    %c373 = arith.constant 373 : index
    %1811 = memref.load %arg2[%c373] : memref<405xf32, #tpu.memory_space<smem>>
    %1812 = vector.broadcast %1811 : f32 to vector<8x256xf32>
    %1813 = arith.mulf %1812, %1806 : vector<8x256xf32>
    %1814 = arith.addf %1771, %1813 : vector<8x256xf32>
    %c374 = arith.constant 374 : index
    %1815 = memref.load %arg2[%c374] : memref<405xf32, #tpu.memory_space<smem>>
    %1816 = vector.broadcast %1815 : f32 to vector<8x256xf32>
    %1817 = arith.mulf %1816, %1806 : vector<8x256xf32>
    %1818 = arith.addf %1775, %1817 : vector<8x256xf32>
    %1819 = vector.extract_strided_slice %1792 {offsets = [16, 0], sizes = [8, 256], strides = [1, 1]} : vector<24x256xf32> to vector<8x256xf32>
    %c375 = arith.constant 375 : index
    %1820 = memref.load %arg2[%c375] : memref<405xf32, #tpu.memory_space<smem>>
    %1821 = vector.broadcast %1820 : f32 to vector<8x256xf32>
    %1822 = arith.mulf %1821, %1819 : vector<8x256xf32>
    %1823 = arith.addf %1780, %1822 : vector<8x256xf32>
    %c376 = arith.constant 376 : index
    %1824 = memref.load %arg2[%c376] : memref<405xf32, #tpu.memory_space<smem>>
    %1825 = vector.broadcast %1824 : f32 to vector<8x256xf32>
    %1826 = arith.mulf %1825, %1819 : vector<8x256xf32>
    %1827 = arith.addf %1784, %1826 : vector<8x256xf32>
    %c377 = arith.constant 377 : index
    %1828 = memref.load %arg2[%c377] : memref<405xf32, #tpu.memory_space<smem>>
    %1829 = vector.broadcast %1828 : f32 to vector<8x256xf32>
    %1830 = arith.mulf %1829, %1819 : vector<8x256xf32>
    %1831 = arith.addf %1788, %1830 : vector<8x256xf32>
    %c241_i32_57 = arith.constant 241 : i32
    %1832 = tpu.dynamic_rotate %1586 by %c241_i32_57 dim 1 : vector<24x256xf32>, i32 -> vector<24x256xf32>
    %1833 = vector.extract_strided_slice %2 {offsets = [6, 0], sizes = [1, 256], strides = [1, 1]} : vector<9x256xf32> to vector<1x256xf32>
    %1834 = vector.broadcast %1833 : vector<1x256xf32> to vector<24x256xf32>
    %1835 = arith.mulf %1832, %1834 : vector<24x256xf32>
    %1836 = vector.extract_strided_slice %1835 {offsets = [0, 0], sizes = [8, 256], strides = [1, 1]} : vector<24x256xf32> to vector<8x256xf32>
    %c378 = arith.constant 378 : index
    %1837 = memref.load %arg2[%c378] : memref<405xf32, #tpu.memory_space<smem>>
    %1838 = vector.broadcast %1837 : f32 to vector<8x256xf32>
    %1839 = arith.mulf %1838, %1836 : vector<8x256xf32>
    %1840 = arith.addf %1797, %1839 : vector<8x256xf32>
    %c379 = arith.constant 379 : index
    %1841 = memref.load %arg2[%c379] : memref<405xf32, #tpu.memory_space<smem>>
    %1842 = vector.broadcast %1841 : f32 to vector<8x256xf32>
    %1843 = arith.mulf %1842, %1836 : vector<8x256xf32>
    %1844 = arith.addf %1801, %1843 : vector<8x256xf32>
    %c380 = arith.constant 380 : index
    %1845 = memref.load %arg2[%c380] : memref<405xf32, #tpu.memory_space<smem>>
    %1846 = vector.broadcast %1845 : f32 to vector<8x256xf32>
    %1847 = arith.mulf %1846, %1836 : vector<8x256xf32>
    %1848 = arith.addf %1805, %1847 : vector<8x256xf32>
    %1849 = vector.extract_strided_slice %1835 {offsets = [8, 0], sizes = [8, 256], strides = [1, 1]} : vector<24x256xf32> to vector<8x256xf32>
    %c381 = arith.constant 381 : index
    %1850 = memref.load %arg2[%c381] : memref<405xf32, #tpu.memory_space<smem>>
    %1851 = vector.broadcast %1850 : f32 to vector<8x256xf32>
    %1852 = arith.mulf %1851, %1849 : vector<8x256xf32>
    %1853 = arith.addf %1810, %1852 : vector<8x256xf32>
    %c382 = arith.constant 382 : index
    %1854 = memref.load %arg2[%c382] : memref<405xf32, #tpu.memory_space<smem>>
    %1855 = vector.broadcast %1854 : f32 to vector<8x256xf32>
    %1856 = arith.mulf %1855, %1849 : vector<8x256xf32>
    %1857 = arith.addf %1814, %1856 : vector<8x256xf32>
    %c383 = arith.constant 383 : index
    %1858 = memref.load %arg2[%c383] : memref<405xf32, #tpu.memory_space<smem>>
    %1859 = vector.broadcast %1858 : f32 to vector<8x256xf32>
    %1860 = arith.mulf %1859, %1849 : vector<8x256xf32>
    %1861 = arith.addf %1818, %1860 : vector<8x256xf32>
    %1862 = vector.extract_strided_slice %1835 {offsets = [16, 0], sizes = [8, 256], strides = [1, 1]} : vector<24x256xf32> to vector<8x256xf32>
    %c384 = arith.constant 384 : index
    %1863 = memref.load %arg2[%c384] : memref<405xf32, #tpu.memory_space<smem>>
    %1864 = vector.broadcast %1863 : f32 to vector<8x256xf32>
    %1865 = arith.mulf %1864, %1862 : vector<8x256xf32>
    %1866 = arith.addf %1823, %1865 : vector<8x256xf32>
    %c385 = arith.constant 385 : index
    %1867 = memref.load %arg2[%c385] : memref<405xf32, #tpu.memory_space<smem>>
    %1868 = vector.broadcast %1867 : f32 to vector<8x256xf32>
    %1869 = arith.mulf %1868, %1862 : vector<8x256xf32>
    %1870 = arith.addf %1827, %1869 : vector<8x256xf32>
    %c386 = arith.constant 386 : index
    %1871 = memref.load %arg2[%c386] : memref<405xf32, #tpu.memory_space<smem>>
    %1872 = vector.broadcast %1871 : f32 to vector<8x256xf32>
    %1873 = arith.mulf %1872, %1862 : vector<8x256xf32>
    %1874 = arith.addf %1831, %1873 : vector<8x256xf32>
    %c240_i32_58 = arith.constant 240 : i32
    %1875 = tpu.dynamic_rotate %1586 by %c240_i32_58 dim 1 : vector<24x256xf32>, i32 -> vector<24x256xf32>
    %1876 = vector.extract_strided_slice %2 {offsets = [7, 0], sizes = [1, 256], strides = [1, 1]} : vector<9x256xf32> to vector<1x256xf32>
    %1877 = vector.broadcast %1876 : vector<1x256xf32> to vector<24x256xf32>
    %1878 = arith.mulf %1875, %1877 : vector<24x256xf32>
    %1879 = vector.extract_strided_slice %1878 {offsets = [0, 0], sizes = [8, 256], strides = [1, 1]} : vector<24x256xf32> to vector<8x256xf32>
    %c387 = arith.constant 387 : index
    %1880 = memref.load %arg2[%c387] : memref<405xf32, #tpu.memory_space<smem>>
    %1881 = vector.broadcast %1880 : f32 to vector<8x256xf32>
    %1882 = arith.mulf %1881, %1879 : vector<8x256xf32>
    %1883 = arith.addf %1840, %1882 : vector<8x256xf32>
    %c388 = arith.constant 388 : index
    %1884 = memref.load %arg2[%c388] : memref<405xf32, #tpu.memory_space<smem>>
    %1885 = vector.broadcast %1884 : f32 to vector<8x256xf32>
    %1886 = arith.mulf %1885, %1879 : vector<8x256xf32>
    %1887 = arith.addf %1844, %1886 : vector<8x256xf32>
    %c389 = arith.constant 389 : index
    %1888 = memref.load %arg2[%c389] : memref<405xf32, #tpu.memory_space<smem>>
    %1889 = vector.broadcast %1888 : f32 to vector<8x256xf32>
    %1890 = arith.mulf %1889, %1879 : vector<8x256xf32>
    %1891 = arith.addf %1848, %1890 : vector<8x256xf32>
    %1892 = vector.extract_strided_slice %1878 {offsets = [8, 0], sizes = [8, 256], strides = [1, 1]} : vector<24x256xf32> to vector<8x256xf32>
    %c390 = arith.constant 390 : index
    %1893 = memref.load %arg2[%c390] : memref<405xf32, #tpu.memory_space<smem>>
    %1894 = vector.broadcast %1893 : f32 to vector<8x256xf32>
    %1895 = arith.mulf %1894, %1892 : vector<8x256xf32>
    %1896 = arith.addf %1853, %1895 : vector<8x256xf32>
    %c391 = arith.constant 391 : index
    %1897 = memref.load %arg2[%c391] : memref<405xf32, #tpu.memory_space<smem>>
    %1898 = vector.broadcast %1897 : f32 to vector<8x256xf32>
    %1899 = arith.mulf %1898, %1892 : vector<8x256xf32>
    %1900 = arith.addf %1857, %1899 : vector<8x256xf32>
    %c392 = arith.constant 392 : index
    %1901 = memref.load %arg2[%c392] : memref<405xf32, #tpu.memory_space<smem>>
    %1902 = vector.broadcast %1901 : f32 to vector<8x256xf32>
    %1903 = arith.mulf %1902, %1892 : vector<8x256xf32>
    %1904 = arith.addf %1861, %1903 : vector<8x256xf32>
    %1905 = vector.extract_strided_slice %1878 {offsets = [16, 0], sizes = [8, 256], strides = [1, 1]} : vector<24x256xf32> to vector<8x256xf32>
    %c393 = arith.constant 393 : index
    %1906 = memref.load %arg2[%c393] : memref<405xf32, #tpu.memory_space<smem>>
    %1907 = vector.broadcast %1906 : f32 to vector<8x256xf32>
    %1908 = arith.mulf %1907, %1905 : vector<8x256xf32>
    %1909 = arith.addf %1866, %1908 : vector<8x256xf32>
    %c394 = arith.constant 394 : index
    %1910 = memref.load %arg2[%c394] : memref<405xf32, #tpu.memory_space<smem>>
    %1911 = vector.broadcast %1910 : f32 to vector<8x256xf32>
    %1912 = arith.mulf %1911, %1905 : vector<8x256xf32>
    %1913 = arith.addf %1870, %1912 : vector<8x256xf32>
    %c395 = arith.constant 395 : index
    %1914 = memref.load %arg2[%c395] : memref<405xf32, #tpu.memory_space<smem>>
    %1915 = vector.broadcast %1914 : f32 to vector<8x256xf32>
    %1916 = arith.mulf %1915, %1905 : vector<8x256xf32>
    %1917 = arith.addf %1874, %1916 : vector<8x256xf32>
    %c239_i32_59 = arith.constant 239 : i32
    %1918 = tpu.dynamic_rotate %1586 by %c239_i32_59 dim 1 : vector<24x256xf32>, i32 -> vector<24x256xf32>
    %1919 = vector.extract_strided_slice %2 {offsets = [8, 0], sizes = [1, 256], strides = [1, 1]} : vector<9x256xf32> to vector<1x256xf32>
    %1920 = vector.broadcast %1919 : vector<1x256xf32> to vector<24x256xf32>
    %1921 = arith.mulf %1918, %1920 : vector<24x256xf32>
    %1922 = vector.extract_strided_slice %1921 {offsets = [0, 0], sizes = [8, 256], strides = [1, 1]} : vector<24x256xf32> to vector<8x256xf32>
    %c396 = arith.constant 396 : index
    %1923 = memref.load %arg2[%c396] : memref<405xf32, #tpu.memory_space<smem>>
    %1924 = vector.broadcast %1923 : f32 to vector<8x256xf32>
    %1925 = arith.mulf %1924, %1922 : vector<8x256xf32>
    %1926 = arith.addf %1883, %1925 : vector<8x256xf32>
    %c397 = arith.constant 397 : index
    %1927 = memref.load %arg2[%c397] : memref<405xf32, #tpu.memory_space<smem>>
    %1928 = vector.broadcast %1927 : f32 to vector<8x256xf32>
    %1929 = arith.mulf %1928, %1922 : vector<8x256xf32>
    %1930 = arith.addf %1887, %1929 : vector<8x256xf32>
    %c398 = arith.constant 398 : index
    %1931 = memref.load %arg2[%c398] : memref<405xf32, #tpu.memory_space<smem>>
    %1932 = vector.broadcast %1931 : f32 to vector<8x256xf32>
    %1933 = arith.mulf %1932, %1922 : vector<8x256xf32>
    %1934 = arith.addf %1891, %1933 : vector<8x256xf32>
    %1935 = vector.extract_strided_slice %1921 {offsets = [8, 0], sizes = [8, 256], strides = [1, 1]} : vector<24x256xf32> to vector<8x256xf32>
    %c399 = arith.constant 399 : index
    %1936 = memref.load %arg2[%c399] : memref<405xf32, #tpu.memory_space<smem>>
    %1937 = vector.broadcast %1936 : f32 to vector<8x256xf32>
    %1938 = arith.mulf %1937, %1935 : vector<8x256xf32>
    %1939 = arith.addf %1896, %1938 : vector<8x256xf32>
    %c400 = arith.constant 400 : index
    %1940 = memref.load %arg2[%c400] : memref<405xf32, #tpu.memory_space<smem>>
    %1941 = vector.broadcast %1940 : f32 to vector<8x256xf32>
    %1942 = arith.mulf %1941, %1935 : vector<8x256xf32>
    %1943 = arith.addf %1900, %1942 : vector<8x256xf32>
    %c401 = arith.constant 401 : index
    %1944 = memref.load %arg2[%c401] : memref<405xf32, #tpu.memory_space<smem>>
    %1945 = vector.broadcast %1944 : f32 to vector<8x256xf32>
    %1946 = arith.mulf %1945, %1935 : vector<8x256xf32>
    %1947 = arith.addf %1904, %1946 : vector<8x256xf32>
    %1948 = vector.extract_strided_slice %1921 {offsets = [16, 0], sizes = [8, 256], strides = [1, 1]} : vector<24x256xf32> to vector<8x256xf32>
    %c402 = arith.constant 402 : index
    %1949 = memref.load %arg2[%c402] : memref<405xf32, #tpu.memory_space<smem>>
    %1950 = vector.broadcast %1949 : f32 to vector<8x256xf32>
    %1951 = arith.mulf %1950, %1948 : vector<8x256xf32>
    %1952 = arith.addf %1909, %1951 : vector<8x256xf32>
    %c403 = arith.constant 403 : index
    %1953 = memref.load %arg2[%c403] : memref<405xf32, #tpu.memory_space<smem>>
    %1954 = vector.broadcast %1953 : f32 to vector<8x256xf32>
    %1955 = arith.mulf %1954, %1948 : vector<8x256xf32>
    %1956 = arith.addf %1913, %1955 : vector<8x256xf32>
    %c404 = arith.constant 404 : index
    %1957 = memref.load %arg2[%c404] : memref<405xf32, #tpu.memory_space<smem>>
    %1958 = vector.broadcast %1957 : f32 to vector<8x256xf32>
    %1959 = arith.mulf %1958, %1948 : vector<8x256xf32>
    %1960 = arith.addf %1917, %1959 : vector<8x256xf32>
    %c12_60 = arith.constant 12 : index
    %1961 = memref.load %arg3[%c12_60] : memref<15xf32, #tpu.memory_space<smem>>
    %1962 = arith.addf %1926, %1939 : vector<8x256xf32>
    %1963 = vector.broadcast %1961 : f32 to vector<8x256xf32>
    %1964 = arith.addf %1952, %1963 : vector<8x256xf32>
    %1965 = arith.addf %1962, %1964 : vector<8x256xf32>
    %cst_61 = arith.constant 0.000000e+00 : f32
    %1966 = vector.broadcast %cst_61 : f32 to vector<8x256xf32>
    %1967 = arith.maximumf %1965, %1966 : vector<8x256xf32>
    %c13_62 = arith.constant 13 : index
    %1968 = memref.load %arg3[%c13_62] : memref<15xf32, #tpu.memory_space<smem>>
    %1969 = arith.addf %1930, %1943 : vector<8x256xf32>
    %1970 = vector.broadcast %1968 : f32 to vector<8x256xf32>
    %1971 = arith.addf %1956, %1970 : vector<8x256xf32>
    %1972 = arith.addf %1969, %1971 : vector<8x256xf32>
    %cst_63 = arith.constant 0.000000e+00 : f32
    %1973 = vector.broadcast %cst_63 : f32 to vector<8x256xf32>
    %1974 = arith.maximumf %1972, %1973 : vector<8x256xf32>
    %c14_64 = arith.constant 14 : index
    %1975 = memref.load %arg3[%c14_64] : memref<15xf32, #tpu.memory_space<smem>>
    %1976 = arith.addf %1934, %1947 : vector<8x256xf32>
    %1977 = vector.broadcast %1975 : f32 to vector<8x256xf32>
    %1978 = arith.addf %1960, %1977 : vector<8x256xf32>
    %1979 = arith.addf %1976, %1978 : vector<8x256xf32>
    %cst_65 = arith.constant 0.000000e+00 : f32
    %1980 = vector.broadcast %cst_65 : f32 to vector<8x256xf32>
    %1981 = arith.maximumf %1979, %1980 : vector<8x256xf32>
    %1982 = tpu.concatenate %1967, %1974, %1981 in 0 : vector<8x256xf32>, vector<8x256xf32>, vector<8x256xf32> -> vector<24x256xf32>
    %c0_66 = arith.constant 0 : index
    %c0_67 = arith.constant 0 : index
    %c0_68 = arith.constant 0 : index
    %1983 = vector.load %arg5[%c0_66, %c0_67, %c0_68] : memref<1x24x256xf32, #tpu.memory_space<vmem>>, vector<1x24x256xf32>
    %1984 = vector.shape_cast %1983 : vector<1x24x256xf32> to vector<24x256xf32>
    %1985 = vector.shape_cast %1982 : vector<24x256xf32> to vector<1x24x256xf32>
    tpu.vector_store %arg5[%c0_66, %c0_67, %c0_68], %1985 {strides = array<i32>} : memref<1x24x256xf32, #tpu.memory_space<vmem>>, vector<1x24x256xf32>,
    return
  }
  func.func @transform_0(%arg0: i32) -> (i32, i32, i32) {
    %c0_i32 = arith.constant 0 : i32
    %c0_i32_0 = arith.constant 0 : i32
    %c0_i32_1 = arith.constant 0 : i32
    return %arg0, %c0_i32, %c0_i32_0 : i32, i32, i32
  }
  func.func @transform_1(%arg0: i32) -> i32 {
    %c0_i32 = arith.constant 0 : i32
    %c0_i32_0 = arith.constant 0 : i32
    return %c0_i32 : i32
  }
  func.func @transform_2(%arg0: i32) -> i32 {
    %c0_i32 = arith.constant 0 : i32
    %c0_i32_0 = arith.constant 0 : i32
    return %c0_i32 : i32
  }
  func.func @transform_3(%arg0: i32) -> (i32, i32) {
    %c0_i32 = arith.constant 0 : i32
    %c0_i32_0 = arith.constant 0 : i32
    %c0_i32_1 = arith.constant 0 : i32
    return %c0_i32, %c0_i32_0 : i32, i32
  }
  func.func @transform_4(%arg0: i32) -> (i32, i32, i32) {
    %c0_i32 = arith.constant 0 : i32
    %c0_i32_0 = arith.constant 0 : i32
    %c0_i32_1 = arith.constant 0 : i32
    return %arg0, %c0_i32, %c0_i32_0 : i32, i32, i32
  }
}

</mosaic_0001>

<llo_original>
// kernel: tpu_custom_call.1
$region0: #{tpu_custom_call.1}
  #allocation0 [shape = 'u32[]', space=smem, size = 0x4, offset = 0x4, fixed_abs, tag = 'smem constant byte address 0x4 - core index']
  #allocation1 [shape = 'u32[144,128]{1,0:T(1,128)}', space=vmem, size = 0x12000, scoped, tag = 'internal scratch']
  %s0 = inlined_call_operand.hbm [shape: f32[2,24,256], index: 0, kind: input, shape index: {}]
  %s1 = inlined_call_operand.hbm [shape: f32[405], index: 1, kind: input, shape index: {}]
  %s2 = inlined_call_operand.vmem [shape: f32[15], index: 2, kind: input, shape index: {}]
  %s3 = inlined_call_operand.hbm [shape: f32[9,256], index: 3, kind: input, shape index: {}]
  %s4 = inlined_call_operand.hbm [shape: f32[2,24,256], index: 4, kind: output, shape index: {}]
  %s5 = sld [smem:[#allocation0]]
  $region65: #{tpu_custom_call.1} parent=0
    _
  %s7 = ssub.s32 1, %s5
  %s8 = scalar_select 0, %s7, %s5
  $region1: #{tpu_custom_call.1} parent=0
    #allocation2 [shape = 'u8[49152]{0}', space=vmem, size = 0xc000, scoped, tag = 'input window, operand 0']
    #allocation3 [shape = 's32[2]{0}', space=sflag, size = 0x8, scoped, tag = 'scoped memory for tpu_custom_call.1']
    #allocation4 [shape = 's32[2]{0}', space=sflag, size = 0x8, scoped, tag = 'scoped memory for tpu_custom_call.1']
    #allocation5 [shape = 's32[2]{0}', space=sflag, size = 0x8, scoped, tag = 'scoped memory for tpu_custom_call.1']
    #allocation6 [shape = 's32[2]{0}', space=sflag, size = 0x8, scoped, tag = 'scoped memory for tpu_custom_call.1']
    #allocation7 [shape = 'u8[2048]{0}', space=smem, size = 0x800, scoped, tag = 'input window, operand 1, single buffered']
    #allocation8 [shape = 'u8[512]{0}', space=smem, size = 0x200, scoped, tag = 'input window, operand 2, single buffered']
    #allocation9 [shape = 'u8[16384]{0}', space=vmem, size = 0x4000, scoped, tag = 'input window, operand 3, single buffered']
    #allocation10 [shape = 's32[1]{0}', space=sflag, size = 0x4, scoped, tag = 'scoped memory for tpu_custom_call.1']
    #allocation11 [shape = 'u8[49152]{0}', space=vmem, size = 0xc000, scoped, tag = 'output window, operand 0']
    %9 = vsyncpa [#allocation3], 0
    %s10 = scalar_lea.sflag [#allocation3], 1
    %11 = vsyncpa %s10, 0
    %12 = vsyncpa [#allocation5], 0
    %13 = vsyncpa [#allocation6], 0
    %14 = vsyncpa [#allocation10], 0
    %15 = vsyncpa [#allocation4], 0
    %s16 = scalar_lea.sflag [#allocation4], 1
    %17 = vsyncpa %s16, 0
    loop: start=0, step=1, limit=4
    $region2: #{tpu_custom_call.1} parent=1 // loop_pre_header
      _
    $region3: #{tpu_custom_call.1} parent=1 // loop_header
      %s19 = sphi 0, %s23
      %p20 = scmp.ge.s32.totalorder %s19, 4
      %s29 = sphi 0, %s31
      %s32 = sphi 0, %s29
      %s33 = sphi 0, %s32
      %s49 = sphi 0, %s33
      %s53 = sphi 0, %s53
      %s55 = sphi 0, %s53
      %s56 = sphi 0, %s55
      %s70 = sphi 0, %s56
      %s74 = sphi 0, %s74
      %s76 = sphi 0, %s74
      %s77 = sphi 0, %s76
      %s91 = sphi 0, %s77
      %s95 = sphi 0, %s95
      %s97 = sphi 0, %s95
      %s98 = sphi 0, %s97
      %s112 = sphi 0, %s98
      %s118 = sphi 0, %s120
      %s121 = sphi 0, %s118
      %s122 = sphi 0, %s121
      %s138 = sphi 0, %s122
    $region4: #{tpu_custom_call.1} parent=1 // loop_header_branch
      %22 = sbr.rel (%p20) target = $region8
    $region5: #{tpu_custom_call.1} parent=1 // loop_body
      %s24 = ssub.s32 %s19, 1
      %s25 = ssub.s32 %s19, 2
      %s26 = sadd.s32 %s19, 1
      %s27 = ssub.s32 %s19, %s26
      %p28 = scmp.eq.s32.totalorder %s27, 0
      %s30 = sadd.s32 %s29, 1
      %s31 = scalar_select %p28, %s29, %s30
      %p34 = pneg %p28
      %p35 = scmp.eq.s32.totalorder %s19, 1
      %p36 = por %p34, %p35
      %p37 = scmp.ne.s32.totalorder %s29, %s32
      %p38 = scmp.eq.s32.totalorder %s19, 0
      %p39 = por %p37, %p38
      %p40 = scmp.ne.s32.totalorder %s29, %s32
      %p41 = scmp.eq.s32.totalorder %s24, 1
      %p42 = por %p40, %p41
      %p43 = scmp.ne.s32.totalorder %s32, %s33
      %p44 = scmp.eq.s32.totalorder %s24, 0
      %p45 = por %p43, %p44
      %p46 = scmp.ne.s32.totalorder %s32, %s33
      %p47 = scmp.eq.s32.totalorder %s25, 1
      %p48 = por %p46, %p47
      %p50 = scmp.ne.s32.totalorder %s33, %s49
      %p51 = scmp.eq.s32.totalorder %s25, 0
      %p52 = por %p50, %p51
      %s54 = sadd.s32 %s53, 1
      %p57 = scmp.eq.s32.totalorder %s19, 1
      %p58 = scmp.ne.s32.totalorder %s53, %s55
      %p59 = scmp.eq.s32.totalorder %s19, 0
      %p60 = por %p58, %p59
      %p61 = scmp.ne.s32.totalorder %s53, %s55
      %p62 = scmp.eq.s32.totalorder %s24, 1
      %p63 = por %p61, %p62
      %p64 = scmp.ne.s32.totalorder %s55, %s56
      %p65 = scmp.eq.s32.totalorder %s24, 0
      %p66 = por %p64, %p65
      %p67 = scmp.ne.s32.totalorder %s55, %s56
      %p68 = scmp.eq.s32.totalorder %s25, 1
      %p69 = por %p67, %p68
      %p71 = scmp.ne.s32.totalorder %s56, %s70
      %p72 = scmp.eq.s32.totalorder %s25, 0
      %p73 = por %p71, %p72
      %s75 = sadd.s32 %s74, 1
      %p78 = scmp.eq.s32.totalorder %s19, 1
      %p79 = scmp.ne.s32.totalorder %s74, %s76
      %p80 = scmp.eq.s32.totalorder %s19, 0
      %p81 = por %p79, %p80
      %p82 = scmp.ne.s32.totalorder %s74, %s76
      %p83 = scmp.eq.s32.totalorder %s24, 1
      %p84 = por %p82, %p83
      %p85 = scmp.ne.s32.totalorder %s76, %s77
      %p86 = scmp.eq.s32.totalorder %s24, 0
      %p87 = por %p85, %p86
      %p88 = scmp.ne.s32.totalorder %s76, %s77
      %p89 = scmp.eq.s32.totalorder %s25, 1
      %p90 = por %p88, %p89
      %p92 = scmp.ne.s32.totalorder %s77, %s91
      %p93 = scmp.eq.s32.totalorder %s25, 0
      %p94 = por %p92, %p93
      %s96 = sadd.s32 %s95, 1
      %p99 = scmp.eq.s32.totalorder %s19, 1
      %p100 = scmp.ne.s32.totalorder %s95, %s97
      %p101 = scmp.eq.s32.totalorder %s19, 0
      %p102 = por %p100, %p101
      %p103 = scmp.ne.s32.totalorder %s95, %s97
      %p104 = scmp.eq.s32.totalorder %s24, 1
      %p105 = por %p103, %p104
      %p106 = scmp.ne.s32.totalorder %s97, %s98
      %p107 = scmp.eq.s32.totalorder %s24, 0
      %p108 = por %p106, %p107
      %p109 = scmp.ne.s32.totalorder %s97, %s98
      %p110 = scmp.eq.s32.totalorder %s25, 1
      %p111 = por %p109, %p110
      %p113 = scmp.ne.s32.totalorder %s98, %s112
      %p114 = scmp.eq.s32.totalorder %s25, 0
      %p115 = por %p113, %p114
      %s116 = ssub.s32 %s19, %s26
      %p117 = scmp.eq.s32.totalorder %s116, 0
      %s119 = sadd.s32 %s118, 1
      %s120 = scalar_select %p117, %s118, %s119
      %p123 = pneg %p117
      %p124 = scmp.eq.s32.totalorder %s19, 1
      %p125 = por %p123, %p124
      %p126 = scmp.ne.s32.totalorder %s118, %s121
      %p127 = scmp.eq.s32.totalorder %s19, 0
      %p128 = por %p126, %p127
      %p129 = scmp.ne.s32.totalorder %s118, %s121
      %p130 = scmp.eq.s32.totalorder %s24, 1
      %p131 = por %p129, %p130
      %p132 = scmp.ne.s32.totalorder %s121, %s122
      %p133 = scmp.eq.s32.totalorder %s24, 0
      %p134 = por %p132, %p133
      %p135 = scmp.ne.s32.totalorder %s121, %s122
      %p136 = scmp.eq.s32.totalorder %s25, 1
      %p137 = por %p135, %p136
      %p139 = scmp.ne.s32.totalorder %s122, %s138
      %p140 = scmp.eq.s32.totalorder %s25, 0
      %p141 = por %p139, %p140
      %p142 = scmp.le.s32.totalorder 1, %s19
      %p143 = scmp.lt.s32.totalorder %s19, 3
      %p144 = pnand %p142, %p143
      %p145 = pneg %p144
      // Predicated region
      $region9: #{tpu_custom_call.1} parent=5 // pred_check
        _
      $region10: #{tpu_custom_call.1} parent=5 // pred_check_branch
        %147 = sbr.rel (%p144) target = $region12
      $region11: #{tpu_custom_call.1} parent=5 // pred_region
        %s148 = ssub.s32 %s19, 1
        // Predicated region
        $region13: #{tpu_custom_call.1} parent=11 // pred_check
          %p149 = pneg %p66
        $region14: #{tpu_custom_call.1} parent=11 // pred_check_branch
          %151 = sbr.rel (%p149) target = $region16
        $region15: #{tpu_custom_call.1} parent=11 // pred_region
          %s153 = ssub.s32 64, 64
          %154 = vsyncadd [#allocation5], %s153
          %157 = dma.hbm_to_smem %s1, 64, [#allocation7], [#allocation5]
        $region16: #{tpu_custom_call.1} parent=11 // pred_fallthru
          _
        // Predicated region
        $region17: #{tpu_custom_call.1} parent=11 // pred_check
          %p158 = pneg %p87
        $region18: #{tpu_custom_call.1} parent=11 // pred_check_branch
          %160 = sbr.rel (%p158) target = $region20
        $region19: #{tpu_custom_call.1} parent=11 // pred_region
          %s162 = ssub.s32 16, 16
          %163 = vsyncadd [#allocation6], %s162
          %s165 = sshll.u32 %s2, 4
          %s166 = int_to_ptr.vmem [resolvable:$true] %s165
          %168 = dma.vmem_to_smem %s166, 16, [#allocation8], [#allocation6]
        $region20: #{tpu_custom_call.1} parent=11 // pred_fallthru
          _
        // Predicated region
        $region21: #{tpu_custom_call.1} parent=11 // pred_check
          %p169 = pneg %p108
        $region22: #{tpu_custom_call.1} parent=11 // pred_check_branch
          %171 = sbr.rel (%p169) target = $region24
        $region23: #{tpu_custom_call.1} parent=11 // pred_region
          %s173 = ssub.s32 512, 512
          %174 = vsyncadd [#allocation10], %s173
          %s175 = sshll.u32 [#allocation9], 4
          %s176 = int_to_ptr.vmem [resolvable:$true] %s175
          %181 = dma.hbm_to_vmem [thread:$0]  %s3, 512, %s176, [#allocation10], 256, 256, 16
        $region24: #{tpu_custom_call.1} parent=11 // pred_fallthru
          _
      $region12: #{tpu_custom_call.1} parent=5 // pred_fallthru
        _
      %p182 = scmp.lt.s32.totalorder %s19, 2
      // Predicated region
      $region25: #{tpu_custom_call.1} parent=5 // pred_check
        %p183 = pneg %p182
      $region26: #{tpu_custom_call.1} parent=5 // pred_check_branch
        %185 = sbr.rel (%p183) target = $region28
      $region27: #{tpu_custom_call.1} parent=5 // pred_region
        // Predicated region
        $region29: #{tpu_custom_call.1} parent=27 // pred_check
          %p186 = pneg %p39
        $region30: #{tpu_custom_call.1} parent=27 // pred_check_branch
          %188 = sbr.rel (%p186) target = $region32
        $region31: #{tpu_custom_call.1} parent=27 // pred_region
          %s189 = sand.u32 %s29, 1
          %s190 = scalar_lea.sflag [#allocation3], %s189
          %s191 = sand.u32 %s29, 1
          %s192 = smul.addr %s191, 48
          %s193 = scalar_lea.vmem [#allocation2], %s192
          %s195 = ssub.s32 768, 768
          %196 = vsyncadd %s190, %s195
          %s197 = smul.addr %s19, 6
          %s198 = smul.addr %s197, 128
          %s199 = scalar_lea.hbm %s0, %s198
          %s200 = sshll.u32 %s193, 4
          %s201 = int_to_ptr.vmem [resolvable:$true] %s200
          %206 = dma.hbm_to_vmem [thread:$0]  %s199, 768, %s201, %s190, 256, 256, 16
        $region32: #{tpu_custom_call.1} parent=27 // pred_fallthru
          _
      $region28: #{tpu_custom_call.1} parent=5 // pred_fallthru
        _
      %p207 = scmp.le.s32.totalorder 1, %s19
      %p208 = scmp.lt.s32.totalorder %s19, 3
      %p209 = pnand %p207, %p208
      %p210 = pneg %p209
      // Predicated region
      $region33: #{tpu_custom_call.1} parent=5 // pred_check
        _
      $region34: #{tpu_custom_call.1} parent=5 // pred_check_branch
        %212 = sbr.rel (%p209) target = $region36
      $region35: #{tpu_custom_call.1} parent=5 // pred_region
        %s213 = ssub.s32 %s19, 1
        %s214 = sand.u32 %s32, 1
        %s215 = scalar_lea.sflag [#allocation3], %s214
        %s216 = sand.u32 %s32, 1
        %s217 = smul.addr %s216, 48
        %s218 = scalar_lea.vmem [#allocation2], %s217
        // Predicated region
        $region37: #{tpu_custom_call.1} parent=35 // pred_check
          %p219 = pneg %p45
        $region38: #{tpu_custom_call.1} parent=35 // pred_check_branch
          %221 = sbr.rel (%p219) target = $region40
        $region39: #{tpu_custom_call.1} parent=35 // pred_region
          %222 = dma.done %s215, 768
        $region40: #{tpu_custom_call.1} parent=35 // pred_fallthru
          _
        // Predicated region
        $region41: #{tpu_custom_call.1} parent=35 // pred_check
          %p223 = pneg %p66
        $region42: #{tpu_custom_call.1} parent=35 // pred_check_branch
          %225 = sbr.rel (%p223) target = $region44
        $region43: #{tpu_custom_call.1} parent=35 // pred_region
          %226 = dma.done [#allocation5], 64
        $region44: #{tpu_custom_call.1} parent=35 // pred_fallthru
          _
        // Predicated region
        $region45: #{tpu_custom_call.1} parent=35 // pred_check
          %p227 = pneg %p87
        $region46: #{tpu_custom_call.1} parent=35 // pred_check_branch
          %229 = sbr.rel (%p227) target = $region48
        $region47: #{tpu_custom_call.1} parent=35 // pred_region
          %230 = dma.done [#allocation6], 16
        $region48: #{tpu_custom_call.1} parent=35 // pred_fallthru
          _
        // Predicated region
        $region49: #{tpu_custom_call.1} parent=35 // pred_check
          %p231 = pneg %p108
        $region50: #{tpu_custom_call.1} parent=35 // pred_check_branch
          %233 = sbr.rel (%p231) target = $region52
        $region51: #{tpu_custom_call.1} parent=35 // pred_region
          %234 = dma.done [#allocation10], 512
        $region52: #{tpu_custom_call.1} parent=35 // pred_fallthru
          _
        %235 = sfence
        %s236 = sand.u32 %s32, 1
        %s237 = scalar_lea.sflag [#allocation3], %s236
        %s238 = sand.u32 %s32, 1
        %s239 = smul.addr %s238, 48
        %s240 = scalar_lea.vmem [#allocation2], %s239
        %p241 = pneg %p45
        %p242 = pneg %p42
        %p243 = pneg %p66
        %p244 = pneg %p63
        %p245 = pneg %p87
        %p246 = pneg %p84
        %p247 = pneg %p108
        %p248 = pneg %p105
        %p249 = pneg %p134
        %p250 = pneg %p131
        %s251 = sand.u32 %s121, 1
        %s252 = scalar_lea.sflag [#allocation4], %s251
        %s253 = sand.u32 %s121, 1
        %s254 = smul.addr %s253, 48
        %s255 = scalar_lea.vmem [#allocation11], %s254
        %v256 = vld [vmem:[%s218] sm:$0xff]
        %v257 = vld [vmem:[%s218 + $0x8] sm:$0xff]
        %v258 = vld [vmem:[%s218 + $0x10] sm:$0xff]
        %v259 = vld [vmem:[%s218 + $0x18] sm:$0xff]
        %v260 = vld [vmem:[%s218 + $0x20] sm:$0xff]
        %v261 = vld [vmem:[%s218 + $0x28] sm:$0xff]
        %v262 = vld [vmem:[#allocation9] sm:$0xff]
        %v263 = vld [vmem:[#allocation9 + $0x8] sm:$0xff]
        %v264 = vld [vmem:[#allocation9 + $0x10] sm:$0x1]
        %v265 = vld [vmem:[#allocation9 + $0x18] sm:$0x1]
        %266 = vrot.lane.b32.xlu0 %v256, 17
        %v267 = vpop.permute.xlu0 %266
        %268 = vrot.lane.b32.xlu0 %v258, 17
        %v269 = vpop.permute.xlu0 %268
        %270 = vrot.lane.b32.xlu0 %v260, 17
        %v271 = vpop.permute.xlu0 %270
        %272 = vrot.lane.b32.xlu0 %v257, 17
        %v273 = vpop.permute.xlu0 %272
        %274 = vrot.lane.b32.xlu0 %v259, 17
        %v275 = vpop.permute.xlu0 %274
        %276 = vrot.lane.b32.xlu0 %v261, 17
        %v277 = vpop.permute.xlu0 %276
        %v278 = vlaneseq
        %v279 = vand.u32 %v278, 127
        %vm280 = vcmp.lt.s32.totalorder %v279, 17
        %v281 = vsel %vm280, %v267, %v273
        %v282 = vsel %vm280, %v269, %v275
        %v283 = vsel %vm280, %v271, %v277
        %v284 = vsel %vm280, %v273, %v267
        %v285 = vsel %vm280, %v275, %v269
        %v286 = vsel %vm280, %v277, %v271
        %v287 = vlaneseq
        %v288 = vshrl.u32 %v287, 7
        %v289 = vsub.s32 0, %v288
        %v290 = vrot.slane %v262, %v289
        %v291 = vlaneseq
        %v292 = vshrl.u32 %v291, 7
        %v293 = vsub.s32 0, %v292
        %v294 = vrot.slane %v263, %v293
        %v295 = vmul.f32 %v284, %v290
        %v296 = vmul.f32 %v281, %v294
        %v297 = vmul.f32 %v285, %v290
        %v298 = vmul.f32 %v282, %v294
        %v299 = vmul.f32 %v286, %v290
        %v300 = vmul.f32 %v283, %v294
        %s301 = sld [smem:[#allocation7]]
        %v302 = vstv %s301
        %v303 = vmul.f32 %v302, %v295
        %v304 = vmul.f32 %v302, %v296
        %s305 = sld [smem:[#allocation7 + $0x1]]
        %v306 = vstv %s305
        %v307 = vmul.f32 %v306, %v295
        %v308 = vmul.f32 %v306, %v296
        %s309 = sld [smem:[#allocation7 + $0x2]]
        %v310 = vstv %s309
        %v311 = vmul.f32 %v310, %v295
        %v312 = vmul.f32 %v310, %v296
        %s313 = sld [smem:[#allocation7 + $0x3]]
        %v314 = vstv %s313
        %v315 = vmul.f32 %v314, %v297
        %v316 = vmul.f32 %v314, %v298
        %s317 = sld [smem:[#allocation7 + $0x4]]
        %v318 = vstv %s317
        %v319 = vmul.f32 %v318, %v297
        %v320 = vmul.f32 %v318, %v298
        %s321 = sld [smem:[#allocation7 + $0x5]]
        %v322 = vstv %s321
        %v323 = vmul.f32 %v322, %v297
        %v324 = vmul.f32 %v322, %v298
        %s325 = sld [smem:[#allocation7 + $0x6]]
        %v326 = vstv %s325
        %v327 = vmul.f32 %v326, %v299
        %v328 = vmul.f32 %v326, %v300
        %s329 = sld [smem:[#allocation7 + $0x7]]
        %v330 = vstv %s329
        %v331 = vmul.f32 %v330, %v299
        %v332 = vmul.f32 %v330, %v300
        %s333 = sld [smem:[#allocation7 + $0x8]]
        %v334 = vstv %s333
        %v335 = vmul.f32 %v334, %v299
        %v336 = vmul.f32 %v334, %v300
        %337 = vrot.lane.b32.xlu0 %v256, 16
        %v338 = vpop.permute.xlu0 %337
        %339 = vrot.lane.b32.xlu0 %v258, 16
        %v340 = vpop.permute.xlu0 %339
        %341 = vrot.lane.b32.xlu0 %v260, 16
        %v342 = vpop.permute.xlu0 %341
        %343 = vrot.lane.b32.xlu0 %v257, 16
        %v344 = vpop.permute.xlu0 %343
        %345 = vrot.lane.b32.xlu0 %v259, 16
        %v346 = vpop.permute.xlu0 %345
        %347 = vrot.lane.b32.xlu0 %v261, 16
        %v348 = vpop.permute.xlu0 %347
        %vm349 = vcmp.lt.s32.totalorder %v279, 16
        %v350 = vsel %vm349, %v338, %v344
        %v351 = vsel %vm349, %v340, %v346
        %v352 = vsel %vm349, %v342, %v348
        %v353 = vsel %vm349, %v344, %v338
        %v354 = vsel %vm349, %v346, %v340
        %v355 = vsel %vm349, %v348, %v342
        %v356 = vlaneseq
        %v357 = vshrl.u32 %v356, 7
        %v358 = vsub.s32 1, %v357
        %v359 = vrot.slane %v262, %v358
        %v360 = vlaneseq
        %v361 = vshrl.u32 %v360, 7
        %v362 = vsub.s32 1, %v361
        %v363 = vrot.slane %v263, %v362
        %v364 = vmul.f32 %v353, %v359
        %v365 = vmul.f32 %v350, %v363
        %v366 = vmul.f32 %v354, %v359
        %v367 = vmul.f32 %v351, %v363
        %v368 = vmul.f32 %v355, %v359
        %v369 = vmul.f32 %v352, %v363
        %s370 = sld [smem:[#allocation7 + $0x9]]
        %v371 = vstv %s370
        %v372 = vmul.f32 %v371, %v364
        %v373 = vmul.f32 %v371, %v365
        %v374 = vadd.f32 %v303, %v372
        %v375 = vadd.f32 %v304, %v373
        %s376 = sld [smem:[#allocation7 + $0xa]]
        %v377 = vstv %s376
        %v378 = vmul.f32 %v377, %v364
        %v379 = vmul.f32 %v377, %v365
        %v380 = vadd.f32 %v307, %v378
        %v381 = vadd.f32 %v308, %v379
        %s382 = sld [smem:[#allocation7 + $0xb]]
        %v383 = vstv %s382
        %v384 = vmul.f32 %v383, %v364
        %v385 = vmul.f32 %v383, %v365
        %v386 = vadd.f32 %v311, %v384
        %v387 = vadd.f32 %v312, %v385
        %s388 = sld [smem:[#allocation7 + $0xc]]
        %v389 = vstv %s388
        %v390 = vmul.f32 %v389, %v366
        %v391 = vmul.f32 %v389, %v367
        %v392 = vadd.f32 %v315, %v390
        %v393 = vadd.f32 %v316, %v391
        %s394 = sld [smem:[#allocation7 + $0xd]]
        %v395 = vstv %s394
        %v396 = vmul.f32 %v395, %v366
        %v397 = vmul.f32 %v395, %v367
        %v398 = vadd.f32 %v319, %v396
        %v399 = vadd.f32 %v320, %v397
        %s400 = sld [smem:[#allocation7 + $0xe]]
        %v401 = vstv %s400
        %v402 = vmul.f32 %v401, %v366
        %v403 = vmul.f32 %v401, %v367
        %v404 = vadd.f32 %v323, %v402
        %v405 = vadd.f32 %v324, %v403
        %s406 = sld [smem:[#allocation7 + $0xf]]
        %v407 = vstv %s406
        %v408 = vmul.f32 %v407, %v368
        %v409 = vmul.f32 %v407, %v369
        %v410 = vadd.f32 %v327, %v408
        %v411 = vadd.f32 %v328, %v409
        %s412 = sld [smem:[#allocation7 + $0x10]]
        %v413 = vstv %s412
        %v414 = vmul.f32 %v413, %v368
        %v415 = vmul.f32 %v413, %v369
        %v416 = vadd.f32 %v331, %v414
        %v417 = vadd.f32 %v332, %v415
        %s418 = sld [smem:[#allocation7 + $0x11]]
        %v419 = vstv %s418
        %v420 = vmul.f32 %v419, %v368
        %v421 = vmul.f32 %v419, %v369
        %v422 = vadd.f32 %v335, %v420
        %v423 = vadd.f32 %v336, %v421
        %424 = vrot.lane.b32.xlu0 %v256, 15
        %v425 = vpop.permute.xlu0 %424
        %426 = vrot.lane.b32.xlu0 %v258, 15
        %v427 = vpop.permute.xlu0 %426
        %428 = vrot.lane.b32.xlu0 %v260, 15
        %v429 = vpop.permute.xlu0 %428
        %430 = vrot.lane.b32.xlu0 %v257, 15
        %v431 = vpop.permute.xlu0 %430
        %432 = vrot.lane.b32.xlu0 %v259, 15
        %v433 = vpop.permute.xlu0 %432
        %434 = vrot.lane.b32.xlu0 %v261, 15
        %v435 = vpop.permute.xlu0 %434
        %vm436 = vcmp.lt.s32.totalorder %v279, 15
        %v437 = vsel %vm436, %v425, %v431
        %v438 = vsel %vm436, %v427, %v433
        %v439 = vsel %vm436, %v429, %v435
        %v440 = vsel %vm436, %v431, %v425
        %v441 = vsel %vm436, %v433, %v427
        %v442 = vsel %vm436, %v435, %v429
        %v443 = vlaneseq
        %v444 = vshrl.u32 %v443, 7
        %v445 = vsub.s32 2, %v444
        %v446 = vrot.slane %v262, %v445
        %v447 = vlaneseq
        %v448 = vshrl.u32 %v447, 7
        %v449 = vsub.s32 2, %v448
        %v450 = vrot.slane %v263, %v449
        %v451 = vmul.f32 %v440, %v446
        %v452 = vmul.f32 %v437, %v450
        %v453 = vmul.f32 %v441, %v446
        %v454 = vmul.f32 %v438, %v450
        %v455 = vmul.f32 %v442, %v446
        %v456 = vmul.f32 %v439, %v450
        %s457 = sld [smem:[#allocation7 + $0x12]]
        %v458 = vstv %s457
        %v459 = vmul.f32 %v458, %v451
        %v460 = vmul.f32 %v458, %v452
        %v461 = vadd.f32 %v374, %v459
        %v462 = vadd.f32 %v375, %v460
        %s463 = sld [smem:[#allocation7 + $0x13]]
        %v464 = vstv %s463
        %v465 = vmul.f32 %v464, %v451
        %v466 = vmul.f32 %v464, %v452
        %v467 = vadd.f32 %v380, %v465
        %v468 = vadd.f32 %v381, %v466
        %s469 = sld [smem:[#allocation7 + $0x14]]
        %v470 = vstv %s469
        %v471 = vmul.f32 %v470, %v451
        %v472 = vmul.f32 %v470, %v452
        %v473 = vadd.f32 %v386, %v471
        %v474 = vadd.f32 %v387, %v472
        %s475 = sld [smem:[#allocation7 + $0x15]]
        %v476 = vstv %s475
        %v477 = vmul.f32 %v476, %v453
        %v478 = vmul.f32 %v476, %v454
        %v479 = vadd.f32 %v392, %v477
        %v480 = vadd.f32 %v393, %v478
        %s481 = sld [smem:[#allocation7 + $0x16]]
        %v482 = vstv %s481
        %v483 = vmul.f32 %v482, %v453
        %v484 = vmul.f32 %v482, %v454
        %v485 = vadd.f32 %v398, %v483
        %v486 = vadd.f32 %v399, %v484
        %s487 = sld [smem:[#allocation7 + $0x17]]
        %v488 = vstv %s487
        %v489 = vmul.f32 %v488, %v453
        %v490 = vmul.f32 %v488, %v454
        %v491 = vadd.f32 %v404, %v489
        %v492 = vadd.f32 %v405, %v490
        %s493 = sld [smem:[#allocation7 + $0x18]]
        %v494 = vstv %s493
        %v495 = vmul.f32 %v494, %v455
        %v496 = vmul.f32 %v494, %v456
        %v497 = vadd.f32 %v410, %v495
        %v498 = vadd.f32 %v411, %v496
        %s499 = sld [smem:[#allocation7 + $0x19]]
        %v500 = vstv %s499
        %v501 = vmul.f32 %v500, %v455
        %v502 = vmul.f32 %v500, %v456
        %v503 = vadd.f32 %v416, %v501
        %v504 = vadd.f32 %v417, %v502
        %s505 = sld [smem:[#allocation7 + $0x1a]]
        %v506 = vstv %s505
        %v507 = vmul.f32 %v506, %v455
        %v508 = vmul.f32 %v506, %v456
        %v509 = vadd.f32 %v422, %v507
        %v510 = vadd.f32 %v423, %v508
        %511 = vrot.lane.b32.xlu0 %v256, 1
        %v512 = vpop.permute.xlu0 %511
        %513 = vrot.lane.b32.xlu0 %v258, 1
        %v514 = vpop.permute.xlu0 %513
        %515 = vrot.lane.b32.xlu0 %v260, 1
        %v516 = vpop.permute.xlu0 %515
        %517 = vrot.lane.b32.xlu0 %v257, 1
        %v518 = vpop.permute.xlu0 %517
        %519 = vrot.lane.b32.xlu0 %v259, 1
        %v520 = vpop.permute.xlu0 %519
        %521 = vrot.lane.b32.xlu0 %v261, 1
        %v522 = vpop.permute.xlu0 %521
        %vm523 = vcmp.lt.s32.totalorder %v279, 1
        %v524 = vsel %vm523, %v512, %v518
        %v525 = vsel %vm523, %v514, %v520
        %v526 = vsel %vm523, %v516, %v522
        %v527 = vsel %vm523, %v518, %v512
        %v528 = vsel %vm523, %v520, %v514
        %v529 = vsel %vm523, %v522, %v516
        %v530 = vlaneseq
        %v531 = vshrl.u32 %v530, 7
        %v532 = vsub.s32 3, %v531
        %v533 = vrot.slane %v262, %v532
        %v534 = vlaneseq
        %v535 = vshrl.u32 %v534, 7
        %v536 = vsub.s32 3, %v535
        %v537 = vrot.slane %v263, %v536
        %v538 = vmul.f32 %v527, %v533
        %v539 = vmul.f32 %v524, %v537
        %v540 = vmul.f32 %v528, %v533
        %v541 = vmul.f32 %v525, %v537
        %v542 = vmul.f32 %v529, %v533
        %v543 = vmul.f32 %v526, %v537
        %s544 = sld [smem:[#allocation7 + $0x1b]]
        %v545 = vstv %s544
        %v546 = vmul.f32 %v545, %v538
        %v547 = vmul.f32 %v545, %v539
        %v548 = vadd.f32 %v461, %v546
        %v549 = vadd.f32 %v462, %v547
        %s550 = sld [smem:[#allocation7 + $0x1c]]
        %v551 = vstv %s550
        %v552 = vmul.f32 %v551, %v538
        %v553 = vmul.f32 %v551, %v539
        %v554 = vadd.f32 %v467, %v552
        %v555 = vadd.f32 %v468, %v553
        %s556 = sld [smem:[#allocation7 + $0x1d]]
        %v557 = vstv %s556
        %v558 = vmul.f32 %v557, %v538
        %v559 = vmul.f32 %v557, %v539
        %v560 = vadd.f32 %v473, %v558
        %v561 = vadd.f32 %v474, %v559
        %s562 = sld [smem:[#allocation7 + $0x1e]]
        %v563 = vstv %s562
        %v564 = vmul.f32 %v563, %v540
        %v565 = vmul.f32 %v563, %v541
        %v566 = vadd.f32 %v479, %v564
        %v567 = vadd.f32 %v480, %v565
        %s568 = sld [smem:[#allocation7 + $0x1f]]
        %v569 = vstv %s568
        %v570 = vmul.f32 %v569, %v540
        %v571 = vmul.f32 %v569, %v541
        %v572 = vadd.f32 %v485, %v570
        %v573 = vadd.f32 %v486, %v571
        %s574 = sld [smem:[#allocation7 + $0x20]]
        %v575 = vstv %s574
        %v576 = vmul.f32 %v575, %v540
        %v577 = vmul.f32 %v575, %v541
        %v578 = vadd.f32 %v491, %v576
        %v579 = vadd.f32 %v492, %v577
        %s580 = sld [smem:[#allocation7 + $0x21]]
        %v581 = vstv %s580
        %v582 = vmul.f32 %v581, %v542
        %v583 = vmul.f32 %v581, %v543
        %v584 = vadd.f32 %v497, %v582
        %v585 = vadd.f32 %v498, %v583
        %s586 = sld [smem:[#allocation7 + $0x22]]
        %v587 = vstv %s586
        %v588 = vmul.f32 %v587, %v542
        %v589 = vmul.f32 %v587, %v543
        %v590 = vadd.f32 %v503, %v588
        %v591 = vadd.f32 %v504, %v589
        %s592 = sld [smem:[#allocation7 + $0x23]]
        %v593 = vstv %s592
        %v594 = vmul.f32 %v593, %v542
        %v595 = vmul.f32 %v593, %v543
        %v596 = vadd.f32 %v509, %v594
        %v597 = vadd.f32 %v510, %v595
        %s598 = sld [smem:[#allocation7 + $0x24]]
        %v599 = vstv %s598
        %v600 = vmul.f32 %v599, %v256
        %v601 = vmul.f32 %v599, %v257
        %v602 = vadd.f32 %v548, %v600
        %v603 = vadd.f32 %v549, %v601
        %s604 = sld [smem:[#allocation7 + $0x25]]
        %v605 = vstv %s604
        %v606 = vmul.f32 %v605, %v256
        %v607 = vmul.f32 %v605, %v257
        %v608 = vadd.f32 %v554, %v606
        %v609 = vadd.f32 %v555, %v607
        %s610 = sld [smem:[#allocation7 + $0x26]]
        %v611 = vstv %s610
        %v612 = vmul.f32 %v611, %v256
        %v613 = vmul.f32 %v611, %v257
        %v614 = vadd.f32 %v560, %v612
        %v615 = vadd.f32 %v561, %v613
        %s616 = sld [smem:[#allocation7 + $0x27]]
        %v617 = vstv %s616
        %v618 = vmul.f32 %v617, %v258
        %v619 = vmul.f32 %v617, %v259
        %v620 = vadd.f32 %v566, %v618
        %v621 = vadd.f32 %v567, %v619
        %s622 = sld [smem:[#allocation7 + $0x28]]
        %v623 = vstv %s622
        %v624 = vmul.f32 %v623, %v258
        %v625 = vmul.f32 %v623, %v259
        %v626 = vadd.f32 %v572, %v624
        %v627 = vadd.f32 %v573, %v625
        %s628 = sld [smem:[#allocation7 + $0x29]]
        %v629 = vstv %s628
        %v630 = vmul.f32 %v629, %v258
        %v631 = vmul.f32 %v629, %v259
        %v632 = vadd.f32 %v578, %v630
        %v633 = vadd.f32 %v579, %v631
        %s634 = sld [smem:[#allocation7 + $0x2a]]
        %v635 = vstv %s634
        %v636 = vmul.f32 %v635, %v260
        %v637 = vmul.f32 %v635, %v261
        %v638 = vadd.f32 %v584, %v636
        %v639 = vadd.f32 %v585, %v637
        %s640 = sld [smem:[#allocation7 + $0x2b]]
        %v641 = vstv %s640
        %v642 = vmul.f32 %v641, %v260
        %v643 = vmul.f32 %v641, %v261
        %v644 = vadd.f32 %v590, %v642
        %v645 = vadd.f32 %v591, %v643
        %s646 = sld [smem:[#allocation7 + $0x2c]]
        %v647 = vstv %s646
        %v648 = vmul.f32 %v647, %v260
        %v649 = vmul.f32 %v647, %v261
        %v650 = vadd.f32 %v596, %v648
        %v651 = vadd.f32 %v597, %v649
        %652 = vrot.lane.b32.xlu0 %v256, 127
        %v653 = vpop.permute.xlu0 %652
        %654 = vrot.lane.b32.xlu0 %v258, 127
        %v655 = vpop.permute.xlu0 %654
        %656 = vrot.lane.b32.xlu0 %v260, 127
        %v657 = vpop.permute.xlu0 %656
        %658 = vrot.lane.b32.xlu0 %v257, 127
        %v659 = vpop.permute.xlu0 %658
        %660 = vrot.lane.b32.xlu0 %v259, 127
        %v661 = vpop.permute.xlu0 %660
        %662 = vrot.lane.b32.xlu0 %v261, 127
        %v663 = vpop.permute.xlu0 %662
        %vm664 = vcmp.lt.s32.totalorder %v279, 127
        %v665 = vsel %vm664, %v653, %v659
        %v666 = vsel %vm664, %v655, %v661
        %v667 = vsel %vm664, %v657, %v663
        %v668 = vsel %vm664, %v659, %v653
        %v669 = vsel %vm664, %v661, %v655
        %v670 = vsel %vm664, %v663, %v657
        %v671 = vlaneseq
        %v672 = vshrl.u32 %v671, 7
        %v673 = vsub.s32 5, %v672
        %v674 = vrot.slane %v262, %v673
        %v675 = vlaneseq
        %v676 = vshrl.u32 %v675, 7
        %v677 = vsub.s32 5, %v676
        %v678 = vrot.slane %v263, %v677
        %v679 = vmul.f32 %v665, %v674
        %v680 = vmul.f32 %v668, %v678
        %v681 = vmul.f32 %v666, %v674
        %v682 = vmul.f32 %v669, %v678
        %v683 = vmul.f32 %v667, %v674
        %v684 = vmul.f32 %v670, %v678
        %s685 = sld [smem:[#allocation7 + $0x2d]]
        %v686 = vstv %s685
        %v687 = vmul.f32 %v686, %v679
        %v688 = vmul.f32 %v686, %v680
        %v689 = vadd.f32 %v602, %v687
        %v690 = vadd.f32 %v603, %v688
        %s691 = sld [smem:[#allocation7 + $0x2e]]
        %v692 = vstv %s691
        %v693 = vmul.f32 %v692, %v679
        %v694 = vmul.f32 %v692, %v680
        %v695 = vadd.f32 %v608, %v693
        %v696 = vadd.f32 %v609, %v694
        %s697 = sld [smem:[#allocation7 + $0x2f]]
        %v698 = vstv %s697
        %v699 = vmul.f32 %v698, %v679
        %v700 = vmul.f32 %v698, %v680
        %v701 = vadd.f32 %v614, %v699
        %v702 = vadd.f32 %v615, %v700
        %s703 = sld [smem:[#allocation7 + $0x30]]
        %v704 = vstv %s703
        %v705 = vmul.f32 %v704, %v681
        %v706 = vmul.f32 %v704, %v682
        %v707 = vadd.f32 %v620, %v705
        %v708 = vadd.f32 %v621, %v706
        %s709 = sld [smem:[#allocation7 + $0x31]]
        %v710 = vstv %s709
        %v711 = vmul.f32 %v710, %v681
        %v712 = vmul.f32 %v710, %v682
        %v713 = vadd.f32 %v626, %v711
        %v714 = vadd.f32 %v627, %v712
        %s715 = sld [smem:[#allocation7 + $0x32]]
        %v716 = vstv %s715
        %v717 = vmul.f32 %v716, %v681
        %v718 = vmul.f32 %v716, %v682
        %v719 = vadd.f32 %v632, %v717
        %v720 = vadd.f32 %v633, %v718
        %s721 = sld [smem:[#allocation7 + $0x33]]
        %v722 = vstv %s721
        %v723 = vmul.f32 %v722, %v683
        %v724 = vmul.f32 %v722, %v684
        %v725 = vadd.f32 %v638, %v723
        %v726 = vadd.f32 %v639, %v724
        %s727 = sld [smem:[#allocation7 + $0x34]]
        %v728 = vstv %s727
        %v729 = vmul.f32 %v728, %v683
        %v730 = vmul.f32 %v728, %v684
        %v731 = vadd.f32 %v644, %v729
        %v732 = vadd.f32 %v645, %v730
        %s733 = sld [smem:[#allocation7 + $0x35]]
        %v734 = vstv %s733
        %v735 = vmul.f32 %v734, %v683
        %v736 = vmul.f32 %v734, %v684
        %v737 = vadd.f32 %v650, %v735
        %v738 = vadd.f32 %v651, %v736
        %739 = vrot.lane.b32.xlu0 %v256, 113
        %v740 = vpop.permute.xlu0 %739
        %741 = vrot.lane.b32.xlu0 %v258, 113
        %v742 = vpop.permute.xlu0 %741
        %743 = vrot.lane.b32.xlu0 %v260, 113
        %v744 = vpop.permute.xlu0 %743
        %745 = vrot.lane.b32.xlu0 %v257, 113
        %v746 = vpop.permute.xlu0 %745
        %747 = vrot.lane.b32.xlu0 %v259, 113
        %v748 = vpop.permute.xlu0 %747
        %749 = vrot.lane.b32.xlu0 %v261, 113
        %v750 = vpop.permute.xlu0 %749
        %vm751 = vcmp.lt.s32.totalorder %v279, 113
        %v752 = vsel %vm751, %v740, %v746
        %v753 = vsel %vm751, %v742, %v748
        %v754 = vsel %vm751, %v744, %v750
        %v755 = vsel %vm751, %v746, %v740
        %v756 = vsel %vm751, %v748, %v742
        %v757 = vsel %vm751, %v750, %v744
        %v758 = vlaneseq
        %v759 = vshrl.u32 %v758, 7
        %v760 = vsub.s32 6, %v759
        %v761 = vrot.slane %v262, %v760
        %v762 = vlaneseq
        %v763 = vshrl.u32 %v762, 7
        %v764 = vsub.s32 6, %v763
        %v765 = vrot.slane %v263, %v764
        %v766 = vmul.f32 %v752, %v761
        %v767 = vmul.f32 %v755, %v765
        %v768 = vmul.f32 %v753, %v761
        %v769 = vmul.f32 %v756, %v765
        %v770 = vmul.f32 %v754, %v761
        %v771 = vmul.f32 %v757, %v765
        %s772 = sld [smem:[#allocation7 + $0x36]]
        %v773 = vstv %s772
        %v774 = vmul.f32 %v773, %v766
        %v775 = vmul.f32 %v773, %v767
        %v776 = vadd.f32 %v689, %v774
        %v777 = vadd.f32 %v690, %v775
        %s778 = sld [smem:[#allocation7 + $0x37]]
        %v779 = vstv %s778
        %v780 = vmul.f32 %v779, %v766
        %v781 = vmul.f32 %v779, %v767
        %v782 = vadd.f32 %v695, %v780
        %v783 = vadd.f32 %v696, %v781
        %s784 = sld [smem:[#allocation7 + $0x38]]
        %v785 = vstv %s784
        %v786 = vmul.f32 %v785, %v766
        %v787 = vmul.f32 %v785, %v767
        %v788 = vadd.f32 %v701, %v786
        %v789 = vadd.f32 %v702, %v787
        %s790 = sld [smem:[#allocation7 + $0x39]]
        %v791 = vstv %s790
        %v792 = vmul.f32 %v791, %v768
        %v793 = vmul.f32 %v791, %v769
        %v794 = vadd.f32 %v707, %v792
        %v795 = vadd.f32 %v708, %v793
        %s796 = sld [smem:[#allocation7 + $0x3a]]
        %v797 = vstv %s796
        %v798 = vmul.f32 %v797, %v768
        %v799 = vmul.f32 %v797, %v769
        %v800 = vadd.f32 %v713, %v798
        %v801 = vadd.f32 %v714, %v799
        %s802 = sld [smem:[#allocation7 + $0x3b]]
        %v803 = vstv %s802
        %v804 = vmul.f32 %v803, %v768
        %v805 = vmul.f32 %v803, %v769
        %v806 = vadd.f32 %v719, %v804
        %v807 = vadd.f32 %v720, %v805
        %s808 = sld [smem:[#allocation7 + $0x3c]]
        %v809 = vstv %s808
        %v810 = vmul.f32 %v809, %v770
        %v811 = vmul.f32 %v809, %v771
        %v812 = vadd.f32 %v725, %v810
        %v813 = vadd.f32 %v726, %v811
        %s814 = sld [smem:[#allocation7 + $0x3d]]
        %v815 = vstv %s814
        %v816 = vmul.f32 %v815, %v770
        %v817 = vmul.f32 %v815, %v771
        %v818 = vadd.f32 %v731, %v816
        %v819 = vadd.f32 %v732, %v817
        %s820 = sld [smem:[#allocation7 + $0x3e]]
        %v821 = vstv %s820
        %v822 = vmul.f32 %v821, %v770
        %v823 = vmul.f32 %v821, %v771
        %v824 = vadd.f32 %v737, %v822
        %v825 = vadd.f32 %v738, %v823
        %826 = vrot.lane.b32.xlu0 %v256, 112
        %v827 = vpop.permute.xlu0 %826
        %828 = vrot.lane.b32.xlu0 %v258, 112
        %v829 = vpop.permute.xlu0 %828
        %830 = vrot.lane.b32.xlu0 %v260, 112
        %v831 = vpop.permute.xlu0 %830
        %832 = vrot.lane.b32.xlu0 %v257, 112
        %v833 = vpop.permute.xlu0 %832
        %834 = vrot.lane.b32.xlu0 %v259, 112
        %v835 = vpop.permute.xlu0 %834
        %836 = vrot.lane.b32.xlu0 %v261, 112
        %v837 = vpop.permute.xlu0 %836
        %vm838 = vcmp.lt.s32.totalorder %v279, 112
        %v839 = vsel %vm838, %v827, %v833
        %v840 = vsel %vm838, %v829, %v835
        %v841 = vsel %vm838, %v831, %v837
        %v842 = vsel %vm838, %v833, %v827
        %v843 = vsel %vm838, %v835, %v829
        %v844 = vsel %vm838, %v837, %v831
        %v845 = vlaneseq
        %v846 = vshrl.u32 %v845, 7
        %v847 = vsub.s32 7, %v846
        %v848 = vrot.slane %v262, %v847
        %v849 = vlaneseq
        %v850 = vshrl.u32 %v849, 7
        %v851 = vsub.s32 7, %v850
        %v852 = vrot.slane %v263, %v851
        %v853 = vmul.f32 %v839, %v848
        %v854 = vmul.f32 %v842, %v852
        %v855 = vmul.f32 %v840, %v848
        %v856 = vmul.f32 %v843, %v852
        %v857 = vmul.f32 %v841, %v848
        %v858 = vmul.f32 %v844, %v852
        %s859 = sld [smem:[#allocation7 + $0x3f]]
        %v860 = vstv %s859
        %v861 = vmul.f32 %v860, %v853
        %v862 = vmul.f32 %v860, %v854
        %v863 = vadd.f32 %v776, %v861
        %v864 = vadd.f32 %v777, %v862
        %s865 = sld [smem:[#allocation7 + $0x40]]
        %v866 = vstv %s865
        %v867 = vmul.f32 %v866, %v853
        %v868 = vmul.f32 %v866, %v854
        %v869 = vadd.f32 %v782, %v867
        %v870 = vadd.f32 %v783, %v868
        %s871 = sld [smem:[#allocation7 + $0x41]]
        %v872 = vstv %s871
        %v873 = vmul.f32 %v872, %v853
        %v874 = vmul.f32 %v872, %v854
        %v875 = vadd.f32 %v788, %v873
        %v876 = vadd.f32 %v789, %v874
        %s877 = sld [smem:[#allocation7 + $0x42]]
        %v878 = vstv %s877
        %v879 = vmul.f32 %v878, %v855
        %v880 = vmul.f32 %v878, %v856
        %v881 = vadd.f32 %v794, %v879
        %v882 = vadd.f32 %v795, %v880
        %s883 = sld [smem:[#allocation7 + $0x43]]
        %v884 = vstv %s883
        %v885 = vmul.f32 %v884, %v855
        %v886 = vmul.f32 %v884, %v856
        %v887 = vadd.f32 %v800, %v885
        %v888 = vadd.f32 %v801, %v886
        %s889 = sld [smem:[#allocation7 + $0x44]]
        %v890 = vstv %s889
        %v891 = vmul.f32 %v890, %v855
        %v892 = vmul.f32 %v890, %v856
        %v893 = vadd.f32 %v806, %v891
        %v894 = vadd.f32 %v807, %v892
        %s895 = sld [smem:[#allocation7 + $0x45]]
        %v896 = vstv %s895
        %v897 = vmul.f32 %v896, %v857
        %v898 = vmul.f32 %v896, %v858
        %v899 = vadd.f32 %v812, %v897
        %v900 = vadd.f32 %v813, %v898
        %s901 = sld [smem:[#allocation7 + $0x46]]
        %v902 = vstv %s901
        %v903 = vmul.f32 %v902, %v857
        %v904 = vmul.f32 %v902, %v858
        %v905 = vadd.f32 %v818, %v903
        %v906 = vadd.f32 %v819, %v904
        %s907 = sld [smem:[#allocation7 + $0x47]]
        %v908 = vstv %s907
        %v909 = vmul.f32 %v908, %v857
        %v910 = vmul.f32 %v908, %v858
        %v911 = vadd.f32 %v824, %v909
        %v912 = vadd.f32 %v825, %v910
        %913 = vrot.lane.b32.xlu0 %v256, 111
        %v914 = vpop.permute.xlu0 %913
        %915 = vrot.lane.b32.xlu0 %v258, 111
        %v916 = vpop.permute.xlu0 %915
        %917 = vrot.lane.b32.xlu0 %v260, 111
        %v918 = vpop.permute.xlu0 %917
        %919 = vrot.lane.b32.xlu0 %v257, 111
        %v920 = vpop.permute.xlu0 %919
        %921 = vrot.lane.b32.xlu0 %v259, 111
        %v922 = vpop.permute.xlu0 %921
        %923 = vrot.lane.b32.xlu0 %v261, 111
        %v924 = vpop.permute.xlu0 %923
        %vm925 = vcmp.lt.s32.totalorder %v279, 111
        %v926 = vsel %vm925, %v914, %v920
        %v927 = vsel %vm925, %v916, %v922
        %v928 = vsel %vm925, %v918, %v924
        %v929 = vsel %vm925, %v920, %v914
        %v930 = vsel %vm925, %v922, %v916
        %v931 = vsel %vm925, %v924, %v918
        %v932 = vlaneseq
        %v933 = vshrl.u32 %v932, 7
        %v934 = vsub.s32 0, %v933
        %v935 = vrot.slane %v264, %v934
        %v936 = vlaneseq
        %v937 = vshrl.u32 %v936, 7
        %v938 = vsub.s32 0, %v937
        %v939 = vrot.slane %v265, %v938
        %v940 = vmul.f32 %v926, %v935
        %v941 = vmul.f32 %v929, %v939
        %v942 = vmul.f32 %v927, %v935
        %v943 = vmul.f32 %v930, %v939
        %v944 = vmul.f32 %v928, %v935
        %v945 = vmul.f32 %v931, %v939
        %s946 = sld [smem:[#allocation7 + $0x48]]
        %v947 = vstv %s946
        %v948 = vmul.f32 %v947, %v940
        %v949 = vmul.f32 %v947, %v941
        %v950 = vadd.f32 %v863, %v948
        %v951 = vadd.f32 %v864, %v949
        %s952 = sld [smem:[#allocation7 + $0x49]]
        %v953 = vstv %s952
        %v954 = vmul.f32 %v953, %v940
        %v955 = vmul.f32 %v953, %v941
        %v956 = vadd.f32 %v869, %v954
        %v957 = vadd.f32 %v870, %v955
        %s958 = sld [smem:[#allocation7 + $0x4a]]
        %v959 = vstv %s958
        %v960 = vmul.f32 %v959, %v940
        %v961 = vmul.f32 %v959, %v941
        %v962 = vadd.f32 %v875, %v960
        %v963 = vadd.f32 %v876, %v961
        %s964 = sld [smem:[#allocation7 + $0x4b]]
        %v965 = vstv %s964
        %v966 = vmul.f32 %v965, %v942
        %v967 = vmul.f32 %v965, %v943
        %v968 = vadd.f32 %v881, %v966
        %v969 = vadd.f32 %v882, %v967
        %s970 = sld [smem:[#allocation7 + $0x4c]]
        %v971 = vstv %s970
        %v972 = vmul.f32 %v971, %v942
        %v973 = vmul.f32 %v971, %v943
        %v974 = vadd.f32 %v887, %v972
        %v975 = vadd.f32 %v888, %v973
        %s976 = sld [smem:[#allocation7 + $0x4d]]
        %v977 = vstv %s976
        %v978 = vmul.f32 %v977, %v942
        %v979 = vmul.f32 %v977, %v943
        %v980 = vadd.f32 %v893, %v978
        %v981 = vadd.f32 %v894, %v979
        %s982 = sld [smem:[#allocation7 + $0x4e]]
        %v983 = vstv %s982
        %v984 = vmul.f32 %v983, %v944
        %v985 = vmul.f32 %v983, %v945
        %v986 = vadd.f32 %v899, %v984
        %v987 = vadd.f32 %v900, %v985
        %s988 = sld [smem:[#allocation7 + $0x4f]]
        %v989 = vstv %s988
        %v990 = vmul.f32 %v989, %v944
        %v991 = vmul.f32 %v989, %v945
        %v992 = vadd.f32 %v905, %v990
        %v993 = vadd.f32 %v906, %v991
        %s994 = sld [smem:[#allocation7 + $0x50]]
        %v995 = vstv %s994
        %v996 = vmul.f32 %v995, %v944
        %v997 = vmul.f32 %v995, %v945
        %v998 = vadd.f32 %v911, %v996
        %v999 = vadd.f32 %v912, %v997
        %s1000 = sld [smem:[#allocation8]]
        %v1001 = vadd.f32 %v950, %v968
        %v1002 = vadd.f32 %v951, %v969
        %v1003 = vstv %s1000
        %v1004 = vadd.f32 %v986, %v1003
        %v1005 = vadd.f32 %v987, %v1003
        %v1006 = vadd.f32 %v1001, %v1004
        %v1007 = vadd.f32 %v1002, %v1005
        %v1008 = vmax.f32 %v1006, 0.0
        %v1009 = vmax.f32 %v1007, 0.0
        %s1010 = sld [smem:[#allocation8 + $0x1]]
        %v1011 = vadd.f32 %v956, %v974
        %v1012 = vadd.f32 %v957, %v975
        %v1013 = vstv %s1010
        %v1014 = vadd.f32 %v992, %v1013
        %v1015 = vadd.f32 %v993, %v1013
        %v1016 = vadd.f32 %v1011, %v1014
        %v1017 = vadd.f32 %v1012, %v1015
        %v1018 = vmax.f32 %v1016, 0.0
        %v1019 = vmax.f32 %v1017, 0.0
        %s1020 = sld [smem:[#allocation8 + $0x2]]
        %v1021 = vadd.f32 %v962, %v980
        %v1022 = vadd.f32 %v963, %v981
        %v1023 = vstv %s1020
        %v1024 = vadd.f32 %v998, %v1023
        %v1025 = vadd.f32 %v999, %v1023
        %v1026 = vadd.f32 %v1021, %v1024
        %v1027 = vadd.f32 %v1022, %v1025
        %v1028 = vmax.f32 %v1026, 0.0
        %v1029 = vmax.f32 %v1027, 0.0
        %1030 = vrot.lane.b32.xlu0 %v1008, 17
        %v1031 = vpop.permute.xlu0 %1030
        %1032 = vrot.lane.b32.xlu0 %v1018, 17
        %v1033 = vpop.permute.xlu0 %1032
        %1034 = vrot.lane.b32.xlu0 %v1028, 17
        %v1035 = vpop.permute.xlu0 %1034
        %1036 = vrot.lane.b32.xlu0 %v1009, 17
        %v1037 = vpop.permute.xlu0 %1036
        %1038 = vrot.lane.b32.xlu0 %v1019, 17
        %v1039 = vpop.permute.xlu0 %1038
        %1040 = vrot.lane.b32.xlu0 %v1029, 17
        %v1041 = vpop.permute.xlu0 %1040
        %v1042 = vsel %vm280, %v1031, %v1037
        %v1043 = vsel %vm280, %v1033, %v1039
        %v1044 = vsel %vm280, %v1035, %v1041
        %v1045 = vsel %vm280, %v1037, %v1031
        %v1046 = vsel %vm280, %v1039, %v1033
        %v1047 = vsel %vm280, %v1041, %v1035
        %v1048 = vmul.f32 %v1045, %v290
        %v1049 = vmul.f32 %v1042, %v294
        %v1050 = vmul.f32 %v1046, %v290
        %v1051 = vmul.f32 %v1043, %v294
        %v1052 = vmul.f32 %v1047, %v290
        %v1053 = vmul.f32 %v1044, %v294
        %s1054 = sld [smem:[#allocation7 + $0x51]]
        %v1055 = vstv %s1054
        %v1056 = vmul.f32 %v1055, %v1048
        %v1057 = vmul.f32 %v1055, %v1049
        %s1058 = sld [smem:[#allocation7 + $0x52]]
        %v1059 = vstv %s1058
        %v1060 = vmul.f32 %v1059, %v1048
        %v1061 = vmul.f32 %v1059, %v1049
        %s1062 = sld [smem:[#allocation7 + $0x53]]
        %v1063 = vstv %s1062
        %v1064 = vmul.f32 %v1063, %v1048
        %v1065 = vmul.f32 %v1063, %v1049
        %s1066 = sld [smem:[#allocation7 + $0x54]]
        %v1067 = vstv %s1066
        %v1068 = vmul.f32 %v1067, %v1050
        %v1069 = vmul.f32 %v1067, %v1051
        %s1070 = sld [smem:[#allocation7 + $0x55]]
        %v1071 = vstv %s1070
        %v1072 = vmul.f32 %v1071, %v1050
        %v1073 = vmul.f32 %v1071, %v1051
        %s1074 = sld [smem:[#allocation7 + $0x56]]
        %v1075 = vstv %s1074
        %v1076 = vmul.f32 %v1075, %v1050
        %v1077 = vmul.f32 %v1075, %v1051
        %s1078 = sld [smem:[#allocation7 + $0x57]]
        %v1079 = vstv %s1078
        %v1080 = vmul.f32 %v1079, %v1052
        %v1081 = vmul.f32 %v1079, %v1053
        %s1082 = sld [smem:[#allocation7 + $0x58]]
        %v1083 = vstv %s1082
        %v1084 = vmul.f32 %v1083, %v1052
        %v1085 = vmul.f32 %v1083, %v1053
        %s1086 = sld [smem:[#allocation7 + $0x59]]
        %v1087 = vstv %s1086
        %v1088 = vmul.f32 %v1087, %v1052
        %v1089 = vmul.f32 %v1087, %v1053
        %1090 = vrot.lane.b32.xlu0 %v1008, 16
        %v1091 = vpop.permute.xlu0 %1090
        %1092 = vrot.lane.b32.xlu0 %v1018, 16
        %v1093 = vpop.permute.xlu0 %1092
        %1094 = vrot.lane.b32.xlu0 %v1028, 16
        %v1095 = vpop.permute.xlu0 %1094
        %1096 = vrot.lane.b32.xlu0 %v1009, 16
        %v1097 = vpop.permute.xlu0 %1096
        %1098 = vrot.lane.b32.xlu0 %v1019, 16
        %v1099 = vpop.permute.xlu0 %1098
        %1100 = vrot.lane.b32.xlu0 %v1029, 16
        %v1101 = vpop.permute.xlu0 %1100
        %v1102 = vsel %vm349, %v1091, %v1097
        %v1103 = vsel %vm349, %v1093, %v1099
        %v1104 = vsel %vm349, %v1095, %v1101
        %v1105 = vsel %vm349, %v1097, %v1091
        %v1106 = vsel %vm349, %v1099, %v1093
        %v1107 = vsel %vm349, %v1101, %v1095
        %v1108 = vmul.f32 %v1105, %v359
        %v1109 = vmul.f32 %v1102, %v363
        %v1110 = vmul.f32 %v1106, %v359
        %v1111 = vmul.f32 %v1103, %v363
        %v1112 = vmul.f32 %v1107, %v359
        %v1113 = vmul.f32 %v1104, %v363
        %s1114 = sld [smem:[#allocation7 + $0x5a]]
        %v1115 = vstv %s1114
        %v1116 = vmul.f32 %v1115, %v1108
        %v1117 = vmul.f32 %v1115, %v1109
        %v1118 = vadd.f32 %v1056, %v1116
        %v1119 = vadd.f32 %v1057, %v1117
        %s1120 = sld [smem:[#allocation7 + $0x5b]]
        %v1121 = vstv %s1120
        %v1122 = vmul.f32 %v1121, %v1108
        %v1123 = vmul.f32 %v1121, %v1109
        %v1124 = vadd.f32 %v1060, %v1122
        %v1125 = vadd.f32 %v1061, %v1123
        %s1126 = sld [smem:[#allocation7 + $0x5c]]
        %v1127 = vstv %s1126
        %v1128 = vmul.f32 %v1127, %v1108
        %v1129 = vmul.f32 %v1127, %v1109
        %v1130 = vadd.f32 %v1064, %v1128
        %v1131 = vadd.f32 %v1065, %v1129
        %s1132 = sld [smem:[#allocation7 + $0x5d]]
        %v1133 = vstv %s1132
        %v1134 = vmul.f32 %v1133, %v1110
        %v1135 = vmul.f32 %v1133, %v1111
        %v1136 = vadd.f32 %v1068, %v1134
        %v1137 = vadd.f32 %v1069, %v1135
        %s1138 = sld [smem:[#allocation7 + $0x5e]]
        %v1139 = vstv %s1138
        %v1140 = vmul.f32 %v1139, %v1110
        %v1141 = vmul.f32 %v1139, %v1111
        %v1142 = vadd.f32 %v1072, %v1140
        %v1143 = vadd.f32 %v1073, %v1141
        %s1144 = sld [smem:[#allocation7 + $0x5f]]
        %v1145 = vstv %s1144
        %v1146 = vmul.f32 %v1145, %v1110
        %v1147 = vmul.f32 %v1145, %v1111
        %v1148 = vadd.f32 %v1076, %v1146
        %v1149 = vadd.f32 %v1077, %v1147
        %s1150 = sld [smem:[#allocation7 + $0x60]]
        %v1151 = vstv %s1150
        %v1152 = vmul.f32 %v1151, %v1112
        %v1153 = vmul.f32 %v1151, %v1113
        %v1154 = vadd.f32 %v1080, %v1152
        %v1155 = vadd.f32 %v1081, %v1153
        %s1156 = sld [smem:[#allocation7 + $0x61]]
        %v1157 = vstv %s1156
        %v1158 = vmul.f32 %v1157, %v1112
        %v1159 = vmul.f32 %v1157, %v1113
        %v1160 = vadd.f32 %v1084, %v1158
        %v1161 = vadd.f32 %v1085, %v1159
        %s1162 = sld [smem:[#allocation7 + $0x62]]
        %v1163 = vstv %s1162
        %v1164 = vmul.f32 %v1163, %v1112
        %v1165 = vmul.f32 %v1163, %v1113
        %v1166 = vadd.f32 %v1088, %v1164
        %v1167 = vadd.f32 %v1089, %v1165
        %1168 = vrot.lane.b32.xlu0 %v1008, 15
        %v1169 = vpop.permute.xlu0 %1168
        %1170 = vrot.lane.b32.xlu0 %v1018, 15
        %v1171 = vpop.permute.xlu0 %1170
        %1172 = vrot.lane.b32.xlu0 %v1028, 15
        %v1173 = vpop.permute.xlu0 %1172
        %1174 = vrot.lane.b32.xlu0 %v1009, 15
        %v1175 = vpop.permute.xlu0 %1174
        %1176 = vrot.lane.b32.xlu0 %v1019, 15
        %v1177 = vpop.permute.xlu0 %1176
        %1178 = vrot.lane.b32.xlu0 %v1029, 15
        %v1179 = vpop.permute.xlu0 %1178
        %v1180 = vsel %vm436, %v1169, %v1175
        %v1181 = vsel %vm436, %v1171, %v1177
        %v1182 = vsel %vm436, %v1173, %v1179
        %v1183 = vsel %vm436, %v1175, %v1169
        %v1184 = vsel %vm436, %v1177, %v1171
        %v1185 = vsel %vm436, %v1179, %v1173
        %v1186 = vmul.f32 %v1183, %v446
        %v1187 = vmul.f32 %v1180, %v450
        %v1188 = vmul.f32 %v1184, %v446
        %v1189 = vmul.f32 %v1181, %v450
        %v1190 = vmul.f32 %v1185, %v446
        %v1191 = vmul.f32 %v1182, %v450
        %s1192 = sld [smem:[#allocation7 + $0x63]]
        %v1193 = vstv %s1192
        %v1194 = vmul.f32 %v1193, %v1186
        %v1195 = vmul.f32 %v1193, %v1187
        %v1196 = vadd.f32 %v1118, %v1194
        %v1197 = vadd.f32 %v1119, %v1195
        %s1198 = sld [smem:[#allocation7 + $0x64]]
        %v1199 = vstv %s1198
        %v1200 = vmul.f32 %v1199, %v1186
        %v1201 = vmul.f32 %v1199, %v1187
        %v1202 = vadd.f32 %v1124, %v1200
        %v1203 = vadd.f32 %v1125, %v1201
        %s1204 = sld [smem:[#allocation7 + $0x65]]
        %v1205 = vstv %s1204
        %v1206 = vmul.f32 %v1205, %v1186
        %v1207 = vmul.f32 %v1205, %v1187
        %v1208 = vadd.f32 %v1130, %v1206
        %v1209 = vadd.f32 %v1131, %v1207
        %s1210 = sld [smem:[#allocation7 + $0x66]]
        %v1211 = vstv %s1210
        %v1212 = vmul.f32 %v1211, %v1188
        %v1213 = vmul.f32 %v1211, %v1189
        %v1214 = vadd.f32 %v1136, %v1212
        %v1215 = vadd.f32 %v1137, %v1213
        %s1216 = sld [smem:[#allocation7 + $0x67]]
        %v1217 = vstv %s1216
        %v1218 = vmul.f32 %v1217, %v1188
        %v1219 = vmul.f32 %v1217, %v1189
        %v1220 = vadd.f32 %v1142, %v1218
        %v1221 = vadd.f32 %v1143, %v1219
        %s1222 = sld [smem:[#allocation7 + $0x68]]
        %v1223 = vstv %s1222
        %v1224 = vmul.f32 %v1223, %v1188
        %v1225 = vmul.f32 %v1223, %v1189
        %v1226 = vadd.f32 %v1148, %v1224
        %v1227 = vadd.f32 %v1149, %v1225
        %s1228 = sld [smem:[#allocation7 + $0x69]]
        %v1229 = vstv %s1228
        %v1230 = vmul.f32 %v1229, %v1190
        %v1231 = vmul.f32 %v1229, %v1191
        %v1232 = vadd.f32 %v1154, %v1230
        %v1233 = vadd.f32 %v1155, %v1231
        %s1234 = sld [smem:[#allocation7 + $0x6a]]
        %v1235 = vstv %s1234
        %v1236 = vmul.f32 %v1235, %v1190
        %v1237 = vmul.f32 %v1235, %v1191
        %v1238 = vadd.f32 %v1160, %v1236
        %v1239 = vadd.f32 %v1161, %v1237
        %s1240 = sld [smem:[#allocation7 + $0x6b]]
        %v1241 = vstv %s1240
        %v1242 = vmul.f32 %v1241, %v1190
        %v1243 = vmul.f32 %v1241, %v1191
        %v1244 = vadd.f32 %v1166, %v1242
        %v1245 = vadd.f32 %v1167, %v1243
        %1246 = vrot.lane.b32.xlu0 %v1008, 1
        %v1247 = vpop.permute.xlu0 %1246
        %1248 = vrot.lane.b32.xlu0 %v1018, 1
        %v1249 = vpop.permute.xlu0 %1248
        %1250 = vrot.lane.b32.xlu0 %v1028, 1
        %v1251 = vpop.permute.xlu0 %1250
        %1252 = vrot.lane.b32.xlu0 %v1009, 1
        %v1253 = vpop.permute.xlu0 %1252
        %1254 = vrot.lane.b32.xlu0 %v1019, 1
        %v1255 = vpop.permute.xlu0 %1254
        %1256 = vrot.lane.b32.xlu0 %v1029, 1
        %v1257 = vpop.permute.xlu0 %1256
        %v1258 = vsel %vm523, %v1247, %v1253
        %v1259 = vsel %vm523, %v1249, %v1255
        %v1260 = vsel %vm523, %v1251, %v1257
        %v1261 = vsel %vm523, %v1253, %v1247
        %v1262 = vsel %vm523, %v1255, %v1249
        %v1263 = vsel %vm523, %v1257, %v1251
        %v1264 = vmul.f32 %v1261, %v533
        %v1265 = vmul.f32 %v1258, %v537
        %v1266 = vmul.f32 %v1262, %v533
        %v1267 = vmul.f32 %v1259, %v537
        %v1268 = vmul.f32 %v1263, %v533
        %v1269 = vmul.f32 %v1260, %v537
        %s1270 = sld [smem:[#allocation7 + $0x6c]]
        %v1271 = vstv %s1270
        %v1272 = vmul.f32 %v1271, %v1264
        %v1273 = vmul.f32 %v1271, %v1265
        %v1274 = vadd.f32 %v1196, %v1272
        %v1275 = vadd.f32 %v1197, %v1273
        %s1276 = sld [smem:[#allocation7 + $0x6d]]
        %v1277 = vstv %s1276
        %v1278 = vmul.f32 %v1277, %v1264
        %v1279 = vmul.f32 %v1277, %v1265
        %v1280 = vadd.f32 %v1202, %v1278
        %v1281 = vadd.f32 %v1203, %v1279
        %s1282 = sld [smem:[#allocation7 + $0x6e]]
        %v1283 = vstv %s1282
        %v1284 = vmul.f32 %v1283, %v1264
        %v1285 = vmul.f32 %v1283, %v1265
        %v1286 = vadd.f32 %v1208, %v1284
        %v1287 = vadd.f32 %v1209, %v1285
        %s1288 = sld [smem:[#allocation7 + $0x6f]]
        %v1289 = vstv %s1288
        %v1290 = vmul.f32 %v1289, %v1266
        %v1291 = vmul.f32 %v1289, %v1267
        %v1292 = vadd.f32 %v1214, %v1290
        %v1293 = vadd.f32 %v1215, %v1291
        %s1294 = sld [smem:[#allocation7 + $0x70]]
        %v1295 = vstv %s1294
        %v1296 = vmul.f32 %v1295, %v1266
        %v1297 = vmul.f32 %v1295, %v1267
        %v1298 = vadd.f32 %v1220, %v1296
        %v1299 = vadd.f32 %v1221, %v1297
        %s1300 = sld [smem:[#allocation7 + $0x71]]
        %v1301 = vstv %s1300
        %v1302 = vmul.f32 %v1301, %v1266
        %v1303 = vmul.f32 %v1301, %v1267
        %v1304 = vadd.f32 %v1226, %v1302
        %v1305 = vadd.f32 %v1227, %v1303
        %s1306 = sld [smem:[#allocation7 + $0x72]]
        %v1307 = vstv %s1306
        %v1308 = vmul.f32 %v1307, %v1268
        %v1309 = vmul.f32 %v1307, %v1269
        %v1310 = vadd.f32 %v1232, %v1308
        %v1311 = vadd.f32 %v1233, %v1309
        %s1312 = sld [smem:[#allocation7 + $0x73]]
        %v1313 = vstv %s1312
        %v1314 = vmul.f32 %v1313, %v1268
        %v1315 = vmul.f32 %v1313, %v1269
        %v1316 = vadd.f32 %v1238, %v1314
        %v1317 = vadd.f32 %v1239, %v1315
        %s1318 = sld [smem:[#allocation7 + $0x74]]
        %v1319 = vstv %s1318
        %v1320 = vmul.f32 %v1319, %v1268
        %v1321 = vmul.f32 %v1319, %v1269
        %v1322 = vadd.f32 %v1244, %v1320
        %v1323 = vadd.f32 %v1245, %v1321
        %s1324 = sld [smem:[#allocation7 + $0x75]]
        %v1325 = vstv %s1324
        %v1326 = vmul.f32 %v1325, %v1008
        %v1327 = vmul.f32 %v1325, %v1009
        %v1328 = vadd.f32 %v1274, %v1326
        %v1329 = vadd.f32 %v1275, %v1327
        %s1330 = sld [smem:[#allocation7 + $0x76]]
        %v1331 = vstv %s1330
        %v1332 = vmul.f32 %v1331, %v1008
        %v1333 = vmul.f32 %v1331, %v1009
        %v1334 = vadd.f32 %v1280, %v1332
        %v1335 = vadd.f32 %v1281, %v1333
        %s1336 = sld [smem:[#allocation7 + $0x77]]
        %v1337 = vstv %s1336
        %v1338 = vmul.f32 %v1337, %v1008
        %v1339 = vmul.f32 %v1337, %v1009
        %v1340 = vadd.f32 %v1286, %v1338
        %v1341 = vadd.f32 %v1287, %v1339
        %s1342 = sld [smem:[#allocation7 + $0x78]]
        %v1343 = vstv %s1342
        %v1344 = vmul.f32 %v1343, %v1018
        %v1345 = vmul.f32 %v1343, %v1019
        %v1346 = vadd.f32 %v1292, %v1344
        %v1347 = vadd.f32 %v1293, %v1345
        %s1348 = sld [smem:[#allocation7 + $0x79]]
        %v1349 = vstv %s1348
        %v1350 = vmul.f32 %v1349, %v1018
        %v1351 = vmul.f32 %v1349, %v1019
        %v1352 = vadd.f32 %v1298, %v1350
        %v1353 = vadd.f32 %v1299, %v1351
        %s1354 = sld [smem:[#allocation7 + $0x7a]]
        %v1355 = vstv %s1354
        %v1356 = vmul.f32 %v1355, %v1018
        %v1357 = vmul.f32 %v1355, %v1019
        %v1358 = vadd.f32 %v1304, %v1356
        %v1359 = vadd.f32 %v1305, %v1357
        %s1360 = sld [smem:[#allocation7 + $0x7b]]
        %v1361 = vstv %s1360
        %v1362 = vmul.f32 %v1361, %v1028
        %v1363 = vmul.f32 %v1361, %v1029
        %v1364 = vadd.f32 %v1310, %v1362
        %v1365 = vadd.f32 %v1311, %v1363
        %s1366 = sld [smem:[#allocation7 + $0x7c]]
        %v1367 = vstv %s1366
        %v1368 = vmul.f32 %v1367, %v1028
        %v1369 = vmul.f32 %v1367, %v1029
        %v1370 = vadd.f32 %v1316, %v1368
        %v1371 = vadd.f32 %v1317, %v1369
        %s1372 = sld [smem:[#allocation7 + $0x7d]]
        %v1373 = vstv %s1372
        %v1374 = vmul.f32 %v1373, %v1028
        %v1375 = vmul.f32 %v1373, %v1029
        %v1376 = vadd.f32 %v1322, %v1374
        %v1377 = vadd.f32 %v1323, %v1375
        %1378 = vrot.lane.b32.xlu0 %v1008, 127
        %v1379 = vpop.permute.xlu0 %1378
        %1380 = vrot.lane.b32.xlu0 %v1018, 127
        %v1381 = vpop.permute.xlu0 %1380
        %1382 = vrot.lane.b32.xlu0 %v1028, 127
        %v1383 = vpop.permute.xlu0 %1382
        %1384 = vrot.lane.b32.xlu0 %v1009, 127
        %v1385 = vpop.permute.xlu0 %1384
        %1386 = vrot.lane.b32.xlu0 %v1019, 127
        %v1387 = vpop.permute.xlu0 %1386
        %1388 = vrot.lane.b32.xlu0 %v1029, 127
        %v1389 = vpop.permute.xlu0 %1388
        %v1390 = vsel %vm664, %v1379, %v1385
        %v1391 = vsel %vm664, %v1381, %v1387
        %v1392 = vsel %vm664, %v1383, %v1389
        %v1393 = vsel %vm664, %v1385, %v1379
        %v1394 = vsel %vm664, %v1387, %v1381
        %v1395 = vsel %vm664, %v1389, %v1383
        %v1396 = vmul.f32 %v1390, %v674
        %v1397 = vmul.f32 %v1393, %v678
        %v1398 = vmul.f32 %v1391, %v674
        %v1399 = vmul.f32 %v1394, %v678
        %v1400 = vmul.f32 %v1392, %v674
        %v1401 = vmul.f32 %v1395, %v678
        %s1402 = sld [smem:[#allocation7 + $0x7e]]
        %v1403 = vstv %s1402
        %v1404 = vmul.f32 %v1403, %v1396
        %v1405 = vmul.f32 %v1403, %v1397
        %v1406 = vadd.f32 %v1328, %v1404
        %v1407 = vadd.f32 %v1329, %v1405
        %s1408 = sld [smem:[#allocation7 + $0x7f]]
        %v1409 = vstv %s1408
        %v1410 = vmul.f32 %v1409, %v1396
        %v1411 = vmul.f32 %v1409, %v1397
        %v1412 = vadd.f32 %v1334, %v1410
        %v1413 = vadd.f32 %v1335, %v1411
        %s1414 = sld [smem:[#allocation7 + $0x80]]
        %v1415 = vstv %s1414
        %v1416 = vmul.f32 %v1415, %v1396
        %v1417 = vmul.f32 %v1415, %v1397
        %v1418 = vadd.f32 %v1340, %v1416
        %v1419 = vadd.f32 %v1341, %v1417
        %s1420 = sld [smem:[#allocation7 + $0x81]]
        %v1421 = vstv %s1420
        %v1422 = vmul.f32 %v1421, %v1398
        %v1423 = vmul.f32 %v1421, %v1399
        %v1424 = vadd.f32 %v1346, %v1422
        %v1425 = vadd.f32 %v1347, %v1423
        %s1426 = sld [smem:[#allocation7 + $0x82]]
        %v1427 = vstv %s1426
        %v1428 = vmul.f32 %v1427, %v1398
        %v1429 = vmul.f32 %v1427, %v1399
        %v1430 = vadd.f32 %v1352, %v1428
        %v1431 = vadd.f32 %v1353, %v1429
        %s1432 = sld [smem:[#allocation7 + $0x83]]
        %v1433 = vstv %s1432
        %v1434 = vmul.f32 %v1433, %v1398
        %v1435 = vmul.f32 %v1433, %v1399
        %v1436 = vadd.f32 %v1358, %v1434
        %v1437 = vadd.f32 %v1359, %v1435
        %s1438 = sld [smem:[#allocation7 + $0x84]]
        %v1439 = vstv %s1438
        %v1440 = vmul.f32 %v1439, %v1400
        %v1441 = vmul.f32 %v1439, %v1401
        %v1442 = vadd.f32 %v1364, %v1440
        %v1443 = vadd.f32 %v1365, %v1441
        %s1444 = sld [smem:[#allocation7 + $0x85]]
        %v1445 = vstv %s1444
        %v1446 = vmul.f32 %v1445, %v1400
        %v1447 = vmul.f32 %v1445, %v1401
        %v1448 = vadd.f32 %v1370, %v1446
        %v1449 = vadd.f32 %v1371, %v1447
        %s1450 = sld [smem:[#allocation7 + $0x86]]
        %v1451 = vstv %s1450
        %v1452 = vmul.f32 %v1451, %v1400
        %v1453 = vmul.f32 %v1451, %v1401
        %v1454 = vadd.f32 %v1376, %v1452
        %v1455 = vadd.f32 %v1377, %v1453
        %1456 = vrot.lane.b32.xlu0 %v1008, 113
        %v1457 = vpop.permute.xlu0 %1456
        %1458 = vrot.lane.b32.xlu0 %v1018, 113
        %v1459 = vpop.permute.xlu0 %1458
        %1460 = vrot.lane.b32.xlu0 %v1028, 113
        %v1461 = vpop.permute.xlu0 %1460
        %1462 = vrot.lane.b32.xlu0 %v1009, 113
        %v1463 = vpop.permute.xlu0 %1462
        %1464 = vrot.lane.b32.xlu0 %v1019, 113
        %v1465 = vpop.permute.xlu0 %1464
        %1466 = vrot.lane.b32.xlu0 %v1029, 113
        %v1467 = vpop.permute.xlu0 %1466
        %v1468 = vsel %vm751, %v1457, %v1463
        %v1469 = vsel %vm751, %v1459, %v1465
        %v1470 = vsel %vm751, %v1461, %v1467
        %v1471 = vsel %vm751, %v1463, %v1457
        %v1472 = vsel %vm751, %v1465, %v1459
        %v1473 = vsel %vm751, %v1467, %v1461
        %v1474 = vmul.f32 %v1468, %v761
        %v1475 = vmul.f32 %v1471, %v765
        %v1476 = vmul.f32 %v1469, %v761
        %v1477 = vmul.f32 %v1472, %v765
        %v1478 = vmul.f32 %v1470, %v761
        %v1479 = vmul.f32 %v1473, %v765
        %s1480 = sld [smem:[#allocation7 + $0x87]]
        %v1481 = vstv %s1480
        %v1482 = vmul.f32 %v1481, %v1474
        %v1483 = vmul.f32 %v1481, %v1475
        %v1484 = vadd.f32 %v1406, %v1482
        %v1485 = vadd.f32 %v1407, %v1483
        %s1486 = sld [smem:[#allocation7 + $0x88]]
        %v1487 = vstv %s1486
        %v1488 = vmul.f32 %v1487, %v1474
        %v1489 = vmul.f32 %v1487, %v1475
        %v1490 = vadd.f32 %v1412, %v1488
        %v1491 = vadd.f32 %v1413, %v1489
        %s1492 = sld [smem:[#allocation7 + $0x89]]
        %v1493 = vstv %s1492
        %v1494 = vmul.f32 %v1493, %v1474
        %v1495 = vmul.f32 %v1493, %v1475
        %v1496 = vadd.f32 %v1418, %v1494
        %v1497 = vadd.f32 %v1419, %v1495
        %s1498 = sld [smem:[#allocation7 + $0x8a]]
        %v1499 = vstv %s1498
        %v1500 = vmul.f32 %v1499, %v1476
        %v1501 = vmul.f32 %v1499, %v1477
        %v1502 = vadd.f32 %v1424, %v1500
        %v1503 = vadd.f32 %v1425, %v1501
        %s1504 = sld [smem:[#allocation7 + $0x8b]]
        %v1505 = vstv %s1504
        %v1506 = vmul.f32 %v1505, %v1476
        %v1507 = vmul.f32 %v1505, %v1477
        %v1508 = vadd.f32 %v1430, %v1506
        %v1509 = vadd.f32 %v1431, %v1507
        %s1510 = sld [smem:[#allocation7 + $0x8c]]
        %v1511 = vstv %s1510
        %v1512 = vmul.f32 %v1511, %v1476
        %v1513 = vmul.f32 %v1511, %v1477
        %v1514 = vadd.f32 %v1436, %v1512
        %v1515 = vadd.f32 %v1437, %v1513
        %s1516 = sld [smem:[#allocation7 + $0x8d]]
        %v1517 = vstv %s1516
        %v1518 = vmul.f32 %v1517, %v1478
        %v1519 = vmul.f32 %v1517, %v1479
        %v1520 = vadd.f32 %v1442, %v1518
        %v1521 = vadd.f32 %v1443, %v1519
        %s1522 = sld [smem:[#allocation7 + $0x8e]]
        %v1523 = vstv %s1522
        %v1524 = vmul.f32 %v1523, %v1478
        %v1525 = vmul.f32 %v1523, %v1479
        %v1526 = vadd.f32 %v1448, %v1524
        %v1527 = vadd.f32 %v1449, %v1525
        %s1528 = sld [smem:[#allocation7 + $0x8f]]
        %v1529 = vstv %s1528
        %v1530 = vmul.f32 %v1529, %v1478
        %v1531 = vmul.f32 %v1529, %v1479
        %v1532 = vadd.f32 %v1454, %v1530
        %v1533 = vadd.f32 %v1455, %v1531
        %1534 = vrot.lane.b32.xlu0 %v1008, 112
        %v1535 = vpop.permute.xlu0 %1534
        %1536 = vrot.lane.b32.xlu0 %v1018, 112
        %v1537 = vpop.permute.xlu0 %1536
        %1538 = vrot.lane.b32.xlu0 %v1028, 112
        %v1539 = vpop.permute.xlu0 %1538
        %1540 = vrot.lane.b32.xlu0 %v1009, 112
        %v1541 = vpop.permute.xlu0 %1540
        %1542 = vrot.lane.b32.xlu0 %v1019, 112
        %v1543 = vpop.permute.xlu0 %1542
        %1544 = vrot.lane.b32.xlu0 %v1029, 112
        %v1545 = vpop.permute.xlu0 %1544
        %v1546 = vsel %vm838, %v1535, %v1541
        %v1547 = vsel %vm838, %v1537, %v1543
        %v1548 = vsel %vm838, %v1539, %v1545
        %v1549 = vsel %vm838, %v1541, %v1535
        %v1550 = vsel %vm838, %v1543, %v1537
        %v1551 = vsel %vm838, %v1545, %v1539
        %v1552 = vmul.f32 %v1546, %v848
        %v1553 = vmul.f32 %v1549, %v852
        %v1554 = vmul.f32 %v1547, %v848
        %v1555 = vmul.f32 %v1550, %v852
        %v1556 = vmul.f32 %v1548, %v848
        %v1557 = vmul.f32 %v1551, %v852
        %s1558 = sld [smem:[#allocation7 + $0x90]]
        %v1559 = vstv %s1558
        %v1560 = vmul.f32 %v1559, %v1552
        %v1561 = vmul.f32 %v1559, %v1553
        %v1562 = vadd.f32 %v1484, %v1560
        %v1563 = vadd.f32 %v1485, %v1561
        %s1564 = sld [smem:[#allocation7 + $0x91]]
        %v1565 = vstv %s1564
        %v1566 = vmul.f32 %v1565, %v1552
        %v1567 = vmul.f32 %v1565, %v1553
        %v1568 = vadd.f32 %v1490, %v1566
        %v1569 = vadd.f32 %v1491, %v1567
        %s1570 = sld [smem:[#allocation7 + $0x92]]
        %v1571 = vstv %s1570
        %v1572 = vmul.f32 %v1571, %v1552
        %v1573 = vmul.f32 %v1571, %v1553
        %v1574 = vadd.f32 %v1496, %v1572
        %v1575 = vadd.f32 %v1497, %v1573
        %s1576 = sld [smem:[#allocation7 + $0x93]]
        %v1577 = vstv %s1576
        %v1578 = vmul.f32 %v1577, %v1554
        %v1579 = vmul.f32 %v1577, %v1555
        %v1580 = vadd.f32 %v1502, %v1578
        %v1581 = vadd.f32 %v1503, %v1579
        %s1582 = sld [smem:[#allocation7 + $0x94]]
        %v1583 = vstv %s1582
        %v1584 = vmul.f32 %v1583, %v1554
        %v1585 = vmul.f32 %v1583, %v1555
        %v1586 = vadd.f32 %v1508, %v1584
        %v1587 = vadd.f32 %v1509, %v1585
        %s1588 = sld [smem:[#allocation7 + $0x95]]
        %v1589 = vstv %s1588
        %v1590 = vmul.f32 %v1589, %v1554
        %v1591 = vmul.f32 %v1589, %v1555
        %v1592 = vadd.f32 %v1514, %v1590
        %v1593 = vadd.f32 %v1515, %v1591
        %s1594 = sld [smem:[#allocation7 + $0x96]]
        %v1595 = vstv %s1594
        %v1596 = vmul.f32 %v1595, %v1556
        %v1597 = vmul.f32 %v1595, %v1557
        %v1598 = vadd.f32 %v1520, %v1596
        %v1599 = vadd.f32 %v1521, %v1597
        %s1600 = sld [smem:[#allocation7 + $0x97]]
        %v1601 = vstv %s1600
        %v1602 = vmul.f32 %v1601, %v1556
        %v1603 = vmul.f32 %v1601, %v1557
        %v1604 = vadd.f32 %v1526, %v1602
        %v1605 = vadd.f32 %v1527, %v1603
        %s1606 = sld [smem:[#allocation7 + $0x98]]
        %v1607 = vstv %s1606
        %v1608 = vmul.f32 %v1607, %v1556
        %v1609 = vmul.f32 %v1607, %v1557
        %v1610 = vadd.f32 %v1532, %v1608
        %v1611 = vadd.f32 %v1533, %v1609
        %1612 = vrot.lane.b32.xlu0 %v1008, 111
        %v1613 = vpop.permute.xlu0 %1612
        %1614 = vrot.lane.b32.xlu0 %v1018, 111
        %v1615 = vpop.permute.xlu0 %1614
        %1616 = vrot.lane.b32.xlu0 %v1028, 111
        %v1617 = vpop.permute.xlu0 %1616
        %1618 = vrot.lane.b32.xlu0 %v1009, 111
        %v1619 = vpop.permute.xlu0 %1618
        %1620 = vrot.lane.b32.xlu0 %v1019, 111
        %v1621 = vpop.permute.xlu0 %1620
        %1622 = vrot.lane.b32.xlu0 %v1029, 111
        %v1623 = vpop.permute.xlu0 %1622
        %v1624 = vsel %vm925, %v1613, %v1619
        %v1625 = vsel %vm925, %v1615, %v1621
        %v1626 = vsel %vm925, %v1617, %v1623
        %v1627 = vsel %vm925, %v1619, %v1613
        %v1628 = vsel %vm925, %v1621, %v1615
        %v1629 = vsel %vm925, %v1623, %v1617
        %v1630 = vmul.f32 %v1624, %v935
        %v1631 = vmul.f32 %v1627, %v939
        %v1632 = vmul.f32 %v1625, %v935
        %v1633 = vmul.f32 %v1628, %v939
        %v1634 = vmul.f32 %v1626, %v935
        %v1635 = vmul.f32 %v1629, %v939
        %s1636 = sld [smem:[#allocation7 + $0x99]]
        %v1637 = vstv %s1636
        %v1638 = vmul.f32 %v1637, %v1630
        %v1639 = vmul.f32 %v1637, %v1631
        %v1640 = vadd.f32 %v1562, %v1638
        %v1641 = vadd.f32 %v1563, %v1639
        %s1642 = sld [smem:[#allocation7 + $0x9a]]
        %v1643 = vstv %s1642
        %v1644 = vmul.f32 %v1643, %v1630
        %v1645 = vmul.f32 %v1643, %v1631
        %v1646 = vadd.f32 %v1568, %v1644
        %v1647 = vadd.f32 %v1569, %v1645
        %s1648 = sld [smem:[#allocation7 + $0x9b]]
        %v1649 = vstv %s1648
        %v1650 = vmul.f32 %v1649, %v1630
        %v1651 = vmul.f32 %v1649, %v1631
        %v1652 = vadd.f32 %v1574, %v1650
        %v1653 = vadd.f32 %v1575, %v1651
        %s1654 = sld [smem:[#allocation7 + $0x9c]]
        %v1655 = vstv %s1654
        %v1656 = vmul.f32 %v1655, %v1632
        %v1657 = vmul.f32 %v1655, %v1633
        %v1658 = vadd.f32 %v1580, %v1656
        %v1659 = vadd.f32 %v1581, %v1657
        %s1660 = sld [smem:[#allocation7 + $0x9d]]
        %v1661 = vstv %s1660
        %v1662 = vmul.f32 %v1661, %v1632
        %v1663 = vmul.f32 %v1661, %v1633
        %v1664 = vadd.f32 %v1586, %v1662
        %v1665 = vadd.f32 %v1587, %v1663
        %s1666 = sld [smem:[#allocation7 + $0x9e]]
        %v1667 = vstv %s1666
        %v1668 = vmul.f32 %v1667, %v1632
        %v1669 = vmul.f32 %v1667, %v1633
        %v1670 = vadd.f32 %v1592, %v1668
        %v1671 = vadd.f32 %v1593, %v1669
        %s1672 = sld [smem:[#allocation7 + $0x9f]]
        %v1673 = vstv %s1672
        %v1674 = vmul.f32 %v1673, %v1634
        %v1675 = vmul.f32 %v1673, %v1635
        %v1676 = vadd.f32 %v1598, %v1674
        %v1677 = vadd.f32 %v1599, %v1675
        %s1678 = sld [smem:[#allocation7 + $0xa0]]
        %v1679 = vstv %s1678
        %v1680 = vmul.f32 %v1679, %v1634
        %v1681 = vmul.f32 %v1679, %v1635
        %v1682 = vadd.f32 %v1604, %v1680
        %v1683 = vadd.f32 %v1605, %v1681
        %s1684 = sld [smem:[#allocation7 + $0xa1]]
        %v1685 = vstv %s1684
        %v1686 = vmul.f32 %v1685, %v1634
        %v1687 = vmul.f32 %v1685, %v1635
        %v1688 = vadd.f32 %v1610, %v1686
        %v1689 = vadd.f32 %v1611, %v1687
        %s1690 = sld [smem:[#allocation8 + $0x3]]
        %v1691 = vadd.f32 %v1640, %v1658
        %v1692 = vadd.f32 %v1641, %v1659
        %v1693 = vstv %s1690
        %v1694 = vadd.f32 %v1676, %v1693
        %v1695 = vadd.f32 %v1677, %v1693
        %v1696 = vadd.f32 %v1691, %v1694
        %v1697 = vadd.f32 %v1692, %v1695
        %v1698 = vmax.f32 %v1696, 0.0
        %v1699 = vmax.f32 %v1697, 0.0
        %s1700 = sld [smem:[#allocation8 + $0x4]]
        %v1701 = vadd.f32 %v1646, %v1664
        %v1702 = vadd.f32 %v1647, %v1665
        %v1703 = vstv %s1700
        %v1704 = vadd.f32 %v1682, %v1703
        %v1705 = vadd.f32 %v1683, %v1703
        %v1706 = vadd.f32 %v1701, %v1704
        %v1707 = vadd.f32 %v1702, %v1705
        %v1708 = vmax.f32 %v1706, 0.0
        %v1709 = vmax.f32 %v1707, 0.0
        %s1710 = sld [smem:[#allocation8 + $0x5]]
        %v1711 = vadd.f32 %v1652, %v1670
        %v1712 = vadd.f32 %v1653, %v1671
        %v1713 = vstv %s1710
        %v1714 = vadd.f32 %v1688, %v1713
        %v1715 = vadd.f32 %v1689, %v1713
        %v1716 = vadd.f32 %v1711, %v1714
        %v1717 = vadd.f32 %v1712, %v1715
        %v1718 = vmax.f32 %v1716, 0.0
        %v1719 = vmax.f32 %v1717, 0.0
        %1720 = vrot.lane.b32.xlu0 %v1698, 17
        %v1721 = vpop.permute.xlu0 %1720
        %1722 = vrot.lane.b32.xlu0 %v1708, 17
        %v1723 = vpop.permute.xlu0 %1722
        %1724 = vrot.lane.b32.xlu0 %v1718, 17
        %v1725 = vpop.permute.xlu0 %1724
        %1726 = vrot.lane.b32.xlu0 %v1699, 17
        %v1727 = vpop.permute.xlu0 %1726
        %1728 = vrot.lane.b32.xlu0 %v1709, 17
        %v1729 = vpop.permute.xlu0 %1728
        %1730 = vrot.lane.b32.xlu0 %v1719, 17
        %v1731 = vpop.permute.xlu0 %1730
        %v1732 = vsel %vm280, %v1721, %v1727
        %v1733 = vsel %vm280, %v1723, %v1729
        %v1734 = vsel %vm280, %v1725, %v1731
        %v1735 = vsel %vm280, %v1727, %v1721
        %v1736 = vsel %vm280, %v1729, %v1723
        %v1737 = vsel %vm280, %v1731, %v1725
        %v1738 = vmul.f32 %v1735, %v290
        %v1739 = vmul.f32 %v1732, %v294
        %v1740 = vmul.f32 %v1736, %v290
        %v1741 = vmul.f32 %v1733, %v294
        %v1742 = vmul.f32 %v1737, %v290
        %v1743 = vmul.f32 %v1734, %v294
        %s1744 = sld [smem:[#allocation7 + $0xa2]]
        %v1745 = vstv %s1744
        %v1746 = vmul.f32 %v1745, %v1738
        %v1747 = vmul.f32 %v1745, %v1739
        %s1748 = sld [smem:[#allocation7 + $0xa3]]
        %v1749 = vstv %s1748
        %v1750 = vmul.f32 %v1749, %v1738
        %v1751 = vmul.f32 %v1749, %v1739
        %s1752 = sld [smem:[#allocation7 + $0xa4]]
        %v1753 = vstv %s1752
        %v1754 = vmul.f32 %v1753, %v1738
        %v1755 = vmul.f32 %v1753, %v1739
        %s1756 = sld [smem:[#allocation7 + $0xa5]]
        %v1757 = vstv %s1756
        %v1758 = vmul.f32 %v1757, %v1740
        %v1759 = vmul.f32 %v1757, %v1741
        %s1760 = sld [smem:[#allocation7 + $0xa6]]
        %v1761 = vstv %s1760
        %v1762 = vmul.f32 %v1761, %v1740
        %v1763 = vmul.f32 %v1761, %v1741
        %s1764 = sld [smem:[#allocation7 + $0xa7]]
        %v1765 = vstv %s1764
        %v1766 = vmul.f32 %v1765, %v1740
        %v1767 = vmul.f32 %v1765, %v1741
        %s1768 = sld [smem:[#allocation7 + $0xa8]]
        %v1769 = vstv %s1768
        %v1770 = vmul.f32 %v1769, %v1742
        %v1771 = vmul.f32 %v1769, %v1743
        %s1772 = sld [smem:[#allocation7 + $0xa9]]
        %v1773 = vstv %s1772
        %v1774 = vmul.f32 %v1773, %v1742
        %v1775 = vmul.f32 %v1773, %v1743
        %s1776 = sld [smem:[#allocation7 + $0xaa]]
        %v1777 = vstv %s1776
        %v1778 = vmul.f32 %v1777, %v1742
        %v1779 = vmul.f32 %v1777, %v1743
        %1780 = vrot.lane.b32.xlu0 %v1698, 16
        %v1781 = vpop.permute.xlu0 %1780
        %1782 = vrot.lane.b32.xlu0 %v1708, 16
        %v1783 = vpop.permute.xlu0 %1782
        %1784 = vrot.lane.b32.xlu0 %v1718, 16
        %v1785 = vpop.permute.xlu0 %1784
        %1786 = vrot.lane.b32.xlu0 %v1699, 16
        %v1787 = vpop.permute.xlu0 %1786
        %1788 = vrot.lane.b32.xlu0 %v1709, 16
        %v1789 = vpop.permute.xlu0 %1788
        %1790 = vrot.lane.b32.xlu0 %v1719, 16
        %v1791 = vpop.permute.xlu0 %1790
        %v1792 = vsel %vm349, %v1781, %v1787
        %v1793 = vsel %vm349, %v1783, %v1789
        %v1794 = vsel %vm349, %v1785, %v1791
        %v1795 = vsel %vm349, %v1787, %v1781
        %v1796 = vsel %vm349, %v1789, %v1783
        %v1797 = vsel %vm349, %v1791, %v1785
        %v1798 = vmul.f32 %v1795, %v359
        %v1799 = vmul.f32 %v1792, %v363
        %v1800 = vmul.f32 %v1796, %v359
        %v1801 = vmul.f32 %v1793, %v363
        %v1802 = vmul.f32 %v1797, %v359
        %v1803 = vmul.f32 %v1794, %v363
        %s1804 = sld [smem:[#allocation7 + $0xab]]
        %v1805 = vstv %s1804
        %v1806 = vmul.f32 %v1805, %v1798
        %v1807 = vmul.f32 %v1805, %v1799
        %v1808 = vadd.f32 %v1746, %v1806
        %v1809 = vadd.f32 %v1747, %v1807
        %s1810 = sld [smem:[#allocation7 + $0xac]]
        %v1811 = vstv %s1810
        %v1812 = vmul.f32 %v1811, %v1798
        %v1813 = vmul.f32 %v1811, %v1799
        %v1814 = vadd.f32 %v1750, %v1812
        %v1815 = vadd.f32 %v1751, %v1813
        %s1816 = sld [smem:[#allocation7 + $0xad]]
        %v1817 = vstv %s1816
        %v1818 = vmul.f32 %v1817, %v1798
        %v1819 = vmul.f32 %v1817, %v1799
        %v1820 = vadd.f32 %v1754, %v1818
        %v1821 = vadd.f32 %v1755, %v1819
        %s1822 = sld [smem:[#allocation7 + $0xae]]
        %v1823 = vstv %s1822
        %v1824 = vmul.f32 %v1823, %v1800
        %v1825 = vmul.f32 %v1823, %v1801
        %v1826 = vadd.f32 %v1758, %v1824
        %v1827 = vadd.f32 %v1759, %v1825
        %s1828 = sld [smem:[#allocation7 + $0xaf]]
        %v1829 = vstv %s1828
        %v1830 = vmul.f32 %v1829, %v1800
        %v1831 = vmul.f32 %v1829, %v1801
        %v1832 = vadd.f32 %v1762, %v1830
        %v1833 = vadd.f32 %v1763, %v1831
        %s1834 = sld [smem:[#allocation7 + $0xb0]]
        %v1835 = vstv %s1834
        %v1836 = vmul.f32 %v1835, %v1800
        %v1837 = vmul.f32 %v1835, %v1801
        %v1838 = vadd.f32 %v1766, %v1836
        %v1839 = vadd.f32 %v1767, %v1837
        %s1840 = sld [smem:[#allocation7 + $0xb1]]
        %v1841 = vstv %s1840
        %v1842 = vmul.f32 %v1841, %v1802
        %v1843 = vmul.f32 %v1841, %v1803
        %v1844 = vadd.f32 %v1770, %v1842
        %v1845 = vadd.f32 %v1771, %v1843
        %s1846 = sld [smem:[#allocation7 + $0xb2]]
        %v1847 = vstv %s1846
        %v1848 = vmul.f32 %v1847, %v1802
        %v1849 = vmul.f32 %v1847, %v1803
        %v1850 = vadd.f32 %v1774, %v1848
        %v1851 = vadd.f32 %v1775, %v1849
        %s1852 = sld [smem:[#allocation7 + $0xb3]]
        %v1853 = vstv %s1852
        %v1854 = vmul.f32 %v1853, %v1802
        %v1855 = vmul.f32 %v1853, %v1803
        %v1856 = vadd.f32 %v1778, %v1854
        %v1857 = vadd.f32 %v1779, %v1855
        %1858 = vrot.lane.b32.xlu0 %v1698, 15
        %v1859 = vpop.permute.xlu0 %1858
        %1860 = vrot.lane.b32.xlu0 %v1708, 15
        %v1861 = vpop.permute.xlu0 %1860
        %1862 = vrot.lane.b32.xlu0 %v1718, 15
        %v1863 = vpop.permute.xlu0 %1862
        %1864 = vrot.lane.b32.xlu0 %v1699, 15
        %v1865 = vpop.permute.xlu0 %1864
        %1866 = vrot.lane.b32.xlu0 %v1709, 15
        %v1867 = vpop.permute.xlu0 %1866
        %1868 = vrot.lane.b32.xlu0 %v1719, 15
        %v1869 = vpop.permute.xlu0 %1868
        %v1870 = vsel %vm436, %v1859, %v1865
        %v1871 = vsel %vm436, %v1861, %v1867
        %v1872 = vsel %vm436, %v1863, %v1869
        %v1873 = vsel %vm436, %v1865, %v1859
        %v1874 = vsel %vm436, %v1867, %v1861
        %v1875 = vsel %vm436, %v1869, %v1863
        %v1876 = vmul.f32 %v1873, %v446
        %v1877 = vmul.f32 %v1870, %v450
        %v1878 = vmul.f32 %v1874, %v446
        %v1879 = vmul.f32 %v1871, %v450
        %v1880 = vmul.f32 %v1875, %v446
        %v1881 = vmul.f32 %v1872, %v450
        %s1882 = sld [smem:[#allocation7 + $0xb4]]
        %v1883 = vstv %s1882
        %v1884 = vmul.f32 %v1883, %v1876
        %v1885 = vmul.f32 %v1883, %v1877
        %v1886 = vadd.f32 %v1808, %v1884
        %v1887 = vadd.f32 %v1809, %v1885
        %s1888 = sld [smem:[#allocation7 + $0xb5]]
        %v1889 = vstv %s1888
        %v1890 = vmul.f32 %v1889, %v1876
        %v1891 = vmul.f32 %v1889, %v1877
        %v1892 = vadd.f32 %v1814, %v1890
        %v1893 = vadd.f32 %v1815, %v1891
        %s1894 = sld [smem:[#allocation7 + $0xb6]]
        %v1895 = vstv %s1894
        %v1896 = vmul.f32 %v1895, %v1876
        %v1897 = vmul.f32 %v1895, %v1877
        %v1898 = vadd.f32 %v1820, %v1896
        %v1899 = vadd.f32 %v1821, %v1897
        %s1900 = sld [smem:[#allocation7 + $0xb7]]
        %v1901 = vstv %s1900
        %v1902 = vmul.f32 %v1901, %v1878
        %v1903 = vmul.f32 %v1901, %v1879
        %v1904 = vadd.f32 %v1826, %v1902
        %v1905 = vadd.f32 %v1827, %v1903
        %s1906 = sld [smem:[#allocation7 + $0xb8]]
        %v1907 = vstv %s1906
        %v1908 = vmul.f32 %v1907, %v1878
        %v1909 = vmul.f32 %v1907, %v1879
        %v1910 = vadd.f32 %v1832, %v1908
        %v1911 = vadd.f32 %v1833, %v1909
        %s1912 = sld [smem:[#allocation7 + $0xb9]]
        %v1913 = vstv %s1912
        %v1914 = vmul.f32 %v1913, %v1878
        %v1915 = vmul.f32 %v1913, %v1879
        %v1916 = vadd.f32 %v1838, %v1914
        %v1917 = vadd.f32 %v1839, %v1915
        %s1918 = sld [smem:[#allocation7 + $0xba]]
        %v1919 = vstv %s1918
        %v1920 = vmul.f32 %v1919, %v1880
        %v1921 = vmul.f32 %v1919, %v1881
        %v1922 = vadd.f32 %v1844, %v1920
        %v1923 = vadd.f32 %v1845, %v1921
        %s1924 = sld [smem:[#allocation7 + $0xbb]]
        %v1925 = vstv %s1924
        %v1926 = vmul.f32 %v1925, %v1880
        %v1927 = vmul.f32 %v1925, %v1881
        %v1928 = vadd.f32 %v1850, %v1926
        %v1929 = vadd.f32 %v1851, %v1927
        %s1930 = sld [smem:[#allocation7 + $0xbc]]
        %v1931 = vstv %s1930
        %v1932 = vmul.f32 %v1931, %v1880
        %v1933 = vmul.f32 %v1931, %v1881
        %v1934 = vadd.f32 %v1856, %v1932
        %v1935 = vadd.f32 %v1857, %v1933
        %1936 = vrot.lane.b32.xlu0 %v1698, 1
        %v1937 = vpop.permute.xlu0 %1936
        %1938 = vrot.lane.b32.xlu0 %v1708, 1
        %v1939 = vpop.permute.xlu0 %1938
        %1940 = vrot.lane.b32.xlu0 %v1718, 1
        %v1941 = vpop.permute.xlu0 %1940
        %1942 = vrot.lane.b32.xlu0 %v1699, 1
        %v1943 = vpop.permute.xlu0 %1942
        %1944 = vrot.lane.b32.xlu0 %v1709, 1
        %v1945 = vpop.permute.xlu0 %1944
        %1946 = vrot.lane.b32.xlu0 %v1719, 1
        %v1947 = vpop.permute.xlu0 %1946
        %v1948 = vsel %vm523, %v1937, %v1943
        %v1949 = vsel %vm523, %v1939, %v1945
        %v1950 = vsel %vm523, %v1941, %v1947
        %v1951 = vsel %vm523, %v1943, %v1937
        %v1952 = vsel %vm523, %v1945, %v1939
        %v1953 = vsel %vm523, %v1947, %v1941
        %v1954 = vmul.f32 %v1951, %v533
        %v1955 = vmul.f32 %v1948, %v537
        %v1956 = vmul.f32 %v1952, %v533
        %v1957 = vmul.f32 %v1949, %v537
        %v1958 = vmul.f32 %v1953, %v533
        %v1959 = vmul.f32 %v1950, %v537
        %s1960 = sld [smem:[#allocation7 + $0xbd]]
        %v1961 = vstv %s1960
        %v1962 = vmul.f32 %v1961, %v1954
        %v1963 = vmul.f32 %v1961, %v1955
        %v1964 = vadd.f32 %v1886, %v1962
        %v1965 = vadd.f32 %v1887, %v1963
        %s1966 = sld [smem:[#allocation7 + $0xbe]]
        %v1967 = vstv %s1966
        %v1968 = vmul.f32 %v1967, %v1954
        %v1969 = vmul.f32 %v1967, %v1955
        %v1970 = vadd.f32 %v1892, %v1968
        %v1971 = vadd.f32 %v1893, %v1969
        %s1972 = sld [smem:[#allocation7 + $0xbf]]
        %v1973 = vstv %s1972
        %v1974 = vmul.f32 %v1973, %v1954
        %v1975 = vmul.f32 %v1973, %v1955
        %v1976 = vadd.f32 %v1898, %v1974
        %v1977 = vadd.f32 %v1899, %v1975
        %s1978 = sld [smem:[#allocation7 + $0xc0]]
        %v1979 = vstv %s1978
        %v1980 = vmul.f32 %v1979, %v1956
        %v1981 = vmul.f32 %v1979, %v1957
        %v1982 = vadd.f32 %v1904, %v1980
        %v1983 = vadd.f32 %v1905, %v1981
        %s1984 = sld [smem:[#allocation7 + $0xc1]]
        %v1985 = vstv %s1984
        %v1986 = vmul.f32 %v1985, %v1956
        %v1987 = vmul.f32 %v1985, %v1957
        %v1988 = vadd.f32 %v1910, %v1986
        %v1989 = vadd.f32 %v1911, %v1987
        %s1990 = sld [smem:[#allocation7 + $0xc2]]
        %v1991 = vstv %s1990
        %v1992 = vmul.f32 %v1991, %v1956
        %v1993 = vmul.f32 %v1991, %v1957
        %v1994 = vadd.f32 %v1916, %v1992
        %v1995 = vadd.f32 %v1917, %v1993
        %s1996 = sld [smem:[#allocation7 + $0xc3]]
        %v1997 = vstv %s1996
        %v1998 = vmul.f32 %v1997, %v1958
        %v1999 = vmul.f32 %v1997, %v1959
        %v2000 = vadd.f32 %v1922, %v1998
        %v2001 = vadd.f32 %v1923, %v1999
        %s2002 = sld [smem:[#allocation7 + $0xc4]]
        %v2003 = vstv %s2002
        %v2004 = vmul.f32 %v2003, %v1958
        %v2005 = vmul.f32 %v2003, %v1959
        %v2006 = vadd.f32 %v1928, %v2004
        %v2007 = vadd.f32 %v1929, %v2005
        %s2008 = sld [smem:[#allocation7 + $0xc5]]
        %v2009 = vstv %s2008
        %v2010 = vmul.f32 %v2009, %v1958
        %v2011 = vmul.f32 %v2009, %v1959
        %v2012 = vadd.f32 %v1934, %v2010
        %v2013 = vadd.f32 %v1935, %v2011
        %s2014 = sld [smem:[#allocation7 + $0xc6]]
        %v2015 = vstv %s2014
        %v2016 = vmul.f32 %v2015, %v1698
        %v2017 = vmul.f32 %v2015, %v1699
        %v2018 = vadd.f32 %v1964, %v2016
        %v2019 = vadd.f32 %v1965, %v2017
        %s2020 = sld [smem:[#allocation7 + $0xc7]]
        %v2021 = vstv %s2020
        %v2022 = vmul.f32 %v2021, %v1698
        %v2023 = vmul.f32 %v2021, %v1699
        %v2024 = vadd.f32 %v1970, %v2022
        %v2025 = vadd.f32 %v1971, %v2023
        %s2026 = sld [smem:[#allocation7 + $0xc8]]
        %v2027 = vstv %s2026
        %v2028 = vmul.f32 %v2027, %v1698
        %v2029 = vmul.f32 %v2027, %v1699
        %v2030 = vadd.f32 %v1976, %v2028
        %v2031 = vadd.f32 %v1977, %v2029
        %s2032 = sld [smem:[#allocation7 + $0xc9]]
        %v2033 = vstv %s2032
        %v2034 = vmul.f32 %v2033, %v1708
        %v2035 = vmul.f32 %v2033, %v1709
        %v2036 = vadd.f32 %v1982, %v2034
        %v2037 = vadd.f32 %v1983, %v2035
        %s2038 = sld [smem:[#allocation7 + $0xca]]
        %v2039 = vstv %s2038
        %v2040 = vmul.f32 %v2039, %v1708
        %v2041 = vmul.f32 %v2039, %v1709
        %v2042 = vadd.f32 %v1988, %v2040
        %v2043 = vadd.f32 %v1989, %v2041
        %s2044 = sld [smem:[#allocation7 + $0xcb]]
        %v2045 = vstv %s2044
        %v2046 = vmul.f32 %v2045, %v1708
        %v2047 = vmul.f32 %v2045, %v1709
        %v2048 = vadd.f32 %v1994, %v2046
        %v2049 = vadd.f32 %v1995, %v2047
        %s2050 = sld [smem:[#allocation7 + $0xcc]]
        %v2051 = vstv %s2050
        %v2052 = vmul.f32 %v2051, %v1718
        %v2053 = vmul.f32 %v2051, %v1719
        %v2054 = vadd.f32 %v2000, %v2052
        %v2055 = vadd.f32 %v2001, %v2053
        %s2056 = sld [smem:[#allocation7 + $0xcd]]
        %v2057 = vstv %s2056
        %v2058 = vmul.f32 %v2057, %v1718
        %v2059 = vmul.f32 %v2057, %v1719
        %v2060 = vadd.f32 %v2006, %v2058
        %v2061 = vadd.f32 %v2007, %v2059
        %s2062 = sld [smem:[#allocation7 + $0xce]]
        %v2063 = vstv %s2062
        %v2064 = vmul.f32 %v2063, %v1718
        %v2065 = vmul.f32 %v2063, %v1719
        %v2066 = vadd.f32 %v2012, %v2064
        %v2067 = vadd.f32 %v2013, %v2065
        %2068 = vrot.lane.b32.xlu0 %v1698, 127
        %v2069 = vpop.permute.xlu0 %2068
        %2070 = vrot.lane.b32.xlu0 %v1708, 127
        %v2071 = vpop.permute.xlu0 %2070
        %2072 = vrot.lane.b32.xlu0 %v1718, 127
        %v2073 = vpop.permute.xlu0 %2072
        %2074 = vrot.lane.b32.xlu0 %v1699, 127
        %v2075 = vpop.permute.xlu0 %2074
        %2076 = vrot.lane.b32.xlu0 %v1709, 127
        %v2077 = vpop.permute.xlu0 %2076
        %2078 = vrot.lane.b32.xlu0 %v1719, 127
        %v2079 = vpop.permute.xlu0 %2078
        %v2080 = vsel %vm664, %v2069, %v2075
        %v2081 = vsel %vm664, %v2071, %v2077
        %v2082 = vsel %vm664, %v2073, %v2079
        %v2083 = vsel %vm664, %v2075, %v2069
        %v2084 = vsel %vm664, %v2077, %v2071
        %v2085 = vsel %vm664, %v2079, %v2073
        %v2086 = vmul.f32 %v2080, %v674
        %v2087 = vmul.f32 %v2083, %v678
        %v2088 = vmul.f32 %v2081, %v674
        %v2089 = vmul.f32 %v2084, %v678
        %v2090 = vmul.f32 %v2082, %v674
        %v2091 = vmul.f32 %v2085, %v678
        %s2092 = sld [smem:[#allocation7 + $0xcf]]
        %v2093 = vstv %s2092
        %v2094 = vmul.f32 %v2093, %v2086
        %v2095 = vmul.f32 %v2093, %v2087
        %v2096 = vadd.f32 %v2018, %v2094
        %v2097 = vadd.f32 %v2019, %v2095
        %s2098 = sld [smem:[#allocation7 + $0xd0]]
        %v2099 = vstv %s2098
        %v2100 = vmul.f32 %v2099, %v2086
        %v2101 = vmul.f32 %v2099, %v2087
        %v2102 = vadd.f32 %v2024, %v2100
        %v2103 = vadd.f32 %v2025, %v2101
        %s2104 = sld [smem:[#allocation7 + $0xd1]]
        %v2105 = vstv %s2104
        %v2106 = vmul.f32 %v2105, %v2086
        %v2107 = vmul.f32 %v2105, %v2087
        %v2108 = vadd.f32 %v2030, %v2106
        %v2109 = vadd.f32 %v2031, %v2107
        %s2110 = sld [smem:[#allocation7 + $0xd2]]
        %v2111 = vstv %s2110
        %v2112 = vmul.f32 %v2111, %v2088
        %v2113 = vmul.f32 %v2111, %v2089
        %v2114 = vadd.f32 %v2036, %v2112
        %v2115 = vadd.f32 %v2037, %v2113
        %s2116 = sld [smem:[#allocation7 + $0xd3]]
        %v2117 = vstv %s2116
        %v2118 = vmul.f32 %v2117, %v2088
        %v2119 = vmul.f32 %v2117, %v2089
        %v2120 = vadd.f32 %v2042, %v2118
        %v2121 = vadd.f32 %v2043, %v2119
        %s2122 = sld [smem:[#allocation7 + $0xd4]]
        %v2123 = vstv %s2122
        %v2124 = vmul.f32 %v2123, %v2088
        %v2125 = vmul.f32 %v2123, %v2089
        %v2126 = vadd.f32 %v2048, %v2124
        %v2127 = vadd.f32 %v2049, %v2125
        %s2128 = sld [smem:[#allocation7 + $0xd5]]
        %v2129 = vstv %s2128
        %v2130 = vmul.f32 %v2129, %v2090
        %v2131 = vmul.f32 %v2129, %v2091
        %v2132 = vadd.f32 %v2054, %v2130
        %v2133 = vadd.f32 %v2055, %v2131
        %s2134 = sld [smem:[#allocation7 + $0xd6]]
        %v2135 = vstv %s2134
        %v2136 = vmul.f32 %v2135, %v2090
        %v2137 = vmul.f32 %v2135, %v2091
        %v2138 = vadd.f32 %v2060, %v2136
        %v2139 = vadd.f32 %v2061, %v2137
        %s2140 = sld [smem:[#allocation7 + $0xd7]]
        %v2141 = vstv %s2140
        %v2142 = vmul.f32 %v2141, %v2090
        %v2143 = vmul.f32 %v2141, %v2091
        %v2144 = vadd.f32 %v2066, %v2142
        %v2145 = vadd.f32 %v2067, %v2143
        %2146 = vrot.lane.b32.xlu0 %v1698, 113
        %v2147 = vpop.permute.xlu0 %2146
        %2148 = vrot.lane.b32.xlu0 %v1708, 113
        %v2149 = vpop.permute.xlu0 %2148
        %2150 = vrot.lane.b32.xlu0 %v1718, 113
        %v2151 = vpop.permute.xlu0 %2150
        %2152 = vrot.lane.b32.xlu0 %v1699, 113
        %v2153 = vpop.permute.xlu0 %2152
        %2154 = vrot.lane.b32.xlu0 %v1709, 113
        %v2155 = vpop.permute.xlu0 %2154
        %2156 = vrot.lane.b32.xlu0 %v1719, 113
        %v2157 = vpop.permute.xlu0 %2156
        %v2158 = vsel %vm751, %v2147, %v2153
        %v2159 = vsel %vm751, %v2149, %v2155
        %v2160 = vsel %vm751, %v2151, %v2157
        %v2161 = vsel %vm751, %v2153, %v2147
        %v2162 = vsel %vm751, %v2155, %v2149
        %v2163 = vsel %vm751, %v2157, %v2151
        %v2164 = vmul.f32 %v2158, %v761
        %v2165 = vmul.f32 %v2161, %v765
        %v2166 = vmul.f32 %v2159, %v761
        %v2167 = vmul.f32 %v2162, %v765
        %v2168 = vmul.f32 %v2160, %v761
        %v2169 = vmul.f32 %v2163, %v765
        %s2170 = sld [smem:[#allocation7 + $0xd8]]
        %v2171 = vstv %s2170
        %v2172 = vmul.f32 %v2171, %v2164
        %v2173 = vmul.f32 %v2171, %v2165
        %v2174 = vadd.f32 %v2096, %v2172
        %v2175 = vadd.f32 %v2097, %v2173
        %s2176 = sld [smem:[#allocation7 + $0xd9]]
        %v2177 = vstv %s2176
        %v2178 = vmul.f32 %v2177, %v2164
        %v2179 = vmul.f32 %v2177, %v2165
        %v2180 = vadd.f32 %v2102, %v2178
        %v2181 = vadd.f32 %v2103, %v2179
        %s2182 = sld [smem:[#allocation7 + $0xda]]
        %v2183 = vstv %s2182
        %v2184 = vmul.f32 %v2183, %v2164
        %v2185 = vmul.f32 %v2183, %v2165
        %v2186 = vadd.f32 %v2108, %v2184
        %v2187 = vadd.f32 %v2109, %v2185
        %s2188 = sld [smem:[#allocation7 + $0xdb]]
        %v2189 = vstv %s2188
        %v2190 = vmul.f32 %v2189, %v2166
        %v2191 = vmul.f32 %v2189, %v2167
        %v2192 = vadd.f32 %v2114, %v2190
        %v2193 = vadd.f32 %v2115, %v2191
        %s2194 = sld [smem:[#allocation7 + $0xdc]]
        %v2195 = vstv %s2194
        %v2196 = vmul.f32 %v2195, %v2166
        %v2197 = vmul.f32 %v2195, %v2167
        %v2198 = vadd.f32 %v2120, %v2196
        %v2199 = vadd.f32 %v2121, %v2197
        %s2200 = sld [smem:[#allocation7 + $0xdd]]
        %v2201 = vstv %s2200
        %v2202 = vmul.f32 %v2201, %v2166
        %v2203 = vmul.f32 %v2201, %v2167
        %v2204 = vadd.f32 %v2126, %v2202
        %v2205 = vadd.f32 %v2127, %v2203
        %s2206 = sld [smem:[#allocation7 + $0xde]]
        %v2207 = vstv %s2206
        %v2208 = vmul.f32 %v2207, %v2168
        %v2209 = vmul.f32 %v2207, %v2169
        %v2210 = vadd.f32 %v2132, %v2208
        %v2211 = vadd.f32 %v2133, %v2209
        %s2212 = sld [smem:[#allocation7 + $0xdf]]
        %v2213 = vstv %s2212
        %v2214 = vmul.f32 %v2213, %v2168
        %v2215 = vmul.f32 %v2213, %v2169
        %v2216 = vadd.f32 %v2138, %v2214
        %v2217 = vadd.f32 %v2139, %v2215
        %s2218 = sld [smem:[#allocation7 + $0xe0]]
        %v2219 = vstv %s2218
        %v2220 = vmul.f32 %v2219, %v2168
        %v2221 = vmul.f32 %v2219, %v2169
        %v2222 = vadd.f32 %v2144, %v2220
        %v2223 = vadd.f32 %v2145, %v2221
        %2224 = vrot.lane.b32.xlu0 %v1698, 112
        %v2225 = vpop.permute.xlu0 %2224
        %2226 = vrot.lane.b32.xlu0 %v1708, 112
        %v2227 = vpop.permute.xlu0 %2226
        %2228 = vrot.lane.b32.xlu0 %v1718, 112
        %v2229 = vpop.permute.xlu0 %2228
        %2230 = vrot.lane.b32.xlu0 %v1699, 112
        %v2231 = vpop.permute.xlu0 %2230
        %2232 = vrot.lane.b32.xlu0 %v1709, 112
        %v2233 = vpop.permute.xlu0 %2232
        %2234 = vrot.lane.b32.xlu0 %v1719, 112
        %v2235 = vpop.permute.xlu0 %2234
        %v2236 = vsel %vm838, %v2225, %v2231
        %v2237 = vsel %vm838, %v2227, %v2233
        %v2238 = vsel %vm838, %v2229, %v2235
        %v2239 = vsel %vm838, %v2231, %v2225
        %v2240 = vsel %vm838, %v2233, %v2227
        %v2241 = vsel %vm838, %v2235, %v2229
        %v2242 = vmul.f32 %v2236, %v848
        %v2243 = vmul.f32 %v2239, %v852
        %v2244 = vmul.f32 %v2237, %v848
        %v2245 = vmul.f32 %v2240, %v852
        %v2246 = vmul.f32 %v2238, %v848
        %v2247 = vmul.f32 %v2241, %v852
        %s2248 = sld [smem:[#allocation7 + $0xe1]]
        %v2249 = vstv %s2248
        %v2250 = vmul.f32 %v2249, %v2242
        %v2251 = vmul.f32 %v2249, %v2243
        %v2252 = vadd.f32 %v2174, %v2250
        %v2253 = vadd.f32 %v2175, %v2251
        %s2254 = sld [smem:[#allocation7 + $0xe2]]
        %v2255 = vstv %s2254
        %v2256 = vmul.f32 %v2255, %v2242
        %v2257 = vmul.f32 %v2255, %v2243
        %v2258 = vadd.f32 %v2180, %v2256
        %v2259 = vadd.f32 %v2181, %v2257
        %s2260 = sld [smem:[#allocation7 + $0xe3]]
        %v2261 = vstv %s2260
        %v2262 = vmul.f32 %v2261, %v2242
        %v2263 = vmul.f32 %v2261, %v2243
        %v2264 = vadd.f32 %v2186, %v2262
        %v2265 = vadd.f32 %v2187, %v2263
        %s2266 = sld [smem:[#allocation7 + $0xe4]]
        %v2267 = vstv %s2266
        %v2268 = vmul.f32 %v2267, %v2244
        %v2269 = vmul.f32 %v2267, %v2245
        %v2270 = vadd.f32 %v2192, %v2268
        %v2271 = vadd.f32 %v2193, %v2269
        %s2272 = sld [smem:[#allocation7 + $0xe5]]
        %v2273 = vstv %s2272
        %v2274 = vmul.f32 %v2273, %v2244
        %v2275 = vmul.f32 %v2273, %v2245
        %v2276 = vadd.f32 %v2198, %v2274
        %v2277 = vadd.f32 %v2199, %v2275
        %s2278 = sld [smem:[#allocation7 + $0xe6]]
        %v2279 = vstv %s2278
        %v2280 = vmul.f32 %v2279, %v2244
        %v2281 = vmul.f32 %v2279, %v2245
        %v2282 = vadd.f32 %v2204, %v2280
        %v2283 = vadd.f32 %v2205, %v2281
        %s2284 = sld [smem:[#allocation7 + $0xe7]]
        %v2285 = vstv %s2284
        %v2286 = vmul.f32 %v2285, %v2246
        %v2287 = vmul.f32 %v2285, %v2247
        %v2288 = vadd.f32 %v2210, %v2286
        %v2289 = vadd.f32 %v2211, %v2287
        %s2290 = sld [smem:[#allocation7 + $0xe8]]
        %v2291 = vstv %s2290
        %v2292 = vmul.f32 %v2291, %v2246
        %v2293 = vmul.f32 %v2291, %v2247
        %v2294 = vadd.f32 %v2216, %v2292
        %v2295 = vadd.f32 %v2217, %v2293
        %s2296 = sld [smem:[#allocation7 + $0xe9]]
        %v2297 = vstv %s2296
        %v2298 = vmul.f32 %v2297, %v2246
        %v2299 = vmul.f32 %v2297, %v2247
        %v2300 = vadd.f32 %v2222, %v2298
        %v2301 = vadd.f32 %v2223, %v2299
        %2302 = vrot.lane.b32.xlu0 %v1698, 111
        %v2303 = vpop.permute.xlu0 %2302
        %2304 = vrot.lane.b32.xlu0 %v1708, 111
        %v2305 = vpop.permute.xlu0 %2304
        %2306 = vrot.lane.b32.xlu0 %v1718, 111
        %v2307 = vpop.permute.xlu0 %2306
        %2308 = vrot.lane.b32.xlu0 %v1699, 111
        %v2309 = vpop.permute.xlu0 %2308
        %2310 = vrot.lane.b32.xlu0 %v1709, 111
        %v2311 = vpop.permute.xlu0 %2310
        %2312 = vrot.lane.b32.xlu0 %v1719, 111
        %v2313 = vpop.permute.xlu0 %2312
        %v2314 = vsel %vm925, %v2303, %v2309
        %v2315 = vsel %vm925, %v2305, %v2311
        %v2316 = vsel %vm925, %v2307, %v2313
        %v2317 = vsel %vm925, %v2309, %v2303
        %v2318 = vsel %vm925, %v2311, %v2305
        %v2319 = vsel %vm925, %v2313, %v2307
        %v2320 = vmul.f32 %v2314, %v935
        %v2321 = vmul.f32 %v2317, %v939
        %v2322 = vmul.f32 %v2315, %v935
        %v2323 = vmul.f32 %v2318, %v939
        %v2324 = vmul.f32 %v2316, %v935
        %v2325 = vmul.f32 %v2319, %v939
        %s2326 = sld [smem:[#allocation7 + $0xea]]
        %v2327 = vstv %s2326
        %v2328 = vmul.f32 %v2327, %v2320
        %v2329 = vmul.f32 %v2327, %v2321
        %v2330 = vadd.f32 %v2252, %v2328
        %v2331 = vadd.f32 %v2253, %v2329
        %s2332 = sld [smem:[#allocation7 + $0xeb]]
        %v2333 = vstv %s2332
        %v2334 = vmul.f32 %v2333, %v2320
        %v2335 = vmul.f32 %v2333, %v2321
        %v2336 = vadd.f32 %v2258, %v2334
        %v2337 = vadd.f32 %v2259, %v2335
        %s2338 = sld [smem:[#allocation7 + $0xec]]
        %v2339 = vstv %s2338
        %v2340 = vmul.f32 %v2339, %v2320
        %v2341 = vmul.f32 %v2339, %v2321
        %v2342 = vadd.f32 %v2264, %v2340
        %v2343 = vadd.f32 %v2265, %v2341
        %s2344 = sld [smem:[#allocation7 + $0xed]]
        %v2345 = vstv %s2344
        %v2346 = vmul.f32 %v2345, %v2322
        %v2347 = vmul.f32 %v2345, %v2323
        %v2348 = vadd.f32 %v2270, %v2346
        %v2349 = vadd.f32 %v2271, %v2347
        %s2350 = sld [smem:[#allocation7 + $0xee]]
        %v2351 = vstv %s2350
        %v2352 = vmul.f32 %v2351, %v2322
        %v2353 = vmul.f32 %v2351, %v2323
        %v2354 = vadd.f32 %v2276, %v2352
        %v2355 = vadd.f32 %v2277, %v2353
        %s2356 = sld [smem:[#allocation7 + $0xef]]
        %v2357 = vstv %s2356
        %v2358 = vmul.f32 %v2357, %v2322
        %v2359 = vmul.f32 %v2357, %v2323
        %v2360 = vadd.f32 %v2282, %v2358
        %v2361 = vadd.f32 %v2283, %v2359
        %s2362 = sld [smem:[#allocation7 + $0xf0]]
        %v2363 = vstv %s2362
        %v2364 = vmul.f32 %v2363, %v2324
        %v2365 = vmul.f32 %v2363, %v2325
        %v2366 = vadd.f32 %v2288, %v2364
        %v2367 = vadd.f32 %v2289, %v2365
        %s2368 = sld [smem:[#allocation7 + $0xf1]]
        %v2369 = vstv %s2368
        %v2370 = vmul.f32 %v2369, %v2324
        %v2371 = vmul.f32 %v2369, %v2325
        %v2372 = vadd.f32 %v2294, %v2370
        %v2373 = vadd.f32 %v2295, %v2371
        %s2374 = sld [smem:[#allocation7 + $0xf2]]
        %v2375 = vstv %s2374
        %v2376 = vmul.f32 %v2375, %v2324
        %v2377 = vmul.f32 %v2375, %v2325
        %v2378 = vadd.f32 %v2300, %v2376
        %v2379 = vadd.f32 %v2301, %v2377
        %s2380 = sld [smem:[#allocation8 + $0x6]]
        %v2381 = vadd.f32 %v2330, %v2348
        %v2382 = vadd.f32 %v2331, %v2349
        %v2383 = vstv %s2380
        %v2384 = vadd.f32 %v2366, %v2383
        %v2385 = vadd.f32 %v2367, %v2383
        %v2386 = vadd.f32 %v2381, %v2384
        %v2387 = vadd.f32 %v2382, %v2385
        %v2388 = vmax.f32 %v2386, 0.0
        %v2389 = vmax.f32 %v2387, 0.0
        %s2390 = sld [smem:[#allocation8 + $0x7]]
        %v2391 = vadd.f32 %v2336, %v2354
        %v2392 = vadd.f32 %v2337, %v2355
        %v2393 = vstv %s2390
        %v2394 = vadd.f32 %v2372, %v2393
        %v2395 = vadd.f32 %v2373, %v2393
        %v2396 = vadd.f32 %v2391, %v2394
        %v2397 = vadd.f32 %v2392, %v2395
        %v2398 = vmax.f32 %v2396, 0.0
        %v2399 = vmax.f32 %v2397, 0.0
        %s2400 = sld [smem:[#allocation8 + $0x8]]
        %v2401 = vadd.f32 %v2342, %v2360
        %v2402 = vadd.f32 %v2343, %v2361
        %v2403 = vstv %s2400
        %v2404 = vadd.f32 %v2378, %v2403
        %v2405 = vadd.f32 %v2379, %v2403
        %v2406 = vadd.f32 %v2401, %v2404
        %v2407 = vadd.f32 %v2402, %v2405
        %v2408 = vmax.f32 %v2406, 0.0
        %v2409 = vmax.f32 %v2407, 0.0
        %2410 = vrot.lane.b32.xlu0 %v2388, 17
        %v2411 = vpop.permute.xlu0 %2410
        %2412 = vrot.lane.b32.xlu0 %v2398, 17
        %v2413 = vpop.permute.xlu0 %2412
        %2414 = vrot.lane.b32.xlu0 %v2408, 17
        %v2415 = vpop.permute.xlu0 %2414
        %2416 = vrot.lane.b32.xlu0 %v2389, 17
        %v2417 = vpop.permute.xlu0 %2416
        %2418 = vrot.lane.b32.xlu0 %v2399, 17
        %v2419 = vpop.permute.xlu0 %2418
        %2420 = vrot.lane.b32.xlu0 %v2409, 17
        %v2421 = vpop.permute.xlu0 %2420
        %v2422 = vsel %vm280, %v2411, %v2417
        %v2423 = vsel %vm280, %v2413, %v2419
        %v2424 = vsel %vm280, %v2415, %v2421
        %v2425 = vsel %vm280, %v2417, %v2411
        %v2426 = vsel %vm280, %v2419, %v2413
        %v2427 = vsel %vm280, %v2421, %v2415
        %v2428 = vmul.f32 %v2425, %v290
        %v2429 = vmul.f32 %v2422, %v294
        %v2430 = vmul.f32 %v2426, %v290
        %v2431 = vmul.f32 %v2423, %v294
        %v2432 = vmul.f32 %v2427, %v290
        %v2433 = vmul.f32 %v2424, %v294
        %s2434 = sld [smem:[#allocation7 + $0xf3]]
        %v2435 = vstv %s2434
        %v2436 = vmul.f32 %v2435, %v2428
        %v2437 = vmul.f32 %v2435, %v2429
        %s2438 = sld [smem:[#allocation7 + $0xf4]]
        %v2439 = vstv %s2438
        %v2440 = vmul.f32 %v2439, %v2428
        %v2441 = vmul.f32 %v2439, %v2429
        %s2442 = sld [smem:[#allocation7 + $0xf5]]
        %v2443 = vstv %s2442
        %v2444 = vmul.f32 %v2443, %v2428
        %v2445 = vmul.f32 %v2443, %v2429
        %s2446 = sld [smem:[#allocation7 + $0xf6]]
        %v2447 = vstv %s2446
        %v2448 = vmul.f32 %v2447, %v2430
        %v2449 = vmul.f32 %v2447, %v2431
        %s2450 = sld [smem:[#allocation7 + $0xf7]]
        %v2451 = vstv %s2450
        %v2452 = vmul.f32 %v2451, %v2430
        %v2453 = vmul.f32 %v2451, %v2431
        %s2454 = sld [smem:[#allocation7 + $0xf8]]
        %v2455 = vstv %s2454
        %v2456 = vmul.f32 %v2455, %v2430
        %v2457 = vmul.f32 %v2455, %v2431
        %s2458 = sld [smem:[#allocation7 + $0xf9]]
        %v2459 = vstv %s2458
        %v2460 = vmul.f32 %v2459, %v2432
        %v2461 = vmul.f32 %v2459, %v2433
        %s2462 = sld [smem:[#allocation7 + $0xfa]]
        %v2463 = vstv %s2462
        %v2464 = vmul.f32 %v2463, %v2432
        %v2465 = vmul.f32 %v2463, %v2433
        %s2466 = sld [smem:[#allocation7 + $0xfb]]
        %v2467 = vstv %s2466
        %v2468 = vmul.f32 %v2467, %v2432
        %v2469 = vmul.f32 %v2467, %v2433
        %2470 = vrot.lane.b32.xlu0 %v2388, 16
        %v2471 = vpop.permute.xlu0 %2470
        %2472 = vrot.lane.b32.xlu0 %v2398, 16
        %v2473 = vpop.permute.xlu0 %2472
        %2474 = vrot.lane.b32.xlu0 %v2408, 16
        %v2475 = vpop.permute.xlu0 %2474
        %2476 = vrot.lane.b32.xlu0 %v2389, 16
        %v2477 = vpop.permute.xlu0 %2476
        %2478 = vrot.lane.b32.xlu0 %v2399, 16
        %v2479 = vpop.permute.xlu0 %2478
        %2480 = vrot.lane.b32.xlu0 %v2409, 16
        %v2481 = vpop.permute.xlu0 %2480
        %v2482 = vsel %vm349, %v2471, %v2477
        %v2483 = vsel %vm349, %v2473, %v2479
        %v2484 = vsel %vm349, %v2475, %v2481
        %v2485 = vsel %vm349, %v2477, %v2471
        %v2486 = vsel %vm349, %v2479, %v2473
        %v2487 = vsel %vm349, %v2481, %v2475
        %v2488 = vmul.f32 %v2485, %v359
        %v2489 = vmul.f32 %v2482, %v363
        %v2490 = vmul.f32 %v2486, %v359
        %v2491 = vmul.f32 %v2483, %v363
        %v2492 = vmul.f32 %v2487, %v359
        %v2493 = vmul.f32 %v2484, %v363
        %s2494 = sld [smem:[#allocation7 + $0xfc]]
        %v2495 = vstv %s2494
        %v2496 = vmul.f32 %v2495, %v2488
        %v2497 = vmul.f32 %v2495, %v2489
        %v2498 = vadd.f32 %v2436, %v2496
        %v2499 = vadd.f32 %v2437, %v2497
        %s2500 = sld [smem:[#allocation7 + $0xfd]]
        %v2501 = vstv %s2500
        %v2502 = vmul.f32 %v2501, %v2488
        %v2503 = vmul.f32 %v2501, %v2489
        %v2504 = vadd.f32 %v2440, %v2502
        %v2505 = vadd.f32 %v2441, %v2503
        %s2506 = sld [smem:[#allocation7 + $0xfe]]
        %v2507 = vstv %s2506
        %v2508 = vmul.f32 %v2507, %v2488
        %v2509 = vmul.f32 %v2507, %v2489
        %v2510 = vadd.f32 %v2444, %v2508
        %v2511 = vadd.f32 %v2445, %v2509
        %s2512 = sld [smem:[#allocation7 + $0xff]]
        %v2513 = vstv %s2512
        %v2514 = vmul.f32 %v2513, %v2490
        %v2515 = vmul.f32 %v2513, %v2491
        %v2516 = vadd.f32 %v2448, %v2514
        %v2517 = vadd.f32 %v2449, %v2515
        %s2518 = sld [smem:[#allocation7 + $0x100]]
        %v2519 = vstv %s2518
        %v2520 = vmul.f32 %v2519, %v2490
        %v2521 = vmul.f32 %v2519, %v2491
        %v2522 = vadd.f32 %v2452, %v2520
        %v2523 = vadd.f32 %v2453, %v2521
        %s2524 = sld [smem:[#allocation7 + $0x101]]
        %v2525 = vstv %s2524
        %v2526 = vmul.f32 %v2525, %v2490
        %v2527 = vmul.f32 %v2525, %v2491
        %v2528 = vadd.f32 %v2456, %v2526
        %v2529 = vadd.f32 %v2457, %v2527
        %s2530 = sld [smem:[#allocation7 + $0x102]]
        %v2531 = vstv %s2530
        %v2532 = vmul.f32 %v2531, %v2492
        %v2533 = vmul.f32 %v2531, %v2493
        %v2534 = vadd.f32 %v2460, %v2532
        %v2535 = vadd.f32 %v2461, %v2533
        %s2536 = sld [smem:[#allocation7 + $0x103]]
        %v2537 = vstv %s2536
        %v2538 = vmul.f32 %v2537, %v2492
        %v2539 = vmul.f32 %v2537, %v2493
        %v2540 = vadd.f32 %v2464, %v2538
        %v2541 = vadd.f32 %v2465, %v2539
        %s2542 = sld [smem:[#allocation7 + $0x104]]
        %v2543 = vstv %s2542
        %v2544 = vmul.f32 %v2543, %v2492
        %v2545 = vmul.f32 %v2543, %v2493
        %v2546 = vadd.f32 %v2468, %v2544
        %v2547 = vadd.f32 %v2469, %v2545
        %2548 = vrot.lane.b32.xlu0 %v2388, 15
        %v2549 = vpop.permute.xlu0 %2548
        %2550 = vrot.lane.b32.xlu0 %v2398, 15
        %v2551 = vpop.permute.xlu0 %2550
        %2552 = vrot.lane.b32.xlu0 %v2408, 15
        %v2553 = vpop.permute.xlu0 %2552
        %2554 = vrot.lane.b32.xlu0 %v2389, 15
        %v2555 = vpop.permute.xlu0 %2554
        %2556 = vrot.lane.b32.xlu0 %v2399, 15
        %v2557 = vpop.permute.xlu0 %2556
        %2558 = vrot.lane.b32.xlu0 %v2409, 15
        %v2559 = vpop.permute.xlu0 %2558
        %v2560 = vsel %vm436, %v2549, %v2555
        %v2561 = vsel %vm436, %v2551, %v2557
        %v2562 = vsel %vm436, %v2553, %v2559
        %v2563 = vsel %vm436, %v2555, %v2549
        %v2564 = vsel %vm436, %v2557, %v2551
        %v2565 = vsel %vm436, %v2559, %v2553
        %v2566 = vmul.f32 %v2563, %v446
        %v2567 = vmul.f32 %v2560, %v450
        %v2568 = vmul.f32 %v2564, %v446
        %v2569 = vmul.f32 %v2561, %v450
        %v2570 = vmul.f32 %v2565, %v446
        %v2571 = vmul.f32 %v2562, %v450
        %s2572 = sld [smem:[#allocation7 + $0x105]]
        %v2573 = vstv %s2572
        %v2574 = vmul.f32 %v2573, %v2566
        %v2575 = vmul.f32 %v2573, %v2567
        %v2576 = vadd.f32 %v2498, %v2574
        %v2577 = vadd.f32 %v2499, %v2575
        %s2578 = sld [smem:[#allocation7 + $0x106]]
        %v2579 = vstv %s2578
        %v2580 = vmul.f32 %v2579, %v2566
        %v2581 = vmul.f32 %v2579, %v2567
        %v2582 = vadd.f32 %v2504, %v2580
        %v2583 = vadd.f32 %v2505, %v2581
        %s2584 = sld [smem:[#allocation7 + $0x107]]
        %v2585 = vstv %s2584
        %v2586 = vmul.f32 %v2585, %v2566
        %v2587 = vmul.f32 %v2585, %v2567
        %v2588 = vadd.f32 %v2510, %v2586
        %v2589 = vadd.f32 %v2511, %v2587
        %s2590 = sld [smem:[#allocation7 + $0x108]]
        %v2591 = vstv %s2590
        %v2592 = vmul.f32 %v2591, %v2568
        %v2593 = vmul.f32 %v2591, %v2569
        %v2594 = vadd.f32 %v2516, %v2592
        %v2595 = vadd.f32 %v2517, %v2593
        %s2596 = sld [smem:[#allocation7 + $0x109]]
        %v2597 = vstv %s2596
        %v2598 = vmul.f32 %v2597, %v2568
        %v2599 = vmul.f32 %v2597, %v2569
        %v2600 = vadd.f32 %v2522, %v2598
        %v2601 = vadd.f32 %v2523, %v2599
        %s2602 = sld [smem:[#allocation7 + $0x10a]]
        %v2603 = vstv %s2602
        %v2604 = vmul.f32 %v2603, %v2568
        %v2605 = vmul.f32 %v2603, %v2569
        %v2606 = vadd.f32 %v2528, %v2604
        %v2607 = vadd.f32 %v2529, %v2605
        %s2608 = sld [smem:[#allocation7 + $0x10b]]
        %v2609 = vstv %s2608
        %v2610 = vmul.f32 %v2609, %v2570
        %v2611 = vmul.f32 %v2609, %v2571
        %v2612 = vadd.f32 %v2534, %v2610
        %v2613 = vadd.f32 %v2535, %v2611
        %s2614 = sld [smem:[#allocation7 + $0x10c]]
        %v2615 = vstv %s2614
        %v2616 = vmul.f32 %v2615, %v2570
        %v2617 = vmul.f32 %v2615, %v2571
        %v2618 = vadd.f32 %v2540, %v2616
        %v2619 = vadd.f32 %v2541, %v2617
        %s2620 = sld [smem:[#allocation7 + $0x10d]]
        %v2621 = vstv %s2620
        %v2622 = vmul.f32 %v2621, %v2570
        %v2623 = vmul.f32 %v2621, %v2571
        %v2624 = vadd.f32 %v2546, %v2622
        %v2625 = vadd.f32 %v2547, %v2623
        %2626 = vrot.lane.b32.xlu0 %v2388, 1
        %v2627 = vpop.permute.xlu0 %2626
        %2628 = vrot.lane.b32.xlu0 %v2398, 1
        %v2629 = vpop.permute.xlu0 %2628
        %2630 = vrot.lane.b32.xlu0 %v2408, 1
        %v2631 = vpop.permute.xlu0 %2630
        %2632 = vrot.lane.b32.xlu0 %v2389, 1
        %v2633 = vpop.permute.xlu0 %2632
        %2634 = vrot.lane.b32.xlu0 %v2399, 1
        %v2635 = vpop.permute.xlu0 %2634
        %2636 = vrot.lane.b32.xlu0 %v2409, 1
        %v2637 = vpop.permute.xlu0 %2636
        %v2638 = vsel %vm523, %v2627, %v2633
        %v2639 = vsel %vm523, %v2629, %v2635
        %v2640 = vsel %vm523, %v2631, %v2637
        %v2641 = vsel %vm523, %v2633, %v2627
        %v2642 = vsel %vm523, %v2635, %v2629
        %v2643 = vsel %vm523, %v2637, %v2631
        %v2644 = vmul.f32 %v2641, %v533
        %v2645 = vmul.f32 %v2638, %v537
        %v2646 = vmul.f32 %v2642, %v533
        %v2647 = vmul.f32 %v2639, %v537
        %v2648 = vmul.f32 %v2643, %v533
        %v2649 = vmul.f32 %v2640, %v537
        %s2650 = sld [smem:[#allocation7 + $0x10e]]
        %v2651 = vstv %s2650
        %v2652 = vmul.f32 %v2651, %v2644
        %v2653 = vmul.f32 %v2651, %v2645
        %v2654 = vadd.f32 %v2576, %v2652
        %v2655 = vadd.f32 %v2577, %v2653
        %s2656 = sld [smem:[#allocation7 + $0x10f]]
        %v2657 = vstv %s2656
        %v2658 = vmul.f32 %v2657, %v2644
        %v2659 = vmul.f32 %v2657, %v2645
        %v2660 = vadd.f32 %v2582, %v2658
        %v2661 = vadd.f32 %v2583, %v2659
        %s2662 = sld [smem:[#allocation7 + $0x110]]
        %v2663 = vstv %s2662
        %v2664 = vmul.f32 %v2663, %v2644
        %v2665 = vmul.f32 %v2663, %v2645
        %v2666 = vadd.f32 %v2588, %v2664
        %v2667 = vadd.f32 %v2589, %v2665
        %s2668 = sld [smem:[#allocation7 + $0x111]]
        %v2669 = vstv %s2668
        %v2670 = vmul.f32 %v2669, %v2646
        %v2671 = vmul.f32 %v2669, %v2647
        %v2672 = vadd.f32 %v2594, %v2670
        %v2673 = vadd.f32 %v2595, %v2671
        %s2674 = sld [smem:[#allocation7 + $0x112]]
        %v2675 = vstv %s2674
        %v2676 = vmul.f32 %v2675, %v2646
        %v2677 = vmul.f32 %v2675, %v2647
        %v2678 = vadd.f32 %v2600, %v2676
        %v2679 = vadd.f32 %v2601, %v2677
        %s2680 = sld [smem:[#allocation7 + $0x113]]
        %v2681 = vstv %s2680
        %v2682 = vmul.f32 %v2681, %v2646
        %v2683 = vmul.f32 %v2681, %v2647
        %v2684 = vadd.f32 %v2606, %v2682
        %v2685 = vadd.f32 %v2607, %v2683
        %s2686 = sld [smem:[#allocation7 + $0x114]]
        %v2687 = vstv %s2686
        %v2688 = vmul.f32 %v2687, %v2648
        %v2689 = vmul.f32 %v2687, %v2649
        %v2690 = vadd.f32 %v2612, %v2688
        %v2691 = vadd.f32 %v2613, %v2689
        %s2692 = sld [smem:[#allocation7 + $0x115]]
        %v2693 = vstv %s2692
        %v2694 = vmul.f32 %v2693, %v2648
        %v2695 = vmul.f32 %v2693, %v2649
        %v2696 = vadd.f32 %v2618, %v2694
        %v2697 = vadd.f32 %v2619, %v2695
        %s2698 = sld [smem:[#allocation7 + $0x116]]
        %v2699 = vstv %s2698
        %v2700 = vmul.f32 %v2699, %v2648
        %v2701 = vmul.f32 %v2699, %v2649
        %v2702 = vadd.f32 %v2624, %v2700
        %v2703 = vadd.f32 %v2625, %v2701
        %s2704 = sld [smem:[#allocation7 + $0x117]]
        %v2705 = vstv %s2704
        %v2706 = vmul.f32 %v2705, %v2388
        %v2707 = vmul.f32 %v2705, %v2389
        %v2708 = vadd.f32 %v2654, %v2706
        %v2709 = vadd.f32 %v2655, %v2707
        %s2710 = sld [smem:[#allocation7 + $0x118]]
        %v2711 = vstv %s2710
        %v2712 = vmul.f32 %v2711, %v2388
        %v2713 = vmul.f32 %v2711, %v2389
        %v2714 = vadd.f32 %v2660, %v2712
        %v2715 = vadd.f32 %v2661, %v2713
        %s2716 = sld [smem:[#allocation7 + $0x119]]
        %v2717 = vstv %s2716
        %v2718 = vmul.f32 %v2717, %v2388
        %v2719 = vmul.f32 %v2717, %v2389
        %v2720 = vadd.f32 %v2666, %v2718
        %v2721 = vadd.f32 %v2667, %v2719
        %s2722 = sld [smem:[#allocation7 + $0x11a]]
        %v2723 = vstv %s2722
        %v2724 = vmul.f32 %v2723, %v2398
        %v2725 = vmul.f32 %v2723, %v2399
        %v2726 = vadd.f32 %v2672, %v2724
        %v2727 = vadd.f32 %v2673, %v2725
        %s2728 = sld [smem:[#allocation7 + $0x11b]]
        %v2729 = vstv %s2728
        %v2730 = vmul.f32 %v2729, %v2398
        %v2731 = vmul.f32 %v2729, %v2399
        %v2732 = vadd.f32 %v2678, %v2730
        %v2733 = vadd.f32 %v2679, %v2731
        %s2734 = sld [smem:[#allocation7 + $0x11c]]
        %v2735 = vstv %s2734
        %v2736 = vmul.f32 %v2735, %v2398
        %v2737 = vmul.f32 %v2735, %v2399
        %v2738 = vadd.f32 %v2684, %v2736
        %v2739 = vadd.f32 %v2685, %v2737
        %s2740 = sld [smem:[#allocation7 + $0x11d]]
        %v2741 = vstv %s2740
        %v2742 = vmul.f32 %v2741, %v2408
        %v2743 = vmul.f32 %v2741, %v2409
        %v2744 = vadd.f32 %v2690, %v2742
        %v2745 = vadd.f32 %v2691, %v2743
        %s2746 = sld [smem:[#allocation7 + $0x11e]]
        %v2747 = vstv %s2746
        %v2748 = vmul.f32 %v2747, %v2408
        %v2749 = vmul.f32 %v2747, %v2409
        %v2750 = vadd.f32 %v2696, %v2748
        %v2751 = vadd.f32 %v2697, %v2749
        %s2752 = sld [smem:[#allocation7 + $0x11f]]
        %v2753 = vstv %s2752
        %v2754 = vmul.f32 %v2753, %v2408
        %v2755 = vmul.f32 %v2753, %v2409
        %v2756 = vadd.f32 %v2702, %v2754
        %v2757 = vadd.f32 %v2703, %v2755
        %2758 = vrot.lane.b32.xlu0 %v2388, 127
        %v2759 = vpop.permute.xlu0 %2758
        %2760 = vrot.lane.b32.xlu0 %v2398, 127
        %v2761 = vpop.permute.xlu0 %2760
        %2762 = vrot.lane.b32.xlu0 %v2408, 127
        %v2763 = vpop.permute.xlu0 %2762
        %2764 = vrot.lane.b32.xlu0 %v2389, 127
        %v2765 = vpop.permute.xlu0 %2764
        %2766 = vrot.lane.b32.xlu0 %v2399, 127
        %v2767 = vpop.permute.xlu0 %2766
        %2768 = vrot.lane.b32.xlu0 %v2409, 127
        %v2769 = vpop.permute.xlu0 %2768
        %v2770 = vsel %vm664, %v2759, %v2765
        %v2771 = vsel %vm664, %v2761, %v2767
        %v2772 = vsel %vm664, %v2763, %v2769
        %v2773 = vsel %vm664, %v2765, %v2759
        %v2774 = vsel %vm664, %v2767, %v2761
        %v2775 = vsel %vm664, %v2769, %v2763
        %v2776 = vmul.f32 %v2770, %v674
        %v2777 = vmul.f32 %v2773, %v678
        %v2778 = vmul.f32 %v2771, %v674
        %v2779 = vmul.f32 %v2774, %v678
        %v2780 = vmul.f32 %v2772, %v674
        %v2781 = vmul.f32 %v2775, %v678
        %s2782 = sld [smem:[#allocation7 + $0x120]]
        %v2783 = vstv %s2782
        %v2784 = vmul.f32 %v2783, %v2776
        %v2785 = vmul.f32 %v2783, %v2777
        %v2786 = vadd.f32 %v2708, %v2784
        %v2787 = vadd.f32 %v2709, %v2785
        %s2788 = sld [smem:[#allocation7 + $0x121]]
        %v2789 = vstv %s2788
        %v2790 = vmul.f32 %v2789, %v2776
        %v2791 = vmul.f32 %v2789, %v2777
        %v2792 = vadd.f32 %v2714, %v2790
        %v2793 = vadd.f32 %v2715, %v2791
        %s2794 = sld [smem:[#allocation7 + $0x122]]
        %v2795 = vstv %s2794
        %v2796 = vmul.f32 %v2795, %v2776
        %v2797 = vmul.f32 %v2795, %v2777
        %v2798 = vadd.f32 %v2720, %v2796
        %v2799 = vadd.f32 %v2721, %v2797
        %s2800 = sld [smem:[#allocation7 + $0x123]]
        %v2801 = vstv %s2800
        %v2802 = vmul.f32 %v2801, %v2778
        %v2803 = vmul.f32 %v2801, %v2779
        %v2804 = vadd.f32 %v2726, %v2802
        %v2805 = vadd.f32 %v2727, %v2803
        %s2806 = sld [smem:[#allocation7 + $0x124]]
        %v2807 = vstv %s2806
        %v2808 = vmul.f32 %v2807, %v2778
        %v2809 = vmul.f32 %v2807, %v2779
        %v2810 = vadd.f32 %v2732, %v2808
        %v2811 = vadd.f32 %v2733, %v2809
        %s2812 = sld [smem:[#allocation7 + $0x125]]
        %v2813 = vstv %s2812
        %v2814 = vmul.f32 %v2813, %v2778
        %v2815 = vmul.f32 %v2813, %v2779
        %v2816 = vadd.f32 %v2738, %v2814
        %v2817 = vadd.f32 %v2739, %v2815
        %s2818 = sld [smem:[#allocation7 + $0x126]]
        %v2819 = vstv %s2818
        %v2820 = vmul.f32 %v2819, %v2780
        %v2821 = vmul.f32 %v2819, %v2781
        %v2822 = vadd.f32 %v2744, %v2820
        %v2823 = vadd.f32 %v2745, %v2821
        %s2824 = sld [smem:[#allocation7 + $0x127]]
        %v2825 = vstv %s2824
        %v2826 = vmul.f32 %v2825, %v2780
        %v2827 = vmul.f32 %v2825, %v2781
        %v2828 = vadd.f32 %v2750, %v2826
        %v2829 = vadd.f32 %v2751, %v2827
        %s2830 = sld [smem:[#allocation7 + $0x128]]
        %v2831 = vstv %s2830
        %v2832 = vmul.f32 %v2831, %v2780
        %v2833 = vmul.f32 %v2831, %v2781
        %v2834 = vadd.f32 %v2756, %v2832
        %v2835 = vadd.f32 %v2757, %v2833
        %2836 = vrot.lane.b32.xlu0 %v2388, 113
        %v2837 = vpop.permute.xlu0 %2836
        %2838 = vrot.lane.b32.xlu0 %v2398, 113
        %v2839 = vpop.permute.xlu0 %2838
        %2840 = vrot.lane.b32.xlu0 %v2408, 113
        %v2841 = vpop.permute.xlu0 %2840
        %2842 = vrot.lane.b32.xlu0 %v2389, 113
        %v2843 = vpop.permute.xlu0 %2842
        %2844 = vrot.lane.b32.xlu0 %v2399, 113
        %v2845 = vpop.permute.xlu0 %2844
        %2846 = vrot.lane.b32.xlu0 %v2409, 113
        %v2847 = vpop.permute.xlu0 %2846
        %v2848 = vsel %vm751, %v2837, %v2843
        %v2849 = vsel %vm751, %v2839, %v2845
        %v2850 = vsel %vm751, %v2841, %v2847
        %v2851 = vsel %vm751, %v2843, %v2837
        %v2852 = vsel %vm751, %v2845, %v2839
        %v2853 = vsel %vm751, %v2847, %v2841
        %v2854 = vmul.f32 %v2848, %v761
        %v2855 = vmul.f32 %v2851, %v765
        %v2856 = vmul.f32 %v2849, %v761
        %v2857 = vmul.f32 %v2852, %v765
        %v2858 = vmul.f32 %v2850, %v761
        %v2859 = vmul.f32 %v2853, %v765
        %s2860 = sld [smem:[#allocation7 + $0x129]]
        %v2861 = vstv %s2860
        %v2862 = vmul.f32 %v2861, %v2854
        %v2863 = vmul.f32 %v2861, %v2855
        %v2864 = vadd.f32 %v2786, %v2862
        %v2865 = vadd.f32 %v2787, %v2863
        %s2866 = sld [smem:[#allocation7 + $0x12a]]
        %v2867 = vstv %s2866
        %v2868 = vmul.f32 %v2867, %v2854
        %v2869 = vmul.f32 %v2867, %v2855
        %v2870 = vadd.f32 %v2792, %v2868
        %v2871 = vadd.f32 %v2793, %v2869
        %s2872 = sld [smem:[#allocation7 + $0x12b]]
        %v2873 = vstv %s2872
        %v2874 = vmul.f32 %v2873, %v2854
        %v2875 = vmul.f32 %v2873, %v2855
        %v2876 = vadd.f32 %v2798, %v2874
        %v2877 = vadd.f32 %v2799, %v2875
        %s2878 = sld [smem:[#allocation7 + $0x12c]]
        %v2879 = vstv %s2878
        %v2880 = vmul.f32 %v2879, %v2856
        %v2881 = vmul.f32 %v2879, %v2857
        %v2882 = vadd.f32 %v2804, %v2880
        %v2883 = vadd.f32 %v2805, %v2881
        %s2884 = sld [smem:[#allocation7 + $0x12d]]
        %v2885 = vstv %s2884
        %v2886 = vmul.f32 %v2885, %v2856
        %v2887 = vmul.f32 %v2885, %v2857
        %v2888 = vadd.f32 %v2810, %v2886
        %v2889 = vadd.f32 %v2811, %v2887
        %s2890 = sld [smem:[#allocation7 + $0x12e]]
        %v2891 = vstv %s2890
        %v2892 = vmul.f32 %v2891, %v2856
        %v2893 = vmul.f32 %v2891, %v2857
        %v2894 = vadd.f32 %v2816, %v2892
        %v2895 = vadd.f32 %v2817, %v2893
        %s2896 = sld [smem:[#allocation7 + $0x12f]]
        %v2897 = vstv %s2896
        %v2898 = vmul.f32 %v2897, %v2858
        %v2899 = vmul.f32 %v2897, %v2859
        %v2900 = vadd.f32 %v2822, %v2898
        %v2901 = vadd.f32 %v2823, %v2899
        %s2902 = sld [smem:[#allocation7 + $0x130]]
        %v2903 = vstv %s2902
        %v2904 = vmul.f32 %v2903, %v2858
        %v2905 = vmul.f32 %v2903, %v2859
        %v2906 = vadd.f32 %v2828, %v2904
        %v2907 = vadd.f32 %v2829, %v2905
        %s2908 = sld [smem:[#allocation7 + $0x131]]
        %v2909 = vstv %s2908
        %v2910 = vmul.f32 %v2909, %v2858
        %v2911 = vmul.f32 %v2909, %v2859
        %v2912 = vadd.f32 %v2834, %v2910
        %v2913 = vadd.f32 %v2835, %v2911
        %2914 = vrot.lane.b32.xlu0 %v2388, 112
        %v2915 = vpop.permute.xlu0 %2914
        %2916 = vrot.lane.b32.xlu0 %v2398, 112
        %v2917 = vpop.permute.xlu0 %2916
        %2918 = vrot.lane.b32.xlu0 %v2408, 112
        %v2919 = vpop.permute.xlu0 %2918
        %2920 = vrot.lane.b32.xlu0 %v2389, 112
        %v2921 = vpop.permute.xlu0 %2920
        %2922 = vrot.lane.b32.xlu0 %v2399, 112
        %v2923 = vpop.permute.xlu0 %2922
        %2924 = vrot.lane.b32.xlu0 %v2409, 112
        %v2925 = vpop.permute.xlu0 %2924
        %v2926 = vsel %vm838, %v2915, %v2921
        %v2927 = vsel %vm838, %v2917, %v2923
        %v2928 = vsel %vm838, %v2919, %v2925
        %v2929 = vsel %vm838, %v2921, %v2915
        %v2930 = vsel %vm838, %v2923, %v2917
        %v2931 = vsel %vm838, %v2925, %v2919
        %v2932 = vmul.f32 %v2926, %v848
        %v2933 = vmul.f32 %v2929, %v852
        %v2934 = vmul.f32 %v2927, %v848
        %v2935 = vmul.f32 %v2930, %v852
        %v2936 = vmul.f32 %v2928, %v848
        %v2937 = vmul.f32 %v2931, %v852
        %s2938 = sld [smem:[#allocation7 + $0x132]]
        %v2939 = vstv %s2938
        %v2940 = vmul.f32 %v2939, %v2932
        %v2941 = vmul.f32 %v2939, %v2933
        %v2942 = vadd.f32 %v2864, %v2940
        %v2943 = vadd.f32 %v2865, %v2941
        %s2944 = sld [smem:[#allocation7 + $0x133]]
        %v2945 = vstv %s2944
        %v2946 = vmul.f32 %v2945, %v2932
        %v2947 = vmul.f32 %v2945, %v2933
        %v2948 = vadd.f32 %v2870, %v2946
        %v2949 = vadd.f32 %v2871, %v2947
        %s2950 = sld [smem:[#allocation7 + $0x134]]
        %v2951 = vstv %s2950
        %v2952 = vmul.f32 %v2951, %v2932
        %v2953 = vmul.f32 %v2951, %v2933
        %v2954 = vadd.f32 %v2876, %v2952
        %v2955 = vadd.f32 %v2877, %v2953
        %s2956 = sld [smem:[#allocation7 + $0x135]]
        %v2957 = vstv %s2956
        %v2958 = vmul.f32 %v2957, %v2934
        %v2959 = vmul.f32 %v2957, %v2935
        %v2960 = vadd.f32 %v2882, %v2958
        %v2961 = vadd.f32 %v2883, %v2959
        %s2962 = sld [smem:[#allocation7 + $0x136]]
        %v2963 = vstv %s2962
        %v2964 = vmul.f32 %v2963, %v2934
        %v2965 = vmul.f32 %v2963, %v2935
        %v2966 = vadd.f32 %v2888, %v2964
        %v2967 = vadd.f32 %v2889, %v2965
        %s2968 = sld [smem:[#allocation7 + $0x137]]
        %v2969 = vstv %s2968
        %v2970 = vmul.f32 %v2969, %v2934
        %v2971 = vmul.f32 %v2969, %v2935
        %v2972 = vadd.f32 %v2894, %v2970
        %v2973 = vadd.f32 %v2895, %v2971
        %s2974 = sld [smem:[#allocation7 + $0x138]]
        %v2975 = vstv %s2974
        %v2976 = vmul.f32 %v2975, %v2936
        %v2977 = vmul.f32 %v2975, %v2937
        %v2978 = vadd.f32 %v2900, %v2976
        %v2979 = vadd.f32 %v2901, %v2977
        %s2980 = sld [smem:[#allocation7 + $0x139]]
        %v2981 = vstv %s2980
        %v2982 = vmul.f32 %v2981, %v2936
        %v2983 = vmul.f32 %v2981, %v2937
        %v2984 = vadd.f32 %v2906, %v2982
        %v2985 = vadd.f32 %v2907, %v2983
        %s2986 = sld [smem:[#allocation7 + $0x13a]]
        %v2987 = vstv %s2986
        %v2988 = vmul.f32 %v2987, %v2936
        %v2989 = vmul.f32 %v2987, %v2937
        %v2990 = vadd.f32 %v2912, %v2988
        %v2991 = vadd.f32 %v2913, %v2989
        %2992 = vrot.lane.b32.xlu0 %v2388, 111
        %v2993 = vpop.permute.xlu0 %2992
        %2994 = vrot.lane.b32.xlu0 %v2398, 111
        %v2995 = vpop.permute.xlu0 %2994
        %2996 = vrot.lane.b32.xlu0 %v2408, 111
        %v2997 = vpop.permute.xlu0 %2996
        %2998 = vrot.lane.b32.xlu0 %v2389, 111
        %v2999 = vpop.permute.xlu0 %2998
        %3000 = vrot.lane.b32.xlu0 %v2399, 111
        %v3001 = vpop.permute.xlu0 %3000
        %3002 = vrot.lane.b32.xlu0 %v2409, 111
        %v3003 = vpop.permute.xlu0 %3002
        %v3004 = vsel %vm925, %v2993, %v2999
        %v3005 = vsel %vm925, %v2995, %v3001
        %v3006 = vsel %vm925, %v2997, %v3003
        %v3007 = vsel %vm925, %v2999, %v2993
        %v3008 = vsel %vm925, %v3001, %v2995
        %v3009 = vsel %vm925, %v3003, %v2997
        %v3010 = vmul.f32 %v3004, %v935
        %v3011 = vmul.f32 %v3007, %v939
        %v3012 = vmul.f32 %v3005, %v935
        %v3013 = vmul.f32 %v3008, %v939
        %v3014 = vmul.f32 %v3006, %v935
        %v3015 = vmul.f32 %v3009, %v939
        %s3016 = sld [smem:[#allocation7 + $0x13b]]
        %v3017 = vstv %s3016
        %v3018 = vmul.f32 %v3017, %v3010
        %v3019 = vmul.f32 %v3017, %v3011
        %v3020 = vadd.f32 %v2942, %v3018
        %v3021 = vadd.f32 %v2943, %v3019
        %s3022 = sld [smem:[#allocation7 + $0x13c]]
        %v3023 = vstv %s3022
        %v3024 = vmul.f32 %v3023, %v3010
        %v3025 = vmul.f32 %v3023, %v3011
        %v3026 = vadd.f32 %v2948, %v3024
        %v3027 = vadd.f32 %v2949, %v3025
        %s3028 = sld [smem:[#allocation7 + $0x13d]]
        %v3029 = vstv %s3028
        %v3030 = vmul.f32 %v3029, %v3010
        %v3031 = vmul.f32 %v3029, %v3011
        %v3032 = vadd.f32 %v2954, %v3030
        %v3033 = vadd.f32 %v2955, %v3031
        %s3034 = sld [smem:[#allocation7 + $0x13e]]
        %v3035 = vstv %s3034
        %v3036 = vmul.f32 %v3035, %v3012
        %v3037 = vmul.f32 %v3035, %v3013
        %v3038 = vadd.f32 %v2960, %v3036
        %v3039 = vadd.f32 %v2961, %v3037
        %s3040 = sld [smem:[#allocation7 + $0x13f]]
        %v3041 = vstv %s3040
        %v3042 = vmul.f32 %v3041, %v3012
        %v3043 = vmul.f32 %v3041, %v3013
        %v3044 = vadd.f32 %v2966, %v3042
        %v3045 = vadd.f32 %v2967, %v3043
        %s3046 = sld [smem:[#allocation7 + $0x140]]
        %v3047 = vstv %s3046
        %v3048 = vmul.f32 %v3047, %v3012
        %v3049 = vmul.f32 %v3047, %v3013
        %v3050 = vadd.f32 %v2972, %v3048
        %v3051 = vadd.f32 %v2973, %v3049
        %s3052 = sld [smem:[#allocation7 + $0x141]]
        %v3053 = vstv %s3052
        %v3054 = vmul.f32 %v3053, %v3014
        %v3055 = vmul.f32 %v3053, %v3015
        %v3056 = vadd.f32 %v2978, %v3054
        %v3057 = vadd.f32 %v2979, %v3055
        %s3058 = sld [smem:[#allocation7 + $0x142]]
        %v3059 = vstv %s3058
        %v3060 = vmul.f32 %v3059, %v3014
        %v3061 = vmul.f32 %v3059, %v3015
        %v3062 = vadd.f32 %v2984, %v3060
        %v3063 = vadd.f32 %v2985, %v3061
        %s3064 = sld [smem:[#allocation7 + $0x143]]
        %v3065 = vstv %s3064
        %v3066 = vmul.f32 %v3065, %v3014
        %v3067 = vmul.f32 %v3065, %v3015
        %v3068 = vadd.f32 %v2990, %v3066
        %v3069 = vadd.f32 %v2991, %v3067
        %s3070 = sld [smem:[#allocation8 + $0x9]]
        %v3071 = vadd.f32 %v3020, %v3038
        %v3072 = vadd.f32 %v3021, %v3039
        %v3073 = vstv %s3070
        %v3074 = vadd.f32 %v3056, %v3073
        %v3075 = vadd.f32 %v3057, %v3073
        %v3076 = vadd.f32 %v3071, %v3074
        %v3077 = vadd.f32 %v3072, %v3075
        %v3078 = vmax.f32 %v3076, 0.0
        %v3079 = vmax.f32 %v3077, 0.0
        %s3080 = sld [smem:[#allocation8 + $0xa]]
        %v3081 = vadd.f32 %v3026, %v3044
        %v3082 = vadd.f32 %v3027, %v3045
        %v3083 = vstv %s3080
        %v3084 = vadd.f32 %v3062, %v3083
        %v3085 = vadd.f32 %v3063, %v3083
        %v3086 = vadd.f32 %v3081, %v3084
        %v3087 = vadd.f32 %v3082, %v3085
        %v3088 = vmax.f32 %v3086, 0.0
        %v3089 = vmax.f32 %v3087, 0.0
        %s3090 = sld [smem:[#allocation8 + $0xb]]
        %v3091 = vadd.f32 %v3032, %v3050
        %v3092 = vadd.f32 %v3033, %v3051
        %v3093 = vstv %s3090
        %v3094 = vadd.f32 %v3068, %v3093
        %v3095 = vadd.f32 %v3069, %v3093
        %v3096 = vadd.f32 %v3091, %v3094
        %v3097 = vadd.f32 %v3092, %v3095
        %v3098 = vmax.f32 %v3096, 0.0
        %v3099 = vmax.f32 %v3097, 0.0
        %3100 = vrot.lane.b32.xlu0 %v3078, 17
        %v3101 = vpop.permute.xlu0 %3100
        %3102 = vrot.lane.b32.xlu0 %v3088, 17
        %v3103 = vpop.permute.xlu0 %3102
        %3104 = vrot.lane.b32.xlu0 %v3098, 17
        %v3105 = vpop.permute.xlu0 %3104
        %3106 = vrot.lane.b32.xlu0 %v3079, 17
        %v3107 = vpop.permute.xlu0 %3106
        %3108 = vrot.lane.b32.xlu0 %v3089, 17
        %v3109 = vpop.permute.xlu0 %3108
        %3110 = vrot.lane.b32.xlu0 %v3099, 17
        %v3111 = vpop.permute.xlu0 %3110
        %v3112 = vsel %vm280, %v3101, %v3107
        %v3113 = vsel %vm280, %v3103, %v3109
        %v3114 = vsel %vm280, %v3105, %v3111
        %v3115 = vsel %vm280, %v3107, %v3101
        %v3116 = vsel %vm280, %v3109, %v3103
        %v3117 = vsel %vm280, %v3111, %v3105
        %v3118 = vmul.f32 %v3115, %v290
        %v3119 = vmul.f32 %v3112, %v294
        %v3120 = vmul.f32 %v3116, %v290
        %v3121 = vmul.f32 %v3113, %v294
        %v3122 = vmul.f32 %v3117, %v290
        %v3123 = vmul.f32 %v3114, %v294
        %s3124 = sld [smem:[#allocation7 + $0x144]]
        %v3125 = vstv %s3124
        %v3126 = vmul.f32 %v3125, %v3118
        %v3127 = vmul.f32 %v3125, %v3119
        %s3128 = sld [smem:[#allocation7 + $0x145]]
        %v3129 = vstv %s3128
        %v3130 = vmul.f32 %v3129, %v3118
        %v3131 = vmul.f32 %v3129, %v3119
        %s3132 = sld [smem:[#allocation7 + $0x146]]
        %v3133 = vstv %s3132
        %v3134 = vmul.f32 %v3133, %v3118
        %v3135 = vmul.f32 %v3133, %v3119
        %s3136 = sld [smem:[#allocation7 + $0x147]]
        %v3137 = vstv %s3136
        %v3138 = vmul.f32 %v3137, %v3120
        %v3139 = vmul.f32 %v3137, %v3121
        %s3140 = sld [smem:[#allocation7 + $0x148]]
        %v3141 = vstv %s3140
        %v3142 = vmul.f32 %v3141, %v3120
        %v3143 = vmul.f32 %v3141, %v3121
        %s3144 = sld [smem:[#allocation7 + $0x149]]
        %v3145 = vstv %s3144
        %v3146 = vmul.f32 %v3145, %v3120
        %v3147 = vmul.f32 %v3145, %v3121
        %s3148 = sld [smem:[#allocation7 + $0x14a]]
        %v3149 = vstv %s3148
        %v3150 = vmul.f32 %v3149, %v3122
        %v3151 = vmul.f32 %v3149, %v3123
        %s3152 = sld [smem:[#allocation7 + $0x14b]]
        %v3153 = vstv %s3152
        %v3154 = vmul.f32 %v3153, %v3122
        %v3155 = vmul.f32 %v3153, %v3123
        %s3156 = sld [smem:[#allocation7 + $0x14c]]
        %v3157 = vstv %s3156
        %v3158 = vmul.f32 %v3157, %v3122
        %v3159 = vmul.f32 %v3157, %v3123
        %3160 = vrot.lane.b32.xlu0 %v3078, 16
        %v3161 = vpop.permute.xlu0 %3160
        %3162 = vrot.lane.b32.xlu0 %v3088, 16
        %v3163 = vpop.permute.xlu0 %3162
        %3164 = vrot.lane.b32.xlu0 %v3098, 16
        %v3165 = vpop.permute.xlu0 %3164
        %3166 = vrot.lane.b32.xlu0 %v3079, 16
        %v3167 = vpop.permute.xlu0 %3166
        %3168 = vrot.lane.b32.xlu0 %v3089, 16
        %v3169 = vpop.permute.xlu0 %3168
        %3170 = vrot.lane.b32.xlu0 %v3099, 16
        %v3171 = vpop.permute.xlu0 %3170
        %v3172 = vsel %vm349, %v3161, %v3167
        %v3173 = vsel %vm349, %v3163, %v3169
        %v3174 = vsel %vm349, %v3165, %v3171
        %v3175 = vsel %vm349, %v3167, %v3161
        %v3176 = vsel %vm349, %v3169, %v3163
        %v3177 = vsel %vm349, %v3171, %v3165
        %v3178 = vmul.f32 %v3175, %v359
        %v3179 = vmul.f32 %v3172, %v363
        %v3180 = vmul.f32 %v3176, %v359
        %v3181 = vmul.f32 %v3173, %v363
        %v3182 = vmul.f32 %v3177, %v359
        %v3183 = vmul.f32 %v3174, %v363
        %s3184 = sld [smem:[#allocation7 + $0x14d]]
        %v3185 = vstv %s3184
        %v3186 = vmul.f32 %v3185, %v3178
        %v3187 = vmul.f32 %v3185, %v3179
        %v3188 = vadd.f32 %v3126, %v3186
        %v3189 = vadd.f32 %v3127, %v3187
        %s3190 = sld [smem:[#allocation7 + $0x14e]]
        %v3191 = vstv %s3190
        %v3192 = vmul.f32 %v3191, %v3178
        %v3193 = vmul.f32 %v3191, %v3179
        %v3194 = vadd.f32 %v3130, %v3192
        %v3195 = vadd.f32 %v3131, %v3193
        %s3196 = sld [smem:[#allocation7 + $0x14f]]
        %v3197 = vstv %s3196
        %v3198 = vmul.f32 %v3197, %v3178
        %v3199 = vmul.f32 %v3197, %v3179
        %v3200 = vadd.f32 %v3134, %v3198
        %v3201 = vadd.f32 %v3135, %v3199
        %s3202 = sld [smem:[#allocation7 + $0x150]]
        %v3203 = vstv %s3202
        %v3204 = vmul.f32 %v3203, %v3180
        %v3205 = vmul.f32 %v3203, %v3181
        %v3206 = vadd.f32 %v3138, %v3204
        %v3207 = vadd.f32 %v3139, %v3205
        %s3208 = sld [smem:[#allocation7 + $0x151]]
        %v3209 = vstv %s3208
        %v3210 = vmul.f32 %v3209, %v3180
        %v3211 = vmul.f32 %v3209, %v3181
        %v3212 = vadd.f32 %v3142, %v3210
        %v3213 = vadd.f32 %v3143, %v3211
        %s3214 = sld [smem:[#allocation7 + $0x152]]
        %v3215 = vstv %s3214
        %v3216 = vmul.f32 %v3215, %v3180
        %v3217 = vmul.f32 %v3215, %v3181
        %v3218 = vadd.f32 %v3146, %v3216
        %v3219 = vadd.f32 %v3147, %v3217
        %s3220 = sld [smem:[#allocation7 + $0x153]]
        %v3221 = vstv %s3220
        %v3222 = vmul.f32 %v3221, %v3182
        %v3223 = vmul.f32 %v3221, %v3183
        %v3224 = vadd.f32 %v3150, %v3222
        %v3225 = vadd.f32 %v3151, %v3223
        %s3226 = sld [smem:[#allocation7 + $0x154]]
        %v3227 = vstv %s3226
        %v3228 = vmul.f32 %v3227, %v3182
        %v3229 = vmul.f32 %v3227, %v3183
        %v3230 = vadd.f32 %v3154, %v3228
        %v3231 = vadd.f32 %v3155, %v3229
        %s3232 = sld [smem:[#allocation7 + $0x155]]
        %v3233 = vstv %s3232
        %v3234 = vmul.f32 %v3233, %v3182
        %v3235 = vmul.f32 %v3233, %v3183
        %v3236 = vadd.f32 %v3158, %v3234
        %v3237 = vadd.f32 %v3159, %v3235
        %3238 = vrot.lane.b32.xlu0 %v3078, 15
        %v3239 = vpop.permute.xlu0 %3238
        %3240 = vrot.lane.b32.xlu0 %v3088, 15
        %v3241 = vpop.permute.xlu0 %3240
        %3242 = vrot.lane.b32.xlu0 %v3098, 15
        %v3243 = vpop.permute.xlu0 %3242
        %3244 = vrot.lane.b32.xlu0 %v3079, 15
        %v3245 = vpop.permute.xlu0 %3244
        %3246 = vrot.lane.b32.xlu0 %v3089, 15
        %v3247 = vpop.permute.xlu0 %3246
        %3248 = vrot.lane.b32.xlu0 %v3099, 15
        %v3249 = vpop.permute.xlu0 %3248
        %v3250 = vsel %vm436, %v3239, %v3245
        %v3251 = vsel %vm436, %v3241, %v3247
        %v3252 = vsel %vm436, %v3243, %v3249
        %v3253 = vsel %vm436, %v3245, %v3239
        %v3254 = vsel %vm436, %v3247, %v3241
        %v3255 = vsel %vm436, %v3249, %v3243
        %v3256 = vmul.f32 %v3253, %v446
        %v3257 = vmul.f32 %v3250, %v450
        %v3258 = vmul.f32 %v3254, %v446
        %v3259 = vmul.f32 %v3251, %v450
        %v3260 = vmul.f32 %v3255, %v446
        %v3261 = vmul.f32 %v3252, %v450
        %s3262 = sld [smem:[#allocation7 + $0x156]]
        %v3263 = vstv %s3262
        %v3264 = vmul.f32 %v3263, %v3256
        %v3265 = vmul.f32 %v3263, %v3257
        %v3266 = vadd.f32 %v3188, %v3264
        %v3267 = vadd.f32 %v3189, %v3265
        %s3268 = sld [smem:[#allocation7 + $0x157]]
        %v3269 = vstv %s3268
        %v3270 = vmul.f32 %v3269, %v3256
        %v3271 = vmul.f32 %v3269, %v3257
        %v3272 = vadd.f32 %v3194, %v3270
        %v3273 = vadd.f32 %v3195, %v3271
        %s3274 = sld [smem:[#allocation7 + $0x158]]
        %v3275 = vstv %s3274
        %v3276 = vmul.f32 %v3275, %v3256
        %v3277 = vmul.f32 %v3275, %v3257
        %v3278 = vadd.f32 %v3200, %v3276
        %v3279 = vadd.f32 %v3201, %v3277
        %s3280 = sld [smem:[#allocation7 + $0x159]]
        %v3281 = vstv %s3280
        %v3282 = vmul.f32 %v3281, %v3258
        %v3283 = vmul.f32 %v3281, %v3259
        %v3284 = vadd.f32 %v3206, %v3282
        %v3285 = vadd.f32 %v3207, %v3283
        %s3286 = sld [smem:[#allocation7 + $0x15a]]
        %v3287 = vstv %s3286
        %v3288 = vmul.f32 %v3287, %v3258
        %v3289 = vmul.f32 %v3287, %v3259
        %v3290 = vadd.f32 %v3212, %v3288
        %v3291 = vadd.f32 %v3213, %v3289
        %s3292 = sld [smem:[#allocation7 + $0x15b]]
        %v3293 = vstv %s3292
        %v3294 = vmul.f32 %v3293, %v3258
        %v3295 = vmul.f32 %v3293, %v3259
        %v3296 = vadd.f32 %v3218, %v3294
        %v3297 = vadd.f32 %v3219, %v3295
        %s3298 = sld [smem:[#allocation7 + $0x15c]]
        %v3299 = vstv %s3298
        %v3300 = vmul.f32 %v3299, %v3260
        %v3301 = vmul.f32 %v3299, %v3261
        %v3302 = vadd.f32 %v3224, %v3300
        %v3303 = vadd.f32 %v3225, %v3301
        %s3304 = sld [smem:[#allocation7 + $0x15d]]
        %v3305 = vstv %s3304
        %v3306 = vmul.f32 %v3305, %v3260
        %v3307 = vmul.f32 %v3305, %v3261
        %v3308 = vadd.f32 %v3230, %v3306
        %v3309 = vadd.f32 %v3231, %v3307
        %s3310 = sld [smem:[#allocation7 + $0x15e]]
        %v3311 = vstv %s3310
        %v3312 = vmul.f32 %v3311, %v3260
        %v3313 = vmul.f32 %v3311, %v3261
        %v3314 = vadd.f32 %v3236, %v3312
        %v3315 = vadd.f32 %v3237, %v3313
        %3316 = vrot.lane.b32.xlu0 %v3078, 1
        %v3317 = vpop.permute.xlu0 %3316
        %3318 = vrot.lane.b32.xlu0 %v3088, 1
        %v3319 = vpop.permute.xlu0 %3318
        %3320 = vrot.lane.b32.xlu0 %v3098, 1
        %v3321 = vpop.permute.xlu0 %3320
        %3322 = vrot.lane.b32.xlu0 %v3079, 1
        %v3323 = vpop.permute.xlu0 %3322
        %3324 = vrot.lane.b32.xlu0 %v3089, 1
        %v3325 = vpop.permute.xlu0 %3324
        %3326 = vrot.lane.b32.xlu0 %v3099, 1
        %v3327 = vpop.permute.xlu0 %3326
        %v3328 = vsel %vm523, %v3317, %v3323
        %v3329 = vsel %vm523, %v3319, %v3325
        %v3330 = vsel %vm523, %v3321, %v3327
        %v3331 = vsel %vm523, %v3323, %v3317
        %v3332 = vsel %vm523, %v3325, %v3319
        %v3333 = vsel %vm523, %v3327, %v3321
        %v3334 = vmul.f32 %v3331, %v533
        %v3335 = vmul.f32 %v3328, %v537
        %v3336 = vmul.f32 %v3332, %v533
        %v3337 = vmul.f32 %v3329, %v537
        %v3338 = vmul.f32 %v3333, %v533
        %v3339 = vmul.f32 %v3330, %v537
        %s3340 = sld [smem:[#allocation7 + $0x15f]]
        %v3341 = vstv %s3340
        %v3342 = vmul.f32 %v3341, %v3334
        %v3343 = vmul.f32 %v3341, %v3335
        %v3344 = vadd.f32 %v3266, %v3342
        %v3345 = vadd.f32 %v3267, %v3343
        %s3346 = sld [smem:[#allocation7 + $0x160]]
        %v3347 = vstv %s3346
        %v3348 = vmul.f32 %v3347, %v3334
        %v3349 = vmul.f32 %v3347, %v3335
        %v3350 = vadd.f32 %v3272, %v3348
        %v3351 = vadd.f32 %v3273, %v3349
        %s3352 = sld [smem:[#allocation7 + $0x161]]
        %v3353 = vstv %s3352
        %v3354 = vmul.f32 %v3353, %v3334
        %v3355 = vmul.f32 %v3353, %v3335
        %v3356 = vadd.f32 %v3278, %v3354
        %v3357 = vadd.f32 %v3279, %v3355
        %s3358 = sld [smem:[#allocation7 + $0x162]]
        %v3359 = vstv %s3358
        %v3360 = vmul.f32 %v3359, %v3336
        %v3361 = vmul.f32 %v3359, %v3337
        %v3362 = vadd.f32 %v3284, %v3360
        %v3363 = vadd.f32 %v3285, %v3361
        %s3364 = sld [smem:[#allocation7 + $0x163]]
        %v3365 = vstv %s3364
        %v3366 = vmul.f32 %v3365, %v3336
        %v3367 = vmul.f32 %v3365, %v3337
        %v3368 = vadd.f32 %v3290, %v3366
        %v3369 = vadd.f32 %v3291, %v3367
        %s3370 = sld [smem:[#allocation7 + $0x164]]
        %v3371 = vstv %s3370
        %v3372 = vmul.f32 %v3371, %v3336
        %v3373 = vmul.f32 %v3371, %v3337
        %v3374 = vadd.f32 %v3296, %v3372
        %v3375 = vadd.f32 %v3297, %v3373
        %s3376 = sld [smem:[#allocation7 + $0x165]]
        %v3377 = vstv %s3376
        %v3378 = vmul.f32 %v3377, %v3338
        %v3379 = vmul.f32 %v3377, %v3339
        %v3380 = vadd.f32 %v3302, %v3378
        %v3381 = vadd.f32 %v3303, %v3379
        %s3382 = sld [smem:[#allocation7 + $0x166]]
        %v3383 = vstv %s3382
        %v3384 = vmul.f32 %v3383, %v3338
        %v3385 = vmul.f32 %v3383, %v3339
        %v3386 = vadd.f32 %v3308, %v3384
        %v3387 = vadd.f32 %v3309, %v3385
        %s3388 = sld [smem:[#allocation7 + $0x167]]
        %v3389 = vstv %s3388
        %v3390 = vmul.f32 %v3389, %v3338
        %v3391 = vmul.f32 %v3389, %v3339
        %v3392 = vadd.f32 %v3314, %v3390
        %v3393 = vadd.f32 %v3315, %v3391
        %s3394 = sld [smem:[#allocation7 + $0x168]]
        %v3395 = vstv %s3394
        %v3396 = vmul.f32 %v3395, %v3078
        %v3397 = vmul.f32 %v3395, %v3079
        %v3398 = vadd.f32 %v3344, %v3396
        %v3399 = vadd.f32 %v3345, %v3397
        %s3400 = sld [smem:[#allocation7 + $0x169]]
        %v3401 = vstv %s3400
        %v3402 = vmul.f32 %v3401, %v3078
        %v3403 = vmul.f32 %v3401, %v3079
        %v3404 = vadd.f32 %v3350, %v3402
        %v3405 = vadd.f32 %v3351, %v3403
        %s3406 = sld [smem:[#allocation7 + $0x16a]]
        %v3407 = vstv %s3406
        %v3408 = vmul.f32 %v3407, %v3078
        %v3409 = vmul.f32 %v3407, %v3079
        %v3410 = vadd.f32 %v3356, %v3408
        %v3411 = vadd.f32 %v3357, %v3409
        %s3412 = sld [smem:[#allocation7 + $0x16b]]
        %v3413 = vstv %s3412
        %v3414 = vmul.f32 %v3413, %v3088
        %v3415 = vmul.f32 %v3413, %v3089
        %v3416 = vadd.f32 %v3362, %v3414
        %v3417 = vadd.f32 %v3363, %v3415
        %s3418 = sld [smem:[#allocation7 + $0x16c]]
        %v3419 = vstv %s3418
        %v3420 = vmul.f32 %v3419, %v3088
        %v3421 = vmul.f32 %v3419, %v3089
        %v3422 = vadd.f32 %v3368, %v3420
        %v3423 = vadd.f32 %v3369, %v3421
        %s3424 = sld [smem:[#allocation7 + $0x16d]]
        %v3425 = vstv %s3424
        %v3426 = vmul.f32 %v3425, %v3088
        %v3427 = vmul.f32 %v3425, %v3089
        %v3428 = vadd.f32 %v3374, %v3426
        %v3429 = vadd.f32 %v3375, %v3427
        %s3430 = sld [smem:[#allocation7 + $0x16e]]
        %v3431 = vstv %s3430
        %v3432 = vmul.f32 %v3431, %v3098
        %v3433 = vmul.f32 %v3431, %v3099
        %v3434 = vadd.f32 %v3380, %v3432
        %v3435 = vadd.f32 %v3381, %v3433
        %s3436 = sld [smem:[#allocation7 + $0x16f]]
        %v3437 = vstv %s3436
        %v3438 = vmul.f32 %v3437, %v3098
        %v3439 = vmul.f32 %v3437, %v3099
        %v3440 = vadd.f32 %v3386, %v3438
        %v3441 = vadd.f32 %v3387, %v3439
        %s3442 = sld [smem:[#allocation7 + $0x170]]
        %v3443 = vstv %s3442
        %v3444 = vmul.f32 %v3443, %v3098
        %v3445 = vmul.f32 %v3443, %v3099
        %v3446 = vadd.f32 %v3392, %v3444
        %v3447 = vadd.f32 %v3393, %v3445
        %3448 = vrot.lane.b32.xlu0 %v3078, 127
        %v3449 = vpop.permute.xlu0 %3448
        %3450 = vrot.lane.b32.xlu0 %v3088, 127
        %v3451 = vpop.permute.xlu0 %3450
        %3452 = vrot.lane.b32.xlu0 %v3098, 127
        %v3453 = vpop.permute.xlu0 %3452
        %3454 = vrot.lane.b32.xlu0 %v3079, 127
        %v3455 = vpop.permute.xlu0 %3454
        %3456 = vrot.lane.b32.xlu0 %v3089, 127
        %v3457 = vpop.permute.xlu0 %3456
        %3458 = vrot.lane.b32.xlu0 %v3099, 127
        %v3459 = vpop.permute.xlu0 %3458
        %v3460 = vsel %vm664, %v3449, %v3455
        %v3461 = vsel %vm664, %v3451, %v3457
        %v3462 = vsel %vm664, %v3453, %v3459
        %v3463 = vsel %vm664, %v3455, %v3449
        %v3464 = vsel %vm664, %v3457, %v3451
        %v3465 = vsel %vm664, %v3459, %v3453
        %v3466 = vmul.f32 %v3460, %v674
        %v3467 = vmul.f32 %v3463, %v678
        %v3468 = vmul.f32 %v3461, %v674
        %v3469 = vmul.f32 %v3464, %v678
        %v3470 = vmul.f32 %v3462, %v674
        %v3471 = vmul.f32 %v3465, %v678
        %s3472 = sld [smem:[#allocation7 + $0x171]]
        %v3473 = vstv %s3472
        %v3474 = vmul.f32 %v3473, %v3466
        %v3475 = vmul.f32 %v3473, %v3467
        %v3476 = vadd.f32 %v3398, %v3474
        %v3477 = vadd.f32 %v3399, %v3475
        %s3478 = sld [smem:[#allocation7 + $0x172]]
        %v3479 = vstv %s3478
        %v3480 = vmul.f32 %v3479, %v3466
        %v3481 = vmul.f32 %v3479, %v3467
        %v3482 = vadd.f32 %v3404, %v3480
        %v3483 = vadd.f32 %v3405, %v3481
        %s3484 = sld [smem:[#allocation7 + $0x173]]
        %v3485 = vstv %s3484
        %v3486 = vmul.f32 %v3485, %v3466
        %v3487 = vmul.f32 %v3485, %v3467
        %v3488 = vadd.f32 %v3410, %v3486
        %v3489 = vadd.f32 %v3411, %v3487
        %s3490 = sld [smem:[#allocation7 + $0x174]]
        %v3491 = vstv %s3490
        %v3492 = vmul.f32 %v3491, %v3468
        %v3493 = vmul.f32 %v3491, %v3469
        %v3494 = vadd.f32 %v3416, %v3492
        %v3495 = vadd.f32 %v3417, %v3493
        %s3496 = sld [smem:[#allocation7 + $0x175]]
        %v3497 = vstv %s3496
        %v3498 = vmul.f32 %v3497, %v3468
        %v3499 = vmul.f32 %v3497, %v3469
        %v3500 = vadd.f32 %v3422, %v3498
        %v3501 = vadd.f32 %v3423, %v3499
        %s3502 = sld [smem:[#allocation7 + $0x176]]
        %v3503 = vstv %s3502
        %v3504 = vmul.f32 %v3503, %v3468
        %v3505 = vmul.f32 %v3503, %v3469
        %v3506 = vadd.f32 %v3428, %v3504
        %v3507 = vadd.f32 %v3429, %v3505
        %s3508 = sld [smem:[#allocation7 + $0x177]]
        %v3509 = vstv %s3508
        %v3510 = vmul.f32 %v3509, %v3470
        %v3511 = vmul.f32 %v3509, %v3471
        %v3512 = vadd.f32 %v3434, %v3510
        %v3513 = vadd.f32 %v3435, %v3511
        %s3514 = sld [smem:[#allocation7 + $0x178]]
        %v3515 = vstv %s3514
        %v3516 = vmul.f32 %v3515, %v3470
        %v3517 = vmul.f32 %v3515, %v3471
        %v3518 = vadd.f32 %v3440, %v3516
        %v3519 = vadd.f32 %v3441, %v3517
        %s3520 = sld [smem:[#allocation7 + $0x179]]
        %v3521 = vstv %s3520
        %v3522 = vmul.f32 %v3521, %v3470
        %v3523 = vmul.f32 %v3521, %v3471
        %v3524 = vadd.f32 %v3446, %v3522
        %v3525 = vadd.f32 %v3447, %v3523
        %3526 = vrot.lane.b32.xlu0 %v3078, 113
        %v3527 = vpop.permute.xlu0 %3526
        %3528 = vrot.lane.b32.xlu0 %v3088, 113
        %v3529 = vpop.permute.xlu0 %3528
        %3530 = vrot.lane.b32.xlu0 %v3098, 113
        %v3531 = vpop.permute.xlu0 %3530
        %3532 = vrot.lane.b32.xlu0 %v3079, 113
        %v3533 = vpop.permute.xlu0 %3532
        %3534 = vrot.lane.b32.xlu0 %v3089, 113
        %v3535 = vpop.permute.xlu0 %3534
        %3536 = vrot.lane.b32.xlu0 %v3099, 113
        %v3537 = vpop.permute.xlu0 %3536
        %v3538 = vsel %vm751, %v3527, %v3533
        %v3539 = vsel %vm751, %v3529, %v3535
        %v3540 = vsel %vm751, %v3531, %v3537
        %v3541 = vsel %vm751, %v3533, %v3527
        %v3542 = vsel %vm751, %v3535, %v3529
        %v3543 = vsel %vm751, %v3537, %v3531
        %v3544 = vmul.f32 %v3538, %v761
        %v3545 = vmul.f32 %v3541, %v765
        %v3546 = vmul.f32 %v3539, %v761
        %v3547 = vmul.f32 %v3542, %v765
        %v3548 = vmul.f32 %v3540, %v761
        %v3549 = vmul.f32 %v3543, %v765
        %s3550 = sld [smem:[#allocation7 + $0x17a]]
        %v3551 = vstv %s3550
        %v3552 = vmul.f32 %v3551, %v3544
        %v3553 = vmul.f32 %v3551, %v3545
        %v3554 = vadd.f32 %v3476, %v3552
        %v3555 = vadd.f32 %v3477, %v3553
        %s3556 = sld [smem:[#allocation7 + $0x17b]]
        %v3557 = vstv %s3556
        %v3558 = vmul.f32 %v3557, %v3544
        %v3559 = vmul.f32 %v3557, %v3545
        %v3560 = vadd.f32 %v3482, %v3558
        %v3561 = vadd.f32 %v3483, %v3559
        %s3562 = sld [smem:[#allocation7 + $0x17c]]
        %v3563 = vstv %s3562
        %v3564 = vmul.f32 %v3563, %v3544
        %v3565 = vmul.f32 %v3563, %v3545
        %v3566 = vadd.f32 %v3488, %v3564
        %v3567 = vadd.f32 %v3489, %v3565
        %s3568 = sld [smem:[#allocation7 + $0x17d]]
        %v3569 = vstv %s3568
        %v3570 = vmul.f32 %v3569, %v3546
        %v3571 = vmul.f32 %v3569, %v3547
        %v3572 = vadd.f32 %v3494, %v3570
        %v3573 = vadd.f32 %v3495, %v3571
        %s3574 = sld [smem:[#allocation7 + $0x17e]]
        %v3575 = vstv %s3574
        %v3576 = vmul.f32 %v3575, %v3546
        %v3577 = vmul.f32 %v3575, %v3547
        %v3578 = vadd.f32 %v3500, %v3576
        %v3579 = vadd.f32 %v3501, %v3577
        %s3580 = sld [smem:[#allocation7 + $0x17f]]
        %v3581 = vstv %s3580
        %v3582 = vmul.f32 %v3581, %v3546
        %v3583 = vmul.f32 %v3581, %v3547
        %v3584 = vadd.f32 %v3506, %v3582
        %v3585 = vadd.f32 %v3507, %v3583
        %s3586 = sld [smem:[#allocation7 + $0x180]]
        %v3587 = vstv %s3586
        %v3588 = vmul.f32 %v3587, %v3548
        %v3589 = vmul.f32 %v3587, %v3549
        %v3590 = vadd.f32 %v3512, %v3588
        %v3591 = vadd.f32 %v3513, %v3589
        %s3592 = sld [smem:[#allocation7 + $0x181]]
        %v3593 = vstv %s3592
        %v3594 = vmul.f32 %v3593, %v3548
        %v3595 = vmul.f32 %v3593, %v3549
        %v3596 = vadd.f32 %v3518, %v3594
        %v3597 = vadd.f32 %v3519, %v3595
        %s3598 = sld [smem:[#allocation7 + $0x182]]
        %v3599 = vstv %s3598
        %v3600 = vmul.f32 %v3599, %v3548
        %v3601 = vmul.f32 %v3599, %v3549
        %v3602 = vadd.f32 %v3524, %v3600
        %v3603 = vadd.f32 %v3525, %v3601
        %3604 = vrot.lane.b32.xlu0 %v3078, 112
        %v3605 = vpop.permute.xlu0 %3604
        %3606 = vrot.lane.b32.xlu0 %v3088, 112
        %v3607 = vpop.permute.xlu0 %3606
        %3608 = vrot.lane.b32.xlu0 %v3098, 112
        %v3609 = vpop.permute.xlu0 %3608
        %3610 = vrot.lane.b32.xlu0 %v3079, 112
        %v3611 = vpop.permute.xlu0 %3610
        %3612 = vrot.lane.b32.xlu0 %v3089, 112
        %v3613 = vpop.permute.xlu0 %3612
        %3614 = vrot.lane.b32.xlu0 %v3099, 112
        %v3615 = vpop.permute.xlu0 %3614
        %v3616 = vsel %vm838, %v3605, %v3611
        %v3617 = vsel %vm838, %v3607, %v3613
        %v3618 = vsel %vm838, %v3609, %v3615
        %v3619 = vsel %vm838, %v3611, %v3605
        %v3620 = vsel %vm838, %v3613, %v3607
        %v3621 = vsel %vm838, %v3615, %v3609
        %v3622 = vmul.f32 %v3616, %v848
        %v3623 = vmul.f32 %v3619, %v852
        %v3624 = vmul.f32 %v3617, %v848
        %v3625 = vmul.f32 %v3620, %v852
        %v3626 = vmul.f32 %v3618, %v848
        %v3627 = vmul.f32 %v3621, %v852
        %s3628 = sld [smem:[#allocation7 + $0x183]]
        %v3629 = vstv %s3628
        %v3630 = vmul.f32 %v3629, %v3622
        %v3631 = vmul.f32 %v3629, %v3623
        %v3632 = vadd.f32 %v3554, %v3630
        %v3633 = vadd.f32 %v3555, %v3631
        %s3634 = sld [smem:[#allocation7 + $0x184]]
        %v3635 = vstv %s3634
        %v3636 = vmul.f32 %v3635, %v3622
        %v3637 = vmul.f32 %v3635, %v3623
        %v3638 = vadd.f32 %v3560, %v3636
        %v3639 = vadd.f32 %v3561, %v3637
        %s3640 = sld [smem:[#allocation7 + $0x185]]
        %v3641 = vstv %s3640
        %v3642 = vmul.f32 %v3641, %v3622
        %v3643 = vmul.f32 %v3641, %v3623
        %v3644 = vadd.f32 %v3566, %v3642
        %v3645 = vadd.f32 %v3567, %v3643
        %s3646 = sld [smem:[#allocation7 + $0x186]]
        %v3647 = vstv %s3646
        %v3648 = vmul.f32 %v3647, %v3624
        %v3649 = vmul.f32 %v3647, %v3625
        %v3650 = vadd.f32 %v3572, %v3648
        %v3651 = vadd.f32 %v3573, %v3649
        %s3652 = sld [smem:[#allocation7 + $0x187]]
        %v3653 = vstv %s3652
        %v3654 = vmul.f32 %v3653, %v3624
        %v3655 = vmul.f32 %v3653, %v3625
        %v3656 = vadd.f32 %v3578, %v3654
        %v3657 = vadd.f32 %v3579, %v3655
        %s3658 = sld [smem:[#allocation7 + $0x188]]
        %v3659 = vstv %s3658
        %v3660 = vmul.f32 %v3659, %v3624
        %v3661 = vmul.f32 %v3659, %v3625
        %v3662 = vadd.f32 %v3584, %v3660
        %v3663 = vadd.f32 %v3585, %v3661
        %s3664 = sld [smem:[#allocation7 + $0x189]]
        %v3665 = vstv %s3664
        %v3666 = vmul.f32 %v3665, %v3626
        %v3667 = vmul.f32 %v3665, %v3627
        %v3668 = vadd.f32 %v3590, %v3666
        %v3669 = vadd.f32 %v3591, %v3667
        %s3670 = sld [smem:[#allocation7 + $0x18a]]
        %v3671 = vstv %s3670
        %v3672 = vmul.f32 %v3671, %v3626
        %v3673 = vmul.f32 %v3671, %v3627
        %v3674 = vadd.f32 %v3596, %v3672
        %v3675 = vadd.f32 %v3597, %v3673
        %s3676 = sld [smem:[#allocation7 + $0x18b]]
        %v3677 = vstv %s3676
        %v3678 = vmul.f32 %v3677, %v3626
        %v3679 = vmul.f32 %v3677, %v3627
        %v3680 = vadd.f32 %v3602, %v3678
        %v3681 = vadd.f32 %v3603, %v3679
        %3682 = vrot.lane.b32.xlu0 %v3078, 111
        %v3683 = vpop.permute.xlu0 %3682
        %3684 = vrot.lane.b32.xlu0 %v3088, 111
        %v3685 = vpop.permute.xlu0 %3684
        %3686 = vrot.lane.b32.xlu0 %v3098, 111
        %v3687 = vpop.permute.xlu0 %3686
        %3688 = vrot.lane.b32.xlu0 %v3079, 111
        %v3689 = vpop.permute.xlu0 %3688
        %3690 = vrot.lane.b32.xlu0 %v3089, 111
        %v3691 = vpop.permute.xlu0 %3690
        %3692 = vrot.lane.b32.xlu0 %v3099, 111
        %v3693 = vpop.permute.xlu0 %3692
        %v3694 = vsel %vm925, %v3683, %v3689
        %v3695 = vsel %vm925, %v3685, %v3691
        %v3696 = vsel %vm925, %v3687, %v3693
        %v3697 = vsel %vm925, %v3689, %v3683
        %v3698 = vsel %vm925, %v3691, %v3685
        %v3699 = vsel %vm925, %v3693, %v3687
        %v3700 = vmul.f32 %v3694, %v935
        %v3701 = vmul.f32 %v3697, %v939
        %v3702 = vmul.f32 %v3695, %v935
        %v3703 = vmul.f32 %v3698, %v939
        %v3704 = vmul.f32 %v3696, %v935
        %v3705 = vmul.f32 %v3699, %v939
        %s3706 = sld [smem:[#allocation7 + $0x18c]]
        %v3707 = vstv %s3706
        %v3708 = vmul.f32 %v3707, %v3700
        %v3709 = vmul.f32 %v3707, %v3701
        %v3710 = vadd.f32 %v3632, %v3708
        %v3711 = vadd.f32 %v3633, %v3709
        %s3712 = sld [smem:[#allocation7 + $0x18d]]
        %v3713 = vstv %s3712
        %v3714 = vmul.f32 %v3713, %v3700
        %v3715 = vmul.f32 %v3713, %v3701
        %v3716 = vadd.f32 %v3638, %v3714
        %v3717 = vadd.f32 %v3639, %v3715
        %s3718 = sld [smem:[#allocation7 + $0x18e]]
        %v3719 = vstv %s3718
        %v3720 = vmul.f32 %v3719, %v3700
        %v3721 = vmul.f32 %v3719, %v3701
        %v3722 = vadd.f32 %v3644, %v3720
        %v3723 = vadd.f32 %v3645, %v3721
        %s3724 = sld [smem:[#allocation7 + $0x18f]]
        %v3725 = vstv %s3724
        %v3726 = vmul.f32 %v3725, %v3702
        %v3727 = vmul.f32 %v3725, %v3703
        %v3728 = vadd.f32 %v3650, %v3726
        %v3729 = vadd.f32 %v3651, %v3727
        %s3730 = sld [smem:[#allocation7 + $0x190]]
        %v3731 = vstv %s3730
        %v3732 = vmul.f32 %v3731, %v3702
        %v3733 = vmul.f32 %v3731, %v3703
        %v3734 = vadd.f32 %v3656, %v3732
        %v3735 = vadd.f32 %v3657, %v3733
        %s3736 = sld [smem:[#allocation7 + $0x191]]
        %v3737 = vstv %s3736
        %v3738 = vmul.f32 %v3737, %v3702
        %v3739 = vmul.f32 %v3737, %v3703
        %v3740 = vadd.f32 %v3662, %v3738
        %v3741 = vadd.f32 %v3663, %v3739
        %s3742 = sld [smem:[#allocation7 + $0x192]]
        %v3743 = vstv %s3742
        %v3744 = vmul.f32 %v3743, %v3704
        %v3745 = vmul.f32 %v3743, %v3705
        %v3746 = vadd.f32 %v3668, %v3744
        %v3747 = vadd.f32 %v3669, %v3745
        %s3748 = sld [smem:[#allocation7 + $0x193]]
        %v3749 = vstv %s3748
        %v3750 = vmul.f32 %v3749, %v3704
        %v3751 = vmul.f32 %v3749, %v3705
        %v3752 = vadd.f32 %v3674, %v3750
        %v3753 = vadd.f32 %v3675, %v3751
        %s3754 = sld [smem:[#allocation7 + $0x194]]
        %v3755 = vstv %s3754
        %v3756 = vmul.f32 %v3755, %v3704
        %v3757 = vmul.f32 %v3755, %v3705
        %v3758 = vadd.f32 %v3680, %v3756
        %v3759 = vadd.f32 %v3681, %v3757
        %s3760 = sld [smem:[#allocation8 + $0xc]]
        %v3761 = vadd.f32 %v3710, %v3728
        %v3762 = vadd.f32 %v3711, %v3729
        %v3763 = vstv %s3760
        %v3764 = vadd.f32 %v3746, %v3763
        %v3765 = vadd.f32 %v3747, %v3763
        %v3766 = vadd.f32 %v3761, %v3764
        %v3767 = vadd.f32 %v3762, %v3765
        %v3768 = vmax.f32 %v3766, 0.0
        %v3769 = vmax.f32 %v3767, 0.0
        %s3770 = sld [smem:[#allocation8 + $0xd]]
        %v3771 = vadd.f32 %v3716, %v3734
        %v3772 = vadd.f32 %v3717, %v3735
        %v3773 = vstv %s3770
        %v3774 = vadd.f32 %v3752, %v3773
        %v3775 = vadd.f32 %v3753, %v3773
        %v3776 = vadd.f32 %v3771, %v3774
        %v3777 = vadd.f32 %v3772, %v3775
        %v3778 = vmax.f32 %v3776, 0.0
        %v3779 = vmax.f32 %v3777, 0.0
        %s3780 = sld [smem:[#allocation8 + $0xe]]
        %v3781 = vadd.f32 %v3722, %v3740
        %v3782 = vadd.f32 %v3723, %v3741
        %v3783 = vstv %s3780
        %v3784 = vadd.f32 %v3758, %v3783
        %v3785 = vadd.f32 %v3759, %v3783
        %v3786 = vadd.f32 %v3781, %v3784
        %v3787 = vadd.f32 %v3782, %v3785
        %v3788 = vmax.f32 %v3786, 0.0
        %v3789 = vmax.f32 %v3787, 0.0
        %3790 = vst [vmem:[%s255] sm:$0xff] %v3768
        %3791 = vst [vmem:[%s255 + $0x8] sm:$0xff] %v3769
        %3792 = vst [vmem:[%s255 + $0x10] sm:$0xff] %v3778
        %3793 = vst [vmem:[%s255 + $0x18] sm:$0xff] %v3779
        %3794 = vst [vmem:[%s255 + $0x20] sm:$0xff] %v3788
        %3795 = vst [vmem:[%s255 + $0x28] sm:$0xff] %v3789
        %s3796 = sand.u32 %s121, 1
        %s3797 = scalar_lea.sflag [#allocation4], %s3796
        %s3798 = sand.u32 %s121, 1
        %s3799 = smul.addr %s3798, 48
        %s3800 = scalar_lea.vmem [#allocation11], %s3799
        // Predicated region
        $region53: #{tpu_custom_call.1} parent=35 // pred_check
          %p3801 = pneg %p131
        $region54: #{tpu_custom_call.1} parent=35 // pred_check_branch
          %3803 = sbr.rel (%p3801) target = $region56
        $region55: #{tpu_custom_call.1} parent=35 // pred_region
          %s3805 = ssub.s32 768, 768
          %3806 = vsyncadd %s3797, %s3805
          %s3807 = smul.addr %s24, 6
          %s3808 = smul.addr %s3807, 128
          %s3809 = scalar_lea.hbm %s4, %s3808
          %s3810 = sshll.u32 %s3800, 4
          %s3811 = int_to_ptr.vmem [resolvable:$true] %s3810
          %3816 = dma.vmem_to_hbm [thread:$0]  %s3811, 768, %s3809, %s3797, 256, 256, 16
        $region56: #{tpu_custom_call.1} parent=35 // pred_fallthru
          _
      $region36: #{tpu_custom_call.1} parent=5 // pred_fallthru
        _
      %p3817 = scmp.le.s32.totalorder 2, %s19
      // Predicated region
      $region57: #{tpu_custom_call.1} parent=5 // pred_check
        %p3818 = pneg %p3817
      $region58: #{tpu_custom_call.1} parent=5 // pred_check_branch
        %3820 = sbr.rel (%p3818) target = $region60
      $region59: #{tpu_custom_call.1} parent=5 // pred_region
        %s3821 = ssub.s32 %s19, 2
        // Predicated region
        $region61: #{tpu_custom_call.1} parent=59 // pred_check
          %p3822 = pneg %p137
        $region62: #{tpu_custom_call.1} parent=59 // pred_check_branch
          %3824 = sbr.rel (%p3822) target = $region64
        $region63: #{tpu_custom_call.1} parent=59 // pred_region
          %s3825 = sand.u32 %s122, 1
          %s3826 = scalar_lea.sflag [#allocation4], %s3825
          %s3827 = sand.u32 %s122, 1
          %s3828 = smul.addr %s3827, 48
          %s3829 = scalar_lea.vmem [#allocation11], %s3828
          %3830 = dma.done %s3826, 768
        $region64: #{tpu_custom_call.1} parent=59 // pred_fallthru
          _
      $region60: #{tpu_custom_call.1} parent=5 // pred_fallthru
        _
    $region6: #{tpu_custom_call.1} parent=1 // loop_footer
      %s23 = sadd.s32 1, %s19
    $region7: #{tpu_custom_call.1} parent=1 // loop_footer_branch
      %18 = sbr.rel target = $region3
    $region8: #{tpu_custom_call.1} parent=1 // loop_exit
      _
    %3831 = vsyncpa [#allocation3], 1
    %s3832 = scalar_lea.sflag [#allocation3], 1
    %3833 = vsyncpa %s3832, 1
    %3834 = vsyncpa [#allocation10], 1
    %3835 = vsyncpa [#allocation4], 1
    %s3836 = scalar_lea.sflag [#allocation4], 1
    %3837 = vsyncpa %s3836, 1
    %3838 = vsyncpa [#allocation5], 1
    %s3839 = scalar_lea.sflag [#allocation5], 1
    %3840 = vsyncpa %s3839, 1
    %3841 = vsyncpa [#allocation6], 1
    %s3842 = scalar_lea.sflag [#allocation6], 1
    %3843 = vsyncpa %s3842, 1

</llo_original>
